<compile_context>
chip_gen: v7x
topology: tpu7x:2x2x1
jax: 0.10.0
libtpu: 0.0.40
codegen_flags: <defaults>
</compile_context>

<pallas_src>
import functools

import jax
import jax.numpy as jnp
from jax.experimental import pallas as pl
from jax.experimental.pallas import tpu as pltpu

# ----------------------------- configuration (scaled down) -----------------------------
NPOINT = 128          # module default 1024, scaled down
NUM_CLS = 40
SOR_K = 2
SOR_ALPHA = 1.1
PADDING_SCALE = 0.9
INIT_SIGMA = 0.01

H1, H2, H3 = 64, 64, 128   # per-point MLP widths (scaled-down PointNet)
HF = 64                    # classifier hidden width

EPS = 1e-12
VMEM_LIMIT = 32 * 1024 * 1024   # explicit scoped-VMEM budget (safe on v5e/v6e/v7x)


def _clouds_per_step(batch, max_pack):
    """Pack clouds per grid step (amortize per-step overhead, widen the matmul M),
    but keep >= 2 grid steps when possible so v7x's two TensorCores both get work."""
    for nb in range(max_pack, 1, -1):
        if batch % nb == 0 and batch // nb >= 2:
            return nb
    return 1


# ----------------------------- Kernel 1: SOR k-NN stats + sort key -----------------------------
def _sor_sort_key_kernel(x_ref, out_ref, *, nb):
    # x_ref: [nb, 3, N] lane-dense clouds; out_ref: [nb, 1, N] sort key (smaller = better).
    big = jnp.float32(1e10)
    # Short unrolled loop over the packed clouds (nb is 1 or 2).  At module-default N >= 1024
    # on v7x this should become a column-tiled loop to keep live [N,N] temporaries small.
    for c in range(nb):
        x = x_ref[c].astype(jnp.float32)                                   # [3, N]
        n = x.shape[1]

        # Pairwise squared distances from one MXU matmul.  Both squared-norm vectors come
        # from tiny ones-vector matmuls (MXU is idle anyway) instead of the old diagonal
        # extraction (two [N,N] iotas + compare + select + lane reduce).  This also makes
        # d exactly symmetric and the self-distance exactly 0 after the clamp.
        inner = jax.lax.dot_general(x, x, (((0,), (0,)), ((), ())),
                                    preferred_element_type=jnp.float32)   # [N, N] = x^T x
        xx = x * x
        sq_col = jax.lax.dot_general(xx, jnp.ones((3, 1), jnp.float32),
                                     (((0,), (0,)), ((), ())),
                                     preferred_element_type=jnp.float32)  # [N, 1]
        sq_row = jax.lax.dot_general(jnp.ones((1, 3), jnp.float32), xx,
                                     (((1,), (0,)), ((), ())),
                                     preferred_element_type=jnp.float32)  # [1, N]
        d = jnp.maximum(sq_col + sq_row - 2.0 * inner, 0.0)               # [N, N], d[i,i] == 0

        # Mean of the SOR_K smallest neighbour distances per point.  Min over the sublane
        # axis keeps the running result lane-dense [1, N].  The self-distance is exactly 0,
        # so run SOR_K+1 extractions and discard the first instead of masking the diagonal;
        # the mask update after the last extraction is dead and skipped.  Exact duplicates
        # tie-mask together (one extraction may consume several zero-distance neighbours)
        # -- negligible for float point clouds.
        acc = jnp.zeros((1, n), jnp.float32)
        for t in range(SOR_K + 1):
            m = jnp.min(d, axis=0, keepdims=True)                          # [1, N]
            if t > 0:
                acc = acc + m
            if t < SOR_K:
                d = jnp.where(d <= m, big, d)
        knn_mean = acc / jnp.float32(SOR_K)

        # SOR statistics in-kernel (knn_mean already resident in VMEM): unbiased std to
        # match torch.std(dim=1).  Outliers get a huge additive penalty so the host-side
        # top-NPOINT selection always prefers inliers (fixed-size stand-in for the ragged
        # outlier removal).
        mu = jnp.mean(knn_mean)
        var = jnp.sum((knn_mean - mu) ** 2) / jnp.float32(n - 1)
        thr = mu + jnp.float32(SOR_ALPHA) * jnp.sqrt(var)
        out_ref[c] = knn_mean + jnp.where(knn_mean > thr, jnp.float32(1e9), 0.0)


def sor_sort_key(xc):
    """xc: [B, 3, N] -> sort key [B, N] (smaller = better point)."""
    B, C, N = xc.shape
    nb = _clouds_per_step(B, 2)
    out = pl.pallas_call(
        functools.partial(_sor_sort_key_kernel, nb=nb),
        out_shape=jax.ShapeDtypeStruct((B, 1, N), jnp.float32),
        grid=(B // nb,),
        in_specs=[pl.BlockSpec((nb, C, N), lambda g: (g, 0, 0))],
        out_specs=pl.BlockSpec((nb, 1, N), lambda g: (g, 0, 0)),
        compiler_params=pltpu.CompilerParams(
            dimension_semantics=("parallel",),
            vmem_limit_bytes=VMEM_LIMIT),
    )(xc)
    return out[:, 0, :]


# --------------- Kernel 2: fused normalize_cube + jitter/clamp + normalize_batch_pc + PointNet ---------------
def _purify_cls_kernel(sel_ref, res_ref, noise_ref,
                       w1_ref, b1_ref, w2_ref, b2_ref, w3_ref, b3_ref,
                       wf1_ref, bf1_ref, wf2_ref, bf2_ref,
                       logits_ref, gfeat_ref, *, padding_scale):
    # Point-major blocks: sel/res/noise [nb, K, 3].  Per-cloud stats are sublane reductions,
    # the max pool is a free leading-dim reshape + sublane reduce, and the FC head / outputs
    # are row-major, so nothing in the kernel needs a transpose or lane relayout.
    sel = sel_ref[...].astype(jnp.float32)        # [nb, K, 3] SOR-selected points (raw coords)
    res = res_ref[...].astype(jnp.float32)        # [nb, K, 3] random resample (raw coords)
    noise = noise_ref[...].astype(jnp.float32)    # [nb, K, 3] gaussian jitter
    nb, k, _ = sel.shape

    # ---- normalize_cube statistics from the full SOR-selected cloud ----
    center = jnp.mean(sel, axis=1, keepdims=True)                           # [nb, 1, 3]
    ext = (jnp.max(sel, axis=1, keepdims=True)
           - jnp.min(sel, axis=1, keepdims=True))                           # [nb, 1, 3]
    scale = jnp.max(ext, axis=2, keepdims=True)                             # [nb, 1, 1]
    factor = jnp.float32(padding_scale) / jnp.maximum(scale, EPS)           # eps: degenerate clouds

    # ---- init_points: the random resample gather commutes with this per-point affine, so it
    #      was done host-side on raw coords; apply the affine here, then jitter + clamp to the
    #      padded unit cube. ----
    lo = -0.5 * padding_scale
    hi = 0.5 * padding_scale
    pts = jnp.clip((res - center) * factor + noise, lo, hi)                 # [nb, K, 3]

    # ---- normalize_batch_pc ----
    centroid = jnp.mean(pts, axis=1, keepdims=True)                         # [nb, 1, 3]
    p = pts - centroid
    r2 = jnp.sum(p * p, axis=2, keepdims=True)                              # [nb, K, 1]
    max_r = jnp.sqrt(jnp.max(r2, axis=1, keepdims=True))                    # [nb, 1, 1]
    p = p / jnp.maximum(max_r, EPS)

    # ---- PointNet per-point MLP on the merged [nb*K, 3] block (one matmul chain per step) ----
    pm = p.reshape(nb * k, 3)                                               # leading-dim merge: free
    h = jnp.maximum(jnp.dot(pm, w1_ref[...], preferred_element_type=jnp.float32) + b1_ref[...], 0.0)
    h = jnp.maximum(jnp.dot(h, w2_ref[...], preferred_element_type=jnp.float32) + b2_ref[...], 0.0)
    h = jnp.maximum(jnp.dot(h, w3_ref[...], preferred_element_type=jnp.float32) + b3_ref[...], 0.0)

    # ---- per-cloud global max pool (leading-dim split is free; sublane reduce) ----
    g = jnp.max(h.reshape(nb, k, h.shape[-1]), axis=1)                      # [nb, H3]

    # ---- row-major FC head: lane-dense [nb, H3] / [nb, NUM_CLS] results and stores ----
    f = jnp.maximum(jnp.dot(g, wf1_ref[...], preferred_element_type=jnp.float32) + bf1_ref[...], 0.0)
    logits = jnp.dot(f, wf2_ref[...], preferred_element_type=jnp.float32) + bf2_ref[...]

    logits_ref[0] = logits                                                  # [nb, NUM_CLS]
    gfeat_ref[0] = g                                                        # [nb, H3]


def purify_and_classify(sel, res, noise, params):
    """sel/res/noise: [B, K, 3] point-major -> (logits [B, NUM_CLS], global feature [B, H3])."""
    B, K, _ = sel.shape
    nb = _clouds_per_step(B, 4)
    G = B // nb

    def const_spec(a):
        nd = a.ndim
        # constant index map: block fetched once and revisited across the B//nb grid steps
        return pl.BlockSpec(a.shape, lambda g: (0,) * nd)

    pc_spec = pl.BlockSpec((nb, K, 3), lambda g: (g, 0, 0))

    logits, gfeat = pl.pallas_call(
        functools.partial(_purify_cls_kernel, padding_scale=PADDING_SCALE),
        out_shape=(jax.ShapeDtypeStruct((G, nb, NUM_CLS), jnp.float32),
                   jax.ShapeDtypeStruct((G, nb, H3), jnp.float32)),
        grid=(G,),
        in_specs=[pc_spec, pc_spec, pc_spec] + [const_spec(a) for a in params],
        out_specs=[pl.BlockSpec((1, nb, NUM_CLS), lambda g: (g, 0, 0)),
                   pl.BlockSpec((1, nb, H3), lambda g: (g, 0, 0))],
        compiler_params=pltpu.CompilerParams(
            dimension_semantics=("parallel",),
            vmem_limit_bytes=VMEM_LIMIT),
    )(sel, res, noise, *params)
    return logits.reshape(B, NUM_CLS), gfeat.reshape(B, H3)


# ----------------------------- parameter init (deterministic, synthetic) -----------------------------
def init_pnet_params(key):
    ks = jax.random.split(key, 5)

    def lin(k, fan_in, fan_out):
        # row-major storage matching the point-major kernel: weight [in, out], bias [1, out]
        w = jax.random.normal(k, (fan_in, fan_out), jnp.float32) / jnp.sqrt(jnp.float32(fan_in))
        b = jnp.zeros((1, fan_out), jnp.float32)
        return w, b

    w1, b1 = lin(ks[0], 3, H1)
    w2, b2 = lin(ks[1], H1, H2)
    w3, b3 = lin(ks[2], H2, H3)
    wf1, bf1 = lin(ks[3], H3, HF)
    wf2, bf2 = lin(ks[4], HF, NUM_CLS)
    return (w1, b1, w2, b2, w3, b3, wf1, bf1, wf2, bf2)


# ----------------------------- full forward pipeline -----------------------------
def if_defense_forward(x, pnet_params, key):
    # x: [B, N, 3] (module convention, point-major).  Only the SOR kernel wants the
    # channel-first lane-dense [B, 3, N] layout (absorbs the PyTorch .transpose(2, 1));
    # the purify+classify kernel consumes point-major blocks directly.
    B, N, _ = x.shape
    x = x.astype(jnp.float32)
    xc = jnp.transpose(x, (0, 2, 1))                               # [B, 3, N]

    # ---- 1) SOR defense: k-NN mean distance, threshold and sort key in one Pallas call ----
    sort_key = sor_sort_key(xc)                                    # [B, N], smaller = better
    # Ragged outlier removal -> fixed size: keep the NPOINT best points (top_k instead of a
    # full argsort; outliers carry a +1e9 penalty so inliers are always preferred).
    _, sel_idx = jax.lax.top_k(-sort_key, NPOINT)                  # [B, NPOINT]

    # TODO(synk): ConvONet encode_inputs() + 200-step Adam occupancy optimization
    # (optimize_points) require the conv_onet YAML-defined architecture; skipped.

    # ---- init_points glue: compose the random resample gather with the SOR-selection gather
    #      (one cheap int gather), so both big point gathers pull straight from x. ----
    k1, k2 = jax.random.split(key)
    ridx = jax.random.randint(k1, (B, NPOINT), 0, NPOINT)
    comp_idx = jnp.take_along_axis(sel_idx, ridx, axis=1)          # [B, NPOINT]
    sel = jnp.take_along_axis(
        x, jnp.broadcast_to(sel_idx[:, :, None], (B, NPOINT, 3)), axis=1)    # [B, NPOINT, 3]
    res = jnp.take_along_axis(
        x, jnp.broadcast_to(comp_idx[:, :, None], (B, NPOINT, 3)), axis=1)   # [B, NPOINT, 3]
    noise = jax.random.normal(k2, (B, NPOINT, 3), jnp.float32) * INIT_SIGMA

    # ---- 2+3+4+5) fused normalize_cube + jitter/clamp + normalize_batch_pc + PointNet ----
    logits, gfeat = purify_and_classify(sel, res, noise, pnet_params)
    return logits, gfeat                                           # [B, NUM_CLS], [B, H3]


if __name__ == "__main__":
    key = jax.random.PRNGKey(0)
    kx, kp, kf = jax.random.split(key, 3)

    B, N = 4, 256
    x = jax.random.normal(kx, (B, N, 3), jnp.float32) * 0.3        # synthetic (adv) point clouds
    params = init_pnet_params(kp)

    fwd = jax.jit(if_defense_forward)
    logits, gfeat = fwd(x, params, kf)
    jax.block_until_ready((logits, gfeat))

    assert logits.shape == (B, NUM_CLS) and gfeat.shape == (B, H3)
    assert bool(jnp.all(jnp.isfinite(logits))) and bool(jnp.all(jnp.isfinite(gfeat)))
    print("KERNEL_OK")
</pallas_src>

<mosaic_0001>
module attributes {stable_mosaic.version = 11 : i64} {
  func.func private @main(%arg0: i32) attributes {dimension_semantics = [#tpu.dimension_semantics<core_parallel>], iteration_bounds = array<i64: 2>, tpu.core_type = #tpu.core_type<sc_scalar_subcore>, window_params = []} {
    return
  }
}

module attributes {stable_mosaic.version = 11 : i64} {
  func.func private @main(%arg0: i32) attributes {dimension_semantics = [#tpu.dimension_semantics<core_parallel>], iteration_bounds = array<i64: 2>, tpu.core_type = #tpu.core_type<sc_scalar_subcore>, window_params = []} {
    return
  }
}

module attributes {stable_mosaic.version = 11 : i64} {
  func.func @_sor_sort_key_kernel(%arg0: i32, %arg1: memref<2x3x256xf32, #tpu.memory_space<vmem>>, %arg2: memref<2x1x256xf32, #tpu.memory_space<vmem>>) attributes {dimension_semantics = [#tpu.dimension_semantics<parallel>], iteration_bounds = array<i64: 2>, scalar_prefetch = 0 : i64, scratch_operands = 0 : i64, tpu.core_type = #tpu.core_type<tc>, window_params = [{transform_indices = @transform_0, window_bounds = array<i64: 2, 3, 256>}, {transform_indices = @transform_1, window_bounds = array<i64: 2, 1, 256>}]} {
    %c0 = arith.constant 0 : index
    %c0_0 = arith.constant 0 : index
    %c0_1 = arith.constant 0 : index
    %0 = vector.load %arg1[%c0, %c0_0, %c0_1] : memref<2x3x256xf32, #tpu.memory_space<vmem>>, vector<1x3x256xf32>
    %1 = vector.shape_cast %0 : vector<1x3x256xf32> to vector<3x256xf32>
    %cst = arith.constant dense<0.000000e+00> : vector<256x256xf32>
    %2 = tpu.matmul %1, %1, %cst {dimension_numbers = #tpu.dot_dimension_numbers<[0], [0], [1], [1], [0, 1, 1, 1], [], []>} : vector<3x256xf32>, vector<3x256xf32>, vector<256x256xf32> -> vector<256x256xf32>
    %3 = arith.mulf %1, %1 : vector<3x256xf32>
    %cst_2 = arith.constant 1.000000e+00 : f32
    %4 = vector.broadcast %cst_2 : f32 to vector<3x1xf32>
    %cst_3 = arith.constant dense<0.000000e+00> : vector<256x1xf32>
    %5 = tpu.matmul %3, %4, %cst_3 {dimension_numbers = #tpu.dot_dimension_numbers<[0], [0], [1], [1], [0, 1, 1, 1], [], []>} : vector<3x256xf32>, vector<3x1xf32>, vector<256x1xf32> -> vector<256x1xf32>
    %cst_4 = arith.constant 1.000000e+00 : f32
    %6 = vector.broadcast %cst_4 : f32 to vector<1x3xf32>
    %cst_5 = arith.constant dense<0.000000e+00> : vector<1x256xf32>
    %7 = tpu.matmul %6, %3, %cst_5 {dimension_numbers = #tpu.dot_dimension_numbers<[1], [0], [0], [1], [0, 0, 1, 1], [], []>} : vector<1x3xf32>, vector<3x256xf32>, vector<1x256xf32> -> vector<1x256xf32>
    %8 = vector.broadcast %5 : vector<256x1xf32> to vector<256x256xf32>
    %9 = vector.broadcast %7 : vector<1x256xf32> to vector<256x256xf32>
    %10 = arith.addf %8, %9 : vector<256x256xf32>
    %cst_6 = arith.constant 2.000000e+00 : f32
    %11 = vector.broadcast %cst_6 : f32 to vector<256x256xf32>
    %12 = arith.mulf %11, %2 : vector<256x256xf32>
    %13 = arith.subf %10, %12 : vector<256x256xf32>
    %cst_7 = arith.constant 0.000000e+00 : f32
    %14 = vector.broadcast %cst_7 : f32 to vector<256x256xf32>
    %15 = arith.maximumf %13, %14 : vector<256x256xf32>
    %cst_8 = arith.constant 0.000000e+00 : f32
    %16 = vector.broadcast %cst_8 : f32 to vector<1x256xf32>
    %cst_9 = arith.constant dense<0x7F800000> : vector<256xf32>
    %17 = vector.multi_reduction <minimumf>, %15, %cst_9 [0] : vector<256x256xf32> to vector<256xf32>
    %18 = vector.shape_cast %17 : vector<256xf32> to vector<1x256xf32>
    %19 = vector.broadcast %18 : vector<1x256xf32> to vector<256x256xf32>
    %20 = arith.cmpf ole, %15, %19 : vector<256x256xf32>
    %cst_10 = arith.constant 1.000000e+10 : f32
    %21 = vector.broadcast %cst_10 : f32 to vector<256x256xf32>
    %22 = arith.select %20, %21, %15 : vector<256x256xi1>, vector<256x256xf32>
    %cst_11 = arith.constant dense<0x7F800000> : vector<256xf32>
    %23 = vector.multi_reduction <minimumf>, %22, %cst_11 [0] : vector<256x256xf32> to vector<256xf32>
    %24 = vector.shape_cast %23 : vector<256xf32> to vector<1x256xf32>
    %25 = arith.addf %16, %24 : vector<1x256xf32>
    %26 = vector.broadcast %24 : vector<1x256xf32> to vector<256x256xf32>
    %27 = arith.cmpf ole, %22, %26 : vector<256x256xf32>
    %cst_12 = arith.constant 1.000000e+10 : f32
    %28 = vector.broadcast %cst_12 : f32 to vector<256x256xf32>
    %29 = arith.select %27, %28, %22 : vector<256x256xi1>, vector<256x256xf32>
    %cst_13 = arith.constant dense<0x7F800000> : vector<256xf32>
    %30 = vector.multi_reduction <minimumf>, %29, %cst_13 [0] : vector<256x256xf32> to vector<256xf32>
    %31 = vector.shape_cast %30 : vector<256xf32> to vector<1x256xf32>
    %32 = arith.addf %25, %31 : vector<1x256xf32>
    %cst_14 = arith.constant 2.000000e+00 : f32
    %33 = vector.broadcast %cst_14 : f32 to vector<1x256xf32>
    %34 = arith.divf %32, %33 : vector<1x256xf32>
    %35 = vector.shape_cast %34 : vector<1x256xf32> to vector<1x1x256xf32>
    %cst_15 = arith.constant dense<0.000000e+00> : vector<1xf32>
    %36 = vector.multi_reduction <add>, %35, %cst_15 [1, 2] : vector<1x1x256xf32> to vector<1xf32>
    %37 = vector.shape_cast %36 : vector<1xf32> to vector<1x1x1xf32>
    %38 = vector.extract %37[0, 0, 0] : f32 from vector<1x1x1xf32>
    %cst_16 = arith.constant 2.560000e+02 : f32
    %39 = arith.divf %38, %cst_16 : f32
    %40 = vector.broadcast %39 : f32 to vector<1x256xf32>
    %41 = arith.subf %34, %40 : vector<1x256xf32>
    %42 = arith.mulf %41, %41 : vector<1x256xf32>
    %43 = vector.shape_cast %42 : vector<1x256xf32> to vector<1x1x256xf32>
    %cst_17 = arith.constant dense<0.000000e+00> : vector<1xf32>
    %44 = vector.multi_reduction <add>, %43, %cst_17 [1, 2] : vector<1x1x256xf32> to vector<1xf32>
    %45 = vector.shape_cast %44 : vector<1xf32> to vector<1x1x1xf32>
    %46 = vector.extract %45[0, 0, 0] : f32 from vector<1x1x1xf32>
    %cst_18 = arith.constant 2.550000e+02 : f32
    %47 = arith.divf %46, %cst_18 : f32
    %48 = math.sqrt %47 : f32
    %cst_19 = arith.constant 1.100000e+00 : f32
    %49 = arith.mulf %cst_19, %48 : f32
    %50 = arith.addf %39, %49 : f32
    %51 = vector.broadcast %50 : f32 to vector<1x256xf32>
    %52 = arith.cmpf ogt, %34, %51 : vector<1x256xf32>
    %cst_20 = arith.constant 1.000000e+09 : f32
    %cst_21 = arith.constant 0.000000e+00 : f32
    %53 = vector.broadcast %cst_20 : f32 to vector<1x256xf32>
    %54 = vector.broadcast %cst_21 : f32 to vector<1x256xf32>
    %55 = arith.select %52, %53, %54 : vector<1x256xi1>, vector<1x256xf32>
    %56 = arith.addf %34, %55 : vector<1x256xf32>
    %c0_22 = arith.constant 0 : index
    %c0_23 = arith.constant 0 : index
    %c0_24 = arith.constant 0 : index
    %57 = vector.load %arg2[%c0_22, %c0_23, %c0_24] : memref<2x1x256xf32, #tpu.memory_space<vmem>>, vector<1x1x256xf32>
    %58 = vector.shape_cast %57 : vector<1x1x256xf32> to vector<1x256xf32>
    %59 = vector.shape_cast %56 : vector<1x256xf32> to vector<1x1x256xf32>
    tpu.vector_store %arg2[%c0_22, %c0_23, %c0_24], %59 {strides = array<i32>} : memref<2x1x256xf32, #tpu.memory_space<vmem>>, vector<1x1x256xf32>,
    %c1 = arith.constant 1 : index
    %c0_25 = arith.constant 0 : index
    %c0_26 = arith.constant 0 : index
    %60 = vector.load %arg1[%c1, %c0_25, %c0_26] : memref<2x3x256xf32, #tpu.memory_space<vmem>>, vector<1x3x256xf32>
    %61 = vector.shape_cast %60 : vector<1x3x256xf32> to vector<3x256xf32>
    %cst_27 = arith.constant dense<0.000000e+00> : vector<256x256xf32>
    %62 = tpu.matmul %61, %61, %cst_27 {dimension_numbers = #tpu.dot_dimension_numbers<[0], [0], [1], [1], [0, 1, 1, 1], [], []>} : vector<3x256xf32>, vector<3x256xf32>, vector<256x256xf32> -> vector<256x256xf32>
    %63 = arith.mulf %61, %61 : vector<3x256xf32>
    %cst_28 = arith.constant 1.000000e+00 : f32
    %64 = vector.broadcast %cst_28 : f32 to vector<3x1xf32>
    %cst_29 = arith.constant dense<0.000000e+00> : vector<256x1xf32>
    %65 = tpu.matmul %63, %64, %cst_29 {dimension_numbers = #tpu.dot_dimension_numbers<[0], [0], [1], [1], [0, 1, 1, 1], [], []>} : vector<3x256xf32>, vector<3x1xf32>, vector<256x1xf32> -> vector<256x1xf32>
    %cst_30 = arith.constant 1.000000e+00 : f32
    %66 = vector.broadcast %cst_30 : f32 to vector<1x3xf32>
    %cst_31 = arith.constant dense<0.000000e+00> : vector<1x256xf32>
    %67 = tpu.matmul %66, %63, %cst_31 {dimension_numbers = #tpu.dot_dimension_numbers<[1], [0], [0], [1], [0, 0, 1, 1], [], []>} : vector<1x3xf32>, vector<3x256xf32>, vector<1x256xf32> -> vector<1x256xf32>
    %68 = vector.broadcast %65 : vector<256x1xf32> to vector<256x256xf32>
    %69 = vector.broadcast %67 : vector<1x256xf32> to vector<256x256xf32>
    %70 = arith.addf %68, %69 : vector<256x256xf32>
    %cst_32 = arith.constant 2.000000e+00 : f32
    %71 = vector.broadcast %cst_32 : f32 to vector<256x256xf32>
    %72 = arith.mulf %71, %62 : vector<256x256xf32>
    %73 = arith.subf %70, %72 : vector<256x256xf32>
    %cst_33 = arith.constant 0.000000e+00 : f32
    %74 = vector.broadcast %cst_33 : f32 to vector<256x256xf32>
    %75 = arith.maximumf %73, %74 : vector<256x256xf32>
    %cst_34 = arith.constant 0.000000e+00 : f32
    %76 = vector.broadcast %cst_34 : f32 to vector<1x256xf32>
    %cst_35 = arith.constant dense<0x7F800000> : vector<256xf32>
    %77 = vector.multi_reduction <minimumf>, %75, %cst_35 [0] : vector<256x256xf32> to vector<256xf32>
    %78 = vector.shape_cast %77 : vector<256xf32> to vector<1x256xf32>
    %79 = vector.broadcast %78 : vector<1x256xf32> to vector<256x256xf32>
    %80 = arith.cmpf ole, %75, %79 : vector<256x256xf32>
    %cst_36 = arith.constant 1.000000e+10 : f32
    %81 = vector.broadcast %cst_36 : f32 to vector<256x256xf32>
    %82 = arith.select %80, %81, %75 : vector<256x256xi1>, vector<256x256xf32>
    %cst_37 = arith.constant dense<0x7F800000> : vector<256xf32>
    %83 = vector.multi_reduction <minimumf>, %82, %cst_37 [0] : vector<256x256xf32> to vector<256xf32>
    %84 = vector.shape_cast %83 : vector<256xf32> to vector<1x256xf32>
    %85 = arith.addf %76, %84 : vector<1x256xf32>
    %86 = vector.broadcast %84 : vector<1x256xf32> to vector<256x256xf32>
    %87 = arith.cmpf ole, %82, %86 : vector<256x256xf32>
    %cst_38 = arith.constant 1.000000e+10 : f32
    %88 = vector.broadcast %cst_38 : f32 to vector<256x256xf32>
    %89 = arith.select %87, %88, %82 : vector<256x256xi1>, vector<256x256xf32>
    %cst_39 = arith.constant dense<0x7F800000> : vector<256xf32>
    %90 = vector.multi_reduction <minimumf>, %89, %cst_39 [0] : vector<256x256xf32> to vector<256xf32>
    %91 = vector.shape_cast %90 : vector<256xf32> to vector<1x256xf32>
    %92 = arith.addf %85, %91 : vector<1x256xf32>
    %cst_40 = arith.constant 2.000000e+00 : f32
    %93 = vector.broadcast %cst_40 : f32 to vector<1x256xf32>
    %94 = arith.divf %92, %93 : vector<1x256xf32>
    %95 = vector.shape_cast %94 : vector<1x256xf32> to vector<1x1x256xf32>
    %cst_41 = arith.constant dense<0.000000e+00> : vector<1xf32>
    %96 = vector.multi_reduction <add>, %95, %cst_41 [1, 2] : vector<1x1x256xf32> to vector<1xf32>
    %97 = vector.shape_cast %96 : vector<1xf32> to vector<1x1x1xf32>
    %98 = vector.extract %97[0, 0, 0] : f32 from vector<1x1x1xf32>
    %cst_42 = arith.constant 2.560000e+02 : f32
    %99 = arith.divf %98, %cst_42 : f32
    %100 = vector.broadcast %99 : f32 to vector<1x256xf32>
    %101 = arith.subf %94, %100 : vector<1x256xf32>
    %102 = arith.mulf %101, %101 : vector<1x256xf32>
    %103 = vector.shape_cast %102 : vector<1x256xf32> to vector<1x1x256xf32>
    %cst_43 = arith.constant dense<0.000000e+00> : vector<1xf32>
    %104 = vector.multi_reduction <add>, %103, %cst_43 [1, 2] : vector<1x1x256xf32> to vector<1xf32>
    %105 = vector.shape_cast %104 : vector<1xf32> to vector<1x1x1xf32>
    %106 = vector.extract %105[0, 0, 0] : f32 from vector<1x1x1xf32>
    %cst_44 = arith.constant 2.550000e+02 : f32
    %107 = arith.divf %106, %cst_44 : f32
    %108 = math.sqrt %107 : f32
    %cst_45 = arith.constant 1.100000e+00 : f32
    %109 = arith.mulf %cst_45, %108 : f32
    %110 = arith.addf %99, %109 : f32
    %111 = vector.broadcast %110 : f32 to vector<1x256xf32>
    %112 = arith.cmpf ogt, %94, %111 : vector<1x256xf32>
    %cst_46 = arith.constant 1.000000e+09 : f32
    %cst_47 = arith.constant 0.000000e+00 : f32
    %113 = vector.broadcast %cst_46 : f32 to vector<1x256xf32>
    %114 = vector.broadcast %cst_47 : f32 to vector<1x256xf32>
    %115 = arith.select %112, %113, %114 : vector<1x256xi1>, vector<1x256xf32>
    %116 = arith.addf %94, %115 : vector<1x256xf32>
    %c1_48 = arith.constant 1 : index
    %c0_49 = arith.constant 0 : index
    %c0_50 = arith.constant 0 : index
    %117 = vector.load %arg2[%c1_48, %c0_49, %c0_50] : memref<2x1x256xf32, #tpu.memory_space<vmem>>, vector<1x1x256xf32>
    %118 = vector.shape_cast %117 : vector<1x1x256xf32> to vector<1x256xf32>
    %119 = vector.shape_cast %116 : vector<1x256xf32> to vector<1x1x256xf32>
    tpu.vector_store %arg2[%c1_48, %c0_49, %c0_50], %119 {strides = array<i32>} : memref<2x1x256xf32, #tpu.memory_space<vmem>>, vector<1x1x256xf32>,
    return
  }
  func.func @transform_0(%arg0: i32) -> (i32, i32, i32) {
    %c0_i32 = arith.constant 0 : i32
    %c0_i32_0 = arith.constant 0 : i32
    %c0_i32_1 = arith.constant 0 : i32
    return %arg0, %c0_i32, %c0_i32_0 : i32, i32, i32
  }
  func.func @transform_1(%arg0: i32) -> (i32, i32, i32) {
    %c0_i32 = arith.constant 0 : i32
    %c0_i32_0 = arith.constant 0 : i32
    %c0_i32_1 = arith.constant 0 : i32
    return %arg0, %c0_i32, %c0_i32_0 : i32, i32, i32
  }
}

module attributes {stable_mosaic.version = 11 : i64} {
  func.func @_purify_cls_kernel(%arg0: i32, %arg1: memref<2x128x3xf32, #tpu.memory_space<vmem>>, %arg2: memref<2x128x3xf32, #tpu.memory_space<vmem>>, %arg3: memref<2x128x3xf32, #tpu.memory_space<vmem>>, %arg4: memref<3x64xf32, #tpu.memory_space<vmem>>, %arg5: memref<1x64xf32, #tpu.memory_space<vmem>>, %arg6: memref<64x64xf32, #tpu.memory_space<vmem>>, %arg7: memref<1x64xf32, #tpu.memory_space<vmem>>, %arg8: memref<64x128xf32, #tpu.memory_space<vmem>>, %arg9: memref<1x128xf32, #tpu.memory_space<vmem>>, %arg10: memref<128x64xf32, #tpu.memory_space<vmem>>, %arg11: memref<1x64xf32, #tpu.memory_space<vmem>>, %arg12: memref<64x40xf32, #tpu.memory_space<vmem>>, %arg13: memref<1x40xf32, #tpu.memory_space<vmem>>, %arg14: memref<1x2x40xf32, #tpu.memory_space<vmem>>, %arg15: memref<1x2x128xf32, #tpu.memory_space<vmem>>) attributes {dimension_semantics = [#tpu.dimension_semantics<parallel>], iteration_bounds = array<i64: 2>, scalar_prefetch = 0 : i64, scratch_operands = 0 : i64, tpu.core_type = #tpu.core_type<tc>, window_params = [{transform_indices = @transform_0, window_bounds = array<i64: 2, 128, 3>}, {transform_indices = @transform_1, window_bounds = array<i64: 2, 128, 3>}, {transform_indices = @transform_2, window_bounds = array<i64: 2, 128, 3>}, {pipeline_mode = #tpu.pipeline_mode<synchronous>, transform_indices = @transform_3, window_bounds = array<i64: 3, 64>}, {pipeline_mode = #tpu.pipeline_mode<synchronous>, transform_indices = @transform_4, window_bounds = array<i64: 1, 64>}, {pipeline_mode = #tpu.pipeline_mode<synchronous>, transform_indices = @transform_5, window_bounds = array<i64: 64, 64>}, {pipeline_mode = #tpu.pipeline_mode<synchronous>, transform_indices = @transform_6, window_bounds = array<i64: 1, 64>}, {pipeline_mode = #tpu.pipeline_mode<synchronous>, transform_indices = @transform_7, window_bounds = array<i64: 64, 128>}, {pipeline_mode = #tpu.pipeline_mode<synchronous>, transform_indices = @transform_8, window_bounds = array<i64: 1, 128>}, {pipeline_mode = #tpu.pipeline_mode<synchronous>, transform_indices = @transform_9, window_bounds = array<i64: 128, 64>}, {pipeline_mode = #tpu.pipeline_mode<synchronous>, transform_indices = @transform_10, window_bounds = array<i64: 1, 64>}, {pipeline_mode = #tpu.pipeline_mode<synchronous>, transform_indices = @transform_11, window_bounds = array<i64: 64, 40>}, {pipeline_mode = #tpu.pipeline_mode<synchronous>, transform_indices = @transform_12, window_bounds = array<i64: 1, 40>}, {transform_indices = @transform_13, window_bounds = array<i64: 1, 2, 40>}, {transform_indices = @transform_14, window_bounds = array<i64: 1, 2, 128>}]} {
    %c0 = arith.constant 0 : index
    %c0_0 = arith.constant 0 : index
    %c0_1 = arith.constant 0 : index
    %0 = vector.load %arg1[%c0, %c0_0, %c0_1] : memref<2x128x3xf32, #tpu.memory_space<vmem>>, vector<2x128x3xf32>
    %c0_2 = arith.constant 0 : index
    %c0_3 = arith.constant 0 : index
    %c0_4 = arith.constant 0 : index
    %1 = vector.load %arg2[%c0_2, %c0_3, %c0_4] : memref<2x128x3xf32, #tpu.memory_space<vmem>>, vector<2x128x3xf32>
    %c0_5 = arith.constant 0 : index
    %c0_6 = arith.constant 0 : index
    %c0_7 = arith.constant 0 : index
    %2 = vector.load %arg3[%c0_5, %c0_6, %c0_7] : memref<2x128x3xf32, #tpu.memory_space<vmem>>, vector<2x128x3xf32>
    %cst = arith.constant dense<0.000000e+00> : vector<2x3xf32>
    %3 = vector.multi_reduction <add>, %0, %cst [1] : vector<2x128x3xf32> to vector<2x3xf32>
    %4 = vector.shape_cast %3 : vector<2x3xf32> to vector<2x1x3xf32>
    %cst_8 = arith.constant 1.280000e+02 : f32
    %5 = vector.broadcast %cst_8 : f32 to vector<2x1x3xf32>
    %6 = arith.divf %4, %5 : vector<2x1x3xf32>
    %cst_9 = arith.constant dense<0xFF800000> : vector<2x3xf32>
    %7 = vector.multi_reduction <maximumf>, %0, %cst_9 [1] : vector<2x128x3xf32> to vector<2x3xf32>
    %8 = vector.shape_cast %7 : vector<2x3xf32> to vector<2x1x3xf32>
    %cst_10 = arith.constant dense<0x7F800000> : vector<2x3xf32>
    %9 = vector.multi_reduction <minimumf>, %0, %cst_10 [1] : vector<2x128x3xf32> to vector<2x3xf32>
    %10 = vector.shape_cast %9 : vector<2x3xf32> to vector<2x1x3xf32>
    %11 = arith.subf %8, %10 : vector<2x1x3xf32>
    %cst_11 = arith.constant dense<0xFF800000> : vector<2x1xf32>
    %12 = vector.multi_reduction <maximumf>, %11, %cst_11 [2] : vector<2x1x3xf32> to vector<2x1xf32>
    %13 = vector.shape_cast %12 : vector<2x1xf32> to vector<2x1x1xf32>
    %cst_12 = arith.constant 9.99999996E-13 : f32
    %14 = vector.broadcast %cst_12 : f32 to vector<2x1x1xf32>
    %15 = arith.maximumf %13, %14 : vector<2x1x1xf32>
    %cst_13 = arith.constant 0.899999976 : f32
    %16 = vector.broadcast %cst_13 : f32 to vector<2x1x1xf32>
    %17 = arith.divf %16, %15 : vector<2x1x1xf32>
    %18 = vector.broadcast %6 : vector<2x1x3xf32> to vector<2x128x3xf32>
    %19 = arith.subf %1, %18 : vector<2x128x3xf32>
    %20 = vector.broadcast %17 : vector<2x1x1xf32> to vector<2x128x3xf32>
    %21 = arith.mulf %19, %20 : vector<2x128x3xf32>
    %22 = arith.addf %21, %2 : vector<2x128x3xf32>
    %cst_14 = arith.constant -4.500000e-01 : f32
    %cst_15 = arith.constant 4.500000e-01 : f32
    %23 = vector.broadcast %cst_14 : f32 to vector<2x128x3xf32>
    %24 = arith.maximumf %23, %22 : vector<2x128x3xf32>
    %25 = vector.broadcast %cst_15 : f32 to vector<2x128x3xf32>
    %26 = arith.minimumf %25, %24 : vector<2x128x3xf32>
    %cst_16 = arith.constant dense<0.000000e+00> : vector<2x3xf32>
    %27 = vector.multi_reduction <add>, %26, %cst_16 [1] : vector<2x128x3xf32> to vector<2x3xf32>
    %28 = vector.shape_cast %27 : vector<2x3xf32> to vector<2x1x3xf32>
    %cst_17 = arith.constant 1.280000e+02 : f32
    %29 = vector.broadcast %cst_17 : f32 to vector<2x1x3xf32>
    %30 = arith.divf %28, %29 : vector<2x1x3xf32>
    %31 = vector.broadcast %30 : vector<2x1x3xf32> to vector<2x128x3xf32>
    %32 = arith.subf %26, %31 : vector<2x128x3xf32>
    %33 = arith.mulf %32, %32 : vector<2x128x3xf32>
    %cst_18 = arith.constant dense<0.000000e+00> : vector<2x128xf32>
    %34 = vector.multi_reduction <add>, %33, %cst_18 [2] : vector<2x128x3xf32> to vector<2x128xf32>
    %35 = vector.shape_cast %34 : vector<2x128xf32> to vector<2x128x1xf32>
    %cst_19 = arith.constant dense<0xFF800000> : vector<2x1xf32>
    %36 = vector.multi_reduction <maximumf>, %35, %cst_19 [1] : vector<2x128x1xf32> to vector<2x1xf32>
    %37 = vector.shape_cast %36 : vector<2x1xf32> to vector<2x1x1xf32>
    %38 = math.sqrt %37 : vector<2x1x1xf32>
    %cst_20 = arith.constant 9.99999996E-13 : f32
    %39 = vector.broadcast %cst_20 : f32 to vector<2x1x1xf32>
    %40 = arith.maximumf %38, %39 : vector<2x1x1xf32>
    %41 = vector.broadcast %40 : vector<2x1x1xf32> to vector<2x128x3xf32>
    %42 = arith.divf %32, %41 : vector<2x128x3xf32>
    %43 = vector.shape_cast %42 : vector<2x128x3xf32> to vector<256x3xf32>
    %c0_21 = arith.constant 0 : index
    %c0_22 = arith.constant 0 : index
    %44 = vector.load %arg4[%c0_21, %c0_22] : memref<3x64xf32, #tpu.memory_space<vmem>>, vector<3x64xf32>
    %cst_23 = arith.constant dense<0.000000e+00> : vector<256x64xf32>
    %45 = tpu.matmul %43, %44, %cst_23 {dimension_numbers = #tpu.dot_dimension_numbers<[1], [0], [0], [1], [0, 0, 1, 1], [], []>} : vector<256x3xf32>, vector<3x64xf32>, vector<256x64xf32> -> vector<256x64xf32>
    %c0_24 = arith.constant 0 : index
    %c0_25 = arith.constant 0 : index
    %46 = vector.load %arg5[%c0_24, %c0_25] : memref<1x64xf32, #tpu.memory_space<vmem>>, vector<1x64xf32>
    %47 = vector.broadcast %46 : vector<1x64xf32> to vector<256x64xf32>
    %48 = arith.addf %45, %47 : vector<256x64xf32>
    %cst_26 = arith.constant 0.000000e+00 : f32
    %49 = vector.broadcast %cst_26 : f32 to vector<256x64xf32>
    %50 = arith.maximumf %48, %49 : vector<256x64xf32>
    %c0_27 = arith.constant 0 : index
    %c0_28 = arith.constant 0 : index
    %51 = vector.load %arg6[%c0_27, %c0_28] : memref<64x64xf32, #tpu.memory_space<vmem>>, vector<64x64xf32>
    %cst_29 = arith.constant dense<0.000000e+00> : vector<256x64xf32>
    %52 = tpu.matmul %50, %51, %cst_29 {dimension_numbers = #tpu.dot_dimension_numbers<[1], [0], [0], [1], [0, 0, 1, 1], [], []>} : vector<256x64xf32>, vector<64x64xf32>, vector<256x64xf32> -> vector<256x64xf32>
    %c0_30 = arith.constant 0 : index
    %c0_31 = arith.constant 0 : index
    %53 = vector.load %arg7[%c0_30, %c0_31] : memref<1x64xf32, #tpu.memory_space<vmem>>, vector<1x64xf32>
    %54 = vector.broadcast %53 : vector<1x64xf32> to vector<256x64xf32>
    %55 = arith.addf %52, %54 : vector<256x64xf32>
    %cst_32 = arith.constant 0.000000e+00 : f32
    %56 = vector.broadcast %cst_32 : f32 to vector<256x64xf32>
    %57 = arith.maximumf %55, %56 : vector<256x64xf32>
    %c0_33 = arith.constant 0 : index
    %c0_34 = arith.constant 0 : index
    %58 = vector.load %arg8[%c0_33, %c0_34] : memref<64x128xf32, #tpu.memory_space<vmem>>, vector<64x128xf32>
    %cst_35 = arith.constant dense<0.000000e+00> : vector<256x128xf32>
    %59 = tpu.matmul %57, %58, %cst_35 {dimension_numbers = #tpu.dot_dimension_numbers<[1], [0], [0], [1], [0, 0, 1, 1], [], []>} : vector<256x64xf32>, vector<64x128xf32>, vector<256x128xf32> -> vector<256x128xf32>
    %c0_36 = arith.constant 0 : index
    %c0_37 = arith.constant 0 : index
    %60 = vector.load %arg9[%c0_36, %c0_37] : memref<1x128xf32, #tpu.memory_space<vmem>>, vector<1x128xf32>
    %61 = vector.broadcast %60 : vector<1x128xf32> to vector<256x128xf32>
    %62 = arith.addf %59, %61 : vector<256x128xf32>
    %cst_38 = arith.constant 0.000000e+00 : f32
    %63 = vector.broadcast %cst_38 : f32 to vector<256x128xf32>
    %64 = arith.maximumf %62, %63 : vector<256x128xf32>
    %65 = vector.shape_cast %64 : vector<256x128xf32> to vector<2x128x128xf32>
    %cst_39 = arith.constant dense<0xFF800000> : vector<2x128xf32>
    %66 = vector.multi_reduction <maximumf>, %65, %cst_39 [1] : vector<2x128x128xf32> to vector<2x128xf32>
    %c0_40 = arith.constant 0 : index
    %c0_41 = arith.constant 0 : index
    %67 = vector.load %arg10[%c0_40, %c0_41] : memref<128x64xf32, #tpu.memory_space<vmem>>, vector<128x64xf32>
    %cst_42 = arith.constant dense<0.000000e+00> : vector<2x64xf32>
    %68 = tpu.matmul %66, %67, %cst_42 {dimension_numbers = #tpu.dot_dimension_numbers<[1], [0], [0], [1], [0, 0, 1, 1], [], []>} : vector<2x128xf32>, vector<128x64xf32>, vector<2x64xf32> -> vector<2x64xf32>
    %c0_43 = arith.constant 0 : index
    %c0_44 = arith.constant 0 : index
    %69 = vector.load %arg11[%c0_43, %c0_44] : memref<1x64xf32, #tpu.memory_space<vmem>>, vector<1x64xf32>
    %70 = vector.broadcast %69 : vector<1x64xf32> to vector<2x64xf32>
    %71 = arith.addf %68, %70 : vector<2x64xf32>
    %cst_45 = arith.constant 0.000000e+00 : f32
    %72 = vector.broadcast %cst_45 : f32 to vector<2x64xf32>
    %73 = arith.maximumf %71, %72 : vector<2x64xf32>
    %c0_46 = arith.constant 0 : index
    %c0_47 = arith.constant 0 : index
    %74 = vector.load %arg12[%c0_46, %c0_47] : memref<64x40xf32, #tpu.memory_space<vmem>>, vector<64x40xf32>
    %cst_48 = arith.constant dense<0.000000e+00> : vector<2x40xf32>
    %75 = tpu.matmul %73, %74, %cst_48 {dimension_numbers = #tpu.dot_dimension_numbers<[1], [0], [0], [1], [0, 0, 1, 1], [], []>} : vector<2x64xf32>, vector<64x40xf32>, vector<2x40xf32> -> vector<2x40xf32>
    %c0_49 = arith.constant 0 : index
    %c0_50 = arith.constant 0 : index
    %76 = vector.load %arg13[%c0_49, %c0_50] : memref<1x40xf32, #tpu.memory_space<vmem>>, vector<1x40xf32>
    %77 = vector.broadcast %76 : vector<1x40xf32> to vector<2x40xf32>
    %78 = arith.addf %75, %77 : vector<2x40xf32>
    %c0_51 = arith.constant 0 : index
    %c0_52 = arith.constant 0 : index
    %c0_53 = arith.constant 0 : index
    %79 = vector.load %arg14[%c0_51, %c0_52, %c0_53] : memref<1x2x40xf32, #tpu.memory_space<vmem>>, vector<1x2x40xf32>
    %80 = vector.shape_cast %79 : vector<1x2x40xf32> to vector<2x40xf32>
    %81 = vector.shape_cast %78 : vector<2x40xf32> to vector<1x2x40xf32>
    tpu.vector_store %arg14[%c0_51, %c0_52, %c0_53], %81 {strides = array<i32>} : memref<1x2x40xf32, #tpu.memory_space<vmem>>, vector<1x2x40xf32>,
    %c0_54 = arith.constant 0 : index
    %c0_55 = arith.constant 0 : index
    %c0_56 = arith.constant 0 : index
    %82 = vector.load %arg15[%c0_54, %c0_55, %c0_56] : memref<1x2x128xf32, #tpu.memory_space<vmem>>, vector<1x2x128xf32>
    %83 = vector.shape_cast %82 : vector<1x2x128xf32> to vector<2x128xf32>
    %84 = vector.shape_cast %66 : vector<2x128xf32> to vector<1x2x128xf32>
    tpu.vector_store %arg15[%c0_54, %c0_55, %c0_56], %84 {strides = array<i32>} : memref<1x2x128xf32, #tpu.memory_space<vmem>>, vector<1x2x128xf32>,
    return
  }
  func.func @transform_0(%arg0: i32) -> (i32, i32, i32) {
    %c0_i32 = arith.constant 0 : i32
    %c0_i32_0 = arith.constant 0 : i32
    %c0_i32_1 = arith.constant 0 : i32
    return %arg0, %c0_i32, %c0_i32_0 : i32, i32, i32
  }
  func.func @transform_1(%arg0: i32) -> (i32, i32, i32) {
    %c0_i32 = arith.constant 0 : i32
    %c0_i32_0 = arith.constant 0 : i32
    %c0_i32_1 = arith.constant 0 : i32
    return %arg0, %c0_i32, %c0_i32_0 : i32, i32, i32
  }
  func.func @transform_2(%arg0: i32) -> (i32, i32, i32) {
    %c0_i32 = arith.constant 0 : i32
    %c0_i32_0 = arith.constant 0 : i32
    %c0_i32_1 = arith.constant 0 : i32
    return %arg0, %c0_i32, %c0_i32_0 : i32, i32, i32
  }
  func.func @transform_3(%arg0: i32) -> (i32, i32) {
    %c0_i32 = arith.constant 0 : i32
    %c0_i32_0 = arith.constant 0 : i32
    %c0_i32_1 = arith.constant 0 : i32
    return %c0_i32, %c0_i32_0 : i32, i32
  }
  func.func @transform_4(%arg0: i32) -> (i32, i32) {
    %c0_i32 = arith.constant 0 : i32
    %c0_i32_0 = arith.constant 0 : i32
    %c0_i32_1 = arith.constant 0 : i32
    return %c0_i32, %c0_i32_0 : i32, i32
  }
  func.func @transform_5(%arg0: i32) -> (i32, i32) {
    %c0_i32 = arith.constant 0 : i32
    %c0_i32_0 = arith.constant 0 : i32
    %c0_i32_1 = arith.constant 0 : i32
    return %c0_i32, %c0_i32_0 : i32, i32
  }
  func.func @transform_6(%arg0: i32) -> (i32, i32) {
    %c0_i32 = arith.constant 0 : i32
    %c0_i32_0 = arith.constant 0 : i32
    %c0_i32_1 = arith.constant 0 : i32
    return %c0_i32, %c0_i32_0 : i32, i32
  }
  func.func @transform_7(%arg0: i32) -> (i32, i32) {
    %c0_i32 = arith.constant 0 : i32
    %c0_i32_0 = arith.constant 0 : i32
    %c0_i32_1 = arith.constant 0 : i32
    return %c0_i32, %c0_i32_0 : i32, i32
  }
  func.func @transform_8(%arg0: i32) -> (i32, i32) {
    %c0_i32 = arith.constant 0 : i32
    %c0_i32_0 = arith.constant 0 : i32
    %c0_i32_1 = arith.constant 0 : i32
    return %c0_i32, %c0_i32_0 : i32, i32
  }
  func.func @transform_9(%arg0: i32) -> (i32, i32) {
    %c0_i32 = arith.constant 0 : i32
    %c0_i32_0 = arith.constant 0 : i32
    %c0_i32_1 = arith.constant 0 : i32
    return %c0_i32, %c0_i32_0 : i32, i32
  }
  func.func @transform_10(%arg0: i32) -> (i32, i32) {
    %c0_i32 = arith.constant 0 : i32
    %c0_i32_0 = arith.constant 0 : i32
    %c0_i32_1 = arith.constant 0 : i32
    return %c0_i32, %c0_i32_0 : i32, i32
  }
  func.func @transform_11(%arg0: i32) -> (i32, i32) {
    %c0_i32 = arith.constant 0 : i32
    %c0_i32_0 = arith.constant 0 : i32
    %c0_i32_1 = arith.constant 0 : i32
    return %c0_i32, %c0_i32_0 : i32, i32
  }
  func.func @transform_12(%arg0: i32) -> (i32, i32) {
    %c0_i32 = arith.constant 0 : i32
    %c0_i32_0 = arith.constant 0 : i32
    %c0_i32_1 = arith.constant 0 : i32
    return %c0_i32, %c0_i32_0 : i32, i32
  }
  func.func @transform_13(%arg0: i32) -> (i32, i32, i32) {
    %c0_i32 = arith.constant 0 : i32
    %c0_i32_0 = arith.constant 0 : i32
    %c0_i32_1 = arith.constant 0 : i32
    return %arg0, %c0_i32, %c0_i32_0 : i32, i32, i32
  }
  func.func @transform_14(%arg0: i32) -> (i32, i32, i32) {
    %c0_i32 = arith.constant 0 : i32
    %c0_i32_0 = arith.constant 0 : i32
    %c0_i32_1 = arith.constant 0 : i32
    return %arg0, %c0_i32, %c0_i32_0 : i32, i32, i32
  }
}

</mosaic_0001>

<llo_original>
// kernel: neg.0
$region0: #{neg.0}
  #allocation0 [shape = 's32[1]{0}', space=sflag, size = 0x4, scoped, tag = 'scoped memory for neg.0']
  %s0 = inlined_call_operand.vmem [shape: f32[4,1,256], index: 0, kind: input, shape index: {}]
  %s1 = inlined_call_operand.vmem [shape: f32[4,1,256], index: 1, kind: output, shape index: {}]
  %v2 = vld [vmem:[%s0] sm:$0x1]
  %3 = xla_tuple %v2
  %4 = xla_tuple %3
  %v5 = vxor.u32 %v2, 2147483648
  %6 = xla_tuple %v5
  %7 = vst [vmem:[%s1] sm:$0x1] %v5
  %s8 = scalar_lea.vmem %s0, 2
  %v9 = vld [vmem:[%s8] sm:$0x1]
  %10 = xla_tuple %v9
  %11 = xla_tuple %10
  %v12 = vxor.u32 %v9, 2147483648
  %13 = xla_tuple %v12
  %s14 = scalar_lea.vmem %s1, 2
  %15 = vst [vmem:[%s14] sm:$0x1] %v12
  %s16 = scalar_lea.vmem %s0, 4
  %v17 = vld [vmem:[%s16] sm:$0x1]
  %18 = xla_tuple %v17
  %19 = xla_tuple %18
  %v20 = vxor.u32 %v17, 2147483648
  %21 = xla_tuple %v20
  %s22 = scalar_lea.vmem %s1, 4
  %23 = vst [vmem:[%s22] sm:$0x1] %v20
  %s24 = scalar_lea.vmem %s0, 6
  %v25 = vld [vmem:[%s24] sm:$0x1]
  %26 = xla_tuple %v25
  %27 = xla_tuple %26
  %v28 = vxor.u32 %v25, 2147483648
  %29 = xla_tuple %v28
  %s30 = scalar_lea.vmem %s1, 6
  %31 = vst [vmem:[%s30] sm:$0x1] %v28
  %s32 = scalar_lea.vmem %s0, 1
  %v33 = vld [vmem:[%s32] sm:$0x1]
  %34 = xla_tuple %v33
  %35 = xla_tuple %34
  %v36 = vxor.u32 %v33, 2147483648
  %37 = xla_tuple %v36
  %s38 = scalar_lea.vmem %s1, 1
  %39 = vst [vmem:[%s38] sm:$0x1] %v36
  %s40 = scalar_lea.vmem %s0, 3
  %v41 = vld [vmem:[%s40] sm:$0x1]
  %42 = xla_tuple %v41
  %43 = xla_tuple %42
  %v44 = vxor.u32 %v41, 2147483648
  %45 = xla_tuple %v44
  %s46 = scalar_lea.vmem %s1, 3
  %47 = vst [vmem:[%s46] sm:$0x1] %v44
  %s48 = scalar_lea.vmem %s0, 5
  %v49 = vld [vmem:[%s48] sm:$0x1]
  %50 = xla_tuple %v49
  %51 = xla_tuple %50
  %v52 = vxor.u32 %v49, 2147483648
  %53 = xla_tuple %v52
  %s54 = scalar_lea.vmem %s1, 5
  %55 = vst [vmem:[%s54] sm:$0x1] %v52
  %s56 = scalar_lea.vmem %s0, 7
  %v57 = vld [vmem:[%s56] sm:$0x1]
  %58 = xla_tuple %v57
  %59 = xla_tuple %58
  %v60 = vxor.u32 %v57, 2147483648
  %61 = xla_tuple %v60
  %s62 = scalar_lea.vmem %s1, 7
  %63 = vst [vmem:[%s62] sm:$0x1] %v60

// kernel: if_defense_forward.2
$region0: #{if_defense_forward.2}
  #allocation0 [shape = 'u32[]', space=smem, size = 0x4, offset = 0x4, fixed_abs, tag = 'smem constant byte address 0x4 - core index']
  #allocation1 [shape = 'u32[144,128]{1,0:T(1,128)}', space=vmem, size = 0x12000, scoped, tag = 'internal scratch']
  %s0 = inlined_call_operand.vmem [shape: f32[4,3,256], index: 0, kind: input, shape index: {}]
  %s1 = inlined_call_operand.vmem [shape: f32[4,1,256], index: 1, kind: output, shape index: {}]
  %s2 = sld [smem:[#allocation0]]
  $region37: #{if_defense_forward.2} parent=0
    _
  %s4 = ssub.s32 1, %s2
  %s5 = scalar_select 0, %s4, %s2
  loop: start=0, step=1, limit=4
  $region2: #{if_defense_forward.2} parent=0 // loop_pre_header
    _
  $region3: #{if_defense_forward.2} parent=0 // loop_header
    %s7 = sphi 0, %s11
    %p8 = scmp.ge.s32.totalorder %s7, 4
    %s17 = sphi 0, %s19
    %s20 = sphi 0, %s17
    %s21 = sphi 0, %s20
    %s37 = sphi 0, %s21
    %s43 = sphi 0, %s45
    %s46 = sphi 0, %s43
    %s47 = sphi 0, %s46
    %s63 = sphi 0, %s47
  $region4: #{if_defense_forward.2} parent=0 // loop_header_branch
    %10 = sbr.rel (%p8) target = $region8
  $region5: #{if_defense_forward.2} parent=0 // loop_body
    %s12 = ssub.s32 %s7, 1
    %s13 = ssub.s32 %s7, 2
    %s14 = sadd.s32 %s7, 1
    %s15 = ssub.s32 %s7, %s14
    %p16 = scmp.eq.s32.totalorder %s15, 0
    %s18 = sadd.s32 %s17, 1
    %s19 = scalar_select %p16, %s17, %s18
    %p22 = pneg %p16
    %p23 = scmp.eq.s32.totalorder %s7, 1
    %p24 = por %p22, %p23
    %p25 = scmp.ne.s32.totalorder %s17, %s20
    %p26 = scmp.eq.s32.totalorder %s7, 0
    %p27 = por %p25, %p26
    %p28 = scmp.ne.s32.totalorder %s17, %s20
    %p29 = scmp.eq.s32.totalorder %s12, 1
    %p30 = por %p28, %p29
    %p31 = scmp.ne.s32.totalorder %s20, %s21
    %p32 = scmp.eq.s32.totalorder %s12, 0
    %p33 = por %p31, %p32
    %p34 = scmp.ne.s32.totalorder %s20, %s21
    %p35 = scmp.eq.s32.totalorder %s13, 1
    %p36 = por %p34, %p35
    %p38 = scmp.ne.s32.totalorder %s21, %s37
    %p39 = scmp.eq.s32.totalorder %s13, 0
    %p40 = por %p38, %p39
    %s41 = ssub.s32 %s7, %s14
    %p42 = scmp.eq.s32.totalorder %s41, 0
    %s44 = sadd.s32 %s43, 1
    %s45 = scalar_select %p42, %s43, %s44
    %p48 = pneg %p42
    %p49 = scmp.eq.s32.totalorder %s7, 1
    %p50 = por %p48, %p49
    %p51 = scmp.ne.s32.totalorder %s43, %s46
    %p52 = scmp.eq.s32.totalorder %s7, 0
    %p53 = por %p51, %p52
    %p54 = scmp.ne.s32.totalorder %s43, %s46
    %p55 = scmp.eq.s32.totalorder %s12, 1
    %p56 = por %p54, %p55
    %p57 = scmp.ne.s32.totalorder %s46, %s47
    %p58 = scmp.eq.s32.totalorder %s12, 0
    %p59 = por %p57, %p58
    %p60 = scmp.ne.s32.totalorder %s46, %s47
    %p61 = scmp.eq.s32.totalorder %s13, 1
    %p62 = por %p60, %p61
    %p64 = scmp.ne.s32.totalorder %s47, %s63
    %p65 = scmp.eq.s32.totalorder %s13, 0
    %p66 = por %p64, %p65
    %p67 = scmp.le.s32.totalorder 1, %s7
    %p68 = scmp.lt.s32.totalorder %s7, 3
    %p69 = pnand %p67, %p68
    %p70 = pneg %p69
    // Predicated region
    $region9: #{if_defense_forward.2} parent=5 // pred_check
      _
    $region10: #{if_defense_forward.2} parent=5 // pred_check_branch
      %72 = sbr.rel (%p69) target = $region12
    $region11: #{if_defense_forward.2} parent=5 // pred_region
      %s73 = ssub.s32 %s7, 1
    $region12: #{if_defense_forward.2} parent=5 // pred_fallthru
      _
    %p74 = scmp.lt.s32.totalorder %s7, 2
    // Predicated region
    $region13: #{if_defense_forward.2} parent=5 // pred_check
      %p75 = pneg %p74
    $region14: #{if_defense_forward.2} parent=5 // pred_check_branch
      %77 = sbr.rel (%p75) target = $region16
    $region15: #{if_defense_forward.2} parent=5 // pred_region
      // Predicated region
      $region17: #{if_defense_forward.2} parent=15 // pred_check
        %p78 = pneg %p27
      $region18: #{if_defense_forward.2} parent=15 // pred_check_branch
        %80 = sbr.rel (%p78) target = $region20
      $region19: #{if_defense_forward.2} parent=15 // pred_region
        %s81 = smul.u32 2, %s7
        %p82 = scmp.lt.s32.totalorder %s81, 3
        %s83 = scalar_select %p82, %s81, 3
        %s84 = smul.addr %s83, 2
        %s85 = smul.addr %s84, 4
        %s86 = scalar_lea.vmem %s0, %s85
        %s87 = smul.u32 2, %s7
      $region20: #{if_defense_forward.2} parent=15 // pred_fallthru
        _
    $region16: #{if_defense_forward.2} parent=5 // pred_fallthru
      _
    %p88 = scmp.le.s32.totalorder 1, %s7
    %p89 = scmp.lt.s32.totalorder %s7, 3
    %p90 = pnand %p88, %p89
    %p91 = pneg %p90
    // Predicated region
    $region21: #{if_defense_forward.2} parent=5 // pred_check
      _
    $region22: #{if_defense_forward.2} parent=5 // pred_check_branch
      %93 = sbr.rel (%p90) target = $region24
    $region23: #{if_defense_forward.2} parent=5 // pred_region
      %s94 = ssub.s32 %s7, 1
      %s95 = smul.u32 2, %s12
      %p96 = scmp.lt.s32.totalorder %s95, 3
      %s97 = scalar_select %p96, %s95, 3
      %s98 = smul.addr %s97, 2
      %s99 = smul.addr %s98, 4
      %s100 = scalar_lea.vmem %s0, %s99
      %p101 = pneg %p33
      %p102 = pneg %p30
      %p103 = pneg %p59
      %p104 = pneg %p56
      %s105 = smul.u32 2, %s12
      %p106 = scmp.lt.s32.totalorder %s105, 3
      %s107 = scalar_select %p106, %s105, 3
      %s108 = smul.addr %s107, 2
      %s109 = scalar_lea.vmem %s1, %s108
      %s110 = smul.u32 2, %s12
      %p111 = scmp.lt.s32.totalorder %s110, 3
      %s112 = scalar_select %p111, %s110, 3
      %s113 = smul.addr %s112, 2
      %s114 = smul.addr %s113, 4
      %s115 = scalar_lea.vmem %s0, %s114
      %s116 = smul.u32 2, %s12
      %s117 = smul.u32 2, %s12
      %p118 = scmp.lt.s32.totalorder %s117, 3
      %s119 = scalar_select %p118, %s117, 3
      %s120 = smul.addr %s119, 2
      %s121 = scalar_lea.vmem %s1, %s120
      %s122 = smul.u32 2, %s12
      %v123 = vld [vmem:[%s115] sm:$0x77]
      %v125 = vcombine.high %v123, %v123
      %127 = vxpose.xlu0.b32.start [1/16] %v123, 128
      %128 = vxpose.xlu0.b32.cont [2/16] 0.0, 128
      %129 = vxpose.xlu0.b32.cont [3/16] 0.0, 128
      %130 = vxpose.xlu0.b32.cont [4/16] 0.0, 128
      %131 = vxpose.xlu0.b32.cont [5/16] 0.0, 128
      %132 = vxpose.xlu0.b32.cont [6/16] 0.0, 128
      %133 = vxpose.xlu0.b32.cont [7/16] 0.0, 128
      %134 = vxpose.xlu0.b32.cont [8/16] 0.0, 128
      %135 = vxpose.xlu0.b32.cont [9/16] 0.0, 128
      %136 = vxpose.xlu0.b32.cont [10/16] 0.0, 128
      %137 = vxpose.xlu0.b32.cont [11/16] 0.0, 128
      %138 = vxpose.xlu0.b32.cont [12/16] 0.0, 128
      %139 = vxpose.xlu0.b32.cont [13/16] 0.0, 128
      %140 = vxpose.xlu0.b32.cont [14/16] 0.0, 128
      %141 = vxpose.xlu0.b32.cont [15/16] 0.0, 128
      %142 = vxpose.xlu0.b32.end [16/16] 0.0, 128
      %v143 = vpop.trf.xlu0
      %v144 = vpop.trf.xlu0
      %v145 = vpop.trf.xlu0
      %v146 = vpop.trf.xlu0
      %v147 = vpop.trf.xlu0
      %v148 = vpop.trf.xlu0
      %v149 = vpop.trf.xlu0
      %v150 = vpop.trf.xlu0
      %v151 = vpop.trf.xlu0
      %v152 = vpop.trf.xlu0
      %v153 = vpop.trf.xlu0
      %v154 = vpop.trf.xlu0
      %v155 = vpop.trf.xlu0
      %v156 = vpop.trf.xlu0
      %v157 = vpop.trf.xlu0
      %v158 = vpop.trf.xlu0
      %159 = vxpose.xlu0.b32.start [1/16] %v125, 128
      %160 = vxpose.xlu0.b32.cont [2/16] 0.0, 128
      %161 = vxpose.xlu0.b32.cont [3/16] 0.0, 128
      %162 = vxpose.xlu0.b32.cont [4/16] 0.0, 128
      %163 = vxpose.xlu0.b32.cont [5/16] 0.0, 128
      %164 = vxpose.xlu0.b32.cont [6/16] 0.0, 128
      %165 = vxpose.xlu0.b32.cont [7/16] 0.0, 128
      %166 = vxpose.xlu0.b32.cont [8/16] 0.0, 128
      %167 = vxpose.xlu0.b32.cont [9/16] 0.0, 128
      %168 = vxpose.xlu0.b32.cont [10/16] 0.0, 128
      %169 = vxpose.xlu0.b32.cont [11/16] 0.0, 128
      %170 = vxpose.xlu0.b32.cont [12/16] 0.0, 128
      %171 = vxpose.xlu0.b32.cont [13/16] 0.0, 128
      %172 = vxpose.xlu0.b32.cont [14/16] 0.0, 128
      %173 = vxpose.xlu0.b32.cont [15/16] 0.0, 128
      %174 = vxpose.xlu0.b32.end [16/16] 0.0, 128
      %v175 = vpop.trf.xlu0
      %v176 = vpop.trf.xlu0
      %v177 = vpop.trf.xlu0
      %v178 = vpop.trf.xlu0
      %v179 = vpop.trf.xlu0
      %v180 = vpop.trf.xlu0
      %v181 = vpop.trf.xlu0
      %v182 = vpop.trf.xlu0
      %v183 = vpop.trf.xlu0
      %v184 = vpop.trf.xlu0
      %v185 = vpop.trf.xlu0
      %v186 = vpop.trf.xlu0
      %v187 = vpop.trf.xlu0
      %v188 = vpop.trf.xlu0
      %v189 = vpop.trf.xlu0
      %v190 = vpop.trf.xlu0
      %vm191 = vcmask 23552
      %v193 = vsel %vm191, %v143, 0
      %v196 = vsel %vm191, %v144, 0
      %v199 = vsel %vm191, %v145, 0
      %v202 = vsel %vm191, %v146, 0
      %v205 = vsel %vm191, %v147, 0
      %v208 = vsel %vm191, %v148, 0
      %v211 = vsel %vm191, %v149, 0
      %v214 = vsel %vm191, %v150, 0
      %v217 = vsel %vm191, %v151, 0
      %v220 = vsel %vm191, %v152, 0
      %v223 = vsel %vm191, %v153, 0
      %v226 = vsel %vm191, %v154, 0
      %v229 = vsel %vm191, %v155, 0
      %v232 = vsel %vm191, %v156, 0
      %v235 = vsel %vm191, %v157, 0
      %v238 = vsel %vm191, %v158, 0
      %v241 = vsel %vm191, %v175, 0
      %v244 = vsel %vm191, %v176, 0
      %v247 = vsel %vm191, %v177, 0
      %v250 = vsel %vm191, %v178, 0
      %v253 = vsel %vm191, %v179, 0
      %v256 = vsel %vm191, %v180, 0
      %v259 = vsel %vm191, %v181, 0
      %v262 = vsel %vm191, %v182, 0
      %v265 = vsel %vm191, %v183, 0
      %v268 = vsel %vm191, %v184, 0
      %v271 = vsel %vm191, %v185, 0
      %v274 = vsel %vm191, %v186, 0
      %v277 = vsel %vm191, %v187, 0
      %v280 = vsel %vm191, %v188, 0
      %v283 = vsel %vm191, %v189, 0
      %v286 = vsel %vm191, %v190, 0
      %vm288 = vcmask 1042432
      %v289 = vsel %vm288, %v123, 0
      %v291 = vsel %vm288, %v125, 0
      %293 = vmatprep.subr.mxu0 %v291
      %294 = vmatpush1.msra.mxu0 %v289
      %295 = vmatprep.subr.mxu0 0.0
      %296 = vmatpush1.msra.mxu0 0.0
      %297 = vmatprep.subr.mxu0 0.0
      %298 = vmatpush1.msra.mxu0 0.0
      %299 = vmatprep.subr.mxu0 0.0
      %300 = vmatpush1.msra.mxu0 0.0
      %301 = vmatprep.subr.mxu0 0.0
      %302 = vmatpush1.msra.mxu0 0.0
      %303 = vmatprep.subr.mxu0 0.0
      %304 = vmatpush1.msra.mxu0 0.0
      %305 = vmatprep.subr.mxu0 0.0
      %306 = vmatpush1.msra.mxu0 0.0
      %307 = vmatprep.subr.mxu0 0.0
      %308 = vmatpush1.msra.mxu0 0.0
      %309 = vmatprep.subr.mxu0 0.0
      %310 = vmatpush1.msra.mxu0 0.0
      %311 = vmatprep.subr.mxu0 0.0
      %312 = vmatpush1.msra.mxu0 0.0
      %313 = vmatprep.subr.mxu0 0.0
      %314 = vmatpush1.msra.mxu0 0.0
      %315 = vmatprep.subr.mxu0 0.0
      %316 = vmatpush1.msra.mxu0 0.0
      %317 = vmatprep.subr.mxu0 0.0
      %318 = vmatpush1.msra.mxu0 0.0
      %319 = vmatprep.subr.mxu0 0.0
      %320 = vmatpush1.msra.mxu0 0.0
      %321 = vmatprep.subr.mxu0 0.0
      %322 = vmatpush1.msra.mxu0 0.0
      %323 = vmatprep.subr.mxu0 0.0
      %324 = vmatpush1.msra.mxu0 0.0
      %325 = vmatprep.subr.mxu0 0.0
      %326 = vmatpush1.msra.mxu0 0.0
      %327 = vmatprep.subr.mxu0 0.0
      %328 = vmatpush1.msra.mxu0 0.0
      %329 = vmatprep.subr.mxu0 0.0
      %330 = vmatpush1.msra.mxu0 0.0
      %331 = vmatprep.subr.mxu0 0.0
      %332 = vmatpush1.msra.mxu0 0.0
      %333 = vmatprep.subr.mxu0 0.0
      %334 = vmatpush1.msra.mxu0 0.0
      %335 = vmatprep.subr.mxu0 0.0
      %336 = vmatpush1.msra.mxu0 0.0
      %337 = vmatprep.subr.mxu0 0.0
      %338 = vmatpush1.msra.mxu0 0.0
      %339 = vmatprep.subr.mxu0 0.0
      %340 = vmatpush1.msra.mxu0 0.0
      %341 = vmatprep.subr.mxu0 0.0
      %342 = vmatpush1.msra.mxu0 0.0
      %343 = vmatprep.subr.mxu0 0.0
      %344 = vmatpush1.msra.mxu0 0.0
      %345 = vmatprep.subr.mxu0 0.0
      %346 = vmatpush1.msra.mxu0 0.0
      %347 = vmatprep.subr.mxu0 0.0
      %348 = vmatpush1.msra.mxu0 0.0
      %349 = vmatprep.subr.mxu0 0.0
      %350 = vmatpush1.msra.mxu0 0.0
      %351 = vmatprep.subr.mxu0 0.0
      %352 = vmatpush1.msra.mxu0 0.0
      %353 = vmatprep.subr.mxu0 0.0
      %354 = vmatpush1.msra.mxu0 0.0
      %355 = vmatprep.subr.mxu0 0.0
      %356 = vmatpush1.msra.mxu0 0.0
      %357 = vmatprep.mubr.f32.mxu0 0.0
      %358 = vmatmul.mubr.f32.gmra.mrb[0].mxu0 %v193
      %v359 = vpop.f32.mrb[0].mxu0
      %v360 = vadd.f32 0.0, %v359
      %v361 = vpop.f32.mrb[0].mxu0
      %v362 = vadd.f32 0.0, %v361
      %363 = vmatprep.mubr.f32.mxu0 0.0
      %364 = vmatmul.mubr.f32.gmra.mrb[0].mxu0 %v196
      %v365 = vpop.f32.mrb[0].mxu0
      %v366 = vadd.f32 0.0, %v365
      %v367 = vpop.f32.mrb[0].mxu0
      %v368 = vadd.f32 0.0, %v367
      %369 = vmatprep.mubr.f32.mxu0 0.0
      %370 = vmatmul.mubr.f32.gmra.mrb[0].mxu0 %v199
      %v371 = vpop.f32.mrb[0].mxu0
      %v372 = vadd.f32 0.0, %v371
      %v373 = vpop.f32.mrb[0].mxu0
      %v374 = vadd.f32 0.0, %v373
      %375 = vmatprep.mubr.f32.mxu0 0.0
      %376 = vmatmul.mubr.f32.gmra.mrb[0].mxu0 %v202
      %v377 = vpop.f32.mrb[0].mxu0
      %v378 = vadd.f32 0.0, %v377
      %v379 = vpop.f32.mrb[0].mxu0
      %v380 = vadd.f32 0.0, %v379
      %381 = vmatprep.mubr.f32.mxu0 0.0
      %382 = vmatmul.mubr.f32.gmra.mrb[0].mxu0 %v205
      %v383 = vpop.f32.mrb[0].mxu0
      %v384 = vadd.f32 0.0, %v383
      %v385 = vpop.f32.mrb[0].mxu0
      %v386 = vadd.f32 0.0, %v385
      %387 = vmatprep.mubr.f32.mxu0 0.0
      %388 = vmatmul.mubr.f32.gmra.mrb[0].mxu0 %v208
      %v389 = vpop.f32.mrb[0].mxu0
      %v390 = vadd.f32 0.0, %v389
      %v391 = vpop.f32.mrb[0].mxu0
      %v392 = vadd.f32 0.0, %v391
      %393 = vmatprep.mubr.f32.mxu0 0.0
      %394 = vmatmul.mubr.f32.gmra.mrb[0].mxu0 %v211
      %v395 = vpop.f32.mrb[0].mxu0
      %v396 = vadd.f32 0.0, %v395
      %v397 = vpop.f32.mrb[0].mxu0
      %v398 = vadd.f32 0.0, %v397
      %399 = vmatprep.mubr.f32.mxu0 0.0
      %400 = vmatmul.mubr.f32.gmra.mrb[0].mxu0 %v214
      %v401 = vpop.f32.mrb[0].mxu0
      %v402 = vadd.f32 0.0, %v401
      %v403 = vpop.f32.mrb[0].mxu0
      %v404 = vadd.f32 0.0, %v403
      %405 = vmatprep.mubr.f32.mxu0 0.0
      %406 = vmatmul.mubr.f32.gmra.mrb[0].mxu0 %v217
      %v407 = vpop.f32.mrb[0].mxu0
      %v408 = vadd.f32 0.0, %v407
      %v409 = vpop.f32.mrb[0].mxu0
      %v410 = vadd.f32 0.0, %v409
      %411 = vmatprep.mubr.f32.mxu0 0.0
      %412 = vmatmul.mubr.f32.gmra.mrb[0].mxu0 %v220
      %v413 = vpop.f32.mrb[0].mxu0
      %v414 = vadd.f32 0.0, %v413
      %v415 = vpop.f32.mrb[0].mxu0
      %v416 = vadd.f32 0.0, %v415
      %417 = vmatprep.mubr.f32.mxu0 0.0
      %418 = vmatmul.mubr.f32.gmra.mrb[0].mxu0 %v223
      %v419 = vpop.f32.mrb[0].mxu0
      %v420 = vadd.f32 0.0, %v419
      %v421 = vpop.f32.mrb[0].mxu0
      %v422 = vadd.f32 0.0, %v421
      %423 = vmatprep.mubr.f32.mxu0 0.0
      %424 = vmatmul.mubr.f32.gmra.mrb[0].mxu0 %v226
      %v425 = vpop.f32.mrb[0].mxu0
      %v426 = vadd.f32 0.0, %v425
      %v427 = vpop.f32.mrb[0].mxu0
      %v428 = vadd.f32 0.0, %v427
      %429 = vmatprep.mubr.f32.mxu0 0.0
      %430 = vmatmul.mubr.f32.gmra.mrb[0].mxu0 %v229
      %v431 = vpop.f32.mrb[0].mxu0
      %v432 = vadd.f32 0.0, %v431
      %v433 = vpop.f32.mrb[0].mxu0
      %v434 = vadd.f32 0.0, %v433
      %435 = vmatprep.mubr.f32.mxu0 0.0
      %436 = vmatmul.mubr.f32.gmra.mrb[0].mxu0 %v232
      %v437 = vpop.f32.mrb[0].mxu0
      %v438 = vadd.f32 0.0, %v437
      %v439 = vpop.f32.mrb[0].mxu0
      %v440 = vadd.f32 0.0, %v439
      %441 = vmatprep.mubr.f32.mxu0 0.0
      %442 = vmatmul.mubr.f32.gmra.mrb[0].mxu0 %v235
      %v443 = vpop.f32.mrb[0].mxu0
      %v444 = vadd.f32 0.0, %v443
      %v445 = vpop.f32.mrb[0].mxu0
      %v446 = vadd.f32 0.0, %v445
      %447 = vmatprep.mubr.f32.mxu0 0.0
      %448 = vmatmul.mubr.f32.gmra.mrb[0].mxu0 %v238
      %v449 = vpop.f32.mrb[0].mxu0
      %v450 = vadd.f32 0.0, %v449
      %v451 = vpop.f32.mrb[0].mxu0
      %v452 = vadd.f32 0.0, %v451
      %453 = vmatprep.mubr.f32.mxu0 0.0
      %454 = vmatmul.mubr.f32.gmra.mrb[0].mxu0 %v241
      %v455 = vpop.f32.mrb[0].mxu0
      %v456 = vadd.f32 0.0, %v455
      %v457 = vpop.f32.mrb[0].mxu0
      %v458 = vadd.f32 0.0, %v457
      %459 = vmatprep.mubr.f32.mxu0 0.0
      %460 = vmatmul.mubr.f32.gmra.mrb[0].mxu0 %v244
      %v461 = vpop.f32.mrb[0].mxu0
      %v462 = vadd.f32 0.0, %v461
      %v463 = vpop.f32.mrb[0].mxu0
      %v464 = vadd.f32 0.0, %v463
      %465 = vmatprep.mubr.f32.mxu0 0.0
      %466 = vmatmul.mubr.f32.gmra.mrb[0].mxu0 %v247
      %v467 = vpop.f32.mrb[0].mxu0
      %v468 = vadd.f32 0.0, %v467
      %v469 = vpop.f32.mrb[0].mxu0
      %v470 = vadd.f32 0.0, %v469
      %471 = vmatprep.mubr.f32.mxu0 0.0
      %472 = vmatmul.mubr.f32.gmra.mrb[0].mxu0 %v250
      %v473 = vpop.f32.mrb[0].mxu0
      %v474 = vadd.f32 0.0, %v473
      %v475 = vpop.f32.mrb[0].mxu0
      %v476 = vadd.f32 0.0, %v475
      %477 = vmatprep.mubr.f32.mxu0 0.0
      %478 = vmatmul.mubr.f32.gmra.mrb[0].mxu0 %v253
      %v479 = vpop.f32.mrb[0].mxu0
      %v480 = vadd.f32 0.0, %v479
      %v481 = vpop.f32.mrb[0].mxu0
      %v482 = vadd.f32 0.0, %v481
      %483 = vmatprep.mubr.f32.mxu0 0.0
      %484 = vmatmul.mubr.f32.gmra.mrb[0].mxu0 %v256
      %v485 = vpop.f32.mrb[0].mxu0
      %v486 = vadd.f32 0.0, %v485
      %v487 = vpop.f32.mrb[0].mxu0
      %v488 = vadd.f32 0.0, %v487
      %489 = vmatprep.mubr.f32.mxu0 0.0
      %490 = vmatmul.mubr.f32.gmra.mrb[0].mxu0 %v259
      %v491 = vpop.f32.mrb[0].mxu0
      %v492 = vadd.f32 0.0, %v491
      %v493 = vpop.f32.mrb[0].mxu0
      %v494 = vadd.f32 0.0, %v493
      %495 = vmatprep.mubr.f32.mxu0 0.0
      %496 = vmatmul.mubr.f32.gmra.mrb[0].mxu0 %v262
      %v497 = vpop.f32.mrb[0].mxu0
      %v498 = vadd.f32 0.0, %v497
      %v499 = vpop.f32.mrb[0].mxu0
      %v500 = vadd.f32 0.0, %v499
      %501 = vmatprep.mubr.f32.mxu0 0.0
      %502 = vmatmul.mubr.f32.gmra.mrb[0].mxu0 %v265
      %v503 = vpop.f32.mrb[0].mxu0
      %v504 = vadd.f32 0.0, %v503
      %v505 = vpop.f32.mrb[0].mxu0
      %v506 = vadd.f32 0.0, %v505
      %507 = vmatprep.mubr.f32.mxu0 0.0
      %508 = vmatmul.mubr.f32.gmra.mrb[0].mxu0 %v268
      %v509 = vpop.f32.mrb[0].mxu0
      %v510 = vadd.f32 0.0, %v509
      %v511 = vpop.f32.mrb[0].mxu0
      %v512 = vadd.f32 0.0, %v511
      %513 = vmatprep.mubr.f32.mxu0 0.0
      %514 = vmatmul.mubr.f32.gmra.mrb[0].mxu0 %v271
      %v515 = vpop.f32.mrb[0].mxu0
      %v516 = vadd.f32 0.0, %v515
      %v517 = vpop.f32.mrb[0].mxu0
      %v518 = vadd.f32 0.0, %v517
      %519 = vmatprep.mubr.f32.mxu0 0.0
      %520 = vmatmul.mubr.f32.gmra.mrb[0].mxu0 %v274
      %v521 = vpop.f32.mrb[0].mxu0
      %v522 = vadd.f32 0.0, %v521
      %v523 = vpop.f32.mrb[0].mxu0
      %v524 = vadd.f32 0.0, %v523
      %525 = vmatprep.mubr.f32.mxu0 0.0
      %526 = vmatmul.mubr.f32.gmra.mrb[0].mxu0 %v277
      %v527 = vpop.f32.mrb[0].mxu0
      %v528 = vadd.f32 0.0, %v527
      %v529 = vpop.f32.mrb[0].mxu0
      %v530 = vadd.f32 0.0, %v529
      %531 = vmatprep.mubr.f32.mxu0 0.0
      %532 = vmatmul.mubr.f32.gmra.mrb[0].mxu0 %v280
      %v533 = vpop.f32.mrb[0].mxu0
      %v534 = vadd.f32 0.0, %v533
      %v535 = vpop.f32.mrb[0].mxu0
      %v536 = vadd.f32 0.0, %v535
      %537 = vmatprep.mubr.f32.mxu0 0.0
      %538 = vmatmul.mubr.f32.gmra.mrb[0].mxu0 %v283
      %v539 = vpop.f32.mrb[0].mxu0
      %v540 = vadd.f32 0.0, %v539
      %v541 = vpop.f32.mrb[0].mxu0
      %v542 = vadd.f32 0.0, %v541
      %543 = vmatprep.mubr.f32.mxu0 0.0
      %544 = vmatmul.mubr.f32.gmra.mrb[0].mxu0 %v286
      %v545 = vpop.f32.mrb[0].mxu0
      %v546 = vadd.f32 0.0, %v545
      %v547 = vpop.f32.mrb[0].mxu0
      %v548 = vadd.f32 0.0, %v547
      %549 = vdwg.mxu0
      %v550 = vmul.f32 %v123, %v123
      %v552 = vcombine.high %v550, %v550
      %554 = vxpose.xlu0.b32.start [1/16] %v550, 128
      %555 = vxpose.xlu0.b32.cont [2/16] 0.0, 128
      %556 = vxpose.xlu0.b32.cont [3/16] 0.0, 128
      %557 = vxpose.xlu0.b32.cont [4/16] 0.0, 128
      %558 = vxpose.xlu0.b32.cont [5/16] 0.0, 128
      %559 = vxpose.xlu0.b32.cont [6/16] 0.0, 128
      %560 = vxpose.xlu0.b32.cont [7/16] 0.0, 128
      %561 = vxpose.xlu0.b32.cont [8/16] 0.0, 128
      %562 = vxpose.xlu0.b32.cont [9/16] 0.0, 128
      %563 = vxpose.xlu0.b32.cont [10/16] 0.0, 128
      %564 = vxpose.xlu0.b32.cont [11/16] 0.0, 128
      %565 = vxpose.xlu0.b32.cont [12/16] 0.0, 128
      %566 = vxpose.xlu0.b32.cont [13/16] 0.0, 128
      %567 = vxpose.xlu0.b32.cont [14/16] 0.0, 128
      %568 = vxpose.xlu0.b32.cont [15/16] 0.0, 128
      %569 = vxpose.xlu0.b32.end [16/16] 0.0, 128
      %v570 = vpop.trf.xlu0
      %v571 = vpop.trf.xlu0
      %v572 = vpop.trf.xlu0
      %v573 = vpop.trf.xlu0
      %v574 = vpop.trf.xlu0
      %v575 = vpop.trf.xlu0
      %v576 = vpop.trf.xlu0
      %v577 = vpop.trf.xlu0
      %v578 = vpop.trf.xlu0
      %v579 = vpop.trf.xlu0
      %v580 = vpop.trf.xlu0
      %v581 = vpop.trf.xlu0
      %v582 = vpop.trf.xlu0
      %v583 = vpop.trf.xlu0
      %v584 = vpop.trf.xlu0
      %v585 = vpop.trf.xlu0
      %586 = vxpose.xlu0.b32.start [1/16] %v552, 128
      %587 = vxpose.xlu0.b32.cont [2/16] 0.0, 128
      %588 = vxpose.xlu0.b32.cont [3/16] 0.0, 128
      %589 = vxpose.xlu0.b32.cont [4/16] 0.0, 128
      %590 = vxpose.xlu0.b32.cont [5/16] 0.0, 128
      %591 = vxpose.xlu0.b32.cont [6/16] 0.0, 128
      %592 = vxpose.xlu0.b32.cont [7/16] 0.0, 128
      %593 = vxpose.xlu0.b32.cont [8/16] 0.0, 128
      %594 = vxpose.xlu0.b32.cont [9/16] 0.0, 128
      %595 = vxpose.xlu0.b32.cont [10/16] 0.0, 128
      %596 = vxpose.xlu0.b32.cont [11/16] 0.0, 128
      %597 = vxpose.xlu0.b32.cont [12/16] 0.0, 128
      %598 = vxpose.xlu0.b32.cont [13/16] 0.0, 128
      %599 = vxpose.xlu0.b32.cont [14/16] 0.0, 128
      %600 = vxpose.xlu0.b32.cont [15/16] 0.0, 128
      %601 = vxpose.xlu0.b32.end [16/16] 0.0, 128
      %v602 = vpop.trf.xlu0
      %v603 = vpop.trf.xlu0
      %v604 = vpop.trf.xlu0
      %v605 = vpop.trf.xlu0
      %v606 = vpop.trf.xlu0
      %v607 = vpop.trf.xlu0
      %v608 = vpop.trf.xlu0
      %v609 = vpop.trf.xlu0
      %v610 = vpop.trf.xlu0
      %v611 = vpop.trf.xlu0
      %v612 = vpop.trf.xlu0
      %v613 = vpop.trf.xlu0
      %v614 = vpop.trf.xlu0
      %v615 = vpop.trf.xlu0
      %v616 = vpop.trf.xlu0
      %v617 = vpop.trf.xlu0
      %v619 = vsel %vm191, %v570, 0
      %v622 = vsel %vm191, %v571, 0
      %v625 = vsel %vm191, %v572, 0
      %v628 = vsel %vm191, %v573, 0
      %v631 = vsel %vm191, %v574, 0
      %v634 = vsel %vm191, %v575, 0
      %v637 = vsel %vm191, %v576, 0
      %v640 = vsel %vm191, %v577, 0
      %v643 = vsel %vm191, %v578, 0
      %v646 = vsel %vm191, %v579, 0
      %v649 = vsel %vm191, %v580, 0
      %v652 = vsel %vm191, %v581, 0
      %v655 = vsel %vm191, %v582, 0
      %v658 = vsel %vm191, %v583, 0
      %v661 = vsel %vm191, %v584, 0
      %v664 = vsel %vm191, %v585, 0
      %v667 = vsel %vm191, %v602, 0
      %v670 = vsel %vm191, %v603, 0
      %v673 = vsel %vm191, %v604, 0
      %v676 = vsel %vm191, %v605, 0
      %v679 = vsel %vm191, %v606, 0
      %v682 = vsel %vm191, %v607, 0
      %v685 = vsel %vm191, %v608, 0
      %v688 = vsel %vm191, %v609, 0
      %v691 = vsel %vm191, %v610, 0
      %v694 = vsel %vm191, %v611, 0
      %v697 = vsel %vm191, %v612, 0
      %v700 = vsel %vm191, %v613, 0
      %v703 = vsel %vm191, %v614, 0
      %v706 = vsel %vm191, %v615, 0
      %v709 = vsel %vm191, %v616, 0
      %v712 = vsel %vm191, %v617, 0
      %v715 = vsel %vm288, 1.0, 0
      %717 = vmatprep.subr.mxu0 0.0
      %718 = vmatpush1.msra.mxu0 %v715
      %719 = vmatprep.subr.mxu0 0.0
      %720 = vmatpush1.msra.mxu0 0.0
      %721 = vmatprep.subr.mxu0 0.0
      %722 = vmatpush1.msra.mxu0 0.0
      %723 = vmatprep.subr.mxu0 0.0
      %724 = vmatpush1.msra.mxu0 0.0
      %725 = vmatprep.subr.mxu0 0.0
      %726 = vmatpush1.msra.mxu0 0.0
      %727 = vmatprep.subr.mxu0 0.0
      %728 = vmatpush1.msra.mxu0 0.0
      %729 = vmatprep.subr.mxu0 0.0
      %730 = vmatpush1.msra.mxu0 0.0
      %731 = vmatprep.subr.mxu0 0.0
      %732 = vmatpush1.msra.mxu0 0.0
      %733 = vmatprep.subr.mxu0 0.0
      %734 = vmatpush1.msra.mxu0 0.0
      %735 = vmatprep.subr.mxu0 0.0
      %736 = vmatpush1.msra.mxu0 0.0
      %737 = vmatprep.subr.mxu0 0.0
      %738 = vmatpush1.msra.mxu0 0.0
      %739 = vmatprep.subr.mxu0 0.0
      %740 = vmatpush1.msra.mxu0 0.0
      %741 = vmatprep.subr.mxu0 0.0
      %742 = vmatpush1.msra.mxu0 0.0
      %743 = vmatprep.subr.mxu0 0.0
      %744 = vmatpush1.msra.mxu0 0.0
      %745 = vmatprep.subr.mxu0 0.0
      %746 = vmatpush1.msra.mxu0 0.0
      %747 = vmatprep.subr.mxu0 0.0
      %748 = vmatpush1.msra.mxu0 0.0
      %749 = vmatprep.subr.mxu0 0.0
      %750 = vmatpush1.msra.mxu0 0.0
      %751 = vmatprep.subr.mxu0 0.0
      %752 = vmatpush1.msra.mxu0 0.0
      %753 = vmatprep.subr.mxu0 0.0
      %754 = vmatpush1.msra.mxu0 0.0
      %755 = vmatprep.subr.mxu0 0.0
      %756 = vmatpush1.msra.mxu0 0.0
      %757 = vmatprep.subr.mxu0 0.0
      %758 = vmatpush1.msra.mxu0 0.0
      %759 = vmatprep.subr.mxu0 0.0
      %760 = vmatpush1.msra.mxu0 0.0
      %761 = vmatprep.subr.mxu0 0.0
      %762 = vmatpush1.msra.mxu0 0.0
      %763 = vmatprep.subr.mxu0 0.0
      %764 = vmatpush1.msra.mxu0 0.0
      %765 = vmatprep.subr.mxu0 0.0
      %766 = vmatpush1.msra.mxu0 0.0
      %767 = vmatprep.subr.mxu0 0.0
      %768 = vmatpush1.msra.mxu0 0.0
      %769 = vmatprep.subr.mxu0 0.0
      %770 = vmatpush1.msra.mxu0 0.0
      %771 = vmatprep.subr.mxu0 0.0
      %772 = vmatpush1.msra.mxu0 0.0
      %773 = vmatprep.subr.mxu0 0.0
      %774 = vmatpush1.msra.mxu0 0.0
      %775 = vmatprep.subr.mxu0 0.0
      %776 = vmatpush1.msra.mxu0 0.0
      %777 = vmatprep.subr.mxu0 0.0
      %778 = vmatpush1.msra.mxu0 0.0
      %779 = vmatprep.subr.mxu0 0.0
      %780 = vmatpush1.msra.mxu0 0.0
      %781 = vmatprep.mubr.f32.mxu0 0.0
      %782 = vmatmul.mubr.f32.gmra.mrb[0].mxu0 %v619
      %v783 = vpop.f32.mrb[0].mxu0
      %v784 = vadd.f32 0.0, %v783
      %v785 = vpop.f32.mrb[0].mxu0
      %786 = vmatprep.mubr.f32.mxu0 0.0
      %787 = vmatmul.mubr.f32.gmra.mrb[0].mxu0 %v622
      %v788 = vpop.f32.mrb[0].mxu0
      %v789 = vadd.f32 0.0, %v788
      %v790 = vpop.f32.mrb[0].mxu0
      %791 = vmatprep.mubr.f32.mxu0 0.0
      %792 = vmatmul.mubr.f32.gmra.mrb[0].mxu0 %v625
      %v793 = vpop.f32.mrb[0].mxu0
      %v794 = vadd.f32 0.0, %v793
      %v795 = vpop.f32.mrb[0].mxu0
      %796 = vmatprep.mubr.f32.mxu0 0.0
      %797 = vmatmul.mubr.f32.gmra.mrb[0].mxu0 %v628
      %v798 = vpop.f32.mrb[0].mxu0
      %v799 = vadd.f32 0.0, %v798
      %v800 = vpop.f32.mrb[0].mxu0
      %801 = vmatprep.mubr.f32.mxu0 0.0
      %802 = vmatmul.mubr.f32.gmra.mrb[0].mxu0 %v631
      %v803 = vpop.f32.mrb[0].mxu0
      %v804 = vadd.f32 0.0, %v803
      %v805 = vpop.f32.mrb[0].mxu0
      %806 = vmatprep.mubr.f32.mxu0 0.0
      %807 = vmatmul.mubr.f32.gmra.mrb[0].mxu0 %v634
      %v808 = vpop.f32.mrb[0].mxu0
      %v809 = vadd.f32 0.0, %v808
      %v810 = vpop.f32.mrb[0].mxu0
      %811 = vmatprep.mubr.f32.mxu0 0.0
      %812 = vmatmul.mubr.f32.gmra.mrb[0].mxu0 %v637
      %v813 = vpop.f32.mrb[0].mxu0
      %v814 = vadd.f32 0.0, %v813
      %v815 = vpop.f32.mrb[0].mxu0
      %816 = vmatprep.mubr.f32.mxu0 0.0
      %817 = vmatmul.mubr.f32.gmra.mrb[0].mxu0 %v640
      %v818 = vpop.f32.mrb[0].mxu0
      %v819 = vadd.f32 0.0, %v818
      %v820 = vpop.f32.mrb[0].mxu0
      %821 = vmatprep.mubr.f32.mxu0 0.0
      %822 = vmatmul.mubr.f32.gmra.mrb[0].mxu0 %v643
      %v823 = vpop.f32.mrb[0].mxu0
      %v824 = vadd.f32 0.0, %v823
      %v825 = vpop.f32.mrb[0].mxu0
      %826 = vmatprep.mubr.f32.mxu0 0.0
      %827 = vmatmul.mubr.f32.gmra.mrb[0].mxu0 %v646
      %v828 = vpop.f32.mrb[0].mxu0
      %v829 = vadd.f32 0.0, %v828
      %v830 = vpop.f32.mrb[0].mxu0
      %831 = vmatprep.mubr.f32.mxu0 0.0
      %832 = vmatmul.mubr.f32.gmra.mrb[0].mxu0 %v649
      %v833 = vpop.f32.mrb[0].mxu0
      %v834 = vadd.f32 0.0, %v833
      %v835 = vpop.f32.mrb[0].mxu0
      %836 = vmatprep.mubr.f32.mxu0 0.0
      %837 = vmatmul.mubr.f32.gmra.mrb[0].mxu0 %v652
      %v838 = vpop.f32.mrb[0].mxu0
      %v839 = vadd.f32 0.0, %v838
      %v840 = vpop.f32.mrb[0].mxu0
      %841 = vmatprep.mubr.f32.mxu0 0.0
      %842 = vmatmul.mubr.f32.gmra.mrb[0].mxu0 %v655
      %v843 = vpop.f32.mrb[0].mxu0
      %v844 = vadd.f32 0.0, %v843
      %v845 = vpop.f32.mrb[0].mxu0
      %846 = vmatprep.mubr.f32.mxu0 0.0
      %847 = vmatmul.mubr.f32.gmra.mrb[0].mxu0 %v658
      %v848 = vpop.f32.mrb[0].mxu0
      %v849 = vadd.f32 0.0, %v848
      %v850 = vpop.f32.mrb[0].mxu0
      %851 = vmatprep.mubr.f32.mxu0 0.0
      %852 = vmatmul.mubr.f32.gmra.mrb[0].mxu0 %v661
      %v853 = vpop.f32.mrb[0].mxu0
      %v854 = vadd.f32 0.0, %v853
      %v855 = vpop.f32.mrb[0].mxu0
      %856 = vmatprep.mubr.f32.mxu0 0.0
      %857 = vmatmul.mubr.f32.gmra.mrb[0].mxu0 %v664
      %v858 = vpop.f32.mrb[0].mxu0
      %v859 = vadd.f32 0.0, %v858
      %v860 = vpop.f32.mrb[0].mxu0
      %861 = vmatprep.mubr.f32.mxu0 0.0
      %862 = vmatmul.mubr.f32.gmra.mrb[0].mxu0 %v667
      %v863 = vpop.f32.mrb[0].mxu0
      %v864 = vadd.f32 0.0, %v863
      %v865 = vpop.f32.mrb[0].mxu0
      %866 = vmatprep.mubr.f32.mxu0 0.0
      %867 = vmatmul.mubr.f32.gmra.mrb[0].mxu0 %v670
      %v868 = vpop.f32.mrb[0].mxu0
      %v869 = vadd.f32 0.0, %v868
      %v870 = vpop.f32.mrb[0].mxu0
      %871 = vmatprep.mubr.f32.mxu0 0.0
      %872 = vmatmul.mubr.f32.gmra.mrb[0].mxu0 %v673
      %v873 = vpop.f32.mrb[0].mxu0
      %v874 = vadd.f32 0.0, %v873
      %v875 = vpop.f32.mrb[0].mxu0
      %876 = vmatprep.mubr.f32.mxu0 0.0
      %877 = vmatmul.mubr.f32.gmra.mrb[0].mxu0 %v676
      %v878 = vpop.f32.mrb[0].mxu0
      %v879 = vadd.f32 0.0, %v878
      %v880 = vpop.f32.mrb[0].mxu0
      %881 = vmatprep.mubr.f32.mxu0 0.0
      %882 = vmatmul.mubr.f32.gmra.mrb[0].mxu0 %v679
      %v883 = vpop.f32.mrb[0].mxu0
      %v884 = vadd.f32 0.0, %v883
      %v885 = vpop.f32.mrb[0].mxu0
      %886 = vmatprep.mubr.f32.mxu0 0.0
      %887 = vmatmul.mubr.f32.gmra.mrb[0].mxu0 %v682
      %v888 = vpop.f32.mrb[0].mxu0
      %v889 = vadd.f32 0.0, %v888
      %v890 = vpop.f32.mrb[0].mxu0
      %891 = vmatprep.mubr.f32.mxu0 0.0
      %892 = vmatmul.mubr.f32.gmra.mrb[0].mxu0 %v685
      %v893 = vpop.f32.mrb[0].mxu0
      %v894 = vadd.f32 0.0, %v893
      %v895 = vpop.f32.mrb[0].mxu0
      %896 = vmatprep.mubr.f32.mxu0 0.0
      %897 = vmatmul.mubr.f32.gmra.mrb[0].mxu0 %v688
      %v898 = vpop.f32.mrb[0].mxu0
      %v899 = vadd.f32 0.0, %v898
      %v900 = vpop.f32.mrb[0].mxu0
      %901 = vmatprep.mubr.f32.mxu0 0.0
      %902 = vmatmul.mubr.f32.gmra.mrb[0].mxu0 %v691
      %v903 = vpop.f32.mrb[0].mxu0
      %v904 = vadd.f32 0.0, %v903
      %v905 = vpop.f32.mrb[0].mxu0
      %906 = vmatprep.mubr.f32.mxu0 0.0
      %907 = vmatmul.mubr.f32.gmra.mrb[0].mxu0 %v694
      %v908 = vpop.f32.mrb[0].mxu0
      %v909 = vadd.f32 0.0, %v908
      %v910 = vpop.f32.mrb[0].mxu0
      %911 = vmatprep.mubr.f32.mxu0 0.0
      %912 = vmatmul.mubr.f32.gmra.mrb[0].mxu0 %v697
      %v913 = vpop.f32.mrb[0].mxu0
      %v914 = vadd.f32 0.0, %v913
      %v915 = vpop.f32.mrb[0].mxu0
      %916 = vmatprep.mubr.f32.mxu0 0.0
      %917 = vmatmul.mubr.f32.gmra.mrb[0].mxu0 %v700
      %v918 = vpop.f32.mrb[0].mxu0
      %v919 = vadd.f32 0.0, %v918
      %v920 = vpop.f32.mrb[0].mxu0
      %921 = vmatprep.mubr.f32.mxu0 0.0
      %922 = vmatmul.mubr.f32.gmra.mrb[0].mxu0 %v703
      %v923 = vpop.f32.mrb[0].mxu0
      %v924 = vadd.f32 0.0, %v923
      %v925 = vpop.f32.mrb[0].mxu0
      %926 = vmatprep.mubr.f32.mxu0 0.0
      %927 = vmatmul.mubr.f32.gmra.mrb[0].mxu0 %v706
      %v928 = vpop.f32.mrb[0].mxu0
      %v929 = vadd.f32 0.0, %v928
      %v930 = vpop.f32.mrb[0].mxu0
      %931 = vmatprep.mubr.f32.mxu0 0.0
      %932 = vmatmul.mubr.f32.gmra.mrb[0].mxu0 %v709
      %v933 = vpop.f32.mrb[0].mxu0
      %v934 = vadd.f32 0.0, %v933
      %v935 = vpop.f32.mrb[0].mxu0
      %936 = vmatprep.mubr.f32.mxu0 0.0
      %937 = vmatmul.mubr.f32.gmra.mrb[0].mxu0 %v712
      %v938 = vpop.f32.mrb[0].mxu0
      %v939 = vadd.f32 0.0, %v938
      %v940 = vpop.f32.mrb[0].mxu0
      %941 = vdwg.mxu0
      %v942 = vsel %vm191, 1.0, 0
      %v944 = vsel %vm288, %v550, 0
      %v946 = vsel %vm288, %v552, 0
      %948 = vmatprep.subr.mxu0 %v946
      %949 = vmatpush1.msra.mxu0 %v944
      %950 = vmatprep.subr.mxu0 0.0
      %951 = vmatpush1.msra.mxu0 0.0
      %952 = vmatprep.subr.mxu0 0.0
      %953 = vmatpush1.msra.mxu0 0.0
      %954 = vmatprep.subr.mxu0 0.0
      %955 = vmatpush1.msra.mxu0 0.0
      %956 = vmatprep.subr.mxu0 0.0
      %957 = vmatpush1.msra.mxu0 0.0
      %958 = vmatprep.subr.mxu0 0.0
      %959 = vmatpush1.msra.mxu0 0.0
      %960 = vmatprep.subr.mxu0 0.0
      %961 = vmatpush1.msra.mxu0 0.0
      %962 = vmatprep.subr.mxu0 0.0
      %963 = vmatpush1.msra.mxu0 0.0
      %964 = vmatprep.subr.mxu0 0.0
      %965 = vmatpush1.msra.mxu0 0.0
      %966 = vmatprep.subr.mxu0 0.0
      %967 = vmatpush1.msra.mxu0 0.0
      %968 = vmatprep.subr.mxu0 0.0
      %969 = vmatpush1.msra.mxu0 0.0
      %970 = vmatprep.subr.mxu0 0.0
      %971 = vmatpush1.msra.mxu0 0.0
      %972 = vmatprep.subr.mxu0 0.0
      %973 = vmatpush1.msra.mxu0 0.0
      %974 = vmatprep.subr.mxu0 0.0
      %975 = vmatpush1.msra.mxu0 0.0
      %976 = vmatprep.subr.mxu0 0.0
      %977 = vmatpush1.msra.mxu0 0.0
      %978 = vmatprep.subr.mxu0 0.0
      %979 = vmatpush1.msra.mxu0 0.0
      %980 = vmatprep.subr.mxu0 0.0
      %981 = vmatpush1.msra.mxu0 0.0
      %982 = vmatprep.subr.mxu0 0.0
      %983 = vmatpush1.msra.mxu0 0.0
      %984 = vmatprep.subr.mxu0 0.0
      %985 = vmatpush1.msra.mxu0 0.0
      %986 = vmatprep.subr.mxu0 0.0
      %987 = vmatpush1.msra.mxu0 0.0
      %988 = vmatprep.subr.mxu0 0.0
      %989 = vmatpush1.msra.mxu0 0.0
      %990 = vmatprep.subr.mxu0 0.0
      %991 = vmatpush1.msra.mxu0 0.0
      %992 = vmatprep.subr.mxu0 0.0
      %993 = vmatpush1.msra.mxu0 0.0
      %994 = vmatprep.subr.mxu0 0.0
      %995 = vmatpush1.msra.mxu0 0.0
      %996 = vmatprep.subr.mxu0 0.0
      %997 = vmatpush1.msra.mxu0 0.0
      %998 = vmatprep.subr.mxu0 0.0
      %999 = vmatpush1.msra.mxu0 0.0
      %1000 = vmatprep.subr.mxu0 0.0
      %1001 = vmatpush1.msra.mxu0 0.0
      %1002 = vmatprep.subr.mxu0 0.0
      %1003 = vmatpush1.msra.mxu0 0.0
      %1004 = vmatprep.subr.mxu0 0.0
      %1005 = vmatpush1.msra.mxu0 0.0
      %1006 = vmatprep.subr.mxu0 0.0
      %1007 = vmatpush1.msra.mxu0 0.0
      %1008 = vmatprep.subr.mxu0 0.0
      %1009 = vmatpush1.msra.mxu0 0.0
      %1010 = vmatprep.subr.mxu0 0.0
      %1011 = vmatpush1.msra.mxu0 0.0
      %1012 = vmatprep.mubr.f32.mxu0 0.0
      %1013 = vmatmul.mubr.f32.gmra.mrb[0].mxu0 %v942
      %v1014 = vpop.f32.mrb[0].mxu0
      %v1015 = vadd.f32 0.0, %v1014
      %v1016 = vpop.f32.mrb[0].mxu0
      %v1017 = vadd.f32 0.0, %v1016
      %1018 = vdwg.mxu0
      %1020 = vset.pattern.permute.xlu0 0
      %1021 = vperm.xlu0 %1020, %v784
      %v1022 = vpop.permute.xlu0 %1021
      %1025 = vset.pattern.permute.xlu0 0
      %1026 = vperm.xlu0 %1025, %v789
      %v1027 = vpop.permute.xlu0 %1026
      %1030 = vset.pattern.permute.xlu0 0
      %1031 = vperm.xlu0 %1030, %v794
      %v1032 = vpop.permute.xlu0 %1031
      %1035 = vset.pattern.permute.xlu0 0
      %1036 = vperm.xlu0 %1035, %v799
      %v1037 = vpop.permute.xlu0 %1036
      %1040 = vset.pattern.permute.xlu0 0
      %1041 = vperm.xlu0 %1040, %v804
      %v1042 = vpop.permute.xlu0 %1041
      %1045 = vset.pattern.permute.xlu0 0
      %1046 = vperm.xlu0 %1045, %v809
      %v1047 = vpop.permute.xlu0 %1046
      %1050 = vset.pattern.permute.xlu0 0
      %1051 = vperm.xlu0 %1050, %v814
      %v1052 = vpop.permute.xlu0 %1051
      %1055 = vset.pattern.permute.xlu0 0
      %1056 = vperm.xlu0 %1055, %v819
      %v1057 = vpop.permute.xlu0 %1056
      %1060 = vset.pattern.permute.xlu0 0
      %1061 = vperm.xlu0 %1060, %v824
      %v1062 = vpop.permute.xlu0 %1061
      %1065 = vset.pattern.permute.xlu0 0
      %1066 = vperm.xlu0 %1065, %v829
      %v1067 = vpop.permute.xlu0 %1066
      %1070 = vset.pattern.permute.xlu0 0
      %1071 = vperm.xlu0 %1070, %v834
      %v1072 = vpop.permute.xlu0 %1071
      %1075 = vset.pattern.permute.xlu0 0
      %1076 = vperm.xlu0 %1075, %v839
      %v1077 = vpop.permute.xlu0 %1076
      %1080 = vset.pattern.permute.xlu0 0
      %1081 = vperm.xlu0 %1080, %v844
      %v1082 = vpop.permute.xlu0 %1081
      %1085 = vset.pattern.permute.xlu0 0
      %1086 = vperm.xlu0 %1085, %v849
      %v1087 = vpop.permute.xlu0 %1086
      %1090 = vset.pattern.permute.xlu0 0
      %1091 = vperm.xlu0 %1090, %v854
      %v1092 = vpop.permute.xlu0 %1091
      %1095 = vset.pattern.permute.xlu0 0
      %1096 = vperm.xlu0 %1095, %v859
      %v1097 = vpop.permute.xlu0 %1096
      %1100 = vset.pattern.permute.xlu0 0
      %1101 = vperm.xlu0 %1100, %v864
      %v1102 = vpop.permute.xlu0 %1101
      %1105 = vset.pattern.permute.xlu0 0
      %1106 = vperm.xlu0 %1105, %v869
      %v1107 = vpop.permute.xlu0 %1106
      %1110 = vset.pattern.permute.xlu0 0
      %1111 = vperm.xlu0 %1110, %v874
      %v1112 = vpop.permute.xlu0 %1111
      %1115 = vset.pattern.permute.xlu0 0
      %1116 = vperm.xlu0 %1115, %v879
      %v1117 = vpop.permute.xlu0 %1116
      %1120 = vset.pattern.permute.xlu0 0
      %1121 = vperm.xlu0 %1120, %v884
      %v1122 = vpop.permute.xlu0 %1121
      %1125 = vset.pattern.permute.xlu0 0
      %1126 = vperm.xlu0 %1125, %v889
      %v1127 = vpop.permute.xlu0 %1126
      %1130 = vset.pattern.permute.xlu0 0
      %1131 = vperm.xlu0 %1130, %v894
      %v1132 = vpop.permute.xlu0 %1131
      %1135 = vset.pattern.permute.xlu0 0
      %1136 = vperm.xlu0 %1135, %v899
      %v1137 = vpop.permute.xlu0 %1136
      %1140 = vset.pattern.permute.xlu0 0
      %1141 = vperm.xlu0 %1140, %v904
      %v1142 = vpop.permute.xlu0 %1141
      %1145 = vset.pattern.permute.xlu0 0
      %1146 = vperm.xlu0 %1145, %v909
      %v1147 = vpop.permute.xlu0 %1146
      %1150 = vset.pattern.permute.xlu0 0
      %1151 = vperm.xlu0 %1150, %v914
      %v1152 = vpop.permute.xlu0 %1151
      %1155 = vset.pattern.permute.xlu0 0
      %1156 = vperm.xlu0 %1155, %v919
      %v1157 = vpop.permute.xlu0 %1156
      %1160 = vset.pattern.permute.xlu0 0
      %1161 = vperm.xlu0 %1160, %v924
      %v1162 = vpop.permute.xlu0 %1161
      %1165 = vset.pattern.permute.xlu0 0
      %1166 = vperm.xlu0 %1165, %v929
      %v1167 = vpop.permute.xlu0 %1166
      %1170 = vset.pattern.permute.xlu0 0
      %1171 = vperm.xlu0 %1170, %v934
      %v1172 = vpop.permute.xlu0 %1171
      %1175 = vset.pattern.permute.xlu0 0
      %1176 = vperm.xlu0 %1175, %v939
      %v1177 = vpop.permute.xlu0 %1176
      %v1179 = vlaneseq
      %v1180 = vshrl.u32 %v1179, 7
      %v1181 = vsub.s32 0, %v1180
      %v1182 = vrot.slane %v1015, %v1181
      %v1183 = vlaneseq
      %v1184 = vshrl.u32 %v1183, 7
      %v1185 = vsub.s32 0, %v1184
      %v1186 = vrot.slane %v1017, %v1185
      %v1187 = vadd.f32 %v1022, %v1182
      %v1188 = vadd.f32 %v1022, %v1186
      %v1189 = vadd.f32 %v1027, %v1182
      %v1190 = vadd.f32 %v1027, %v1186
      %v1191 = vadd.f32 %v1032, %v1182
      %v1192 = vadd.f32 %v1032, %v1186
      %v1193 = vadd.f32 %v1037, %v1182
      %v1194 = vadd.f32 %v1037, %v1186
      %v1195 = vadd.f32 %v1042, %v1182
      %v1196 = vadd.f32 %v1042, %v1186
      %v1197 = vadd.f32 %v1047, %v1182
      %v1198 = vadd.f32 %v1047, %v1186
      %v1199 = vadd.f32 %v1052, %v1182
      %v1200 = vadd.f32 %v1052, %v1186
      %v1201 = vadd.f32 %v1057, %v1182
      %v1202 = vadd.f32 %v1057, %v1186
      %v1203 = vadd.f32 %v1062, %v1182
      %v1204 = vadd.f32 %v1062, %v1186
      %v1205 = vadd.f32 %v1067, %v1182
      %v1206 = vadd.f32 %v1067, %v1186
      %v1207 = vadd.f32 %v1072, %v1182
      %v1208 = vadd.f32 %v1072, %v1186
      %v1209 = vadd.f32 %v1077, %v1182
      %v1210 = vadd.f32 %v1077, %v1186
      %v1211 = vadd.f32 %v1082, %v1182
      %v1212 = vadd.f32 %v1082, %v1186
      %v1213 = vadd.f32 %v1087, %v1182
      %v1214 = vadd.f32 %v1087, %v1186
      %v1215 = vadd.f32 %v1092, %v1182
      %v1216 = vadd.f32 %v1092, %v1186
      %v1217 = vadd.f32 %v1097, %v1182
      %v1218 = vadd.f32 %v1097, %v1186
      %v1219 = vadd.f32 %v1102, %v1182
      %v1220 = vadd.f32 %v1102, %v1186
      %v1221 = vadd.f32 %v1107, %v1182
      %v1222 = vadd.f32 %v1107, %v1186
      %v1223 = vadd.f32 %v1112, %v1182
      %v1224 = vadd.f32 %v1112, %v1186
      %v1225 = vadd.f32 %v1117, %v1182
      %v1226 = vadd.f32 %v1117, %v1186
      %v1227 = vadd.f32 %v1122, %v1182
      %v1228 = vadd.f32 %v1122, %v1186
      %v1229 = vadd.f32 %v1127, %v1182
      %v1230 = vadd.f32 %v1127, %v1186
      %v1231 = vadd.f32 %v1132, %v1182
      %v1232 = vadd.f32 %v1132, %v1186
      %v1233 = vadd.f32 %v1137, %v1182
      %v1234 = vadd.f32 %v1137, %v1186
      %v1235 = vadd.f32 %v1142, %v1182
      %v1236 = vadd.f32 %v1142, %v1186
      %v1237 = vadd.f32 %v1147, %v1182
      %v1238 = vadd.f32 %v1147, %v1186
      %v1239 = vadd.f32 %v1152, %v1182
      %v1240 = vadd.f32 %v1152, %v1186
      %v1241 = vadd.f32 %v1157, %v1182
      %v1242 = vadd.f32 %v1157, %v1186
      %v1243 = vadd.f32 %v1162, %v1182
      %v1244 = vadd.f32 %v1162, %v1186
      %v1245 = vadd.f32 %v1167, %v1182
      %v1246 = vadd.f32 %v1167, %v1186
      %v1247 = vadd.f32 %v1172, %v1182
      %v1248 = vadd.f32 %v1172, %v1186
      %v1249 = vadd.f32 %v1177, %v1182
      %v1250 = vadd.f32 %v1177, %v1186
      %v1251 = vmul.f32 %v360, 2.0
      %v1252 = vmul.f32 %v362, 2.0
      %v1253 = vmul.f32 %v366, 2.0
      %v1254 = vmul.f32 %v368, 2.0
      %v1255 = vmul.f32 %v372, 2.0
      %v1256 = vmul.f32 %v374, 2.0
      %v1257 = vmul.f32 %v378, 2.0
      %v1258 = vmul.f32 %v380, 2.0
      %v1259 = vmul.f32 %v384, 2.0
      %v1260 = vmul.f32 %v386, 2.0
      %v1261 = vmul.f32 %v390, 2.0
      %v1262 = vmul.f32 %v392, 2.0
      %v1263 = vmul.f32 %v396, 2.0
      %v1264 = vmul.f32 %v398, 2.0
      %v1265 = vmul.f32 %v402, 2.0
      %v1266 = vmul.f32 %v404, 2.0
      %v1267 = vmul.f32 %v408, 2.0
      %v1268 = vmul.f32 %v410, 2.0
      %v1269 = vmul.f32 %v414, 2.0
      %v1270 = vmul.f32 %v416, 2.0
      %v1271 = vmul.f32 %v420, 2.0
      %v1272 = vmul.f32 %v422, 2.0
      %v1273 = vmul.f32 %v426, 2.0
      %v1274 = vmul.f32 %v428, 2.0
      %v1275 = vmul.f32 %v432, 2.0
      %v1276 = vmul.f32 %v434, 2.0
      %v1277 = vmul.f32 %v438, 2.0
      %v1278 = vmul.f32 %v440, 2.0
      %v1279 = vmul.f32 %v444, 2.0
      %v1280 = vmul.f32 %v446, 2.0
      %v1281 = vmul.f32 %v450, 2.0
      %v1282 = vmul.f32 %v452, 2.0
      %v1283 = vmul.f32 %v456, 2.0
      %v1284 = vmul.f32 %v458, 2.0
      %v1285 = vmul.f32 %v462, 2.0
      %v1286 = vmul.f32 %v464, 2.0
      %v1287 = vmul.f32 %v468, 2.0
      %v1288 = vmul.f32 %v470, 2.0
      %v1289 = vmul.f32 %v474, 2.0
      %v1290 = vmul.f32 %v476, 2.0
      %v1291 = vmul.f32 %v480, 2.0
      %v1292 = vmul.f32 %v482, 2.0
      %v1293 = vmul.f32 %v486, 2.0
      %v1294 = vmul.f32 %v488, 2.0
      %v1295 = vmul.f32 %v492, 2.0
      %v1296 = vmul.f32 %v494, 2.0
      %v1297 = vmul.f32 %v498, 2.0
      %v1298 = vmul.f32 %v500, 2.0
      %v1299 = vmul.f32 %v504, 2.0
      %v1300 = vmul.f32 %v506, 2.0
      %v1301 = vmul.f32 %v510, 2.0
      %v1302 = vmul.f32 %v512, 2.0
      %v1303 = vmul.f32 %v516, 2.0
      %v1304 = vmul.f32 %v518, 2.0
      %v1305 = vmul.f32 %v522, 2.0
      %v1306 = vmul.f32 %v524, 2.0
      %v1307 = vmul.f32 %v528, 2.0
      %v1308 = vmul.f32 %v530, 2.0
      %v1309 = vmul.f32 %v534, 2.0
      %v1310 = vmul.f32 %v536, 2.0
      %v1311 = vmul.f32 %v540, 2.0
      %v1312 = vmul.f32 %v542, 2.0
      %v1313 = vmul.f32 %v546, 2.0
      %v1314 = vmul.f32 %v548, 2.0
      %v1315 = vsub.f32 %v1187, %v1251
      %v1316 = vsub.f32 %v1188, %v1252
      %v1317 = vsub.f32 %v1189, %v1253
      %v1318 = vsub.f32 %v1190, %v1254
      %v1319 = vsub.f32 %v1191, %v1255
      %v1320 = vsub.f32 %v1192, %v1256
      %v1321 = vsub.f32 %v1193, %v1257
      %v1322 = vsub.f32 %v1194, %v1258
      %v1323 = vsub.f32 %v1195, %v1259
      %v1324 = vsub.f32 %v1196, %v1260
      %v1325 = vsub.f32 %v1197, %v1261
      %v1326 = vsub.f32 %v1198, %v1262
      %v1327 = vsub.f32 %v1199, %v1263
      %v1328 = vsub.f32 %v1200, %v1264
      %v1329 = vsub.f32 %v1201, %v1265
      %v1330 = vsub.f32 %v1202, %v1266
      %v1331 = vsub.f32 %v1203, %v1267
      %v1332 = vsub.f32 %v1204, %v1268
      %v1333 = vsub.f32 %v1205, %v1269
      %v1334 = vsub.f32 %v1206, %v1270
      %v1335 = vsub.f32 %v1207, %v1271
      %v1336 = vsub.f32 %v1208, %v1272
      %v1337 = vsub.f32 %v1209, %v1273
      %v1338 = vsub.f32 %v1210, %v1274
      %v1339 = vsub.f32 %v1211, %v1275
      %v1340 = vsub.f32 %v1212, %v1276
      %v1341 = vsub.f32 %v1213, %v1277
      %v1342 = vsub.f32 %v1214, %v1278
      %v1343 = vsub.f32 %v1215, %v1279
      %v1344 = vsub.f32 %v1216, %v1280
      %v1345 = vsub.f32 %v1217, %v1281
      %v1346 = vsub.f32 %v1218, %v1282
      %v1347 = vsub.f32 %v1219, %v1283
      %v1348 = vsub.f32 %v1220, %v1284
      %v1349 = vsub.f32 %v1221, %v1285
      %v1350 = vsub.f32 %v1222, %v1286
      %v1351 = vsub.f32 %v1223, %v1287
      %v1352 = vsub.f32 %v1224, %v1288
      %v1353 = vsub.f32 %v1225, %v1289
      %v1354 = vsub.f32 %v1226, %v1290
      %v1355 = vsub.f32 %v1227, %v1291
      %v1356 = vsub.f32 %v1228, %v1292
      %v1357 = vsub.f32 %v1229, %v1293
      %v1358 = vsub.f32 %v1230, %v1294
      %v1359 = vsub.f32 %v1231, %v1295
      %v1360 = vsub.f32 %v1232, %v1296
      %v1361 = vsub.f32 %v1233, %v1297
      %v1362 = vsub.f32 %v1234, %v1298
      %v1363 = vsub.f32 %v1235, %v1299
      %v1364 = vsub.f32 %v1236, %v1300
      %v1365 = vsub.f32 %v1237, %v1301
      %v1366 = vsub.f32 %v1238, %v1302
      %v1367 = vsub.f32 %v1239, %v1303
      %v1368 = vsub.f32 %v1240, %v1304
      %v1369 = vsub.f32 %v1241, %v1305
      %v1370 = vsub.f32 %v1242, %v1306
      %v1371 = vsub.f32 %v1243, %v1307
      %v1372 = vsub.f32 %v1244, %v1308
      %v1373 = vsub.f32 %v1245, %v1309
      %v1374 = vsub.f32 %v1246, %v1310
      %v1375 = vsub.f32 %v1247, %v1311
      %v1376 = vsub.f32 %v1248, %v1312
      %v1377 = vsub.f32 %v1249, %v1313
      %v1378 = vsub.f32 %v1250, %v1314
      %v1379 = vmax.f32 %v1315, 0.0
      %v1380 = vmax.f32 %v1316, 0.0
      %v1381 = vmax.f32 %v1317, 0.0
      %v1382 = vmax.f32 %v1318, 0.0
      %v1383 = vmax.f32 %v1319, 0.0
      %v1384 = vmax.f32 %v1320, 0.0
      %v1385 = vmax.f32 %v1321, 0.0
      %v1386 = vmax.f32 %v1322, 0.0
      %v1387 = vmax.f32 %v1323, 0.0
      %v1388 = vmax.f32 %v1324, 0.0
      %v1389 = vmax.f32 %v1325, 0.0
      %v1390 = vmax.f32 %v1326, 0.0
      %v1391 = vmax.f32 %v1327, 0.0
      %v1392 = vmax.f32 %v1328, 0.0
      %v1393 = vmax.f32 %v1329, 0.0
      %v1394 = vmax.f32 %v1330, 0.0
      %v1395 = vmax.f32 %v1331, 0.0
      %v1396 = vmax.f32 %v1332, 0.0
      %v1397 = vmax.f32 %v1333, 0.0
      %v1398 = vmax.f32 %v1334, 0.0
      %v1399 = vmax.f32 %v1335, 0.0
      %v1400 = vmax.f32 %v1336, 0.0
      %v1401 = vmax.f32 %v1337, 0.0
      %v1402 = vmax.f32 %v1338, 0.0
      %v1403 = vmax.f32 %v1339, 0.0
      %v1404 = vmax.f32 %v1340, 0.0
      %v1405 = vmax.f32 %v1341, 0.0
      %v1406 = vmax.f32 %v1342, 0.0
      %v1407 = vmax.f32 %v1343, 0.0
      %v1408 = vmax.f32 %v1344, 0.0
      %v1409 = vmax.f32 %v1345, 0.0
      %v1410 = vmax.f32 %v1346, 0.0
      %v1411 = vmax.f32 %v1347, 0.0
      %v1412 = vmax.f32 %v1348, 0.0
      %v1413 = vmax.f32 %v1349, 0.0
      %v1414 = vmax.f32 %v1350, 0.0
      %v1415 = vmax.f32 %v1351, 0.0
      %v1416 = vmax.f32 %v1352, 0.0
      %v1417 = vmax.f32 %v1353, 0.0
      %v1418 = vmax.f32 %v1354, 0.0
      %v1419 = vmax.f32 %v1355, 0.0
      %v1420 = vmax.f32 %v1356, 0.0
      %v1421 = vmax.f32 %v1357, 0.0
      %v1422 = vmax.f32 %v1358, 0.0
      %v1423 = vmax.f32 %v1359, 0.0
      %v1424 = vmax.f32 %v1360, 0.0
      %v1425 = vmax.f32 %v1361, 0.0
      %v1426 = vmax.f32 %v1362, 0.0
      %v1427 = vmax.f32 %v1363, 0.0
      %v1428 = vmax.f32 %v1364, 0.0
      %v1429 = vmax.f32 %v1365, 0.0
      %v1430 = vmax.f32 %v1366, 0.0
      %v1431 = vmax.f32 %v1367, 0.0
      %v1432 = vmax.f32 %v1368, 0.0
      %v1433 = vmax.f32 %v1369, 0.0
      %v1434 = vmax.f32 %v1370, 0.0
      %v1435 = vmax.f32 %v1371, 0.0
      %v1436 = vmax.f32 %v1372, 0.0
      %v1437 = vmax.f32 %v1373, 0.0
      %v1438 = vmax.f32 %v1374, 0.0
      %v1439 = vmax.f32 %v1375, 0.0
      %v1440 = vmax.f32 %v1376, 0.0
      %v1441 = vmax.f32 %v1377, 0.0
      %v1442 = vmax.f32 %v1378, 0.0
      %v1443 = vmin.f32 %v1379, %v1383
      %v1444 = vmin.f32 %v1381, %v1385
      %v1445 = vmin.f32 %v1443, %v1387
      %v1446 = vmin.f32 %v1444, %v1389
      %v1447 = vmin.f32 %v1445, %v1391
      %v1448 = vmin.f32 %v1446, %v1393
      %v1449 = vmin.f32 %v1447, %v1395
      %v1450 = vmin.f32 %v1448, %v1397
      %v1451 = vmin.f32 %v1449, %v1399
      %v1452 = vmin.f32 %v1450, %v1401
      %v1453 = vmin.f32 %v1451, %v1403
      %v1454 = vmin.f32 %v1452, %v1405
      %v1455 = vmin.f32 %v1453, %v1407
      %v1456 = vmin.f32 %v1454, %v1409
      %v1457 = vmin.f32 %v1455, %v1411
      %v1458 = vmin.f32 %v1456, %v1413
      %v1459 = vmin.f32 %v1457, %v1415
      %v1460 = vmin.f32 %v1458, %v1417
      %v1461 = vmin.f32 %v1459, %v1419
      %v1462 = vmin.f32 %v1460, %v1421
      %v1463 = vmin.f32 %v1461, %v1423
      %v1464 = vmin.f32 %v1462, %v1425
      %v1465 = vmin.f32 %v1463, %v1427
      %v1466 = vmin.f32 %v1464, %v1429
      %v1467 = vmin.f32 %v1465, %v1431
      %v1468 = vmin.f32 %v1466, %v1433
      %v1469 = vmin.f32 %v1467, %v1435
      %v1470 = vmin.f32 %v1468, %v1437
      %v1471 = vmin.f32 %v1469, %v1439
      %v1472 = vmin.f32 %v1470, %v1441
      %v1473 = vmin.f32 %v1471, %v1472
      %v1474 = vrot.slane %v1473, 4
      %v1475 = vmin.f32 %v1473, %v1474
      %v1476 = vrot.slane %v1475, 2
      %v1477 = vmin.f32 %v1475, %v1476
      %v1478 = vrot.slane %v1477, 1
      %v1479 = vmin.f32 %v1477, %v1478
      %v1480 = vmin.f32 %v1380, %v1384
      %v1481 = vmin.f32 %v1382, %v1386
      %v1482 = vmin.f32 %v1480, %v1388
      %v1483 = vmin.f32 %v1481, %v1390
      %v1484 = vmin.f32 %v1482, %v1392
      %v1485 = vmin.f32 %v1483, %v1394
      %v1486 = vmin.f32 %v1484, %v1396
      %v1487 = vmin.f32 %v1485, %v1398
      %v1488 = vmin.f32 %v1486, %v1400
      %v1489 = vmin.f32 %v1487, %v1402
      %v1490 = vmin.f32 %v1488, %v1404
      %v1491 = vmin.f32 %v1489, %v1406
      %v1492 = vmin.f32 %v1490, %v1408
      %v1493 = vmin.f32 %v1491, %v1410
      %v1494 = vmin.f32 %v1492, %v1412
      %v1495 = vmin.f32 %v1493, %v1414
      %v1496 = vmin.f32 %v1494, %v1416
      %v1497 = vmin.f32 %v1495, %v1418
      %v1498 = vmin.f32 %v1496, %v1420
      %v1499 = vmin.f32 %v1497, %v1422
      %v1500 = vmin.f32 %v1498, %v1424
      %v1501 = vmin.f32 %v1499, %v1426
      %v1502 = vmin.f32 %v1500, %v1428
      %v1503 = vmin.f32 %v1501, %v1430
      %v1504 = vmin.f32 %v1502, %v1432
      %v1505 = vmin.f32 %v1503, %v1434
      %v1506 = vmin.f32 %v1504, %v1436
      %v1507 = vmin.f32 %v1505, %v1438
      %v1508 = vmin.f32 %v1506, %v1440
      %v1509 = vmin.f32 %v1507, %v1442
      %v1510 = vmin.f32 %v1508, %v1509
      %v1511 = vrot.slane %v1510, 4
      %v1512 = vmin.f32 %v1510, %v1511
      %v1513 = vrot.slane %v1512, 2
      %v1514 = vmin.f32 %v1512, %v1513
      %v1515 = vrot.slane %v1514, 1
      %v1516 = vmin.f32 %v1514, %v1515
      %vm1517 = vcmp.le.f32.partialorder %v1379, %v1479
      %vm1518 = vcmp.le.f32.partialorder %v1380, %v1516
      %vm1519 = vcmp.le.f32.partialorder %v1381, %v1479
      %vm1520 = vcmp.le.f32.partialorder %v1382, %v1516
      %vm1521 = vcmp.le.f32.partialorder %v1383, %v1479
      %vm1522 = vcmp.le.f32.partialorder %v1384, %v1516
      %vm1523 = vcmp.le.f32.partialorder %v1385, %v1479
      %vm1524 = vcmp.le.f32.partialorder %v1386, %v1516
      %vm1525 = vcmp.le.f32.partialorder %v1387, %v1479
      %vm1526 = vcmp.le.f32.partialorder %v1388, %v1516
      %vm1527 = vcmp.le.f32.partialorder %v1389, %v1479
      %vm1528 = vcmp.le.f32.partialorder %v1390, %v1516
      %vm1529 = vcmp.le.f32.partialorder %v1391, %v1479
      %vm1530 = vcmp.le.f32.partialorder %v1392, %v1516
      %vm1531 = vcmp.le.f32.partialorder %v1393, %v1479
      %vm1532 = vcmp.le.f32.partialorder %v1394, %v1516
      %vm1533 = vcmp.le.f32.partialorder %v1395, %v1479
      %vm1534 = vcmp.le.f32.partialorder %v1396, %v1516
      %vm1535 = vcmp.le.f32.partialorder %v1397, %v1479
      %vm1536 = vcmp.le.f32.partialorder %v1398, %v1516
      %vm1537 = vcmp.le.f32.partialorder %v1399, %v1479
      %vm1538 = vcmp.le.f32.partialorder %v1400, %v1516
      %vm1539 = vcmp.le.f32.partialorder %v1401, %v1479
      %vm1540 = vcmp.le.f32.partialorder %v1402, %v1516
      %vm1541 = vcmp.le.f32.partialorder %v1403, %v1479
      %vm1542 = vcmp.le.f32.partialorder %v1404, %v1516
      %vm1543 = vcmp.le.f32.partialorder %v1405, %v1479
      %vm1544 = vcmp.le.f32.partialorder %v1406, %v1516
      %vm1545 = vcmp.le.f32.partialorder %v1407, %v1479
      %vm1546 = vcmp.le.f32.partialorder %v1408, %v1516
      %vm1547 = vcmp.le.f32.partialorder %v1409, %v1479
      %vm1548 = vcmp.le.f32.partialorder %v1410, %v1516
      %vm1549 = vcmp.le.f32.partialorder %v1411, %v1479
      %vm1550 = vcmp.le.f32.partialorder %v1412, %v1516
      %vm1551 = vcmp.le.f32.partialorder %v1413, %v1479
      %vm1552 = vcmp.le.f32.partialorder %v1414, %v1516
      %vm1553 = vcmp.le.f32.partialorder %v1415, %v1479
      %vm1554 = vcmp.le.f32.partialorder %v1416, %v1516
      %vm1555 = vcmp.le.f32.partialorder %v1417, %v1479
      %vm1556 = vcmp.le.f32.partialorder %v1418, %v1516
      %vm1557 = vcmp.le.f32.partialorder %v1419, %v1479
      %vm1558 = vcmp.le.f32.partialorder %v1420, %v1516
      %vm1559 = vcmp.le.f32.partialorder %v1421, %v1479
      %vm1560 = vcmp.le.f32.partialorder %v1422, %v1516
      %vm1561 = vcmp.le.f32.partialorder %v1423, %v1479
      %vm1562 = vcmp.le.f32.partialorder %v1424, %v1516
      %vm1563 = vcmp.le.f32.partialorder %v1425, %v1479
      %vm1564 = vcmp.le.f32.partialorder %v1426, %v1516
      %vm1565 = vcmp.le.f32.partialorder %v1427, %v1479
      %vm1566 = vcmp.le.f32.partialorder %v1428, %v1516
      %vm1567 = vcmp.le.f32.partialorder %v1429, %v1479
      %vm1568 = vcmp.le.f32.partialorder %v1430, %v1516
      %vm1569 = vcmp.le.f32.partialorder %v1431, %v1479
      %vm1570 = vcmp.le.f32.partialorder %v1432, %v1516
      %vm1571 = vcmp.le.f32.partialorder %v1433, %v1479
      %vm1572 = vcmp.le.f32.partialorder %v1434, %v1516
      %vm1573 = vcmp.le.f32.partialorder %v1435, %v1479
      %vm1574 = vcmp.le.f32.partialorder %v1436, %v1516
      %vm1575 = vcmp.le.f32.partialorder %v1437, %v1479
      %vm1576 = vcmp.le.f32.partialorder %v1438, %v1516
      %vm1577 = vcmp.le.f32.partialorder %v1439, %v1479
      %vm1578 = vcmp.le.f32.partialorder %v1440, %v1516
      %vm1579 = vcmp.le.f32.partialorder %v1441, %v1479
      %vm1580 = vcmp.le.f32.partialorder %v1442, %v1516
      %v1581 = vsel %vm1517, 1e+10, %v1379
      %v1582 = vsel %vm1518, 1e+10, %v1380
      %v1583 = vsel %vm1519, 1e+10, %v1381
      %v1584 = vsel %vm1520, 1e+10, %v1382
      %v1585 = vsel %vm1521, 1e+10, %v1383
      %v1586 = vsel %vm1522, 1e+10, %v1384
      %v1587 = vsel %vm1523, 1e+10, %v1385
      %v1588 = vsel %vm1524, 1e+10, %v1386
      %v1589 = vsel %vm1525, 1e+10, %v1387
      %v1590 = vsel %vm1526, 1e+10, %v1388
      %v1591 = vsel %vm1527, 1e+10, %v1389
      %v1592 = vsel %vm1528, 1e+10, %v1390
      %v1593 = vsel %vm1529, 1e+10, %v1391
      %v1594 = vsel %vm1530, 1e+10, %v1392
      %v1595 = vsel %vm1531, 1e+10, %v1393
      %v1596 = vsel %vm1532, 1e+10, %v1394
      %v1597 = vsel %vm1533, 1e+10, %v1395
      %v1598 = vsel %vm1534, 1e+10, %v1396
      %v1599 = vsel %vm1535, 1e+10, %v1397
      %v1600 = vsel %vm1536, 1e+10, %v1398
      %v1601 = vsel %vm1537, 1e+10, %v1399
      %v1602 = vsel %vm1538, 1e+10, %v1400
      %v1603 = vsel %vm1539, 1e+10, %v1401
      %v1604 = vsel %vm1540, 1e+10, %v1402
      %v1605 = vsel %vm1541, 1e+10, %v1403
      %v1606 = vsel %vm1542, 1e+10, %v1404
      %v1607 = vsel %vm1543, 1e+10, %v1405
      %v1608 = vsel %vm1544, 1e+10, %v1406
      %v1609 = vsel %vm1545, 1e+10, %v1407
      %v1610 = vsel %vm1546, 1e+10, %v1408
      %v1611 = vsel %vm1547, 1e+10, %v1409
      %v1612 = vsel %vm1548, 1e+10, %v1410
      %v1613 = vsel %vm1549, 1e+10, %v1411
      %v1614 = vsel %vm1550, 1e+10, %v1412
      %v1615 = vsel %vm1551, 1e+10, %v1413
      %v1616 = vsel %vm1552, 1e+10, %v1414
      %v1617 = vsel %vm1553, 1e+10, %v1415
      %v1618 = vsel %vm1554, 1e+10, %v1416
      %v1619 = vsel %vm1555, 1e+10, %v1417
      %v1620 = vsel %vm1556, 1e+10, %v1418
      %v1621 = vsel %vm1557, 1e+10, %v1419
      %v1622 = vsel %vm1558, 1e+10, %v1420
      %v1623 = vsel %vm1559, 1e+10, %v1421
      %v1624 = vsel %vm1560, 1e+10, %v1422
      %v1625 = vsel %vm1561, 1e+10, %v1423
      %v1626 = vsel %vm1562, 1e+10, %v1424
      %v1627 = vsel %vm1563, 1e+10, %v1425
      %v1628 = vsel %vm1564, 1e+10, %v1426
      %v1629 = vsel %vm1565, 1e+10, %v1427
      %v1630 = vsel %vm1566, 1e+10, %v1428
      %v1631 = vsel %vm1567, 1e+10, %v1429
      %v1632 = vsel %vm1568, 1e+10, %v1430
      %v1633 = vsel %vm1569, 1e+10, %v1431
      %v1634 = vsel %vm1570, 1e+10, %v1432
      %v1635 = vsel %vm1571, 1e+10, %v1433
      %v1636 = vsel %vm1572, 1e+10, %v1434
      %v1637 = vsel %vm1573, 1e+10, %v1435
      %v1638 = vsel %vm1574, 1e+10, %v1436
      %v1639 = vsel %vm1575, 1e+10, %v1437
      %v1640 = vsel %vm1576, 1e+10, %v1438
      %v1641 = vsel %vm1577, 1e+10, %v1439
      %v1642 = vsel %vm1578, 1e+10, %v1440
      %v1643 = vsel %vm1579, 1e+10, %v1441
      %v1644 = vsel %vm1580, 1e+10, %v1442
      %v1645 = vmin.f32 %v1581, %v1585
      %v1646 = vmin.f32 %v1583, %v1587
      %v1647 = vmin.f32 %v1645, %v1589
      %v1648 = vmin.f32 %v1646, %v1591
      %v1649 = vmin.f32 %v1647, %v1593
      %v1650 = vmin.f32 %v1648, %v1595
      %v1651 = vmin.f32 %v1649, %v1597
      %v1652 = vmin.f32 %v1650, %v1599
      %v1653 = vmin.f32 %v1651, %v1601
      %v1654 = vmin.f32 %v1652, %v1603
      %v1655 = vmin.f32 %v1653, %v1605
      %v1656 = vmin.f32 %v1654, %v1607
      %v1657 = vmin.f32 %v1655, %v1609
      %v1658 = vmin.f32 %v1656, %v1611
      %v1659 = vmin.f32 %v1657, %v1613
      %v1660 = vmin.f32 %v1658, %v1615
      %v1661 = vmin.f32 %v1659, %v1617
      %v1662 = vmin.f32 %v1660, %v1619
      %v1663 = vmin.f32 %v1661, %v1621
      %v1664 = vmin.f32 %v1662, %v1623
      %v1665 = vmin.f32 %v1663, %v1625
      %v1666 = vmin.f32 %v1664, %v1627
      %v1667 = vmin.f32 %v1665, %v1629
      %v1668 = vmin.f32 %v1666, %v1631
      %v1669 = vmin.f32 %v1667, %v1633
      %v1670 = vmin.f32 %v1668, %v1635
      %v1671 = vmin.f32 %v1669, %v1637
      %v1672 = vmin.f32 %v1670, %v1639
      %v1673 = vmin.f32 %v1671, %v1641
      %v1674 = vmin.f32 %v1672, %v1643
      %v1675 = vmin.f32 %v1673, %v1674
      %v1676 = vrot.slane %v1675, 4
      %v1677 = vmin.f32 %v1675, %v1676
      %v1678 = vrot.slane %v1677, 2
      %v1679 = vmin.f32 %v1677, %v1678
      %v1680 = vrot.slane %v1679, 1
      %v1681 = vmin.f32 %v1679, %v1680
      %v1682 = vmin.f32 %v1582, %v1586
      %v1683 = vmin.f32 %v1584, %v1588
      %v1684 = vmin.f32 %v1682, %v1590
      %v1685 = vmin.f32 %v1683, %v1592
      %v1686 = vmin.f32 %v1684, %v1594
      %v1687 = vmin.f32 %v1685, %v1596
      %v1688 = vmin.f32 %v1686, %v1598
      %v1689 = vmin.f32 %v1687, %v1600
      %v1690 = vmin.f32 %v1688, %v1602
      %v1691 = vmin.f32 %v1689, %v1604
      %v1692 = vmin.f32 %v1690, %v1606
      %v1693 = vmin.f32 %v1691, %v1608
      %v1694 = vmin.f32 %v1692, %v1610
      %v1695 = vmin.f32 %v1693, %v1612
      %v1696 = vmin.f32 %v1694, %v1614
      %v1697 = vmin.f32 %v1695, %v1616
      %v1698 = vmin.f32 %v1696, %v1618
      %v1699 = vmin.f32 %v1697, %v1620
      %v1700 = vmin.f32 %v1698, %v1622
      %v1701 = vmin.f32 %v1699, %v1624
      %v1702 = vmin.f32 %v1700, %v1626
      %v1703 = vmin.f32 %v1701, %v1628
      %v1704 = vmin.f32 %v1702, %v1630
      %v1705 = vmin.f32 %v1703, %v1632
      %v1706 = vmin.f32 %v1704, %v1634
      %v1707 = vmin.f32 %v1705, %v1636
      %v1708 = vmin.f32 %v1706, %v1638
      %v1709 = vmin.f32 %v1707, %v1640
      %v1710 = vmin.f32 %v1708, %v1642
      %v1711 = vmin.f32 %v1709, %v1644
      %v1712 = vmin.f32 %v1710, %v1711
      %v1713 = vrot.slane %v1712, 4
      %v1714 = vmin.f32 %v1712, %v1713
      %v1715 = vrot.slane %v1714, 2
      %v1716 = vmin.f32 %v1714, %v1715
      %v1717 = vrot.slane %v1716, 1
      %v1718 = vmin.f32 %v1716, %v1717
      %v1719 = vadd.f32 %v1681, 0.0
      %v1720 = vadd.f32 %v1718, 0.0
      %vm1721 = vcmp.le.f32.partialorder %v1581, %v1681
      %vm1722 = vcmp.le.f32.partialorder %v1582, %v1718
      %vm1723 = vcmp.le.f32.partialorder %v1583, %v1681
      %vm1724 = vcmp.le.f32.partialorder %v1584, %v1718
      %vm1725 = vcmp.le.f32.partialorder %v1585, %v1681
      %vm1726 = vcmp.le.f32.partialorder %v1586, %v1718
      %vm1727 = vcmp.le.f32.partialorder %v1587, %v1681
      %vm1728 = vcmp.le.f32.partialorder %v1588, %v1718
      %vm1729 = vcmp.le.f32.partialorder %v1589, %v1681
      %vm1730 = vcmp.le.f32.partialorder %v1590, %v1718
      %vm1731 = vcmp.le.f32.partialorder %v1591, %v1681
      %vm1732 = vcmp.le.f32.partialorder %v1592, %v1718
      %vm1733 = vcmp.le.f32.partialorder %v1593, %v1681
      %vm1734 = vcmp.le.f32.partialorder %v1594, %v1718
      %vm1735 = vcmp.le.f32.partialorder %v1595, %v1681
      %vm1736 = vcmp.le.f32.partialorder %v1596, %v1718
      %vm1737 = vcmp.le.f32.partialorder %v1597, %v1681
      %vm1738 = vcmp.le.f32.partialorder %v1598, %v1718
      %vm1739 = vcmp.le.f32.partialorder %v1599, %v1681
      %vm1740 = vcmp.le.f32.partialorder %v1600, %v1718
      %vm1741 = vcmp.le.f32.partialorder %v1601, %v1681
      %vm1742 = vcmp.le.f32.partialorder %v1602, %v1718
      %vm1743 = vcmp.le.f32.partialorder %v1603, %v1681
      %vm1744 = vcmp.le.f32.partialorder %v1604, %v1718
      %vm1745 = vcmp.le.f32.partialorder %v1605, %v1681
      %vm1746 = vcmp.le.f32.partialorder %v1606, %v1718
      %vm1747 = vcmp.le.f32.partialorder %v1607, %v1681
      %vm1748 = vcmp.le.f32.partialorder %v1608, %v1718
      %vm1749 = vcmp.le.f32.partialorder %v1609, %v1681
      %vm1750 = vcmp.le.f32.partialorder %v1610, %v1718
      %vm1751 = vcmp.le.f32.partialorder %v1611, %v1681
      %vm1752 = vcmp.le.f32.partialorder %v1612, %v1718
      %vm1753 = vcmp.le.f32.partialorder %v1613, %v1681
      %vm1754 = vcmp.le.f32.partialorder %v1614, %v1718
      %vm1755 = vcmp.le.f32.partialorder %v1615, %v1681
      %vm1756 = vcmp.le.f32.partialorder %v1616, %v1718
      %vm1757 = vcmp.le.f32.partialorder %v1617, %v1681
      %vm1758 = vcmp.le.f32.partialorder %v1618, %v1718
      %vm1759 = vcmp.le.f32.partialorder %v1619, %v1681
      %vm1760 = vcmp.le.f32.partialorder %v1620, %v1718
      %vm1761 = vcmp.le.f32.partialorder %v1621, %v1681
      %vm1762 = vcmp.le.f32.partialorder %v1622, %v1718
      %vm1763 = vcmp.le.f32.partialorder %v1623, %v1681
      %vm1764 = vcmp.le.f32.partialorder %v1624, %v1718
      %vm1765 = vcmp.le.f32.partialorder %v1625, %v1681
      %vm1766 = vcmp.le.f32.partialorder %v1626, %v1718
      %vm1767 = vcmp.le.f32.partialorder %v1627, %v1681
      %vm1768 = vcmp.le.f32.partialorder %v1628, %v1718
      %vm1769 = vcmp.le.f32.partialorder %v1629, %v1681
      %vm1770 = vcmp.le.f32.partialorder %v1630, %v1718
      %vm1771 = vcmp.le.f32.partialorder %v1631, %v1681
      %vm1772 = vcmp.le.f32.partialorder %v1632, %v1718
      %vm1773 = vcmp.le.f32.partialorder %v1633, %v1681
      %vm1774 = vcmp.le.f32.partialorder %v1634, %v1718
      %vm1775 = vcmp.le.f32.partialorder %v1635, %v1681
      %vm1776 = vcmp.le.f32.partialorder %v1636, %v1718
      %vm1777 = vcmp.le.f32.partialorder %v1637, %v1681
      %vm1778 = vcmp.le.f32.partialorder %v1638, %v1718
      %vm1779 = vcmp.le.f32.partialorder %v1639, %v1681
      %vm1780 = vcmp.le.f32.partialorder %v1640, %v1718
      %vm1781 = vcmp.le.f32.partialorder %v1641, %v1681
      %vm1782 = vcmp.le.f32.partialorder %v1642, %v1718
      %vm1783 = vcmp.le.f32.partialorder %v1643, %v1681
      %vm1784 = vcmp.le.f32.partialorder %v1644, %v1718
      %v1785 = vsel %vm1721, 1e+10, %v1581
      %v1786 = vsel %vm1722, 1e+10, %v1582
      %v1787 = vsel %vm1723, 1e+10, %v1583
      %v1788 = vsel %vm1724, 1e+10, %v1584
      %v1789 = vsel %vm1725, 1e+10, %v1585
      %v1790 = vsel %vm1726, 1e+10, %v1586
      %v1791 = vsel %vm1727, 1e+10, %v1587
      %v1792 = vsel %vm1728, 1e+10, %v1588
      %v1793 = vsel %vm1729, 1e+10, %v1589
      %v1794 = vsel %vm1730, 1e+10, %v1590
      %v1795 = vsel %vm1731, 1e+10, %v1591
      %v1796 = vsel %vm1732, 1e+10, %v1592
      %v1797 = vsel %vm1733, 1e+10, %v1593
      %v1798 = vsel %vm1734, 1e+10, %v1594
      %v1799 = vsel %vm1735, 1e+10, %v1595
      %v1800 = vsel %vm1736, 1e+10, %v1596
      %v1801 = vsel %vm1737, 1e+10, %v1597
      %v1802 = vsel %vm1738, 1e+10, %v1598
      %v1803 = vsel %vm1739, 1e+10, %v1599
      %v1804 = vsel %vm1740, 1e+10, %v1600
      %v1805 = vsel %vm1741, 1e+10, %v1601
      %v1806 = vsel %vm1742, 1e+10, %v1602
      %v1807 = vsel %vm1743, 1e+10, %v1603
      %v1808 = vsel %vm1744, 1e+10, %v1604
      %v1809 = vsel %vm1745, 1e+10, %v1605
      %v1810 = vsel %vm1746, 1e+10, %v1606
      %v1811 = vsel %vm1747, 1e+10, %v1607
      %v1812 = vsel %vm1748, 1e+10, %v1608
      %v1813 = vsel %vm1749, 1e+10, %v1609
      %v1814 = vsel %vm1750, 1e+10, %v1610
      %v1815 = vsel %vm1751, 1e+10, %v1611
      %v1816 = vsel %vm1752, 1e+10, %v1612
      %v1817 = vsel %vm1753, 1e+10, %v1613
      %v1818 = vsel %vm1754, 1e+10, %v1614
      %v1819 = vsel %vm1755, 1e+10, %v1615
      %v1820 = vsel %vm1756, 1e+10, %v1616
      %v1821 = vsel %vm1757, 1e+10, %v1617
      %v1822 = vsel %vm1758, 1e+10, %v1618
      %v1823 = vsel %vm1759, 1e+10, %v1619
      %v1824 = vsel %vm1760, 1e+10, %v1620
      %v1825 = vsel %vm1761, 1e+10, %v1621
      %v1826 = vsel %vm1762, 1e+10, %v1622
      %v1827 = vsel %vm1763, 1e+10, %v1623
      %v1828 = vsel %vm1764, 1e+10, %v1624
      %v1829 = vsel %vm1765, 1e+10, %v1625
      %v1830 = vsel %vm1766, 1e+10, %v1626
      %v1831 = vsel %vm1767, 1e+10, %v1627
      %v1832 = vsel %vm1768, 1e+10, %v1628
      %v1833 = vsel %vm1769, 1e+10, %v1629
      %v1834 = vsel %vm1770, 1e+10, %v1630
      %v1835 = vsel %vm1771, 1e+10, %v1631
      %v1836 = vsel %vm1772, 1e+10, %v1632
      %v1837 = vsel %vm1773, 1e+10, %v1633
      %v1838 = vsel %vm1774, 1e+10, %v1634
      %v1839 = vsel %vm1775, 1e+10, %v1635
      %v1840 = vsel %vm1776, 1e+10, %v1636
      %v1841 = vsel %vm1777, 1e+10, %v1637
      %v1842 = vsel %vm1778, 1e+10, %v1638
      %v1843 = vsel %vm1779, 1e+10, %v1639
      %v1844 = vsel %vm1780, 1e+10, %v1640
      %v1845 = vsel %vm1781, 1e+10, %v1641
      %v1846 = vsel %vm1782, 1e+10, %v1642
      %v1847 = vsel %vm1783, 1e+10, %v1643
      %v1848 = vsel %vm1784, 1e+10, %v1644
      %v1849 = vmin.f32 %v1785, %v1789
      %v1850 = vmin.f32 %v1787, %v1791
      %v1851 = vmin.f32 %v1849, %v1793
      %v1852 = vmin.f32 %v1850, %v1795
      %v1853 = vmin.f32 %v1851, %v1797
      %v1854 = vmin.f32 %v1852, %v1799
      %v1855 = vmin.f32 %v1853, %v1801
      %v1856 = vmin.f32 %v1854, %v1803
      %v1857 = vmin.f32 %v1855, %v1805
      %v1858 = vmin.f32 %v1856, %v1807
      %v1859 = vmin.f32 %v1857, %v1809
      %v1860 = vmin.f32 %v1858, %v1811
      %v1861 = vmin.f32 %v1859, %v1813
      %v1862 = vmin.f32 %v1860, %v1815
      %v1863 = vmin.f32 %v1861, %v1817
      %v1864 = vmin.f32 %v1862, %v1819
      %v1865 = vmin.f32 %v1863, %v1821
      %v1866 = vmin.f32 %v1864, %v1823
      %v1867 = vmin.f32 %v1865, %v1825
      %v1868 = vmin.f32 %v1866, %v1827
      %v1869 = vmin.f32 %v1867, %v1829
      %v1870 = vmin.f32 %v1868, %v1831
      %v1871 = vmin.f32 %v1869, %v1833
      %v1872 = vmin.f32 %v1870, %v1835
      %v1873 = vmin.f32 %v1871, %v1837
      %v1874 = vmin.f32 %v1872, %v1839
      %v1875 = vmin.f32 %v1873, %v1841
      %v1876 = vmin.f32 %v1874, %v1843
      %v1877 = vmin.f32 %v1875, %v1845
      %v1878 = vmin.f32 %v1876, %v1847
      %v1879 = vmin.f32 %v1877, %v1878
      %v1880 = vrot.slane %v1879, 4
      %v1881 = vmin.f32 %v1879, %v1880
      %v1882 = vrot.slane %v1881, 2
      %v1883 = vmin.f32 %v1881, %v1882
      %v1884 = vrot.slane %v1883, 1
      %v1885 = vmin.f32 %v1883, %v1884
      %v1886 = vmin.f32 %v1786, %v1790
      %v1887 = vmin.f32 %v1788, %v1792
      %v1888 = vmin.f32 %v1886, %v1794
      %v1889 = vmin.f32 %v1887, %v1796
      %v1890 = vmin.f32 %v1888, %v1798
      %v1891 = vmin.f32 %v1889, %v1800
      %v1892 = vmin.f32 %v1890, %v1802
      %v1893 = vmin.f32 %v1891, %v1804
      %v1894 = vmin.f32 %v1892, %v1806
      %v1895 = vmin.f32 %v1893, %v1808
      %v1896 = vmin.f32 %v1894, %v1810
      %v1897 = vmin.f32 %v1895, %v1812
      %v1898 = vmin.f32 %v1896, %v1814
      %v1899 = vmin.f32 %v1897, %v1816
      %v1900 = vmin.f32 %v1898, %v1818
      %v1901 = vmin.f32 %v1899, %v1820
      %v1902 = vmin.f32 %v1900, %v1822
      %v1903 = vmin.f32 %v1901, %v1824
      %v1904 = vmin.f32 %v1902, %v1826
      %v1905 = vmin.f32 %v1903, %v1828
      %v1906 = vmin.f32 %v1904, %v1830
      %v1907 = vmin.f32 %v1905, %v1832
      %v1908 = vmin.f32 %v1906, %v1834
      %v1909 = vmin.f32 %v1907, %v1836
      %v1910 = vmin.f32 %v1908, %v1838
      %v1911 = vmin.f32 %v1909, %v1840
      %v1912 = vmin.f32 %v1910, %v1842
      %v1913 = vmin.f32 %v1911, %v1844
      %v1914 = vmin.f32 %v1912, %v1846
      %v1915 = vmin.f32 %v1913, %v1848
      %v1916 = vmin.f32 %v1914, %v1915
      %v1917 = vrot.slane %v1916, 4
      %v1918 = vmin.f32 %v1916, %v1917
      %v1919 = vrot.slane %v1918, 2
      %v1920 = vmin.f32 %v1918, %v1919
      %v1921 = vrot.slane %v1920, 1
      %v1922 = vmin.f32 %v1920, %v1921
      %v1923 = vadd.f32 %v1719, %v1885
      %v1924 = vadd.f32 %v1720, %v1922
      %v1925 = vrcp.pop 2.0
      %v1926 = vmul.f32 %v1923, %v1925
      %v1927 = vmul.f32 %v1924, %v1925
      %vm1928 = vcmask 1040384
      %v1929 = vsel %vm1928, %v1926, 0.0
      %v1930 = vsel %vm1928, %v1927, 0.0
      %v1931 = vadd.f32 %v1929, %v1930
      %1932 = vadd.xlane.f32.xlu0 %v1931
      %v1933 = vpop.xlane.xlu0 %1932
      %v1934 = vrot.slane %v1933, 4
      %v1935 = vadd.f32 %v1933, %v1934
      %v1936 = vrot.slane %v1935, 2
      %v1937 = vadd.f32 %v1935, %v1936
      %v1938 = vrot.slane %v1937, 1
      %v1939 = vadd.f32 %v1937, %v1938
      %s1940 = vtos %v1939
      %v1941 = vrcp.pop 256.0
      %s1942 = vtos %v1941
      %s1943 = smul.f32 %s1940, %s1942
      %v1944 = vstv %s1943
      %v1945 = vsub.f32 %v1926, %v1944
      %v1946 = vsub.f32 %v1927, %v1944
      %v1947 = vmul.f32 %v1945, %v1945
      %v1948 = vmul.f32 %v1946, %v1946
      %v1949 = vsel %vm1928, %v1947, 0.0
      %v1950 = vsel %vm1928, %v1948, 0.0
      %v1951 = vadd.f32 %v1949, %v1950
      %1952 = vadd.xlane.f32.xlu0 %v1951
      %v1953 = vpop.xlane.xlu0 %1952
      %v1954 = vrot.slane %v1953, 4
      %v1955 = vadd.f32 %v1953, %v1954
      %v1956 = vrot.slane %v1955, 2
      %v1957 = vadd.f32 %v1955, %v1956
      %v1958 = vrot.slane %v1957, 1
      %v1959 = vadd.f32 %v1957, %v1958
      %s1960 = vtos %v1959
      %v1961 = vrcp.pop 255.0
      %s1962 = vtos %v1961
      %s1963 = smul.f32 %s1960, %s1962
      %v1964 = vstv %s1963
      %v1965 = vrsqrt.pop %v1964
      %v1966 = vmul.f32 %v1964, %v1965
      %vm1967 = vcmp.eq.f32.partialorder %v1964, inf
      %v1968 = vsel %vm1967, %v1964, %v1966
      %vm1969 = vcmp.eq.f32.partialorder %v1964, 0.0
      %v1970 = vand.u32 %v1964, 2147483648
      %v1971 = vsel %vm1969, %v1970, %v1968
      %s1972 = vtos %v1971
      %s1973 = smul.f32 %s1972, 1.1
      %s1974 = sadd.f32 %s1943, %s1973
      %v1975 = vstv %s1974
      %vm1976 = vcmp.gt.f32.partialorder %v1926, %v1975
      %vm1977 = vcmp.gt.f32.partialorder %v1927, %v1975
      %v1978 = vsel %vm1976, 1e+09, 0.0
      %v1979 = vsel %vm1977, 1e+09, 0.0
      %v1980 = vadd.f32 %v1926, %v1978
      %v1981 = vadd.f32 %v1927, %v1979
      %v1984 = vcombine.low %v1980, %v1981
      %v1986 = vunpack.c.l.s4 1966171168
      %v1987 = vunpack.c.0.s8 %v1986
      %v1988 = vlaneseq
      %v1989 = vshrl.u32 %v1988, 7
      %v1990 = vsub.s32 %v1987, %v1989
      %v1991 = vrot.slane %v1984, %v1990
      %v1993 = vunpack.c.l.s4 1966171168
      %v1994 = vunpack.c.0.s8 %v1993
      %v1995 = vlaneseq
      %v1996 = vshrl.u32 %v1995, 7
      %v1997 = vsub.s32 %v1994, %v1996
      %v1998 = vrot.slane %v1991, %v1997
      %v2000 = vlaneseq
      %vm2001 = vcmp.ge.s32.totalorder %v2000, 0
      %vm2002 = vcmp.lt.s32.totalorder %v2000, 256
      %vm2003 = vmand %vm2001, %vm2002
      %2004 = vst.msk [vmem:[%s121] sm:$0x3] %vm2003, %v1998
      %s2005 = scalar_lea.vmem %s115, 8
      %v2006 = vld [vmem:[%s2005] sm:$0x77]
      %v2008 = vcombine.high %v2006, %v2006
      %2010 = vxpose.xlu0.b32.start [1/16] %v2006, 128
      %2011 = vxpose.xlu0.b32.cont [2/16] 0.0, 128
      %2012 = vxpose.xlu0.b32.cont [3/16] 0.0, 128
      %2013 = vxpose.xlu0.b32.cont [4/16] 0.0, 128
      %2014 = vxpose.xlu0.b32.cont [5/16] 0.0, 128
      %2015 = vxpose.xlu0.b32.cont [6/16] 0.0, 128
      %2016 = vxpose.xlu0.b32.cont [7/16] 0.0, 128
      %2017 = vxpose.xlu0.b32.cont [8/16] 0.0, 128
      %2018 = vxpose.xlu0.b32.cont [9/16] 0.0, 128
      %2019 = vxpose.xlu0.b32.cont [10/16] 0.0, 128
      %2020 = vxpose.xlu0.b32.cont [11/16] 0.0, 128
      %2021 = vxpose.xlu0.b32.cont [12/16] 0.0, 128
      %2022 = vxpose.xlu0.b32.cont [13/16] 0.0, 128
      %2023 = vxpose.xlu0.b32.cont [14/16] 0.0, 128
      %2024 = vxpose.xlu0.b32.cont [15/16] 0.0, 128
      %2025 = vxpose.xlu0.b32.end [16/16] 0.0, 128
      %v2026 = vpop.trf.xlu0
      %v2027 = vpop.trf.xlu0
      %v2028 = vpop.trf.xlu0
      %v2029 = vpop.trf.xlu0
      %v2030 = vpop.trf.xlu0
      %v2031 = vpop.trf.xlu0
      %v2032 = vpop.trf.xlu0
      %v2033 = vpop.trf.xlu0
      %v2034 = vpop.trf.xlu0
      %v2035 = vpop.trf.xlu0
      %v2036 = vpop.trf.xlu0
      %v2037 = vpop.trf.xlu0
      %v2038 = vpop.trf.xlu0
      %v2039 = vpop.trf.xlu0
      %v2040 = vpop.trf.xlu0
      %v2041 = vpop.trf.xlu0
      %2042 = vxpose.xlu0.b32.start [1/16] %v2008, 128
      %2043 = vxpose.xlu0.b32.cont [2/16] 0.0, 128
      %2044 = vxpose.xlu0.b32.cont [3/16] 0.0, 128
      %2045 = vxpose.xlu0.b32.cont [4/16] 0.0, 128
      %2046 = vxpose.xlu0.b32.cont [5/16] 0.0, 128
      %2047 = vxpose.xlu0.b32.cont [6/16] 0.0, 128
      %2048 = vxpose.xlu0.b32.cont [7/16] 0.0, 128
      %2049 = vxpose.xlu0.b32.cont [8/16] 0.0, 128
      %2050 = vxpose.xlu0.b32.cont [9/16] 0.0, 128
      %2051 = vxpose.xlu0.b32.cont [10/16] 0.0, 128
      %2052 = vxpose.xlu0.b32.cont [11/16] 0.0, 128
      %2053 = vxpose.xlu0.b32.cont [12/16] 0.0, 128
      %2054 = vxpose.xlu0.b32.cont [13/16] 0.0, 128
      %2055 = vxpose.xlu0.b32.cont [14/16] 0.0, 128
      %2056 = vxpose.xlu0.b32.cont [15/16] 0.0, 128
      %2057 = vxpose.xlu0.b32.end [16/16] 0.0, 128
      %v2058 = vpop.trf.xlu0
      %v2059 = vpop.trf.xlu0
      %v2060 = vpop.trf.xlu0
      %v2061 = vpop.trf.xlu0
      %v2062 = vpop.trf.xlu0
      %v2063 = vpop.trf.xlu0
      %v2064 = vpop.trf.xlu0
      %v2065 = vpop.trf.xlu0
      %v2066 = vpop.trf.xlu0
      %v2067 = vpop.trf.xlu0
      %v2068 = vpop.trf.xlu0
      %v2069 = vpop.trf.xlu0
      %v2070 = vpop.trf.xlu0
      %v2071 = vpop.trf.xlu0
      %v2072 = vpop.trf.xlu0
      %v2073 = vpop.trf.xlu0
      %v2075 = vsel %vm191, %v2026, 0
      %v2078 = vsel %vm191, %v2027, 0
      %v2081 = vsel %vm191, %v2028, 0
      %v2084 = vsel %vm191, %v2029, 0
      %v2087 = vsel %vm191, %v2030, 0
      %v2090 = vsel %vm191, %v2031, 0
      %v2093 = vsel %vm191, %v2032, 0
      %v2096 = vsel %vm191, %v2033, 0
      %v2099 = vsel %vm191, %v2034, 0
      %v2102 = vsel %vm191, %v2035, 0
      %v2105 = vsel %vm191, %v2036, 0
      %v2108 = vsel %vm191, %v2037, 0
      %v2111 = vsel %vm191, %v2038, 0
      %v2114 = vsel %vm191, %v2039, 0
      %v2117 = vsel %vm191, %v2040, 0
      %v2120 = vsel %vm191, %v2041, 0
      %v2123 = vsel %vm191, %v2058, 0
      %v2126 = vsel %vm191, %v2059, 0
      %v2129 = vsel %vm191, %v2060, 0
      %v2132 = vsel %vm191, %v2061, 0
      %v2135 = vsel %vm191, %v2062, 0
      %v2138 = vsel %vm191, %v2063, 0
      %v2141 = vsel %vm191, %v2064, 0
      %v2144 = vsel %vm191, %v2065, 0
      %v2147 = vsel %vm191, %v2066, 0
      %v2150 = vsel %vm191, %v2067, 0
      %v2153 = vsel %vm191, %v2068, 0
      %v2156 = vsel %vm191, %v2069, 0
      %v2159 = vsel %vm191, %v2070, 0
      %v2162 = vsel %vm191, %v2071, 0
      %v2165 = vsel %vm191, %v2072, 0
      %v2168 = vsel %vm191, %v2073, 0
      %v2170 = vsel %vm288, %v2006, 0
      %v2172 = vsel %vm288, %v2008, 0
      %2174 = vmatprep.subr.mxu0 %v2172
      %2175 = vmatpush1.msra.mxu0 %v2170
      %2176 = vmatprep.subr.mxu0 0.0
      %2177 = vmatpush1.msra.mxu0 0.0
      %2178 = vmatprep.subr.mxu0 0.0
      %2179 = vmatpush1.msra.mxu0 0.0
      %2180 = vmatprep.subr.mxu0 0.0
      %2181 = vmatpush1.msra.mxu0 0.0
      %2182 = vmatprep.subr.mxu0 0.0
      %2183 = vmatpush1.msra.mxu0 0.0
      %2184 = vmatprep.subr.mxu0 0.0
      %2185 = vmatpush1.msra.mxu0 0.0
      %2186 = vmatprep.subr.mxu0 0.0
      %2187 = vmatpush1.msra.mxu0 0.0
      %2188 = vmatprep.subr.mxu0 0.0
      %2189 = vmatpush1.msra.mxu0 0.0
      %2190 = vmatprep.subr.mxu0 0.0
      %2191 = vmatpush1.msra.mxu0 0.0
      %2192 = vmatprep.subr.mxu0 0.0
      %2193 = vmatpush1.msra.mxu0 0.0
      %2194 = vmatprep.subr.mxu0 0.0
      %2195 = vmatpush1.msra.mxu0 0.0
      %2196 = vmatprep.subr.mxu0 0.0
      %2197 = vmatpush1.msra.mxu0 0.0
      %2198 = vmatprep.subr.mxu0 0.0
      %2199 = vmatpush1.msra.mxu0 0.0
      %2200 = vmatprep.subr.mxu0 0.0
      %2201 = vmatpush1.msra.mxu0 0.0
      %2202 = vmatprep.subr.mxu0 0.0
      %2203 = vmatpush1.msra.mxu0 0.0
      %2204 = vmatprep.subr.mxu0 0.0
      %2205 = vmatpush1.msra.mxu0 0.0
      %2206 = vmatprep.subr.mxu0 0.0
      %2207 = vmatpush1.msra.mxu0 0.0
      %2208 = vmatprep.subr.mxu0 0.0
      %2209 = vmatpush1.msra.mxu0 0.0
      %2210 = vmatprep.subr.mxu0 0.0
      %2211 = vmatpush1.msra.mxu0 0.0
      %2212 = vmatprep.subr.mxu0 0.0
      %2213 = vmatpush1.msra.mxu0 0.0
      %2214 = vmatprep.subr.mxu0 0.0
      %2215 = vmatpush1.msra.mxu0 0.0
      %2216 = vmatprep.subr.mxu0 0.0
      %2217 = vmatpush1.msra.mxu0 0.0
      %2218 = vmatprep.subr.mxu0 0.0
      %2219 = vmatpush1.msra.mxu0 0.0
      %2220 = vmatprep.subr.mxu0 0.0
      %2221 = vmatpush1.msra.mxu0 0.0
      %2222 = vmatprep.subr.mxu0 0.0
      %2223 = vmatpush1.msra.mxu0 0.0
      %2224 = vmatprep.subr.mxu0 0.0
      %2225 = vmatpush1.msra.mxu0 0.0
      %2226 = vmatprep.subr.mxu0 0.0
      %2227 = vmatpush1.msra.mxu0 0.0
      %2228 = vmatprep.subr.mxu0 0.0
      %2229 = vmatpush1.msra.mxu0 0.0
      %2230 = vmatprep.subr.mxu0 0.0
      %2231 = vmatpush1.msra.mxu0 0.0
      %2232 = vmatprep.subr.mxu0 0.0
      %2233 = vmatpush1.msra.mxu0 0.0
      %2234 = vmatprep.subr.mxu0 0.0
      %2235 = vmatpush1.msra.mxu0 0.0
      %2236 = vmatprep.subr.mxu0 0.0
      %2237 = vmatpush1.msra.mxu0 0.0
      %2238 = vmatprep.mubr.f32.mxu0 0.0
      %2239 = vmatmul.mubr.f32.gmra.mrb[0].mxu0 %v2075
      %v2240 = vpop.f32.mrb[0].mxu0
      %v2241 = vadd.f32 0.0, %v2240
      %v2242 = vpop.f32.mrb[0].mxu0
      %v2243 = vadd.f32 0.0, %v2242
      %2244 = vmatprep.mubr.f32.mxu0 0.0
      %2245 = vmatmul.mubr.f32.gmra.mrb[0].mxu0 %v2078
      %v2246 = vpop.f32.mrb[0].mxu0
      %v2247 = vadd.f32 0.0, %v2246
      %v2248 = vpop.f32.mrb[0].mxu0
      %v2249 = vadd.f32 0.0, %v2248
      %2250 = vmatprep.mubr.f32.mxu0 0.0
      %2251 = vmatmul.mubr.f32.gmra.mrb[0].mxu0 %v2081
      %v2252 = vpop.f32.mrb[0].mxu0
      %v2253 = vadd.f32 0.0, %v2252
      %v2254 = vpop.f32.mrb[0].mxu0
      %v2255 = vadd.f32 0.0, %v2254
      %2256 = vmatprep.mubr.f32.mxu0 0.0
      %2257 = vmatmul.mubr.f32.gmra.mrb[0].mxu0 %v2084
      %v2258 = vpop.f32.mrb[0].mxu0
      %v2259 = vadd.f32 0.0, %v2258
      %v2260 = vpop.f32.mrb[0].mxu0
      %v2261 = vadd.f32 0.0, %v2260
      %2262 = vmatprep.mubr.f32.mxu0 0.0
      %2263 = vmatmul.mubr.f32.gmra.mrb[0].mxu0 %v2087
      %v2264 = vpop.f32.mrb[0].mxu0
      %v2265 = vadd.f32 0.0, %v2264
      %v2266 = vpop.f32.mrb[0].mxu0
      %v2267 = vadd.f32 0.0, %v2266
      %2268 = vmatprep.mubr.f32.mxu0 0.0
      %2269 = vmatmul.mubr.f32.gmra.mrb[0].mxu0 %v2090
      %v2270 = vpop.f32.mrb[0].mxu0
      %v2271 = vadd.f32 0.0, %v2270
      %v2272 = vpop.f32.mrb[0].mxu0
      %v2273 = vadd.f32 0.0, %v2272
      %2274 = vmatprep.mubr.f32.mxu0 0.0
      %2275 = vmatmul.mubr.f32.gmra.mrb[0].mxu0 %v2093
      %v2276 = vpop.f32.mrb[0].mxu0
      %v2277 = vadd.f32 0.0, %v2276
      %v2278 = vpop.f32.mrb[0].mxu0
      %v2279 = vadd.f32 0.0, %v2278
      %2280 = vmatprep.mubr.f32.mxu0 0.0
      %2281 = vmatmul.mubr.f32.gmra.mrb[0].mxu0 %v2096
      %v2282 = vpop.f32.mrb[0].mxu0
      %v2283 = vadd.f32 0.0, %v2282
      %v2284 = vpop.f32.mrb[0].mxu0
      %v2285 = vadd.f32 0.0, %v2284
      %2286 = vmatprep.mubr.f32.mxu0 0.0
      %2287 = vmatmul.mubr.f32.gmra.mrb[0].mxu0 %v2099
      %v2288 = vpop.f32.mrb[0].mxu0
      %v2289 = vadd.f32 0.0, %v2288
      %v2290 = vpop.f32.mrb[0].mxu0
      %v2291 = vadd.f32 0.0, %v2290
      %2292 = vmatprep.mubr.f32.mxu0 0.0
      %2293 = vmatmul.mubr.f32.gmra.mrb[0].mxu0 %v2102
      %v2294 = vpop.f32.mrb[0].mxu0
      %v2295 = vadd.f32 0.0, %v2294
      %v2296 = vpop.f32.mrb[0].mxu0
      %v2297 = vadd.f32 0.0, %v2296
      %2298 = vmatprep.mubr.f32.mxu0 0.0
      %2299 = vmatmul.mubr.f32.gmra.mrb[0].mxu0 %v2105
      %v2300 = vpop.f32.mrb[0].mxu0
      %v2301 = vadd.f32 0.0, %v2300
      %v2302 = vpop.f32.mrb[0].mxu0
      %v2303 = vadd.f32 0.0, %v2302
      %2304 = vmatprep.mubr.f32.mxu0 0.0
      %2305 = vmatmul.mubr.f32.gmra.mrb[0].mxu0 %v2108
      %v2306 = vpop.f32.mrb[0].mxu0
      %v2307 = vadd.f32 0.0, %v2306
      %v2308 = vpop.f32.mrb[0].mxu0
      %v2309 = vadd.f32 0.0, %v2308
      %2310 = vmatprep.mubr.f32.mxu0 0.0
      %2311 = vmatmul.mubr.f32.gmra.mrb[0].mxu0 %v2111
      %v2312 = vpop.f32.mrb[0].mxu0
      %v2313 = vadd.f32 0.0, %v2312
      %v2314 = vpop.f32.mrb[0].mxu0
      %v2315 = vadd.f32 0.0, %v2314
      %2316 = vmatprep.mubr.f32.mxu0 0.0
      %2317 = vmatmul.mubr.f32.gmra.mrb[0].mxu0 %v2114
      %v2318 = vpop.f32.mrb[0].mxu0
      %v2319 = vadd.f32 0.0, %v2318
      %v2320 = vpop.f32.mrb[0].mxu0
      %v2321 = vadd.f32 0.0, %v2320
      %2322 = vmatprep.mubr.f32.mxu0 0.0
      %2323 = vmatmul.mubr.f32.gmra.mrb[0].mxu0 %v2117
      %v2324 = vpop.f32.mrb[0].mxu0
      %v2325 = vadd.f32 0.0, %v2324
      %v2326 = vpop.f32.mrb[0].mxu0
      %v2327 = vadd.f32 0.0, %v2326
      %2328 = vmatprep.mubr.f32.mxu0 0.0
      %2329 = vmatmul.mubr.f32.gmra.mrb[0].mxu0 %v2120
      %v2330 = vpop.f32.mrb[0].mxu0
      %v2331 = vadd.f32 0.0, %v2330
      %v2332 = vpop.f32.mrb[0].mxu0
      %v2333 = vadd.f32 0.0, %v2332
      %2334 = vmatprep.mubr.f32.mxu0 0.0
      %2335 = vmatmul.mubr.f32.gmra.mrb[0].mxu0 %v2123
      %v2336 = vpop.f32.mrb[0].mxu0
      %v2337 = vadd.f32 0.0, %v2336
      %v2338 = vpop.f32.mrb[0].mxu0
      %v2339 = vadd.f32 0.0, %v2338
      %2340 = vmatprep.mubr.f32.mxu0 0.0
      %2341 = vmatmul.mubr.f32.gmra.mrb[0].mxu0 %v2126
      %v2342 = vpop.f32.mrb[0].mxu0
      %v2343 = vadd.f32 0.0, %v2342
      %v2344 = vpop.f32.mrb[0].mxu0
      %v2345 = vadd.f32 0.0, %v2344
      %2346 = vmatprep.mubr.f32.mxu0 0.0
      %2347 = vmatmul.mubr.f32.gmra.mrb[0].mxu0 %v2129
      %v2348 = vpop.f32.mrb[0].mxu0
      %v2349 = vadd.f32 0.0, %v2348
      %v2350 = vpop.f32.mrb[0].mxu0
      %v2351 = vadd.f32 0.0, %v2350
      %2352 = vmatprep.mubr.f32.mxu0 0.0
      %2353 = vmatmul.mubr.f32.gmra.mrb[0].mxu0 %v2132
      %v2354 = vpop.f32.mrb[0].mxu0
      %v2355 = vadd.f32 0.0, %v2354
      %v2356 = vpop.f32.mrb[0].mxu0
      %v2357 = vadd.f32 0.0, %v2356
      %2358 = vmatprep.mubr.f32.mxu0 0.0
      %2359 = vmatmul.mubr.f32.gmra.mrb[0].mxu0 %v2135
      %v2360 = vpop.f32.mrb[0].mxu0
      %v2361 = vadd.f32 0.0, %v2360
      %v2362 = vpop.f32.mrb[0].mxu0
      %v2363 = vadd.f32 0.0, %v2362
      %2364 = vmatprep.mubr.f32.mxu0 0.0
      %2365 = vmatmul.mubr.f32.gmra.mrb[0].mxu0 %v2138
      %v2366 = vpop.f32.mrb[0].mxu0
      %v2367 = vadd.f32 0.0, %v2366
      %v2368 = vpop.f32.mrb[0].mxu0
      %v2369 = vadd.f32 0.0, %v2368
      %2370 = vmatprep.mubr.f32.mxu0 0.0
      %2371 = vmatmul.mubr.f32.gmra.mrb[0].mxu0 %v2141
      %v2372 = vpop.f32.mrb[0].mxu0
      %v2373 = vadd.f32 0.0, %v2372
      %v2374 = vpop.f32.mrb[0].mxu0
      %v2375 = vadd.f32 0.0, %v2374
      %2376 = vmatprep.mubr.f32.mxu0 0.0
      %2377 = vmatmul.mubr.f32.gmra.mrb[0].mxu0 %v2144
      %v2378 = vpop.f32.mrb[0].mxu0
      %v2379 = vadd.f32 0.0, %v2378
      %v2380 = vpop.f32.mrb[0].mxu0
      %v2381 = vadd.f32 0.0, %v2380
      %2382 = vmatprep.mubr.f32.mxu0 0.0
      %2383 = vmatmul.mubr.f32.gmra.mrb[0].mxu0 %v2147
      %v2384 = vpop.f32.mrb[0].mxu0
      %v2385 = vadd.f32 0.0, %v2384
      %v2386 = vpop.f32.mrb[0].mxu0
      %v2387 = vadd.f32 0.0, %v2386
      %2388 = vmatprep.mubr.f32.mxu0 0.0
      %2389 = vmatmul.mubr.f32.gmra.mrb[0].mxu0 %v2150
      %v2390 = vpop.f32.mrb[0].mxu0
      %v2391 = vadd.f32 0.0, %v2390
      %v2392 = vpop.f32.mrb[0].mxu0
      %v2393 = vadd.f32 0.0, %v2392
      %2394 = vmatprep.mubr.f32.mxu0 0.0
      %2395 = vmatmul.mubr.f32.gmra.mrb[0].mxu0 %v2153
      %v2396 = vpop.f32.mrb[0].mxu0
      %v2397 = vadd.f32 0.0, %v2396
      %v2398 = vpop.f32.mrb[0].mxu0
      %v2399 = vadd.f32 0.0, %v2398
      %2400 = vmatprep.mubr.f32.mxu0 0.0
      %2401 = vmatmul.mubr.f32.gmra.mrb[0].mxu0 %v2156
      %v2402 = vpop.f32.mrb[0].mxu0
      %v2403 = vadd.f32 0.0, %v2402
      %v2404 = vpop.f32.mrb[0].mxu0
      %v2405 = vadd.f32 0.0, %v2404
      %2406 = vmatprep.mubr.f32.mxu0 0.0
      %2407 = vmatmul.mubr.f32.gmra.mrb[0].mxu0 %v2159
      %v2408 = vpop.f32.mrb[0].mxu0
      %v2409 = vadd.f32 0.0, %v2408
      %v2410 = vpop.f32.mrb[0].mxu0
      %v2411 = vadd.f32 0.0, %v2410
      %2412 = vmatprep.mubr.f32.mxu0 0.0
      %2413 = vmatmul.mubr.f32.gmra.mrb[0].mxu0 %v2162
      %v2414 = vpop.f32.mrb[0].mxu0
      %v2415 = vadd.f32 0.0, %v2414
      %v2416 = vpop.f32.mrb[0].mxu0
      %v2417 = vadd.f32 0.0, %v2416
      %2418 = vmatprep.mubr.f32.mxu0 0.0
      %2419 = vmatmul.mubr.f32.gmra.mrb[0].mxu0 %v2165
      %v2420 = vpop.f32.mrb[0].mxu0
      %v2421 = vadd.f32 0.0, %v2420
      %v2422 = vpop.f32.mrb[0].mxu0
      %v2423 = vadd.f32 0.0, %v2422
      %2424 = vmatprep.mubr.f32.mxu0 0.0
      %2425 = vmatmul.mubr.f32.gmra.mrb[0].mxu0 %v2168
      %v2426 = vpop.f32.mrb[0].mxu0
      %v2427 = vadd.f32 0.0, %v2426
      %v2428 = vpop.f32.mrb[0].mxu0
      %v2429 = vadd.f32 0.0, %v2428
      %2430 = vdwg.mxu0
      %v2431 = vmul.f32 %v2006, %v2006
      %v2433 = vcombine.high %v2431, %v2431
      %2435 = vxpose.xlu0.b32.start [1/16] %v2431, 128
      %2436 = vxpose.xlu0.b32.cont [2/16] 0.0, 128
      %2437 = vxpose.xlu0.b32.cont [3/16] 0.0, 128
      %2438 = vxpose.xlu0.b32.cont [4/16] 0.0, 128
      %2439 = vxpose.xlu0.b32.cont [5/16] 0.0, 128
      %2440 = vxpose.xlu0.b32.cont [6/16] 0.0, 128
      %2441 = vxpose.xlu0.b32.cont [7/16] 0.0, 128
      %2442 = vxpose.xlu0.b32.cont [8/16] 0.0, 128
      %2443 = vxpose.xlu0.b32.cont [9/16] 0.0, 128
      %2444 = vxpose.xlu0.b32.cont [10/16] 0.0, 128
      %2445 = vxpose.xlu0.b32.cont [11/16] 0.0, 128
      %2446 = vxpose.xlu0.b32.cont [12/16] 0.0, 128
      %2447 = vxpose.xlu0.b32.cont [13/16] 0.0, 128
      %2448 = vxpose.xlu0.b32.cont [14/16] 0.0, 128
      %2449 = vxpose.xlu0.b32.cont [15/16] 0.0, 128
      %2450 = vxpose.xlu0.b32.end [16/16] 0.0, 128
      %v2451 = vpop.trf.xlu0
      %v2452 = vpop.trf.xlu0
      %v2453 = vpop.trf.xlu0
      %v2454 = vpop.trf.xlu0
      %v2455 = vpop.trf.xlu0
      %v2456 = vpop.trf.xlu0
      %v2457 = vpop.trf.xlu0
      %v2458 = vpop.trf.xlu0
      %v2459 = vpop.trf.xlu0
      %v2460 = vpop.trf.xlu0
      %v2461 = vpop.trf.xlu0
      %v2462 = vpop.trf.xlu0
      %v2463 = vpop.trf.xlu0
      %v2464 = vpop.trf.xlu0
      %v2465 = vpop.trf.xlu0
      %v2466 = vpop.trf.xlu0
      %2467 = vxpose.xlu0.b32.start [1/16] %v2433, 128
      %2468 = vxpose.xlu0.b32.cont [2/16] 0.0, 128
      %2469 = vxpose.xlu0.b32.cont [3/16] 0.0, 128
      %2470 = vxpose.xlu0.b32.cont [4/16] 0.0, 128
      %2471 = vxpose.xlu0.b32.cont [5/16] 0.0, 128
      %2472 = vxpose.xlu0.b32.cont [6/16] 0.0, 128
      %2473 = vxpose.xlu0.b32.cont [7/16] 0.0, 128
      %2474 = vxpose.xlu0.b32.cont [8/16] 0.0, 128
      %2475 = vxpose.xlu0.b32.cont [9/16] 0.0, 128
      %2476 = vxpose.xlu0.b32.cont [10/16] 0.0, 128
      %2477 = vxpose.xlu0.b32.cont [11/16] 0.0, 128
      %2478 = vxpose.xlu0.b32.cont [12/16] 0.0, 128
      %2479 = vxpose.xlu0.b32.cont [13/16] 0.0, 128
      %2480 = vxpose.xlu0.b32.cont [14/16] 0.0, 128
      %2481 = vxpose.xlu0.b32.cont [15/16] 0.0, 128
      %2482 = vxpose.xlu0.b32.end [16/16] 0.0, 128
      %v2483 = vpop.trf.xlu0
      %v2484 = vpop.trf.xlu0
      %v2485 = vpop.trf.xlu0
      %v2486 = vpop.trf.xlu0
      %v2487 = vpop.trf.xlu0
      %v2488 = vpop.trf.xlu0
      %v2489 = vpop.trf.xlu0
      %v2490 = vpop.trf.xlu0
      %v2491 = vpop.trf.xlu0
      %v2492 = vpop.trf.xlu0
      %v2493 = vpop.trf.xlu0
      %v2494 = vpop.trf.xlu0
      %v2495 = vpop.trf.xlu0
      %v2496 = vpop.trf.xlu0
      %v2497 = vpop.trf.xlu0
      %v2498 = vpop.trf.xlu0
      %v2500 = vsel %vm191, %v2451, 0
      %v2503 = vsel %vm191, %v2452, 0
      %v2506 = vsel %vm191, %v2453, 0
      %v2509 = vsel %vm191, %v2454, 0
      %v2512 = vsel %vm191, %v2455, 0
      %v2515 = vsel %vm191, %v2456, 0
      %v2518 = vsel %vm191, %v2457, 0
      %v2521 = vsel %vm191, %v2458, 0
      %v2524 = vsel %vm191, %v2459, 0
      %v2527 = vsel %vm191, %v2460, 0
      %v2530 = vsel %vm191, %v2461, 0
      %v2533 = vsel %vm191, %v2462, 0
      %v2536 = vsel %vm191, %v2463, 0
      %v2539 = vsel %vm191, %v2464, 0
      %v2542 = vsel %vm191, %v2465, 0
      %v2545 = vsel %vm191, %v2466, 0
      %v2548 = vsel %vm191, %v2483, 0
      %v2551 = vsel %vm191, %v2484, 0
      %v2554 = vsel %vm191, %v2485, 0
      %v2557 = vsel %vm191, %v2486, 0
      %v2560 = vsel %vm191, %v2487, 0
      %v2563 = vsel %vm191, %v2488, 0
      %v2566 = vsel %vm191, %v2489, 0
      %v2569 = vsel %vm191, %v2490, 0
      %v2572 = vsel %vm191, %v2491, 0
      %v2575 = vsel %vm191, %v2492, 0
      %v2578 = vsel %vm191, %v2493, 0
      %v2581 = vsel %vm191, %v2494, 0
      %v2584 = vsel %vm191, %v2495, 0
      %v2587 = vsel %vm191, %v2496, 0
      %v2590 = vsel %vm191, %v2497, 0
      %v2593 = vsel %vm191, %v2498, 0
      %2595 = vmatprep.subr.mxu0 0.0
      %2596 = vmatpush1.msra.mxu0 %v715
      %2597 = vmatprep.subr.mxu0 0.0
      %2598 = vmatpush1.msra.mxu0 0.0
      %2599 = vmatprep.subr.mxu0 0.0
      %2600 = vmatpush1.msra.mxu0 0.0
      %2601 = vmatprep.subr.mxu0 0.0
      %2602 = vmatpush1.msra.mxu0 0.0
      %2603 = vmatprep.subr.mxu0 0.0
      %2604 = vmatpush1.msra.mxu0 0.0
      %2605 = vmatprep.subr.mxu0 0.0
      %2606 = vmatpush1.msra.mxu0 0.0
      %2607 = vmatprep.subr.mxu0 0.0
      %2608 = vmatpush1.msra.mxu0 0.0
      %2609 = vmatprep.subr.mxu0 0.0
      %2610 = vmatpush1.msra.mxu0 0.0
      %2611 = vmatprep.subr.mxu0 0.0
      %2612 = vmatpush1.msra.mxu0 0.0
      %2613 = vmatprep.subr.mxu0 0.0
      %2614 = vmatpush1.msra.mxu0 0.0
      %2615 = vmatprep.subr.mxu0 0.0
      %2616 = vmatpush1.msra.mxu0 0.0
      %2617 = vmatprep.subr.mxu0 0.0
      %2618 = vmatpush1.msra.mxu0 0.0
      %2619 = vmatprep.subr.mxu0 0.0
      %2620 = vmatpush1.msra.mxu0 0.0
      %2621 = vmatprep.subr.mxu0 0.0
      %2622 = vmatpush1.msra.mxu0 0.0
      %2623 = vmatprep.subr.mxu0 0.0
      %2624 = vmatpush1.msra.mxu0 0.0
      %2625 = vmatprep.subr.mxu0 0.0
      %2626 = vmatpush1.msra.mxu0 0.0
      %2627 = vmatprep.subr.mxu0 0.0
      %2628 = vmatpush1.msra.mxu0 0.0
      %2629 = vmatprep.subr.mxu0 0.0
      %2630 = vmatpush1.msra.mxu0 0.0
      %2631 = vmatprep.subr.mxu0 0.0
      %2632 = vmatpush1.msra.mxu0 0.0
      %2633 = vmatprep.subr.mxu0 0.0
      %2634 = vmatpush1.msra.mxu0 0.0
      %2635 = vmatprep.subr.mxu0 0.0
      %2636 = vmatpush1.msra.mxu0 0.0
      %2637 = vmatprep.subr.mxu0 0.0
      %2638 = vmatpush1.msra.mxu0 0.0
      %2639 = vmatprep.subr.mxu0 0.0
      %2640 = vmatpush1.msra.mxu0 0.0
      %2641 = vmatprep.subr.mxu0 0.0
      %2642 = vmatpush1.msra.mxu0 0.0
      %2643 = vmatprep.subr.mxu0 0.0
      %2644 = vmatpush1.msra.mxu0 0.0
      %2645 = vmatprep.subr.mxu0 0.0
      %2646 = vmatpush1.msra.mxu0 0.0
      %2647 = vmatprep.subr.mxu0 0.0
      %2648 = vmatpush1.msra.mxu0 0.0
      %2649 = vmatprep.subr.mxu0 0.0
      %2650 = vmatpush1.msra.mxu0 0.0
      %2651 = vmatprep.subr.mxu0 0.0
      %2652 = vmatpush1.msra.mxu0 0.0
      %2653 = vmatprep.subr.mxu0 0.0
      %2654 = vmatpush1.msra.mxu0 0.0
      %2655 = vmatprep.subr.mxu0 0.0
      %2656 = vmatpush1.msra.mxu0 0.0
      %2657 = vmatprep.subr.mxu0 0.0
      %2658 = vmatpush1.msra.mxu0 0.0
      %2659 = vmatprep.mubr.f32.mxu0 0.0
      %2660 = vmatmul.mubr.f32.gmra.mrb[0].mxu0 %v2500
      %v2661 = vpop.f32.mrb[0].mxu0
      %v2662 = vadd.f32 0.0, %v2661
      %v2663 = vpop.f32.mrb[0].mxu0
      %2664 = vmatprep.mubr.f32.mxu0 0.0
      %2665 = vmatmul.mubr.f32.gmra.mrb[0].mxu0 %v2503
      %v2666 = vpop.f32.mrb[0].mxu0
      %v2667 = vadd.f32 0.0, %v2666
      %v2668 = vpop.f32.mrb[0].mxu0
      %2669 = vmatprep.mubr.f32.mxu0 0.0
      %2670 = vmatmul.mubr.f32.gmra.mrb[0].mxu0 %v2506
      %v2671 = vpop.f32.mrb[0].mxu0
      %v2672 = vadd.f32 0.0, %v2671
      %v2673 = vpop.f32.mrb[0].mxu0
      %2674 = vmatprep.mubr.f32.mxu0 0.0
      %2675 = vmatmul.mubr.f32.gmra.mrb[0].mxu0 %v2509
      %v2676 = vpop.f32.mrb[0].mxu0
      %v2677 = vadd.f32 0.0, %v2676
      %v2678 = vpop.f32.mrb[0].mxu0
      %2679 = vmatprep.mubr.f32.mxu0 0.0
      %2680 = vmatmul.mubr.f32.gmra.mrb[0].mxu0 %v2512
      %v2681 = vpop.f32.mrb[0].mxu0
      %v2682 = vadd.f32 0.0, %v2681
      %v2683 = vpop.f32.mrb[0].mxu0
      %2684 = vmatprep.mubr.f32.mxu0 0.0
      %2685 = vmatmul.mubr.f32.gmra.mrb[0].mxu0 %v2515
      %v2686 = vpop.f32.mrb[0].mxu0
      %v2687 = vadd.f32 0.0, %v2686
      %v2688 = vpop.f32.mrb[0].mxu0
      %2689 = vmatprep.mubr.f32.mxu0 0.0
      %2690 = vmatmul.mubr.f32.gmra.mrb[0].mxu0 %v2518
      %v2691 = vpop.f32.mrb[0].mxu0
      %v2692 = vadd.f32 0.0, %v2691
      %v2693 = vpop.f32.mrb[0].mxu0
      %2694 = vmatprep.mubr.f32.mxu0 0.0
      %2695 = vmatmul.mubr.f32.gmra.mrb[0].mxu0 %v2521
      %v2696 = vpop.f32.mrb[0].mxu0
      %v2697 = vadd.f32 0.0, %v2696
      %v2698 = vpop.f32.mrb[0].mxu0
      %2699 = vmatprep.mubr.f32.mxu0 0.0
      %2700 = vmatmul.mubr.f32.gmra.mrb[0].mxu0 %v2524
      %v2701 = vpop.f32.mrb[0].mxu0
      %v2702 = vadd.f32 0.0, %v2701
      %v2703 = vpop.f32.mrb[0].mxu0
      %2704 = vmatprep.mubr.f32.mxu0 0.0
      %2705 = vmatmul.mubr.f32.gmra.mrb[0].mxu0 %v2527
      %v2706 = vpop.f32.mrb[0].mxu0
      %v2707 = vadd.f32 0.0, %v2706
      %v2708 = vpop.f32.mrb[0].mxu0
      %2709 = vmatprep.mubr.f32.mxu0 0.0
      %2710 = vmatmul.mubr.f32.gmra.mrb[0].mxu0 %v2530
      %v2711 = vpop.f32.mrb[0].mxu0
      %v2712 = vadd.f32 0.0, %v2711
      %v2713 = vpop.f32.mrb[0].mxu0
      %2714 = vmatprep.mubr.f32.mxu0 0.0
      %2715 = vmatmul.mubr.f32.gmra.mrb[0].mxu0 %v2533
      %v2716 = vpop.f32.mrb[0].mxu0
      %v2717 = vadd.f32 0.0, %v2716
      %v2718 = vpop.f32.mrb[0].mxu0
      %2719 = vmatprep.mubr.f32.mxu0 0.0
      %2720 = vmatmul.mubr.f32.gmra.mrb[0].mxu0 %v2536
      %v2721 = vpop.f32.mrb[0].mxu0
      %v2722 = vadd.f32 0.0, %v2721
      %v2723 = vpop.f32.mrb[0].mxu0
      %2724 = vmatprep.mubr.f32.mxu0 0.0
      %2725 = vmatmul.mubr.f32.gmra.mrb[0].mxu0 %v2539
      %v2726 = vpop.f32.mrb[0].mxu0
      %v2727 = vadd.f32 0.0, %v2726
      %v2728 = vpop.f32.mrb[0].mxu0
      %2729 = vmatprep.mubr.f32.mxu0 0.0
      %2730 = vmatmul.mubr.f32.gmra.mrb[0].mxu0 %v2542
      %v2731 = vpop.f32.mrb[0].mxu0
      %v2732 = vadd.f32 0.0, %v2731
      %v2733 = vpop.f32.mrb[0].mxu0
      %2734 = vmatprep.mubr.f32.mxu0 0.0
      %2735 = vmatmul.mubr.f32.gmra.mrb[0].mxu0 %v2545
      %v2736 = vpop.f32.mrb[0].mxu0
      %v2737 = vadd.f32 0.0, %v2736
      %v2738 = vpop.f32.mrb[0].mxu0
      %2739 = vmatprep.mubr.f32.mxu0 0.0
      %2740 = vmatmul.mubr.f32.gmra.mrb[0].mxu0 %v2548
      %v2741 = vpop.f32.mrb[0].mxu0
      %v2742 = vadd.f32 0.0, %v2741
      %v2743 = vpop.f32.mrb[0].mxu0
      %2744 = vmatprep.mubr.f32.mxu0 0.0
      %2745 = vmatmul.mubr.f32.gmra.mrb[0].mxu0 %v2551
      %v2746 = vpop.f32.mrb[0].mxu0
      %v2747 = vadd.f32 0.0, %v2746
      %v2748 = vpop.f32.mrb[0].mxu0
      %2749 = vmatprep.mubr.f32.mxu0 0.0
      %2750 = vmatmul.mubr.f32.gmra.mrb[0].mxu0 %v2554
      %v2751 = vpop.f32.mrb[0].mxu0
      %v2752 = vadd.f32 0.0, %v2751
      %v2753 = vpop.f32.mrb[0].mxu0
      %2754 = vmatprep.mubr.f32.mxu0 0.0
      %2755 = vmatmul.mubr.f32.gmra.mrb[0].mxu0 %v2557
      %v2756 = vpop.f32.mrb[0].mxu0
      %v2757 = vadd.f32 0.0, %v2756
      %v2758 = vpop.f32.mrb[0].mxu0
      %2759 = vmatprep.mubr.f32.mxu0 0.0
      %2760 = vmatmul.mubr.f32.gmra.mrb[0].mxu0 %v2560
      %v2761 = vpop.f32.mrb[0].mxu0
      %v2762 = vadd.f32 0.0, %v2761
      %v2763 = vpop.f32.mrb[0].mxu0
      %2764 = vmatprep.mubr.f32.mxu0 0.0
      %2765 = vmatmul.mubr.f32.gmra.mrb[0].mxu0 %v2563
      %v2766 = vpop.f32.mrb[0].mxu0
      %v2767 = vadd.f32 0.0, %v2766
      %v2768 = vpop.f32.mrb[0].mxu0
      %2769 = vmatprep.mubr.f32.mxu0 0.0
      %2770 = vmatmul.mubr.f32.gmra.mrb[0].mxu0 %v2566
      %v2771 = vpop.f32.mrb[0].mxu0
      %v2772 = vadd.f32 0.0, %v2771
      %v2773 = vpop.f32.mrb[0].mxu0
      %2774 = vmatprep.mubr.f32.mxu0 0.0
      %2775 = vmatmul.mubr.f32.gmra.mrb[0].mxu0 %v2569
      %v2776 = vpop.f32.mrb[0].mxu0
      %v2777 = vadd.f32 0.0, %v2776
      %v2778 = vpop.f32.mrb[0].mxu0
      %2779 = vmatprep.mubr.f32.mxu0 0.0
      %2780 = vmatmul.mubr.f32.gmra.mrb[0].mxu0 %v2572
      %v2781 = vpop.f32.mrb[0].mxu0
      %v2782 = vadd.f32 0.0, %v2781
      %v2783 = vpop.f32.mrb[0].mxu0
      %2784 = vmatprep.mubr.f32.mxu0 0.0
      %2785 = vmatmul.mubr.f32.gmra.mrb[0].mxu0 %v2575
      %v2786 = vpop.f32.mrb[0].mxu0
      %v2787 = vadd.f32 0.0, %v2786
      %v2788 = vpop.f32.mrb[0].mxu0
      %2789 = vmatprep.mubr.f32.mxu0 0.0
      %2790 = vmatmul.mubr.f32.gmra.mrb[0].mxu0 %v2578
      %v2791 = vpop.f32.mrb[0].mxu0
      %v2792 = vadd.f32 0.0, %v2791
      %v2793 = vpop.f32.mrb[0].mxu0
      %2794 = vmatprep.mubr.f32.mxu0 0.0
      %2795 = vmatmul.mubr.f32.gmra.mrb[0].mxu0 %v2581
      %v2796 = vpop.f32.mrb[0].mxu0
      %v2797 = vadd.f32 0.0, %v2796
      %v2798 = vpop.f32.mrb[0].mxu0
      %2799 = vmatprep.mubr.f32.mxu0 0.0
      %2800 = vmatmul.mubr.f32.gmra.mrb[0].mxu0 %v2584
      %v2801 = vpop.f32.mrb[0].mxu0
      %v2802 = vadd.f32 0.0, %v2801
      %v2803 = vpop.f32.mrb[0].mxu0
      %2804 = vmatprep.mubr.f32.mxu0 0.0
      %2805 = vmatmul.mubr.f32.gmra.mrb[0].mxu0 %v2587
      %v2806 = vpop.f32.mrb[0].mxu0
      %v2807 = vadd.f32 0.0, %v2806
      %v2808 = vpop.f32.mrb[0].mxu0
      %2809 = vmatprep.mubr.f32.mxu0 0.0
      %2810 = vmatmul.mubr.f32.gmra.mrb[0].mxu0 %v2590
      %v2811 = vpop.f32.mrb[0].mxu0
      %v2812 = vadd.f32 0.0, %v2811
      %v2813 = vpop.f32.mrb[0].mxu0
      %2814 = vmatprep.mubr.f32.mxu0 0.0
      %2815 = vmatmul.mubr.f32.gmra.mrb[0].mxu0 %v2593
      %v2816 = vpop.f32.mrb[0].mxu0
      %v2817 = vadd.f32 0.0, %v2816
      %v2818 = vpop.f32.mrb[0].mxu0
      %2819 = vdwg.mxu0
      %v2820 = vsel %vm288, %v2431, 0
      %v2822 = vsel %vm288, %v2433, 0
      %2824 = vmatprep.subr.mxu0 %v2822
      %2825 = vmatpush1.msra.mxu0 %v2820
      %2826 = vmatprep.subr.mxu0 0.0
      %2827 = vmatpush1.msra.mxu0 0.0
      %2828 = vmatprep.subr.mxu0 0.0
      %2829 = vmatpush1.msra.mxu0 0.0
      %2830 = vmatprep.subr.mxu0 0.0
      %2831 = vmatpush1.msra.mxu0 0.0
      %2832 = vmatprep.subr.mxu0 0.0
      %2833 = vmatpush1.msra.mxu0 0.0
      %2834 = vmatprep.subr.mxu0 0.0
      %2835 = vmatpush1.msra.mxu0 0.0
      %2836 = vmatprep.subr.mxu0 0.0
      %2837 = vmatpush1.msra.mxu0 0.0
      %2838 = vmatprep.subr.mxu0 0.0
      %2839 = vmatpush1.msra.mxu0 0.0
      %2840 = vmatprep.subr.mxu0 0.0
      %2841 = vmatpush1.msra.mxu0 0.0
      %2842 = vmatprep.subr.mxu0 0.0
      %2843 = vmatpush1.msra.mxu0 0.0
      %2844 = vmatprep.subr.mxu0 0.0
      %2845 = vmatpush1.msra.mxu0 0.0
      %2846 = vmatprep.subr.mxu0 0.0
      %2847 = vmatpush1.msra.mxu0 0.0
      %2848 = vmatprep.subr.mxu0 0.0
      %2849 = vmatpush1.msra.mxu0 0.0
      %2850 = vmatprep.subr.mxu0 0.0
      %2851 = vmatpush1.msra.mxu0 0.0
      %2852 = vmatprep.subr.mxu0 0.0
      %2853 = vmatpush1.msra.mxu0 0.0
      %2854 = vmatprep.subr.mxu0 0.0
      %2855 = vmatpush1.msra.mxu0 0.0
      %2856 = vmatprep.subr.mxu0 0.0
      %2857 = vmatpush1.msra.mxu0 0.0
      %2858 = vmatprep.subr.mxu0 0.0
      %2859 = vmatpush1.msra.mxu0 0.0
      %2860 = vmatprep.subr.mxu0 0.0
      %2861 = vmatpush1.msra.mxu0 0.0
      %2862 = vmatprep.subr.mxu0 0.0
      %2863 = vmatpush1.msra.mxu0 0.0
      %2864 = vmatprep.subr.mxu0 0.0
      %2865 = vmatpush1.msra.mxu0 0.0
      %2866 = vmatprep.subr.mxu0 0.0
      %2867 = vmatpush1.msra.mxu0 0.0
      %2868 = vmatprep.subr.mxu0 0.0
      %2869 = vmatpush1.msra.mxu0 0.0
      %2870 = vmatprep.subr.mxu0 0.0
      %2871 = vmatpush1.msra.mxu0 0.0
      %2872 = vmatprep.subr.mxu0 0.0
      %2873 = vmatpush1.msra.mxu0 0.0
      %2874 = vmatprep.subr.mxu0 0.0
      %2875 = vmatpush1.msra.mxu0 0.0
      %2876 = vmatprep.subr.mxu0 0.0
      %2877 = vmatpush1.msra.mxu0 0.0
      %2878 = vmatprep.subr.mxu0 0.0
      %2879 = vmatpush1.msra.mxu0 0.0
      %2880 = vmatprep.subr.mxu0 0.0
      %2881 = vmatpush1.msra.mxu0 0.0
      %2882 = vmatprep.subr.mxu0 0.0
      %2883 = vmatpush1.msra.mxu0 0.0
      %2884 = vmatprep.subr.mxu0 0.0
      %2885 = vmatpush1.msra.mxu0 0.0
      %2886 = vmatprep.subr.mxu0 0.0
      %2887 = vmatpush1.msra.mxu0 0.0
      %2888 = vmatprep.mubr.f32.mxu0 0.0
      %2889 = vmatmul.mubr.f32.gmra.mrb[0].mxu0 %v942
      %v2890 = vpop.f32.mrb[0].mxu0
      %v2891 = vadd.f32 0.0, %v2890
      %v2892 = vpop.f32.mrb[0].mxu0
      %v2893 = vadd.f32 0.0, %v2892
      %2894 = vdwg.mxu0
      %2896 = vset.pattern.permute.xlu0 0
      %2897 = vperm.xlu0 %2896, %v2662
      %v2898 = vpop.permute.xlu0 %2897
      %2901 = vset.pattern.permute.xlu0 0
      %2902 = vperm.xlu0 %2901, %v2667
      %v2903 = vpop.permute.xlu0 %2902
      %2906 = vset.pattern.permute.xlu0 0
      %2907 = vperm.xlu0 %2906, %v2672
      %v2908 = vpop.permute.xlu0 %2907
      %2911 = vset.pattern.permute.xlu0 0
      %2912 = vperm.xlu0 %2911, %v2677
      %v2913 = vpop.permute.xlu0 %2912
      %2916 = vset.pattern.permute.xlu0 0
      %2917 = vperm.xlu0 %2916, %v2682
      %v2918 = vpop.permute.xlu0 %2917
      %2921 = vset.pattern.permute.xlu0 0
      %2922 = vperm.xlu0 %2921, %v2687
      %v2923 = vpop.permute.xlu0 %2922
      %2926 = vset.pattern.permute.xlu0 0
      %2927 = vperm.xlu0 %2926, %v2692
      %v2928 = vpop.permute.xlu0 %2927
      %2931 = vset.pattern.permute.xlu0 0
      %2932 = vperm.xlu0 %2931, %v2697
      %v2933 = vpop.permute.xlu0 %2932
      %2936 = vset.pattern.permute.xlu0 0
      %2937 = vperm.xlu0 %2936, %v2702
      %v2938 = vpop.permute.xlu0 %2937
      %2941 = vset.pattern.permute.xlu0 0
      %2942 = vperm.xlu0 %2941, %v2707
      %v2943 = vpop.permute.xlu0 %2942
      %2946 = vset.pattern.permute.xlu0 0
      %2947 = vperm.xlu0 %2946, %v2712
      %v2948 = vpop.permute.xlu0 %2947
      %2951 = vset.pattern.permute.xlu0 0
      %2952 = vperm.xlu0 %2951, %v2717
      %v2953 = vpop.permute.xlu0 %2952
      %2956 = vset.pattern.permute.xlu0 0
      %2957 = vperm.xlu0 %2956, %v2722
      %v2958 = vpop.permute.xlu0 %2957
      %2961 = vset.pattern.permute.xlu0 0
      %2962 = vperm.xlu0 %2961, %v2727
      %v2963 = vpop.permute.xlu0 %2962
      %2966 = vset.pattern.permute.xlu0 0
      %2967 = vperm.xlu0 %2966, %v2732
      %v2968 = vpop.permute.xlu0 %2967
      %2971 = vset.pattern.permute.xlu0 0
      %2972 = vperm.xlu0 %2971, %v2737
      %v2973 = vpop.permute.xlu0 %2972
      %2976 = vset.pattern.permute.xlu0 0
      %2977 = vperm.xlu0 %2976, %v2742
      %v2978 = vpop.permute.xlu0 %2977
      %2981 = vset.pattern.permute.xlu0 0
      %2982 = vperm.xlu0 %2981, %v2747
      %v2983 = vpop.permute.xlu0 %2982
      %2986 = vset.pattern.permute.xlu0 0
      %2987 = vperm.xlu0 %2986, %v2752
      %v2988 = vpop.permute.xlu0 %2987
      %2991 = vset.pattern.permute.xlu0 0
      %2992 = vperm.xlu0 %2991, %v2757
      %v2993 = vpop.permute.xlu0 %2992
      %2996 = vset.pattern.permute.xlu0 0
      %2997 = vperm.xlu0 %2996, %v2762
      %v2998 = vpop.permute.xlu0 %2997
      %3001 = vset.pattern.permute.xlu0 0
      %3002 = vperm.xlu0 %3001, %v2767
      %v3003 = vpop.permute.xlu0 %3002
      %3006 = vset.pattern.permute.xlu0 0
      %3007 = vperm.xlu0 %3006, %v2772
      %v3008 = vpop.permute.xlu0 %3007
      %3011 = vset.pattern.permute.xlu0 0
      %3012 = vperm.xlu0 %3011, %v2777
      %v3013 = vpop.permute.xlu0 %3012
      %3016 = vset.pattern.permute.xlu0 0
      %3017 = vperm.xlu0 %3016, %v2782
      %v3018 = vpop.permute.xlu0 %3017
      %3021 = vset.pattern.permute.xlu0 0
      %3022 = vperm.xlu0 %3021, %v2787
      %v3023 = vpop.permute.xlu0 %3022
      %3026 = vset.pattern.permute.xlu0 0
      %3027 = vperm.xlu0 %3026, %v2792
      %v3028 = vpop.permute.xlu0 %3027
      %3031 = vset.pattern.permute.xlu0 0
      %3032 = vperm.xlu0 %3031, %v2797
      %v3033 = vpop.permute.xlu0 %3032
      %3036 = vset.pattern.permute.xlu0 0
      %3037 = vperm.xlu0 %3036, %v2802
      %v3038 = vpop.permute.xlu0 %3037
      %3041 = vset.pattern.permute.xlu0 0
      %3042 = vperm.xlu0 %3041, %v2807
      %v3043 = vpop.permute.xlu0 %3042
      %3046 = vset.pattern.permute.xlu0 0
      %3047 = vperm.xlu0 %3046, %v2812
      %v3048 = vpop.permute.xlu0 %3047
      %3051 = vset.pattern.permute.xlu0 0
      %3052 = vperm.xlu0 %3051, %v2817
      %v3053 = vpop.permute.xlu0 %3052
      %v3055 = vlaneseq
      %v3056 = vshrl.u32 %v3055, 7
      %v3057 = vsub.s32 0, %v3056
      %v3058 = vrot.slane %v2891, %v3057
      %v3059 = vlaneseq
      %v3060 = vshrl.u32 %v3059, 7
      %v3061 = vsub.s32 0, %v3060
      %v3062 = vrot.slane %v2893, %v3061
      %v3063 = vadd.f32 %v2898, %v3058
      %v3064 = vadd.f32 %v2898, %v3062
      %v3065 = vadd.f32 %v2903, %v3058
      %v3066 = vadd.f32 %v2903, %v3062
      %v3067 = vadd.f32 %v2908, %v3058
      %v3068 = vadd.f32 %v2908, %v3062
      %v3069 = vadd.f32 %v2913, %v3058
      %v3070 = vadd.f32 %v2913, %v3062
      %v3071 = vadd.f32 %v2918, %v3058
      %v3072 = vadd.f32 %v2918, %v3062
      %v3073 = vadd.f32 %v2923, %v3058
      %v3074 = vadd.f32 %v2923, %v3062
      %v3075 = vadd.f32 %v2928, %v3058
      %v3076 = vadd.f32 %v2928, %v3062
      %v3077 = vadd.f32 %v2933, %v3058
      %v3078 = vadd.f32 %v2933, %v3062
      %v3079 = vadd.f32 %v2938, %v3058
      %v3080 = vadd.f32 %v2938, %v3062
      %v3081 = vadd.f32 %v2943, %v3058
      %v3082 = vadd.f32 %v2943, %v3062
      %v3083 = vadd.f32 %v2948, %v3058
      %v3084 = vadd.f32 %v2948, %v3062
      %v3085 = vadd.f32 %v2953, %v3058
      %v3086 = vadd.f32 %v2953, %v3062
      %v3087 = vadd.f32 %v2958, %v3058
      %v3088 = vadd.f32 %v2958, %v3062
      %v3089 = vadd.f32 %v2963, %v3058
      %v3090 = vadd.f32 %v2963, %v3062
      %v3091 = vadd.f32 %v2968, %v3058
      %v3092 = vadd.f32 %v2968, %v3062
      %v3093 = vadd.f32 %v2973, %v3058
      %v3094 = vadd.f32 %v2973, %v3062
      %v3095 = vadd.f32 %v2978, %v3058
      %v3096 = vadd.f32 %v2978, %v3062
      %v3097 = vadd.f32 %v2983, %v3058
      %v3098 = vadd.f32 %v2983, %v3062
      %v3099 = vadd.f32 %v2988, %v3058
      %v3100 = vadd.f32 %v2988, %v3062
      %v3101 = vadd.f32 %v2993, %v3058
      %v3102 = vadd.f32 %v2993, %v3062
      %v3103 = vadd.f32 %v2998, %v3058
      %v3104 = vadd.f32 %v2998, %v3062
      %v3105 = vadd.f32 %v3003, %v3058
      %v3106 = vadd.f32 %v3003, %v3062
      %v3107 = vadd.f32 %v3008, %v3058
      %v3108 = vadd.f32 %v3008, %v3062
      %v3109 = vadd.f32 %v3013, %v3058
      %v3110 = vadd.f32 %v3013, %v3062
      %v3111 = vadd.f32 %v3018, %v3058
      %v3112 = vadd.f32 %v3018, %v3062
      %v3113 = vadd.f32 %v3023, %v3058
      %v3114 = vadd.f32 %v3023, %v3062
      %v3115 = vadd.f32 %v3028, %v3058
      %v3116 = vadd.f32 %v3028, %v3062
      %v3117 = vadd.f32 %v3033, %v3058
      %v3118 = vadd.f32 %v3033, %v3062
      %v3119 = vadd.f32 %v3038, %v3058
      %v3120 = vadd.f32 %v3038, %v3062
      %v3121 = vadd.f32 %v3043, %v3058
      %v3122 = vadd.f32 %v3043, %v3062
      %v3123 = vadd.f32 %v3048, %v3058
      %v3124 = vadd.f32 %v3048, %v3062
      %v3125 = vadd.f32 %v3053, %v3058
      %v3126 = vadd.f32 %v3053, %v3062
      %v3127 = vmul.f32 %v2241, 2.0
      %v3128 = vmul.f32 %v2243, 2.0
      %v3129 = vmul.f32 %v2247, 2.0
      %v3130 = vmul.f32 %v2249, 2.0
      %v3131 = vmul.f32 %v2253, 2.0
      %v3132 = vmul.f32 %v2255, 2.0
      %v3133 = vmul.f32 %v2259, 2.0
      %v3134 = vmul.f32 %v2261, 2.0
      %v3135 = vmul.f32 %v2265, 2.0
      %v3136 = vmul.f32 %v2267, 2.0
      %v3137 = vmul.f32 %v2271, 2.0
      %v3138 = vmul.f32 %v2273, 2.0
      %v3139 = vmul.f32 %v2277, 2.0
      %v3140 = vmul.f32 %v2279, 2.0
      %v3141 = vmul.f32 %v2283, 2.0
      %v3142 = vmul.f32 %v2285, 2.0
      %v3143 = vmul.f32 %v2289, 2.0
      %v3144 = vmul.f32 %v2291, 2.0
      %v3145 = vmul.f32 %v2295, 2.0
      %v3146 = vmul.f32 %v2297, 2.0
      %v3147 = vmul.f32 %v2301, 2.0
      %v3148 = vmul.f32 %v2303, 2.0
      %v3149 = vmul.f32 %v2307, 2.0
      %v3150 = vmul.f32 %v2309, 2.0
      %v3151 = vmul.f32 %v2313, 2.0
      %v3152 = vmul.f32 %v2315, 2.0
      %v3153 = vmul.f32 %v2319, 2.0
      %v3154 = vmul.f32 %v2321, 2.0
      %v3155 = vmul.f32 %v2325, 2.0
      %v3156 = vmul.f32 %v2327, 2.0
      %v3157 = vmul.f32 %v2331, 2.0
      %v3158 = vmul.f32 %v2333, 2.0
      %v3159 = vmul.f32 %v2337, 2.0
      %v3160 = vmul.f32 %v2339, 2.0
      %v3161 = vmul.f32 %v2343, 2.0
      %v3162 = vmul.f32 %v2345, 2.0
      %v3163 = vmul.f32 %v2349, 2.0
      %v3164 = vmul.f32 %v2351, 2.0
      %v3165 = vmul.f32 %v2355, 2.0
      %v3166 = vmul.f32 %v2357, 2.0
      %v3167 = vmul.f32 %v2361, 2.0
      %v3168 = vmul.f32 %v2363, 2.0
      %v3169 = vmul.f32 %v2367, 2.0
      %v3170 = vmul.f32 %v2369, 2.0
      %v3171 = vmul.f32 %v2373, 2.0
      %v3172 = vmul.f32 %v2375, 2.0
      %v3173 = vmul.f32 %v2379, 2.0
      %v3174 = vmul.f32 %v2381, 2.0
      %v3175 = vmul.f32 %v2385, 2.0
      %v3176 = vmul.f32 %v2387, 2.0
      %v3177 = vmul.f32 %v2391, 2.0
      %v3178 = vmul.f32 %v2393, 2.0
      %v3179 = vmul.f32 %v2397, 2.0
      %v3180 = vmul.f32 %v2399, 2.0
      %v3181 = vmul.f32 %v2403, 2.0
      %v3182 = vmul.f32 %v2405, 2.0
      %v3183 = vmul.f32 %v2409, 2.0
      %v3184 = vmul.f32 %v2411, 2.0
      %v3185 = vmul.f32 %v2415, 2.0
      %v3186 = vmul.f32 %v2417, 2.0
      %v3187 = vmul.f32 %v2421, 2.0
      %v3188 = vmul.f32 %v2423, 2.0
      %v3189 = vmul.f32 %v2427, 2.0
      %v3190 = vmul.f32 %v2429, 2.0
      %v3191 = vsub.f32 %v3063, %v3127
      %v3192 = vsub.f32 %v3064, %v3128
      %v3193 = vsub.f32 %v3065, %v3129
      %v3194 = vsub.f32 %v3066, %v3130
      %v3195 = vsub.f32 %v3067, %v3131
      %v3196 = vsub.f32 %v3068, %v3132
      %v3197 = vsub.f32 %v3069, %v3133
      %v3198 = vsub.f32 %v3070, %v3134
      %v3199 = vsub.f32 %v3071, %v3135
      %v3200 = vsub.f32 %v3072, %v3136
      %v3201 = vsub.f32 %v3073, %v3137
      %v3202 = vsub.f32 %v3074, %v3138
      %v3203 = vsub.f32 %v3075, %v3139
      %v3204 = vsub.f32 %v3076, %v3140
      %v3205 = vsub.f32 %v3077, %v3141
      %v3206 = vsub.f32 %v3078, %v3142
      %v3207 = vsub.f32 %v3079, %v3143
      %v3208 = vsub.f32 %v3080, %v3144
      %v3209 = vsub.f32 %v3081, %v3145
      %v3210 = vsub.f32 %v3082, %v3146
      %v3211 = vsub.f32 %v3083, %v3147
      %v3212 = vsub.f32 %v3084, %v3148
      %v3213 = vsub.f32 %v3085, %v3149
      %v3214 = vsub.f32 %v3086, %v3150
      %v3215 = vsub.f32 %v3087, %v3151
      %v3216 = vsub.f32 %v3088, %v3152
      %v3217 = vsub.f32 %v3089, %v3153
      %v3218 = vsub.f32 %v3090, %v3154
      %v3219 = vsub.f32 %v3091, %v3155
      %v3220 = vsub.f32 %v3092, %v3156
      %v3221 = vsub.f32 %v3093, %v3157
      %v3222 = vsub.f32 %v3094, %v3158
      %v3223 = vsub.f32 %v3095, %v3159
      %v3224 = vsub.f32 %v3096, %v3160
      %v3225 = vsub.f32 %v3097, %v3161
      %v3226 = vsub.f32 %v3098, %v3162
      %v3227 = vsub.f32 %v3099, %v3163
      %v3228 = vsub.f32 %v3100, %v3164
      %v3229 = vsub.f32 %v3101, %v3165
      %v3230 = vsub.f32 %v3102, %v3166
      %v3231 = vsub.f32 %v3103, %v3167
      %v3232 = vsub.f32 %v3104, %v3168
      %v3233 = vsub.f32 %v3105, %v3169
      %v3234 = vsub.f32 %v3106, %v3170
      %v3235 = vsub.f32 %v3107, %v3171
      %v3236 = vsub.f32 %v3108, %v3172
      %v3237 = vsub.f32 %v3109, %v3173
      %v3238 = vsub.f32 %v3110, %v3174
      %v3239 = vsub.f32 %v3111, %v3175
      %v3240 = vsub.f32 %v3112, %v3176
      %v3241 = vsub.f32 %v3113, %v3177
      %v3242 = vsub.f32 %v3114, %v3178
      %v3243 = vsub.f32 %v3115, %v3179
      %v3244 = vsub.f32 %v3116, %v3180
      %v3245 = vsub.f32 %v3117, %v3181
      %v3246 = vsub.f32 %v3118, %v3182
      %v3247 = vsub.f32 %v3119, %v3183
      %v3248 = vsub.f32 %v3120, %v3184
      %v3249 = vsub.f32 %v3121, %v3185
      %v3250 = vsub.f32 %v3122, %v3186
      %v3251 = vsub.f32 %v3123, %v3187
      %v3252 = vsub.f32 %v3124, %v3188
      %v3253 = vsub.f32 %v3125, %v3189
      %v3254 = vsub.f32 %v3126, %v3190
      %v3255 = vmax.f32 %v3191, 0.0
      %v3256 = vmax.f32 %v3192, 0.0
      %v3257 = vmax.f32 %v3193, 0.0
      %v3258 = vmax.f32 %v3194, 0.0
      %v3259 = vmax.f32 %v3195, 0.0
      %v3260 = vmax.f32 %v3196, 0.0
      %v3261 = vmax.f32 %v3197, 0.0
      %v3262 = vmax.f32 %v3198, 0.0
      %v3263 = vmax.f32 %v3199, 0.0
      %v3264 = vmax.f32 %v3200, 0.0
      %v3265 = vmax.f32 %v3201, 0.0
      %v3266 = vmax.f32 %v3202, 0.0
      %v3267 = vmax.f32 %v3203, 0.0
      %v3268 = vmax.f32 %v3204, 0.0
      %v3269 = vmax.f32 %v3205, 0.0
      %v3270 = vmax.f32 %v3206, 0.0
      %v3271 = vmax.f32 %v3207, 0.0
      %v3272 = vmax.f32 %v3208, 0.0
      %v3273 = vmax.f32 %v3209, 0.0
      %v3274 = vmax.f32 %v3210, 0.0
      %v3275 = vmax.f32 %v3211, 0.0
      %v3276 = vmax.f32 %v3212, 0.0
      %v3277 = vmax.f32 %v3213, 0.0
      %v3278 = vmax.f32 %v3214, 0.0
      %v3279 = vmax.f32 %v3215, 0.0
      %v3280 = vmax.f32 %v3216, 0.0
      %v3281 = vmax.f32 %v3217, 0.0
      %v3282 = vmax.f32 %v3218, 0.0
      %v3283 = vmax.f32 %v3219, 0.0
      %v3284 = vmax.f32 %v3220, 0.0
      %v3285 = vmax.f32 %v3221, 0.0
      %v3286 = vmax.f32 %v3222, 0.0
      %v3287 = vmax.f32 %v3223, 0.0
      %v3288 = vmax.f32 %v3224, 0.0
      %v3289 = vmax.f32 %v3225, 0.0
      %v3290 = vmax.f32 %v3226, 0.0
      %v3291 = vmax.f32 %v3227, 0.0
      %v3292 = vmax.f32 %v3228, 0.0
      %v3293 = vmax.f32 %v3229, 0.0
      %v3294 = vmax.f32 %v3230, 0.0
      %v3295 = vmax.f32 %v3231, 0.0
      %v3296 = vmax.f32 %v3232, 0.0
      %v3297 = vmax.f32 %v3233, 0.0
      %v3298 = vmax.f32 %v3234, 0.0
      %v3299 = vmax.f32 %v3235, 0.0
      %v3300 = vmax.f32 %v3236, 0.0
      %v3301 = vmax.f32 %v3237, 0.0
      %v3302 = vmax.f32 %v3238, 0.0
      %v3303 = vmax.f32 %v3239, 0.0
      %v3304 = vmax.f32 %v3240, 0.0
      %v3305 = vmax.f32 %v3241, 0.0
      %v3306 = vmax.f32 %v3242, 0.0
      %v3307 = vmax.f32 %v3243, 0.0
      %v3308 = vmax.f32 %v3244, 0.0
      %v3309 = vmax.f32 %v3245, 0.0
      %v3310 = vmax.f32 %v3246, 0.0
      %v3311 = vmax.f32 %v3247, 0.0
      %v3312 = vmax.f32 %v3248, 0.0
      %v3313 = vmax.f32 %v3249, 0.0
      %v3314 = vmax.f32 %v3250, 0.0
      %v3315 = vmax.f32 %v3251, 0.0
      %v3316 = vmax.f32 %v3252, 0.0
      %v3317 = vmax.f32 %v3253, 0.0
      %v3318 = vmax.f32 %v3254, 0.0
      %v3319 = vmin.f32 %v3255, %v3259
      %v3320 = vmin.f32 %v3257, %v3261
      %v3321 = vmin.f32 %v3319, %v3263
      %v3322 = vmin.f32 %v3320, %v3265
      %v3323 = vmin.f32 %v3321, %v3267
      %v3324 = vmin.f32 %v3322, %v3269
      %v3325 = vmin.f32 %v3323, %v3271
      %v3326 = vmin.f32 %v3324, %v3273
      %v3327 = vmin.f32 %v3325, %v3275
      %v3328 = vmin.f32 %v3326, %v3277
      %v3329 = vmin.f32 %v3327, %v3279
      %v3330 = vmin.f32 %v3328, %v3281
      %v3331 = vmin.f32 %v3329, %v3283
      %v3332 = vmin.f32 %v3330, %v3285
      %v3333 = vmin.f32 %v3331, %v3287
      %v3334 = vmin.f32 %v3332, %v3289
      %v3335 = vmin.f32 %v3333, %v3291
      %v3336 = vmin.f32 %v3334, %v3293
      %v3337 = vmin.f32 %v3335, %v3295
      %v3338 = vmin.f32 %v3336, %v3297
      %v3339 = vmin.f32 %v3337, %v3299
      %v3340 = vmin.f32 %v3338, %v3301
      %v3341 = vmin.f32 %v3339, %v3303
      %v3342 = vmin.f32 %v3340, %v3305
      %v3343 = vmin.f32 %v3341, %v3307
      %v3344 = vmin.f32 %v3342, %v3309
      %v3345 = vmin.f32 %v3343, %v3311
      %v3346 = vmin.f32 %v3344, %v3313
      %v3347 = vmin.f32 %v3345, %v3315
      %v3348 = vmin.f32 %v3346, %v3317
      %v3349 = vmin.f32 %v3347, %v3348
      %v3350 = vrot.slane %v3349, 4
      %v3351 = vmin.f32 %v3349, %v3350
      %v3352 = vrot.slane %v3351, 2
      %v3353 = vmin.f32 %v3351, %v3352
      %v3354 = vrot.slane %v3353, 1
      %v3355 = vmin.f32 %v3353, %v3354
      %v3356 = vmin.f32 %v3256, %v3260
      %v3357 = vmin.f32 %v3258, %v3262
      %v3358 = vmin.f32 %v3356, %v3264
      %v3359 = vmin.f32 %v3357, %v3266
      %v3360 = vmin.f32 %v3358, %v3268
      %v3361 = vmin.f32 %v3359, %v3270
      %v3362 = vmin.f32 %v3360, %v3272
      %v3363 = vmin.f32 %v3361, %v3274
      %v3364 = vmin.f32 %v3362, %v3276
      %v3365 = vmin.f32 %v3363, %v3278
      %v3366 = vmin.f32 %v3364, %v3280
      %v3367 = vmin.f32 %v3365, %v3282
      %v3368 = vmin.f32 %v3366, %v3284
      %v3369 = vmin.f32 %v3367, %v3286
      %v3370 = vmin.f32 %v3368, %v3288
      %v3371 = vmin.f32 %v3369, %v3290
      %v3372 = vmin.f32 %v3370, %v3292
      %v3373 = vmin.f32 %v3371, %v3294
      %v3374 = vmin.f32 %v3372, %v3296
      %v3375 = vmin.f32 %v3373, %v3298
      %v3376 = vmin.f32 %v3374, %v3300
      %v3377 = vmin.f32 %v3375, %v3302
      %v3378 = vmin.f32 %v3376, %v3304
      %v3379 = vmin.f32 %v3377, %v3306
      %v3380 = vmin.f32 %v3378, %v3308
      %v3381 = vmin.f32 %v3379, %v3310
      %v3382 = vmin.f32 %v3380, %v3312
      %v3383 = vmin.f32 %v3381, %v3314
      %v3384 = vmin.f32 %v3382, %v3316
      %v3385 = vmin.f32 %v3383, %v3318
      %v3386 = vmin.f32 %v3384, %v3385
      %v3387 = vrot.slane %v3386, 4
      %v3388 = vmin.f32 %v3386, %v3387
      %v3389 = vrot.slane %v3388, 2
      %v3390 = vmin.f32 %v3388, %v3389
      %v3391 = vrot.slane %v3390, 1
      %v3392 = vmin.f32 %v3390, %v3391
      %vm3393 = vcmp.le.f32.partialorder %v3255, %v3355
      %vm3394 = vcmp.le.f32.partialorder %v3256, %v3392
      %vm3395 = vcmp.le.f32.partialorder %v3257, %v3355
      %vm3396 = vcmp.le.f32.partialorder %v3258, %v3392
      %vm3397 = vcmp.le.f32.partialorder %v3259, %v3355
      %vm3398 = vcmp.le.f32.partialorder %v3260, %v3392
      %vm3399 = vcmp.le.f32.partialorder %v3261, %v3355
      %vm3400 = vcmp.le.f32.partialorder %v3262, %v3392
      %vm3401 = vcmp.le.f32.partialorder %v3263, %v3355
      %vm3402 = vcmp.le.f32.partialorder %v3264, %v3392
      %vm3403 = vcmp.le.f32.partialorder %v3265, %v3355
      %vm3404 = vcmp.le.f32.partialorder %v3266, %v3392
      %vm3405 = vcmp.le.f32.partialorder %v3267, %v3355
      %vm3406 = vcmp.le.f32.partialorder %v3268, %v3392
      %vm3407 = vcmp.le.f32.partialorder %v3269, %v3355
      %vm3408 = vcmp.le.f32.partialorder %v3270, %v3392
      %vm3409 = vcmp.le.f32.partialorder %v3271, %v3355
      %vm3410 = vcmp.le.f32.partialorder %v3272, %v3392
      %vm3411 = vcmp.le.f32.partialorder %v3273, %v3355
      %vm3412 = vcmp.le.f32.partialorder %v3274, %v3392
      %vm3413 = vcmp.le.f32.partialorder %v3275, %v3355
      %vm3414 = vcmp.le.f32.partialorder %v3276, %v3392
      %vm3415 = vcmp.le.f32.partialorder %v3277, %v3355
      %vm3416 = vcmp.le.f32.partialorder %v3278, %v3392
      %vm3417 = vcmp.le.f32.partialorder %v3279, %v3355
      %vm3418 = vcmp.le.f32.partialorder %v3280, %v3392
      %vm3419 = vcmp.le.f32.partialorder %v3281, %v3355
      %vm3420 = vcmp.le.f32.partialorder %v3282, %v3392
      %vm3421 = vcmp.le.f32.partialorder %v3283, %v3355
      %vm3422 = vcmp.le.f32.partialorder %v3284, %v3392
      %vm3423 = vcmp.le.f32.partialorder %v3285, %v3355
      %vm3424 = vcmp.le.f32.partialorder %v3286, %v3392
      %vm3425 = vcmp.le.f32.partialorder %v3287, %v3355
      %vm3426 = vcmp.le.f32.partialorder %v3288, %v3392
      %vm3427 = vcmp.le.f32.partialorder %v3289, %v3355
      %vm3428 = vcmp.le.f32.partialorder %v3290, %v3392
      %vm3429 = vcmp.le.f32.partialorder %v3291, %v3355
      %vm3430 = vcmp.le.f32.partialorder %v3292, %v3392
      %vm3431 = vcmp.le.f32.partialorder %v3293, %v3355
      %vm3432 = vcmp.le.f32.partialorder %v3294, %v3392
      %vm3433 = vcmp.le.f32.partialorder %v3295, %v3355
      %vm3434 = vcmp.le.f32.partialorder %v3296, %v3392
      %vm3435 = vcmp.le.f32.partialorder %v3297, %v3355
      %vm3436 = vcmp.le.f32.partialorder %v3298, %v3392
      %vm3437 = vcmp.le.f32.partialorder %v3299, %v3355
      %vm3438 = vcmp.le.f32.partialorder %v3300, %v3392
      %vm3439 = vcmp.le.f32.partialorder %v3301, %v3355
      %vm3440 = vcmp.le.f32.partialorder %v3302, %v3392
      %vm3441 = vcmp.le.f32.partialorder %v3303, %v3355
      %vm3442 = vcmp.le.f32.partialorder %v3304, %v3392
      %vm3443 = vcmp.le.f32.partialorder %v3305, %v3355
      %vm3444 = vcmp.le.f32.partialorder %v3306, %v3392
      %vm3445 = vcmp.le.f32.partialorder %v3307, %v3355
      %vm3446 = vcmp.le.f32.partialorder %v3308, %v3392
      %vm3447 = vcmp.le.f32.partialorder %v3309, %v3355
      %vm3448 = vcmp.le.f32.partialorder %v3310, %v3392
      %vm3449 = vcmp.le.f32.partialorder %v3311, %v3355
      %vm3450 = vcmp.le.f32.partialorder %v3312, %v3392
      %vm3451 = vcmp.le.f32.partialorder %v3313, %v3355
      %vm3452 = vcmp.le.f32.partialorder %v3314, %v3392
      %vm3453 = vcmp.le.f32.partialorder %v3315, %v3355
      %vm3454 = vcmp.le.f32.partialorder %v3316, %v3392
      %vm3455 = vcmp.le.f32.partialorder %v3317, %v3355
      %vm3456 = vcmp.le.f32.partialorder %v3318, %v3392
      %v3457 = vsel %vm3393, 1e+10, %v3255
      %v3458 = vsel %vm3394, 1e+10, %v3256
      %v3459 = vsel %vm3395, 1e+10, %v3257
      %v3460 = vsel %vm3396, 1e+10, %v3258
      %v3461 = vsel %vm3397, 1e+10, %v3259
      %v3462 = vsel %vm3398, 1e+10, %v3260
      %v3463 = vsel %vm3399, 1e+10, %v3261
      %v3464 = vsel %vm3400, 1e+10, %v3262
      %v3465 = vsel %vm3401, 1e+10, %v3263
      %v3466 = vsel %vm3402, 1e+10, %v3264
      %v3467 = vsel %vm3403, 1e+10, %v3265
      %v3468 = vsel %vm3404, 1e+10, %v3266
      %v3469 = vsel %vm3405, 1e+10, %v3267
      %v3470 = vsel %vm3406, 1e+10, %v3268
      %v3471 = vsel %vm3407, 1e+10, %v3269
      %v3472 = vsel %vm3408, 1e+10, %v3270
      %v3473 = vsel %vm3409, 1e+10, %v3271
      %v3474 = vsel %vm3410, 1e+10, %v3272
      %v3475 = vsel %vm3411, 1e+10, %v3273
      %v3476 = vsel %vm3412, 1e+10, %v3274
      %v3477 = vsel %vm3413, 1e+10, %v3275
      %v3478 = vsel %vm3414, 1e+10, %v3276
      %v3479 = vsel %vm3415, 1e+10, %v3277
      %v3480 = vsel %vm3416, 1e+10, %v3278
      %v3481 = vsel %vm3417, 1e+10, %v3279
      %v3482 = vsel %vm3418, 1e+10, %v3280
      %v3483 = vsel %vm3419, 1e+10, %v3281
      %v3484 = vsel %vm3420, 1e+10, %v3282
      %v3485 = vsel %vm3421, 1e+10, %v3283
      %v3486 = vsel %vm3422, 1e+10, %v3284
      %v3487 = vsel %vm3423, 1e+10, %v3285
      %v3488 = vsel %vm3424, 1e+10, %v3286
      %v3489 = vsel %vm3425, 1e+10, %v3287
      %v3490 = vsel %vm3426, 1e+10, %v3288
      %v3491 = vsel %vm3427, 1e+10, %v3289
      %v3492 = vsel %vm3428, 1e+10, %v3290
      %v3493 = vsel %vm3429, 1e+10, %v3291
      %v3494 = vsel %vm3430, 1e+10, %v3292
      %v3495 = vsel %vm3431, 1e+10, %v3293
      %v3496 = vsel %vm3432, 1e+10, %v3294
      %v3497 = vsel %vm3433, 1e+10, %v3295
      %v3498 = vsel %vm3434, 1e+10, %v3296
      %v3499 = vsel %vm3435, 1e+10, %v3297
      %v3500 = vsel %vm3436, 1e+10, %v3298
      %v3501 = vsel %vm3437, 1e+10, %v3299
      %v3502 = vsel %vm3438, 1e+10, %v3300
      %v3503 = vsel %vm3439, 1e+10, %v3301
      %v3504 = vsel %vm3440, 1e+10, %v3302
      %v3505 = vsel %vm3441, 1e+10, %v3303
      %v3506 = vsel %vm3442, 1e+10, %v3304
      %v3507 = vsel %vm3443, 1e+10, %v3305
      %v3508 = vsel %vm3444, 1e+10, %v3306
      %v3509 = vsel %vm3445, 1e+10, %v3307
      %v3510 = vsel %vm3446, 1e+10, %v3308
      %v3511 = vsel %vm3447, 1e+10, %v3309
      %v3512 = vsel %vm3448, 1e+10, %v3310
      %v3513 = vsel %vm3449, 1e+10, %v3311
      %v3514 = vsel %vm3450, 1e+10, %v3312
      %v3515 = vsel %vm3451, 1e+10, %v3313
      %v3516 = vsel %vm3452, 1e+10, %v3314
      %v3517 = vsel %vm3453, 1e+10, %v3315
      %v3518 = vsel %vm3454, 1e+10, %v3316
      %v3519 = vsel %vm3455, 1e+10, %v3317
      %v3520 = vsel %vm3456, 1e+10, %v3318
      %v3521 = vmin.f32 %v3457, %v3461
      %v3522 = vmin.f32 %v3459, %v3463
      %v3523 = vmin.f32 %v3521, %v3465
      %v3524 = vmin.f32 %v3522, %v3467
      %v3525 = vmin.f32 %v3523, %v3469
      %v3526 = vmin.f32 %v3524, %v3471
      %v3527 = vmin.f32 %v3525, %v3473
      %v3528 = vmin.f32 %v3526, %v3475
      %v3529 = vmin.f32 %v3527, %v3477
      %v3530 = vmin.f32 %v3528, %v3479
      %v3531 = vmin.f32 %v3529, %v3481
      %v3532 = vmin.f32 %v3530, %v3483
      %v3533 = vmin.f32 %v3531, %v3485
      %v3534 = vmin.f32 %v3532, %v3487
      %v3535 = vmin.f32 %v3533, %v3489
      %v3536 = vmin.f32 %v3534, %v3491
      %v3537 = vmin.f32 %v3535, %v3493
      %v3538 = vmin.f32 %v3536, %v3495
      %v3539 = vmin.f32 %v3537, %v3497
      %v3540 = vmin.f32 %v3538, %v3499
      %v3541 = vmin.f32 %v3539, %v3501
      %v3542 = vmin.f32 %v3540, %v3503
      %v3543 = vmin.f32 %v3541, %v3505
      %v3544 = vmin.f32 %v3542, %v3507
      %v3545 = vmin.f32 %v3543, %v3509
      %v3546 = vmin.f32 %v3544, %v3511
      %v3547 = vmin.f32 %v3545, %v3513
      %v3548 = vmin.f32 %v3546, %v3515
      %v3549 = vmin.f32 %v3547, %v3517
      %v3550 = vmin.f32 %v3548, %v3519
      %v3551 = vmin.f32 %v3549, %v3550
      %v3552 = vrot.slane %v3551, 4
      %v3553 = vmin.f32 %v3551, %v3552
      %v3554 = vrot.slane %v3553, 2
      %v3555 = vmin.f32 %v3553, %v3554
      %v3556 = vrot.slane %v3555, 1
      %v3557 = vmin.f32 %v3555, %v3556
      %v3558 = vmin.f32 %v3458, %v3462
      %v3559 = vmin.f32 %v3460, %v3464
      %v3560 = vmin.f32 %v3558, %v3466
      %v3561 = vmin.f32 %v3559, %v3468
      %v3562 = vmin.f32 %v3560, %v3470
      %v3563 = vmin.f32 %v3561, %v3472
      %v3564 = vmin.f32 %v3562, %v3474
      %v3565 = vmin.f32 %v3563, %v3476
      %v3566 = vmin.f32 %v3564, %v3478
      %v3567 = vmin.f32 %v3565, %v3480
      %v3568 = vmin.f32 %v3566, %v3482
      %v3569 = vmin.f32 %v3567, %v3484
      %v3570 = vmin.f32 %v3568, %v3486
      %v3571 = vmin.f32 %v3569, %v3488
      %v3572 = vmin.f32 %v3570, %v3490
      %v3573 = vmin.f32 %v3571, %v3492
      %v3574 = vmin.f32 %v3572, %v3494
      %v3575 = vmin.f32 %v3573, %v3496
      %v3576 = vmin.f32 %v3574, %v3498
      %v3577 = vmin.f32 %v3575, %v3500
      %v3578 = vmin.f32 %v3576, %v3502
      %v3579 = vmin.f32 %v3577, %v3504
      %v3580 = vmin.f32 %v3578, %v3506
      %v3581 = vmin.f32 %v3579, %v3508
      %v3582 = vmin.f32 %v3580, %v3510
      %v3583 = vmin.f32 %v3581, %v3512
      %v3584 = vmin.f32 %v3582, %v3514
      %v3585 = vmin.f32 %v3583, %v3516
      %v3586 = vmin.f32 %v3584, %v3518
      %v3587 = vmin.f32 %v3585, %v3520
      %v3588 = vmin.f32 %v3586, %v3587
      %v3589 = vrot.slane %v3588, 4
      %v3590 = vmin.f32 %v3588, %v3589
      %v3591 = vrot.slane %v3590, 2
      %v3592 = vmin.f32 %v3590, %v3591
      %v3593 = vrot.slane %v3592, 1
      %v3594 = vmin.f32 %v3592, %v3593
      %v3595 = vadd.f32 %v3557, 0.0
      %v3596 = vadd.f32 %v3594, 0.0
      %vm3597 = vcmp.le.f32.partialorder %v3457, %v3557
      %vm3598 = vcmp.le.f32.partialorder %v3458, %v3594
      %vm3599 = vcmp.le.f32.partialorder %v3459, %v3557
      %vm3600 = vcmp.le.f32.partialorder %v3460, %v3594
      %vm3601 = vcmp.le.f32.partialorder %v3461, %v3557
      %vm3602 = vcmp.le.f32.partialorder %v3462, %v3594
      %vm3603 = vcmp.le.f32.partialorder %v3463, %v3557
      %vm3604 = vcmp.le.f32.partialorder %v3464, %v3594
      %vm3605 = vcmp.le.f32.partialorder %v3465, %v3557
      %vm3606 = vcmp.le.f32.partialorder %v3466, %v3594
      %vm3607 = vcmp.le.f32.partialorder %v3467, %v3557
      %vm3608 = vcmp.le.f32.partialorder %v3468, %v3594
      %vm3609 = vcmp.le.f32.partialorder %v3469, %v3557
      %vm3610 = vcmp.le.f32.partialorder %v3470, %v3594
      %vm3611 = vcmp.le.f32.partialorder %v3471, %v3557
      %vm3612 = vcmp.le.f32.partialorder %v3472, %v3594
      %vm3613 = vcmp.le.f32.partialorder %v3473, %v3557
      %vm3614 = vcmp.le.f32.partialorder %v3474, %v3594
      %vm3615 = vcmp.le.f32.partialorder %v3475, %v3557
      %vm3616 = vcmp.le.f32.partialorder %v3476, %v3594
      %vm3617 = vcmp.le.f32.partialorder %v3477, %v3557
      %vm3618 = vcmp.le.f32.partialorder %v3478, %v3594
      %vm3619 = vcmp.le.f32.partialorder %v3479, %v3557
      %vm3620 = vcmp.le.f32.partialorder %v3480, %v3594
      %vm3621 = vcmp.le.f32.partialorder %v3481, %v3557
      %vm3622 = vcmp.le.f32.partialorder %v3482, %v3594
      %vm3623 = vcmp.le.f32.partialorder %v3483, %v3557
      %vm3624 = vcmp.le.f32.partialorder %v3484, %v3594
      %vm3625 = vcmp.le.f32.partialorder %v3485, %v3557
      %vm3626 = vcmp.le.f32.partialorder %v3486, %v3594
      %vm3627 = vcmp.le.f32.partialorder %v3487, %v3557
      %vm3628 = vcmp.le.f32.partialorder %v3488, %v3594
      %vm3629 = vcmp.le.f32.partialorder %v3489, %v3557
      %vm3630 = vcmp.le.f32.partialorder %v3490, %v3594
      %vm3631 = vcmp.le.f32.partialorder %v3491, %v3557
      %vm3632 = vcmp.le.f32.partialorder %v3492, %v3594
      %vm3633 = vcmp.le.f32.partialorder %v3493, %v3557
      %vm3634 = vcmp.le.f32.partialorder %v3494, %v3594
      %vm3635 = vcmp.le.f32.partialorder %v3495, %v3557
      %vm3636 = vcmp.le.f32.partialorder %v3496, %v3594
      %vm3637 = vcmp.le.f32.partialorder %v3497, %v3557
      %vm3638 = vcmp.le.f32.partialorder %v3498, %v3594
      %vm3639 = vcmp.le.f32.partialorder %v3499, %v3557
      %vm3640 = vcmp.le.f32.partialorder %v3500, %v3594
      %vm3641 = vcmp.le.f32.partialorder %v3501, %v3557
      %vm3642 = vcmp.le.f32.partialorder %v3502, %v3594
      %vm3643 = vcmp.le.f32.partialorder %v3503, %v3557
      %vm3644 = vcmp.le.f32.partialorder %v3504, %v3594
      %vm3645 = vcmp.le.f32.partialorder %v3505, %v3557
      %vm3646 = vcmp.le.f32.partialorder %v3506, %v3594
      %vm3647 = vcmp.le.f32.partialorder %v3507, %v3557
      %vm3648 = vcmp.le.f32.partialorder %v3508, %v3594
      %vm3649 = vcmp.le.f32.partialorder %v3509, %v3557
      %vm3650 = vcmp.le.f32.partialorder %v3510, %v3594
      %vm3651 = vcmp.le.f32.partialorder %v3511, %v3557
      %vm3652 = vcmp.le.f32.partialorder %v3512, %v3594
      %vm3653 = vcmp.le.f32.partialorder %v3513, %v3557
      %vm3654 = vcmp.le.f32.partialorder %v3514, %v3594
      %vm3655 = vcmp.le.f32.partialorder %v3515, %v3557
      %vm3656 = vcmp.le.f32.partialorder %v3516, %v3594
      %vm3657 = vcmp.le.f32.partialorder %v3517, %v3557
      %vm3658 = vcmp.le.f32.partialorder %v3518, %v3594
      %vm3659 = vcmp.le.f32.partialorder %v3519, %v3557
      %vm3660 = vcmp.le.f32.partialorder %v3520, %v3594
      %v3661 = vsel %vm3597, 1e+10, %v3457
      %v3662 = vsel %vm3598, 1e+10, %v3458
      %v3663 = vsel %vm3599, 1e+10, %v3459
      %v3664 = vsel %vm3600, 1e+10, %v3460
      %v3665 = vsel %vm3601, 1e+10, %v3461
      %v3666 = vsel %vm3602, 1e+10, %v3462
      %v3667 = vsel %vm3603, 1e+10, %v3463
      %v3668 = vsel %vm3604, 1e+10, %v3464
      %v3669 = vsel %vm3605, 1e+10, %v3465
      %v3670 = vsel %vm3606, 1e+10, %v3466
      %v3671 = vsel %vm3607, 1e+10, %v3467
      %v3672 = vsel %vm3608, 1e+10, %v3468
      %v3673 = vsel %vm3609, 1e+10, %v3469
      %v3674 = vsel %vm3610, 1e+10, %v3470
      %v3675 = vsel %vm3611, 1e+10, %v3471
      %v3676 = vsel %vm3612, 1e+10, %v3472
      %v3677 = vsel %vm3613, 1e+10, %v3473
      %v3678 = vsel %vm3614, 1e+10, %v3474
      %v3679 = vsel %vm3615, 1e+10, %v3475
      %v3680 = vsel %vm3616, 1e+10, %v3476
      %v3681 = vsel %vm3617, 1e+10, %v3477
      %v3682 = vsel %vm3618, 1e+10, %v3478
      %v3683 = vsel %vm3619, 1e+10, %v3479
      %v3684 = vsel %vm3620, 1e+10, %v3480
      %v3685 = vsel %vm3621, 1e+10, %v3481
      %v3686 = vsel %vm3622, 1e+10, %v3482
      %v3687 = vsel %vm3623, 1e+10, %v3483
      %v3688 = vsel %vm3624, 1e+10, %v3484
      %v3689 = vsel %vm3625, 1e+10, %v3485
      %v3690 = vsel %vm3626, 1e+10, %v3486
      %v3691 = vsel %vm3627, 1e+10, %v3487
      %v3692 = vsel %vm3628, 1e+10, %v3488
      %v3693 = vsel %vm3629, 1e+10, %v3489
      %v3694 = vsel %vm3630, 1e+10, %v3490
      %v3695 = vsel %vm3631, 1e+10, %v3491
      %v3696 = vsel %vm3632, 1e+10, %v3492
      %v3697 = vsel %vm3633, 1e+10, %v3493
      %v3698 = vsel %vm3634, 1e+10, %v3494
      %v3699 = vsel %vm3635, 1e+10, %v3495
      %v3700 = vsel %vm3636, 1e+10, %v3496
      %v3701 = vsel %vm3637, 1e+10, %v3497
      %v3702 = vsel %vm3638, 1e+10, %v3498
      %v3703 = vsel %vm3639, 1e+10, %v3499
      %v3704 = vsel %vm3640, 1e+10, %v3500
      %v3705 = vsel %vm3641, 1e+10, %v3501
      %v3706 = vsel %vm3642, 1e+10, %v3502
      %v3707 = vsel %vm3643, 1e+10, %v3503
      %v3708 = vsel %vm3644, 1e+10, %v3504
      %v3709 = vsel %vm3645, 1e+10, %v3505
      %v3710 = vsel %vm3646, 1e+10, %v3506
      %v3711 = vsel %vm3647, 1e+10, %v3507
      %v3712 = vsel %vm3648, 1e+10, %v3508
      %v3713 = vsel %vm3649, 1e+10, %v3509
      %v3714 = vsel %vm3650, 1e+10, %v3510
      %v3715 = vsel %vm3651, 1e+10, %v3511
      %v3716 = vsel %vm3652, 1e+10, %v3512
      %v3717 = vsel %vm3653, 1e+10, %v3513
      %v3718 = vsel %vm3654, 1e+10, %v3514
      %v3719 = vsel %vm3655, 1e+10, %v3515
      %v3720 = vsel %vm3656, 1e+10, %v3516
      %v3721 = vsel %vm3657, 1e+10, %v3517
      %v3722 = vsel %vm3658, 1e+10, %v3518
      %v3723 = vsel %vm3659, 1e+10, %v3519
      %v3724 = vsel %vm3660, 1e+10, %v3520
      %v3725 = vmin.f32 %v3661, %v3665
      %v3726 = vmin.f32 %v3663, %v3667
      %v3727 = vmin.f32 %v3725, %v3669
      %v3728 = vmin.f32 %v3726, %v3671
      %v3729 = vmin.f32 %v3727, %v3673
      %v3730 = vmin.f32 %v3728, %v3675
      %v3731 = vmin.f32 %v3729, %v3677
      %v3732 = vmin.f32 %v3730, %v3679
      %v3733 = vmin.f32 %v3731, %v3681
      %v3734 = vmin.f32 %v3732, %v3683
      %v3735 = vmin.f32 %v3733, %v3685
      %v3736 = vmin.f32 %v3734, %v3687
      %v3737 = vmin.f32 %v3735, %v3689
      %v3738 = vmin.f32 %v3736, %v3691
      %v3739 = vmin.f32 %v3737, %v3693
      %v3740 = vmin.f32 %v3738, %v3695
      %v3741 = vmin.f32 %v3739, %v3697
      %v3742 = vmin.f32 %v3740, %v3699
      %v3743 = vmin.f32 %v3741, %v3701
      %v3744 = vmin.f32 %v3742, %v3703
      %v3745 = vmin.f32 %v3743, %v3705
      %v3746 = vmin.f32 %v3744, %v3707
      %v3747 = vmin.f32 %v3745, %v3709
      %v3748 = vmin.f32 %v3746, %v3711
      %v3749 = vmin.f32 %v3747, %v3713
      %v3750 = vmin.f32 %v3748, %v3715
      %v3751 = vmin.f32 %v3749, %v3717
      %v3752 = vmin.f32 %v3750, %v3719
      %v3753 = vmin.f32 %v3751, %v3721
      %v3754 = vmin.f32 %v3752, %v3723
      %v3755 = vmin.f32 %v3753, %v3754
      %v3756 = vrot.slane %v3755, 4
      %v3757 = vmin.f32 %v3755, %v3756
      %v3758 = vrot.slane %v3757, 2
      %v3759 = vmin.f32 %v3757, %v3758
      %v3760 = vrot.slane %v3759, 1
      %v3761 = vmin.f32 %v3759, %v3760
      %v3762 = vmin.f32 %v3662, %v3666
      %v3763 = vmin.f32 %v3664, %v3668
      %v3764 = vmin.f32 %v3762, %v3670
      %v3765 = vmin.f32 %v3763, %v3672
      %v3766 = vmin.f32 %v3764, %v3674
      %v3767 = vmin.f32 %v3765, %v3676
      %v3768 = vmin.f32 %v3766, %v3678
      %v3769 = vmin.f32 %v3767, %v3680
      %v3770 = vmin.f32 %v3768, %v3682
      %v3771 = vmin.f32 %v3769, %v3684
      %v3772 = vmin.f32 %v3770, %v3686
      %v3773 = vmin.f32 %v3771, %v3688
      %v3774 = vmin.f32 %v3772, %v3690
      %v3775 = vmin.f32 %v3773, %v3692
      %v3776 = vmin.f32 %v3774, %v3694
      %v3777 = vmin.f32 %v3775, %v3696
      %v3778 = vmin.f32 %v3776, %v3698
      %v3779 = vmin.f32 %v3777, %v3700
      %v3780 = vmin.f32 %v3778, %v3702
      %v3781 = vmin.f32 %v3779, %v3704
      %v3782 = vmin.f32 %v3780, %v3706
      %v3783 = vmin.f32 %v3781, %v3708
      %v3784 = vmin.f32 %v3782, %v3710
      %v3785 = vmin.f32 %v3783, %v3712
      %v3786 = vmin.f32 %v3784, %v3714
      %v3787 = vmin.f32 %v3785, %v3716
      %v3788 = vmin.f32 %v3786, %v3718
      %v3789 = vmin.f32 %v3787, %v3720
      %v3790 = vmin.f32 %v3788, %v3722
      %v3791 = vmin.f32 %v3789, %v3724
      %v3792 = vmin.f32 %v3790, %v3791
      %v3793 = vrot.slane %v3792, 4
      %v3794 = vmin.f32 %v3792, %v3793
      %v3795 = vrot.slane %v3794, 2
      %v3796 = vmin.f32 %v3794, %v3795
      %v3797 = vrot.slane %v3796, 1
      %v3798 = vmin.f32 %v3796, %v3797
      %v3799 = vadd.f32 %v3595, %v3761
      %v3800 = vadd.f32 %v3596, %v3798
      %v3801 = vmul.f32 %v3799, %v1925
      %v3802 = vmul.f32 %v3800, %v1925
      %v3803 = vsel %vm1928, %v3801, 0.0
      %v3804 = vsel %vm1928, %v3802, 0.0
      %v3805 = vadd.f32 %v3803, %v3804
      %3806 = vadd.xlane.f32.xlu0 %v3805
      %v3807 = vpop.xlane.xlu0 %3806
      %v3808 = vrot.slane %v3807, 4
      %v3809 = vadd.f32 %v3807, %v3808
      %v3810 = vrot.slane %v3809, 2
      %v3811 = vadd.f32 %v3809, %v3810
      %v3812 = vrot.slane %v3811, 1
      %v3813 = vadd.f32 %v3811, %v3812
      %s3814 = vtos %v3813
      %v3815 = vrcp.pop 256.0
      %s3816 = vtos %v3815
      %s3817 = smul.f32 %s3814, %s3816
      %v3818 = vstv %s3817
      %v3819 = vsub.f32 %v3801, %v3818
      %v3820 = vsub.f32 %v3802, %v3818
      %v3821 = vmul.f32 %v3819, %v3819
      %v3822 = vmul.f32 %v3820, %v3820
      %v3823 = vsel %vm1928, %v3821, 0.0
      %v3824 = vsel %vm1928, %v3822, 0.0
      %v3825 = vadd.f32 %v3823, %v3824
      %3826 = vadd.xlane.f32.xlu0 %v3825
      %v3827 = vpop.xlane.xlu0 %3826
      %v3828 = vrot.slane %v3827, 4
      %v3829 = vadd.f32 %v3827, %v3828
      %v3830 = vrot.slane %v3829, 2
      %v3831 = vadd.f32 %v3829, %v3830
      %v3832 = vrot.slane %v3831, 1
      %v3833 = vadd.f32 %v3831, %v3832
      %s3834 = vtos %v3833
      %v3835 = vrcp.pop 255.0
      %s3836 = vtos %v3835
      %s3837 = smul.f32 %s3834, %s3836
      %v3838 = vstv %s3837
      %v3839 = vrsqrt.pop %v3838
      %v3840 = vmul.f32 %v3838, %v3839
      %vm3841 = vcmp.eq.f32.partialorder %v3838, inf
      %v3842 = vsel %vm3841, %v3838, %v3840
      %vm3843 = vcmp.eq.f32.partialorder %v3838, 0.0
      %v3844 = vand.u32 %v3838, 2147483648
      %v3845 = vsel %vm3843, %v3844, %v3842
      %s3846 = vtos %v3845
      %s3847 = smul.f32 %s3846, 1.1
      %s3848 = sadd.f32 %s3817, %s3847
      %v3849 = vstv %s3848
      %vm3850 = vcmp.gt.f32.partialorder %v3801, %v3849
      %vm3851 = vcmp.gt.f32.partialorder %v3802, %v3849
      %v3852 = vsel %vm3850, 1e+09, 0.0
      %v3853 = vsel %vm3851, 1e+09, 0.0
      %v3854 = vadd.f32 %v3801, %v3852
      %v3855 = vadd.f32 %v3802, %v3853
      %v3858 = vcombine.low %v3854, %v3855
      %v3860 = vunpack.c.l.s4 1966171168
      %v3861 = vunpack.c.0.s8 %v3860
      %v3862 = vlaneseq
      %v3863 = vshrl.u32 %v3862, 7
      %v3864 = vsub.s32 %v3861, %v3863
      %v3865 = vrot.slane %v3858, %v3864
      %v3867 = vunpack.c.l.s4 1966171168
      %v3868 = vunpack.c.0.s8 %v3867
      %v3869 = vlaneseq
      %v3870 = vshrl.u32 %v3869, 7
      %v3871 = vsub.s32 %v3868, %v3870
      %v3872 = vrot.slane %v3865, %v3871
      %s3874 = scalar_lea.vmem %s121, 2
      %3875 = vst.msk [vmem:[%s3874] sm:$0x3] %vm2003, %v3872
      %s3876 = smul.u32 2, %s12
      %p3877 = scmp.lt.s32.totalorder %s3876, 3
      %s3878 = scalar_select %p3877, %s3876, 3
      %s3879 = smul.addr %s3878, 2
      %s3880 = scalar_lea.vmem %s1, %s3879
      // Predicated region
      $region25: #{if_defense_forward.2} parent=23 // pred_check
        %p3881 = pneg %p56
      $region26: #{if_defense_forward.2} parent=23 // pred_check_branch
        %3883 = sbr.rel (%p3881) target = $region28
      $region27: #{if_defense_forward.2} parent=23 // pred_region
        %s3884 = smul.u32 2, %s12
      $region28: #{if_defense_forward.2} parent=23 // pred_fallthru
        _
    $region24: #{if_defense_forward.2} parent=5 // pred_fallthru
      _
    %p3885 = scmp.le.s32.totalorder 2, %s7
    // Predicated region
    $region29: #{if_defense_forward.2} parent=5 // pred_check
      %p3886 = pneg %p3885
    $region30: #{if_defense_forward.2} parent=5 // pred_check_branch
      %3888 = sbr.rel (%p3886) target = $region32
    $region31: #{if_defense_forward.2} parent=5 // pred_region
      %s3889 = ssub.s32 %s7, 2
      // Predicated region
      $region33: #{if_defense_forward.2} parent=31 // pred_check
        %p3890 = pneg %p62
      $region34: #{if_defense_forward.2} parent=31 // pred_check_branch
        %3892 = sbr.rel (%p3890) target = $region36
      $region35: #{if_defense_forward.2} parent=31 // pred_region
        %s3893 = smul.u32 2, %s13
        %p3894 = scmp.lt.s32.totalorder %s3893, 3
        %s3895 = scalar_select %p3894, %s3893, 3
        %s3896 = smul.addr %s3895, 2
        %s3897 = scalar_lea.vmem %s1, %s3896
      $region36: #{if_defense_forward.2} parent=31 // pred_fallthru
        _
    $region32: #{if_defense_forward.2} parent=5 // pred_fallthru
      _
  $region6: #{if_defense_forward.2} parent=0 // loop_footer
    %s11 = sadd.s32 1, %s7
  $region7: #{if_defense_forward.2} parent=0 // loop_footer_branch
    %6 = sbr.rel target = $region3
  $region8: #{if_defense_forward.2} parent=0 // loop_exit
    _

// kernel: if_defense_forward.3
$region0: #{if_defense_forward.3}
  #allocation0 [shape = 'u32[]', space=smem, size = 0x4, offset = 0x4, fixed_abs, tag = 'smem constant byte address 0x4 - core index']
  #allocation1 [shape = 'u32[144,128]{1,0:T(1,128)}', space=vmem, size = 0x12000, scoped, tag = 'internal scratch']
  %s0 = inlined_call_operand.vmem [shape: f32[4,128,3], index: 0, kind: input, shape index: {}]
  %s1 = inlined_call_operand.vmem [shape: f32[4,128,3], index: 1, kind: input, shape index: {}]
  %s2 = inlined_call_operand.vmem [shape: f32[4,128,3], index: 2, kind: input, shape index: {}]
  %s3 = inlined_call_operand.vmem [shape: f32[3,64], index: 3, kind: input, shape index: {}]
  %s4 = inlined_call_operand.vmem [shape: f32[1,64], index: 4, kind: input, shape index: {}]
  %s5 = inlined_call_operand.vmem [shape: f32[64,64], index: 5, kind: input, shape index: {}]
  %s6 = inlined_call_operand.vmem [shape: f32[1,64], index: 6, kind: input, shape index: {}]
  %s7 = inlined_call_operand.vmem [shape: f32[64,128], index: 7, kind: input, shape index: {}]
  %s8 = inlined_call_operand.vmem [shape: f32[1,128], index: 8, kind: input, shape index: {}]
  %s9 = inlined_call_operand.vmem [shape: f32[128,64], index: 9, kind: input, shape index: {}]
  %s10 = inlined_call_operand.vmem [shape: f32[1,64], index: 10, kind: input, shape index: {}]
  %s11 = inlined_call_operand.vmem [shape: f32[64,40], index: 11, kind: input, shape index: {}]
  %s12 = inlined_call_operand.vmem [shape: f32[1,40], index: 12, kind: input, shape index: {}]
  %s13 = inlined_call_operand.hbm [shape: f32[2,2,40], index: 13, kind: output, shape index: {0}]
  %s14 = inlined_call_operand.hbm [shape: f32[2,2,128], index: 14, kind: output, shape index: {1}]
  %15 = xla_tuple %s13, %s14
  %s16 = sld [smem:[#allocation0]]
  $region93: #{if_defense_forward.3} parent=0
    _
  %s18 = ssub.s32 1, %s16
  %s19 = scalar_select 0, %s18, %s16
  $region1: #{if_defense_forward.3} parent=0
    #allocation2 [shape = 'u8[2048]{0}', space=vmem, size = 0x800, scoped, tag = 'output window, operand 0']
    #allocation3 [shape = 's32[2]{0}', space=sflag, size = 0x8, scoped, tag = 'scoped memory for if_defense_forward.3']
    #allocation4 [shape = 'u8[2048]{0}', space=vmem, size = 0x800, scoped, tag = 'output window, operand 1']
    #allocation5 [shape = 's32[2]{0}', space=sflag, size = 0x8, scoped, tag = 'scoped memory for if_defense_forward.3']
    %20 = vsyncpa [#allocation3], 0
    %s21 = scalar_lea.sflag [#allocation3], 1
    %22 = vsyncpa %s21, 0
    %23 = vsyncpa [#allocation5], 0
    %s24 = scalar_lea.sflag [#allocation5], 1
    %25 = vsyncpa %s24, 0
    loop: start=0, step=1, limit=4
    $region2: #{if_defense_forward.3} parent=1 // loop_pre_header
      _
    $region3: #{if_defense_forward.3} parent=1 // loop_header
      %s27 = sphi 0, %s31
      %p28 = scmp.ge.s32.totalorder %s27, 4
      %s37 = sphi 0, %s39
      %s40 = sphi 0, %s37
      %s41 = sphi 0, %s40
      %s57 = sphi 0, %s41
      %s63 = sphi 0, %s65
      %s66 = sphi 0, %s63
      %s67 = sphi 0, %s66
      %s83 = sphi 0, %s67
      %s89 = sphi 0, %s91
      %s92 = sphi 0, %s89
      %s93 = sphi 0, %s92
      %s109 = sphi 0, %s93
      %s113 = sphi 0, %s113
      %s115 = sphi 0, %s113
      %s116 = sphi 0, %s115
      %s130 = sphi 0, %s116
      %s134 = sphi 0, %s134
      %s136 = sphi 0, %s134
      %s137 = sphi 0, %s136
      %s151 = sphi 0, %s137
      %s155 = sphi 0, %s155
      %s157 = sphi 0, %s155
      %s158 = sphi 0, %s157
      %s172 = sphi 0, %s158
      %s176 = sphi 0, %s176
      %s178 = sphi 0, %s176
      %s179 = sphi 0, %s178
      %s193 = sphi 0, %s179
      %s197 = sphi 0, %s197
      %s199 = sphi 0, %s197
      %s200 = sphi 0, %s199
      %s214 = sphi 0, %s200
      %s218 = sphi 0, %s218
      %s220 = sphi 0, %s218
      %s221 = sphi 0, %s220
      %s235 = sphi 0, %s221
      %s239 = sphi 0, %s239
      %s241 = sphi 0, %s239
      %s242 = sphi 0, %s241
      %s256 = sphi 0, %s242
      %s260 = sphi 0, %s260
      %s262 = sphi 0, %s260
      %s263 = sphi 0, %s262
      %s277 = sphi 0, %s263
      %s281 = sphi 0, %s281
      %s283 = sphi 0, %s281
      %s284 = sphi 0, %s283
      %s298 = sphi 0, %s284
      %s302 = sphi 0, %s302
      %s304 = sphi 0, %s302
      %s305 = sphi 0, %s304
      %s319 = sphi 0, %s305
      %s325 = sphi 0, %s327
      %s328 = sphi 0, %s325
      %s329 = sphi 0, %s328
      %s345 = sphi 0, %s329
      %s351 = sphi 0, %s353
      %s354 = sphi 0, %s351
      %s355 = sphi 0, %s354
      %s371 = sphi 0, %s355
    $region4: #{if_defense_forward.3} parent=1 // loop_header_branch
      %30 = sbr.rel (%p28) target = $region8
    $region5: #{if_defense_forward.3} parent=1 // loop_body
      %s32 = ssub.s32 %s27, 1
      %s33 = ssub.s32 %s27, 2
      %s34 = sadd.s32 %s27, 1
      %s35 = ssub.s32 %s27, %s34
      %p36 = scmp.eq.s32.totalorder %s35, 0
      %s38 = sadd.s32 %s37, 1
      %s39 = scalar_select %p36, %s37, %s38
      %p42 = pneg %p36
      %p43 = scmp.eq.s32.totalorder %s27, 1
      %p44 = por %p42, %p43
      %p45 = scmp.ne.s32.totalorder %s37, %s40
      %p46 = scmp.eq.s32.totalorder %s27, 0
      %p47 = por %p45, %p46
      %p48 = scmp.ne.s32.totalorder %s37, %s40
      %p49 = scmp.eq.s32.totalorder %s32, 1
      %p50 = por %p48, %p49
      %p51 = scmp.ne.s32.totalorder %s40, %s41
      %p52 = scmp.eq.s32.totalorder %s32, 0
      %p53 = por %p51, %p52
      %p54 = scmp.ne.s32.totalorder %s40, %s41
      %p55 = scmp.eq.s32.totalorder %s33, 1
      %p56 = por %p54, %p55
      %p58 = scmp.ne.s32.totalorder %s41, %s57
      %p59 = scmp.eq.s32.totalorder %s33, 0
      %p60 = por %p58, %p59
      %s61 = ssub.s32 %s27, %s34
      %p62 = scmp.eq.s32.totalorder %s61, 0
      %s64 = sadd.s32 %s63, 1
      %s65 = scalar_select %p62, %s63, %s64
      %p68 = pneg %p62
      %p69 = scmp.eq.s32.totalorder %s27, 1
      %p70 = por %p68, %p69
      %p71 = scmp.ne.s32.totalorder %s63, %s66
      %p72 = scmp.eq.s32.totalorder %s27, 0
      %p73 = por %p71, %p72
      %p74 = scmp.ne.s32.totalorder %s63, %s66
      %p75 = scmp.eq.s32.totalorder %s32, 1
      %p76 = por %p74, %p75
      %p77 = scmp.ne.s32.totalorder %s66, %s67
      %p78 = scmp.eq.s32.totalorder %s32, 0
      %p79 = por %p77, %p78
      %p80 = scmp.ne.s32.totalorder %s66, %s67
      %p81 = scmp.eq.s32.totalorder %s33, 1
      %p82 = por %p80, %p81
      %p84 = scmp.ne.s32.totalorder %s67, %s83
      %p85 = scmp.eq.s32.totalorder %s33, 0
      %p86 = por %p84, %p85
      %s87 = ssub.s32 %s27, %s34
      %p88 = scmp.eq.s32.totalorder %s87, 0
      %s90 = sadd.s32 %s89, 1
      %s91 = scalar_select %p88, %s89, %s90
      %p94 = pneg %p88
      %p95 = scmp.eq.s32.totalorder %s27, 1
      %p96 = por %p94, %p95
      %p97 = scmp.ne.s32.totalorder %s89, %s92
      %p98 = scmp.eq.s32.totalorder %s27, 0
      %p99 = por %p97, %p98
      %p100 = scmp.ne.s32.totalorder %s89, %s92
      %p101 = scmp.eq.s32.totalorder %s32, 1
      %p102 = por %p100, %p101
      %p103 = scmp.ne.s32.totalorder %s92, %s93
      %p104 = scmp.eq.s32.totalorder %s32, 0
      %p105 = por %p103, %p104
      %p106 = scmp.ne.s32.totalorder %s92, %s93
      %p107 = scmp.eq.s32.totalorder %s33, 1
      %p108 = por %p106, %p107
      %p110 = scmp.ne.s32.totalorder %s93, %s109
      %p111 = scmp.eq.s32.totalorder %s33, 0
      %p112 = por %p110, %p111
      %s114 = sadd.s32 %s113, 1
      %p117 = scmp.eq.s32.totalorder %s27, 1
      %p118 = scmp.ne.s32.totalorder %s113, %s115
      %p119 = scmp.eq.s32.totalorder %s27, 0
      %p120 = por %p118, %p119
      %p121 = scmp.ne.s32.totalorder %s113, %s115
      %p122 = scmp.eq.s32.totalorder %s32, 1
      %p123 = por %p121, %p122
      %p124 = scmp.ne.s32.totalorder %s115, %s116
      %p125 = scmp.eq.s32.totalorder %s32, 0
      %p126 = por %p124, %p125
      %p127 = scmp.ne.s32.totalorder %s115, %s116
      %p128 = scmp.eq.s32.totalorder %s33, 1
      %p129 = por %p127, %p128
      %p131 = scmp.ne.s32.totalorder %s116, %s130
      %p132 = scmp.eq.s32.totalorder %s33, 0
      %p133 = por %p131, %p132
      %s135 = sadd.s32 %s134, 1
      %p138 = scmp.eq.s32.totalorder %s27, 1
      %p139 = scmp.ne.s32.totalorder %s134, %s136
      %p140 = scmp.eq.s32.totalorder %s27, 0
      %p141 = por %p139, %p140
      %p142 = scmp.ne.s32.totalorder %s134, %s136
      %p143 = scmp.eq.s32.totalorder %s32, 1
      %p144 = por %p142, %p143
      %p145 = scmp.ne.s32.totalorder %s136, %s137
      %p146 = scmp.eq.s32.totalorder %s32, 0
      %p147 = por %p145, %p146
      %p148 = scmp.ne.s32.totalorder %s136, %s137
      %p149 = scmp.eq.s32.totalorder %s33, 1
      %p150 = por %p148, %p149
      %p152 = scmp.ne.s32.totalorder %s137, %s151
      %p153 = scmp.eq.s32.totalorder %s33, 0
      %p154 = por %p152, %p153
      %s156 = sadd.s32 %s155, 1
      %p159 = scmp.eq.s32.totalorder %s27, 1
      %p160 = scmp.ne.s32.totalorder %s155, %s157
      %p161 = scmp.eq.s32.totalorder %s27, 0
      %p162 = por %p160, %p161
      %p163 = scmp.ne.s32.totalorder %s155, %s157
      %p164 = scmp.eq.s32.totalorder %s32, 1
      %p165 = por %p163, %p164
      %p166 = scmp.ne.s32.totalorder %s157, %s158
      %p167 = scmp.eq.s32.totalorder %s32, 0
      %p168 = por %p166, %p167
      %p169 = scmp.ne.s32.totalorder %s157, %s158
      %p170 = scmp.eq.s32.totalorder %s33, 1
      %p171 = por %p169, %p170
      %p173 = scmp.ne.s32.totalorder %s158, %s172
      %p174 = scmp.eq.s32.totalorder %s33, 0
      %p175 = por %p173, %p174
      %s177 = sadd.s32 %s176, 1
      %p180 = scmp.eq.s32.totalorder %s27, 1
      %p181 = scmp.ne.s32.totalorder %s176, %s178
      %p182 = scmp.eq.s32.totalorder %s27, 0
      %p183 = por %p181, %p182
      %p184 = scmp.ne.s32.totalorder %s176, %s178
      %p185 = scmp.eq.s32.totalorder %s32, 1
      %p186 = por %p184, %p185
      %p187 = scmp.ne.s32.totalorder %s178, %s179
      %p188 = scmp.eq.s32.totalorder %s32, 0
      %p189 = por %p187, %p188
      %p190 = scmp.ne.s32.totalorder %s178, %s179
      %p191 = scmp.eq.s32.totalorder %s33, 1
      %p192 = por %p190, %p191
      %p194 = scmp.ne.s32.totalorder %s179, %s193
      %p195 = scmp.eq.s32.totalorder %s33, 0
      %p196 = por %p194, %p195
      %s198 = sadd.s32 %s197, 1
      %p201 = scmp.eq.s32.totalorder %s27, 1
      %p202 = scmp.ne.s32.totalorder %s197, %s199
      %p203 = scmp.eq.s32.totalorder %s27, 0
      %p204 = por %p202, %p203
      %p205 = scmp.ne.s32.totalorder %s197, %s199
      %p206 = scmp.eq.s32.totalorder %s32, 1
      %p207 = por %p205, %p206
      %p208 = scmp.ne.s32.totalorder %s199, %s200
      %p209 = scmp.eq.s32.totalorder %s32, 0
      %p210 = por %p208, %p209
      %p211 = scmp.ne.s32.totalorder %s199, %s200
      %p212 = scmp.eq.s32.totalorder %s33, 1
      %p213 = por %p211, %p212
      %p215 = scmp.ne.s32.totalorder %s200, %s214
      %p216 = scmp.eq.s32.totalorder %s33, 0
      %p217 = por %p215, %p216
      %s219 = sadd.s32 %s218, 1
      %p222 = scmp.eq.s32.totalorder %s27, 1
      %p223 = scmp.ne.s32.totalorder %s218, %s220
      %p224 = scmp.eq.s32.totalorder %s27, 0
      %p225 = por %p223, %p224
      %p226 = scmp.ne.s32.totalorder %s218, %s220
      %p227 = scmp.eq.s32.totalorder %s32, 1
      %p228 = por %p226, %p227
      %p229 = scmp.ne.s32.totalorder %s220, %s221
      %p230 = scmp.eq.s32.totalorder %s32, 0
      %p231 = por %p229, %p230
      %p232 = scmp.ne.s32.totalorder %s220, %s221
      %p233 = scmp.eq.s32.totalorder %s33, 1
      %p234 = por %p232, %p233
      %p236 = scmp.ne.s32.totalorder %s221, %s235
      %p237 = scmp.eq.s32.totalorder %s33, 0
      %p238 = por %p236, %p237
      %s240 = sadd.s32 %s239, 1
      %p243 = scmp.eq.s32.totalorder %s27, 1
      %p244 = scmp.ne.s32.totalorder %s239, %s241
      %p245 = scmp.eq.s32.totalorder %s27, 0
      %p246 = por %p244, %p245
      %p247 = scmp.ne.s32.totalorder %s239, %s241
      %p248 = scmp.eq.s32.totalorder %s32, 1
      %p249 = por %p247, %p248
      %p250 = scmp.ne.s32.totalorder %s241, %s242
      %p251 = scmp.eq.s32.totalorder %s32, 0
      %p252 = por %p250, %p251
      %p253 = scmp.ne.s32.totalorder %s241, %s242
      %p254 = scmp.eq.s32.totalorder %s33, 1
      %p255 = por %p253, %p254
      %p257 = scmp.ne.s32.totalorder %s242, %s256
      %p258 = scmp.eq.s32.totalorder %s33, 0
      %p259 = por %p257, %p258
      %s261 = sadd.s32 %s260, 1
      %p264 = scmp.eq.s32.totalorder %s27, 1
      %p265 = scmp.ne.s32.totalorder %s260, %s262
      %p266 = scmp.eq.s32.totalorder %s27, 0
      %p267 = por %p265, %p266
      %p268 = scmp.ne.s32.totalorder %s260, %s262
      %p269 = scmp.eq.s32.totalorder %s32, 1
      %p270 = por %p268, %p269
      %p271 = scmp.ne.s32.totalorder %s262, %s263
      %p272 = scmp.eq.s32.totalorder %s32, 0
      %p273 = por %p271, %p272
      %p274 = scmp.ne.s32.totalorder %s262, %s263
      %p275 = scmp.eq.s32.totalorder %s33, 1
      %p276 = por %p274, %p275
      %p278 = scmp.ne.s32.totalorder %s263, %s277
      %p279 = scmp.eq.s32.totalorder %s33, 0
      %p280 = por %p278, %p279
      %s282 = sadd.s32 %s281, 1
      %p285 = scmp.eq.s32.totalorder %s27, 1
      %p286 = scmp.ne.s32.totalorder %s281, %s283
      %p287 = scmp.eq.s32.totalorder %s27, 0
      %p288 = por %p286, %p287
      %p289 = scmp.ne.s32.totalorder %s281, %s283
      %p290 = scmp.eq.s32.totalorder %s32, 1
      %p291 = por %p289, %p290
      %p292 = scmp.ne.s32.totalorder %s283, %s284
      %p293 = scmp.eq.s32.totalorder %s32, 0
      %p294 = por %p292, %p293
      %p295 = scmp.ne.s32.totalorder %s283, %s284
      %p296 = scmp.eq.s32.totalorder %s33, 1
      %p297 = por %p295, %p296
      %p299 = scmp.ne.s32.totalorder %s284, %s298
      %p300 = scmp.eq.s32.totalorder %s33, 0
      %p301 = por %p299, %p300
      %s303 = sadd.s32 %s302, 1
      %p306 = scmp.eq.s32.totalorder %s27, 1
      %p307 = scmp.ne.s32.totalorder %s302, %s304
      %p308 = scmp.eq.s32.totalorder %s27, 0
      %p309 = por %p307, %p308
      %p310 = scmp.ne.s32.totalorder %s302, %s304
      %p311 = scmp.eq.s32.totalorder %s32, 1
      %p312 = por %p310, %p311
      %p313 = scmp.ne.s32.totalorder %s304, %s305
      %p314 = scmp.eq.s32.totalorder %s32, 0
      %p315 = por %p313, %p314
      %p316 = scmp.ne.s32.totalorder %s304, %s305
      %p317 = scmp.eq.s32.totalorder %s33, 1
      %p318 = por %p316, %p317
      %p320 = scmp.ne.s32.totalorder %s305, %s319
      %p321 = scmp.eq.s32.totalorder %s33, 0
      %p322 = por %p320, %p321
      %s323 = ssub.s32 %s27, %s34
      %p324 = scmp.eq.s32.totalorder %s323, 0
      %s326 = sadd.s32 %s325, 1
      %s327 = scalar_select %p324, %s325, %s326
      %p330 = pneg %p324
      %p331 = scmp.eq.s32.totalorder %s27, 1
      %p332 = por %p330, %p331
      %p333 = scmp.ne.s32.totalorder %s325, %s328
      %p334 = scmp.eq.s32.totalorder %s27, 0
      %p335 = por %p333, %p334
      %p336 = scmp.ne.s32.totalorder %s325, %s328
      %p337 = scmp.eq.s32.totalorder %s32, 1
      %p338 = por %p336, %p337
      %p339 = scmp.ne.s32.totalorder %s328, %s329
      %p340 = scmp.eq.s32.totalorder %s32, 0
      %p341 = por %p339, %p340
      %p342 = scmp.ne.s32.totalorder %s328, %s329
      %p343 = scmp.eq.s32.totalorder %s33, 1
      %p344 = por %p342, %p343
      %p346 = scmp.ne.s32.totalorder %s329, %s345
      %p347 = scmp.eq.s32.totalorder %s33, 0
      %p348 = por %p346, %p347
      %s349 = ssub.s32 %s27, %s34
      %p350 = scmp.eq.s32.totalorder %s349, 0
      %s352 = sadd.s32 %s351, 1
      %s353 = scalar_select %p350, %s351, %s352
      %p356 = pneg %p350
      %p357 = scmp.eq.s32.totalorder %s27, 1
      %p358 = por %p356, %p357
      %p359 = scmp.ne.s32.totalorder %s351, %s354
      %p360 = scmp.eq.s32.totalorder %s27, 0
      %p361 = por %p359, %p360
      %p362 = scmp.ne.s32.totalorder %s351, %s354
      %p363 = scmp.eq.s32.totalorder %s32, 1
      %p364 = por %p362, %p363
      %p365 = scmp.ne.s32.totalorder %s354, %s355
      %p366 = scmp.eq.s32.totalorder %s32, 0
      %p367 = por %p365, %p366
      %p368 = scmp.ne.s32.totalorder %s354, %s355
      %p369 = scmp.eq.s32.totalorder %s33, 1
      %p370 = por %p368, %p369
      %p372 = scmp.ne.s32.totalorder %s355, %s371
      %p373 = scmp.eq.s32.totalorder %s33, 0
      %p374 = por %p372, %p373
      %p375 = scmp.le.s32.totalorder 1, %s27
      %p376 = scmp.lt.s32.totalorder %s27, 3
      %p377 = pnand %p375, %p376
      %p378 = pneg %p377
      // Predicated region
      $region9: #{if_defense_forward.3} parent=5 // pred_check
        _
      $region10: #{if_defense_forward.3} parent=5 // pred_check_branch
        %380 = sbr.rel (%p377) target = $region12
      $region11: #{if_defense_forward.3} parent=5 // pred_region
        %s381 = ssub.s32 %s27, 1
        // Predicated region
        $region13: #{if_defense_forward.3} parent=11 // pred_check
          %p382 = pneg %p126
        $region14: #{if_defense_forward.3} parent=11 // pred_check_branch
          %384 = sbr.rel (%p382) target = $region16
        $region15: #{if_defense_forward.3} parent=11 // pred_region
          _
        $region16: #{if_defense_forward.3} parent=11 // pred_fallthru
          _
        // Predicated region
        $region17: #{if_defense_forward.3} parent=11 // pred_check
          %p385 = pneg %p147
        $region18: #{if_defense_forward.3} parent=11 // pred_check_branch
          %387 = sbr.rel (%p385) target = $region20
        $region19: #{if_defense_forward.3} parent=11 // pred_region
          _
        $region20: #{if_defense_forward.3} parent=11 // pred_fallthru
          _
        // Predicated region
        $region21: #{if_defense_forward.3} parent=11 // pred_check
          %p388 = pneg %p168
        $region22: #{if_defense_forward.3} parent=11 // pred_check_branch
          %390 = sbr.rel (%p388) target = $region24
        $region23: #{if_defense_forward.3} parent=11 // pred_region
          _
        $region24: #{if_defense_forward.3} parent=11 // pred_fallthru
          _
        // Predicated region
        $region25: #{if_defense_forward.3} parent=11 // pred_check
          %p391 = pneg %p189
        $region26: #{if_defense_forward.3} parent=11 // pred_check_branch
          %393 = sbr.rel (%p391) target = $region28
        $region27: #{if_defense_forward.3} parent=11 // pred_region
          _
        $region28: #{if_defense_forward.3} parent=11 // pred_fallthru
          _
        // Predicated region
        $region29: #{if_defense_forward.3} parent=11 // pred_check
          %p394 = pneg %p210
        $region30: #{if_defense_forward.3} parent=11 // pred_check_branch
          %396 = sbr.rel (%p394) target = $region32
        $region31: #{if_defense_forward.3} parent=11 // pred_region
          _
        $region32: #{if_defense_forward.3} parent=11 // pred_fallthru
          _
        // Predicated region
        $region33: #{if_defense_forward.3} parent=11 // pred_check
          %p397 = pneg %p231
        $region34: #{if_defense_forward.3} parent=11 // pred_check_branch
          %399 = sbr.rel (%p397) target = $region36
        $region35: #{if_defense_forward.3} parent=11 // pred_region
          _
        $region36: #{if_defense_forward.3} parent=11 // pred_fallthru
          _
        // Predicated region
        $region37: #{if_defense_forward.3} parent=11 // pred_check
          %p400 = pneg %p252
        $region38: #{if_defense_forward.3} parent=11 // pred_check_branch
          %402 = sbr.rel (%p400) target = $region40
        $region39: #{if_defense_forward.3} parent=11 // pred_region
          _
        $region40: #{if_defense_forward.3} parent=11 // pred_fallthru
          _
        // Predicated region
        $region41: #{if_defense_forward.3} parent=11 // pred_check
          %p403 = pneg %p273
        $region42: #{if_defense_forward.3} parent=11 // pred_check_branch
          %405 = sbr.rel (%p403) target = $region44
        $region43: #{if_defense_forward.3} parent=11 // pred_region
          _
        $region44: #{if_defense_forward.3} parent=11 // pred_fallthru
          _
        // Predicated region
        $region45: #{if_defense_forward.3} parent=11 // pred_check
          %p406 = pneg %p294
        $region46: #{if_defense_forward.3} parent=11 // pred_check_branch
          %408 = sbr.rel (%p406) target = $region48
        $region47: #{if_defense_forward.3} parent=11 // pred_region
          _
        $region48: #{if_defense_forward.3} parent=11 // pred_fallthru
          _
        // Predicated region
        $region49: #{if_defense_forward.3} parent=11 // pred_check
          %p409 = pneg %p315
        $region50: #{if_defense_forward.3} parent=11 // pred_check_branch
          %411 = sbr.rel (%p409) target = $region52
        $region51: #{if_defense_forward.3} parent=11 // pred_region
          _
        $region52: #{if_defense_forward.3} parent=11 // pred_fallthru
          _
      $region12: #{if_defense_forward.3} parent=5 // pred_fallthru
        _
      %p412 = scmp.lt.s32.totalorder %s27, 2
      // Predicated region
      $region53: #{if_defense_forward.3} parent=5 // pred_check
        %p413 = pneg %p412
      $region54: #{if_defense_forward.3} parent=5 // pred_check_branch
        %415 = sbr.rel (%p413) target = $region56
      $region55: #{if_defense_forward.3} parent=5 // pred_region
        // Predicated region
        $region57: #{if_defense_forward.3} parent=55 // pred_check
          %p416 = pneg %p47
        $region58: #{if_defense_forward.3} parent=55 // pred_check_branch
          %418 = sbr.rel (%p416) target = $region60
        $region59: #{if_defense_forward.3} parent=55 // pred_region
          %s419 = smul.u32 2, %s27
          %p420 = scmp.lt.s32.totalorder %s419, 3
          %s421 = scalar_select %p420, %s419, 3
          %s422 = smul.addr %s421, 16
          %s423 = smul.addr %s422, 8
          %s424 = scalar_lea.vmem %s0, %s423
          %s425 = smul.u32 2, %s27
        $region60: #{if_defense_forward.3} parent=55 // pred_fallthru
          _
        // Predicated region
        $region61: #{if_defense_forward.3} parent=55 // pred_check
          %p426 = pneg %p73
        $region62: #{if_defense_forward.3} parent=55 // pred_check_branch
          %428 = sbr.rel (%p426) target = $region64
        $region63: #{if_defense_forward.3} parent=55 // pred_region
          %s429 = smul.u32 2, %s27
          %p430 = scmp.lt.s32.totalorder %s429, 3
          %s431 = scalar_select %p430, %s429, 3
          %s432 = smul.addr %s431, 16
          %s433 = smul.addr %s432, 8
          %s434 = scalar_lea.vmem %s1, %s433
          %s435 = smul.u32 2, %s27
        $region64: #{if_defense_forward.3} parent=55 // pred_fallthru
          _
        // Predicated region
        $region65: #{if_defense_forward.3} parent=55 // pred_check
          %p436 = pneg %p99
        $region66: #{if_defense_forward.3} parent=55 // pred_check_branch
          %438 = sbr.rel (%p436) target = $region68
        $region67: #{if_defense_forward.3} parent=55 // pred_region
          %s439 = smul.u32 2, %s27
          %p440 = scmp.lt.s32.totalorder %s439, 3
          %s441 = scalar_select %p440, %s439, 3
          %s442 = smul.addr %s441, 16
          %s443 = smul.addr %s442, 8
          %s444 = scalar_lea.vmem %s2, %s443
          %s445 = smul.u32 2, %s27
        $region68: #{if_defense_forward.3} parent=55 // pred_fallthru
          _
      $region56: #{if_defense_forward.3} parent=5 // pred_fallthru
        _
      %p446 = scmp.le.s32.totalorder 1, %s27
      %p447 = scmp.lt.s32.totalorder %s27, 3
      %p448 = pnand %p446, %p447
      %p449 = pneg %p448
      // Predicated region
      $region69: #{if_defense_forward.3} parent=5 // pred_check
        _
      $region70: #{if_defense_forward.3} parent=5 // pred_check_branch
        %451 = sbr.rel (%p448) target = $region72
      $region71: #{if_defense_forward.3} parent=5 // pred_region
        %s452 = ssub.s32 %s27, 1
        %s453 = smul.u32 2, %s32
        %p454 = scmp.lt.s32.totalorder %s453, 3
        %s455 = scalar_select %p454, %s453, 3
        %s456 = smul.addr %s455, 16
        %s457 = smul.addr %s456, 8
        %s458 = scalar_lea.vmem %s0, %s457
        %p459 = pneg %p53
        %p460 = pneg %p50
        %s461 = smul.u32 2, %s32
        %p462 = scmp.lt.s32.totalorder %s461, 3
        %s463 = scalar_select %p462, %s461, 3
        %s464 = smul.addr %s463, 16
        %s465 = smul.addr %s464, 8
        %s466 = scalar_lea.vmem %s1, %s465
        %p467 = pneg %p79
        %p468 = pneg %p76
        %s469 = smul.u32 2, %s32
        %p470 = scmp.lt.s32.totalorder %s469, 3
        %s471 = scalar_select %p470, %s469, 3
        %s472 = smul.addr %s471, 16
        %s473 = smul.addr %s472, 8
        %s474 = scalar_lea.vmem %s2, %s473
        %p475 = pneg %p105
        %p476 = pneg %p102
        %p477 = pneg %p126
        %p478 = pneg %p123
        %p479 = pneg %p147
        %p480 = pneg %p144
        %p481 = pneg %p168
        %p482 = pneg %p165
        %p483 = pneg %p189
        %p484 = pneg %p186
        %p485 = pneg %p210
        %p486 = pneg %p207
        %p487 = pneg %p231
        %p488 = pneg %p228
        %p489 = pneg %p252
        %p490 = pneg %p249
        %p491 = pneg %p273
        %p492 = pneg %p270
        %p493 = pneg %p294
        %p494 = pneg %p291
        %p495 = pneg %p315
        %p496 = pneg %p312
        %p497 = pneg %p341
        %p498 = pneg %p338
        %s499 = sand.u32 %s328, 1
        %s500 = scalar_lea.sflag [#allocation3], %s499
        %s501 = sand.u32 %s328, 1
        %s502 = smul.addr %s501, 2
        %s503 = scalar_lea.vmem [#allocation2], %s502
        %p504 = pneg %p367
        %p505 = pneg %p364
        %s506 = sand.u32 %s354, 1
        %s507 = scalar_lea.sflag [#allocation5], %s506
        %s508 = sand.u32 %s354, 1
        %s509 = smul.addr %s508, 2
        %s510 = scalar_lea.vmem [#allocation4], %s509
        %s511 = smul.u32 2, %s32
        %p512 = scmp.lt.s32.totalorder %s511, 3
        %s513 = scalar_select %p512, %s511, 3
        %s514 = smul.addr %s513, 16
        %s515 = smul.addr %s514, 8
        %s516 = scalar_lea.vmem %s0, %s515
        %s517 = smul.u32 2, %s32
        %s518 = smul.u32 2, %s32
        %p519 = scmp.lt.s32.totalorder %s518, 3
        %s520 = scalar_select %p519, %s518, 3
        %s521 = smul.addr %s520, 16
        %s522 = smul.addr %s521, 8
        %s523 = scalar_lea.vmem %s1, %s522
        %s524 = smul.u32 2, %s32
        %s525 = smul.u32 2, %s32
        %p526 = scmp.lt.s32.totalorder %s525, 3
        %s527 = scalar_select %p526, %s525, 3
        %s528 = smul.addr %s527, 16
        %s529 = smul.addr %s528, 8
        %s530 = scalar_lea.vmem %s2, %s529
        %s531 = smul.u32 2, %s32
        %v532 = vld [vmem:[%s516] sm:$0xff]
        %v533 = vld [vmem:[%s516 + $0x8] sm:$0xff]
        %v534 = vld [vmem:[%s516 + $0x10] sm:$0xff]
        %v535 = vld [vmem:[%s516 + $0x18] sm:$0xff]
        %v536 = vld [vmem:[%s516 + $0x20] sm:$0xff]
        %v537 = vld [vmem:[%s516 + $0x28] sm:$0xff]
        %v538 = vld [vmem:[%s516 + $0x30] sm:$0xff]
        %v539 = vld [vmem:[%s516 + $0x38] sm:$0xff]
        %v540 = vld [vmem:[%s516 + $0x40] sm:$0xff]
        %v541 = vld [vmem:[%s516 + $0x48] sm:$0xff]
        %v542 = vld [vmem:[%s516 + $0x50] sm:$0xff]
        %v543 = vld [vmem:[%s516 + $0x58] sm:$0xff]
        %v544 = vld [vmem:[%s516 + $0x60] sm:$0xff]
        %v545 = vld [vmem:[%s516 + $0x68] sm:$0xff]
        %v546 = vld [vmem:[%s516 + $0x70] sm:$0xff]
        %v547 = vld [vmem:[%s516 + $0x78] sm:$0xff]
        %v548 = vld [vmem:[%s516 + $0x80] sm:$0xff]
        %v549 = vld [vmem:[%s516 + $0x88] sm:$0xff]
        %v550 = vld [vmem:[%s516 + $0x90] sm:$0xff]
        %v551 = vld [vmem:[%s516 + $0x98] sm:$0xff]
        %v552 = vld [vmem:[%s516 + $0xa0] sm:$0xff]
        %v553 = vld [vmem:[%s516 + $0xa8] sm:$0xff]
        %v554 = vld [vmem:[%s516 + $0xb0] sm:$0xff]
        %v555 = vld [vmem:[%s516 + $0xb8] sm:$0xff]
        %v556 = vld [vmem:[%s516 + $0xc0] sm:$0xff]
        %v557 = vld [vmem:[%s516 + $0xc8] sm:$0xff]
        %v558 = vld [vmem:[%s516 + $0xd0] sm:$0xff]
        %v559 = vld [vmem:[%s516 + $0xd8] sm:$0xff]
        %v560 = vld [vmem:[%s516 + $0xe0] sm:$0xff]
        %v561 = vld [vmem:[%s516 + $0xe8] sm:$0xff]
        %v562 = vld [vmem:[%s516 + $0xf0] sm:$0xff]
        %v563 = vld [vmem:[%s516 + $0xf8] sm:$0xff]
        %v564 = vld [vmem:[%s523] sm:$0xff]
        %v565 = vld [vmem:[%s523 + $0x8] sm:$0xff]
        %v566 = vld [vmem:[%s523 + $0x10] sm:$0xff]
        %v567 = vld [vmem:[%s523 + $0x18] sm:$0xff]
        %v568 = vld [vmem:[%s523 + $0x20] sm:$0xff]
        %v569 = vld [vmem:[%s523 + $0x28] sm:$0xff]
        %v570 = vld [vmem:[%s523 + $0x30] sm:$0xff]
        %v571 = vld [vmem:[%s523 + $0x38] sm:$0xff]
        %v572 = vld [vmem:[%s523 + $0x40] sm:$0xff]
        %v573 = vld [vmem:[%s523 + $0x48] sm:$0xff]
        %v574 = vld [vmem:[%s523 + $0x50] sm:$0xff]
        %v575 = vld [vmem:[%s523 + $0x58] sm:$0xff]
        %v576 = vld [vmem:[%s523 + $0x60] sm:$0xff]
        %v577 = vld [vmem:[%s523 + $0x68] sm:$0xff]
        %v578 = vld [vmem:[%s523 + $0x70] sm:$0xff]
        %v579 = vld [vmem:[%s523 + $0x78] sm:$0xff]
        %v580 = vld [vmem:[%s523 + $0x80] sm:$0xff]
        %v581 = vld [vmem:[%s523 + $0x88] sm:$0xff]
        %v582 = vld [vmem:[%s523 + $0x90] sm:$0xff]
        %v583 = vld [vmem:[%s523 + $0x98] sm:$0xff]
        %v584 = vld [vmem:[%s523 + $0xa0] sm:$0xff]
        %v585 = vld [vmem:[%s523 + $0xa8] sm:$0xff]
        %v586 = vld [vmem:[%s523 + $0xb0] sm:$0xff]
        %v587 = vld [vmem:[%s523 + $0xb8] sm:$0xff]
        %v588 = vld [vmem:[%s523 + $0xc0] sm:$0xff]
        %v589 = vld [vmem:[%s523 + $0xc8] sm:$0xff]
        %v590 = vld [vmem:[%s523 + $0xd0] sm:$0xff]
        %v591 = vld [vmem:[%s523 + $0xd8] sm:$0xff]
        %v592 = vld [vmem:[%s523 + $0xe0] sm:$0xff]
        %v593 = vld [vmem:[%s523 + $0xe8] sm:$0xff]
        %v594 = vld [vmem:[%s523 + $0xf0] sm:$0xff]
        %v595 = vld [vmem:[%s523 + $0xf8] sm:$0xff]
        %v596 = vld [vmem:[%s530] sm:$0xff]
        %v597 = vld [vmem:[%s530 + $0x8] sm:$0xff]
        %v598 = vld [vmem:[%s530 + $0x10] sm:$0xff]
        %v599 = vld [vmem:[%s530 + $0x18] sm:$0xff]
        %v600 = vld [vmem:[%s530 + $0x20] sm:$0xff]
        %v601 = vld [vmem:[%s530 + $0x28] sm:$0xff]
        %v602 = vld [vmem:[%s530 + $0x30] sm:$0xff]
        %v603 = vld [vmem:[%s530 + $0x38] sm:$0xff]
        %v604 = vld [vmem:[%s530 + $0x40] sm:$0xff]
        %v605 = vld [vmem:[%s530 + $0x48] sm:$0xff]
        %v606 = vld [vmem:[%s530 + $0x50] sm:$0xff]
        %v607 = vld [vmem:[%s530 + $0x58] sm:$0xff]
        %v608 = vld [vmem:[%s530 + $0x60] sm:$0xff]
        %v609 = vld [vmem:[%s530 + $0x68] sm:$0xff]
        %v610 = vld [vmem:[%s530 + $0x70] sm:$0xff]
        %v611 = vld [vmem:[%s530 + $0x78] sm:$0xff]
        %v612 = vld [vmem:[%s530 + $0x80] sm:$0xff]
        %v613 = vld [vmem:[%s530 + $0x88] sm:$0xff]
        %v614 = vld [vmem:[%s530 + $0x90] sm:$0xff]
        %v615 = vld [vmem:[%s530 + $0x98] sm:$0xff]
        %v616 = vld [vmem:[%s530 + $0xa0] sm:$0xff]
        %v617 = vld [vmem:[%s530 + $0xa8] sm:$0xff]
        %v618 = vld [vmem:[%s530 + $0xb0] sm:$0xff]
        %v619 = vld [vmem:[%s530 + $0xb8] sm:$0xff]
        %v620 = vld [vmem:[%s530 + $0xc0] sm:$0xff]
        %v621 = vld [vmem:[%s530 + $0xc8] sm:$0xff]
        %v622 = vld [vmem:[%s530 + $0xd0] sm:$0xff]
        %v623 = vld [vmem:[%s530 + $0xd8] sm:$0xff]
        %v624 = vld [vmem:[%s530 + $0xe0] sm:$0xff]
        %v625 = vld [vmem:[%s530 + $0xe8] sm:$0xff]
        %v626 = vld [vmem:[%s530 + $0xf0] sm:$0xff]
        %v627 = vld [vmem:[%s530 + $0xf8] sm:$0xff]
        %vm628 = vcmask 23552
        %v629 = vsel %vm628, %v532, 0.0
        %v630 = vsel %vm628, %v533, 0.0
        %v631 = vadd.f32 %v629, %v630
        %v632 = vsel %vm628, %v534, 0.0
        %v633 = vadd.f32 %v631, %v632
        %v634 = vsel %vm628, %v535, 0.0
        %v635 = vadd.f32 %v633, %v634
        %v636 = vsel %vm628, %v536, 0.0
        %v637 = vadd.f32 %v635, %v636
        %v638 = vsel %vm628, %v537, 0.0
        %v639 = vadd.f32 %v637, %v638
        %v640 = vsel %vm628, %v538, 0.0
        %v641 = vadd.f32 %v639, %v640
        %v642 = vsel %vm628, %v539, 0.0
        %v643 = vadd.f32 %v641, %v642
        %v644 = vsel %vm628, %v540, 0.0
        %v645 = vadd.f32 %v643, %v644
        %v646 = vsel %vm628, %v541, 0.0
        %v647 = vadd.f32 %v645, %v646
        %v648 = vsel %vm628, %v542, 0.0
        %v649 = vadd.f32 %v647, %v648
        %v650 = vsel %vm628, %v543, 0.0
        %v651 = vadd.f32 %v649, %v650
        %v652 = vsel %vm628, %v544, 0.0
        %v653 = vadd.f32 %v651, %v652
        %v654 = vsel %vm628, %v545, 0.0
        %v655 = vadd.f32 %v653, %v654
        %v656 = vsel %vm628, %v546, 0.0
        %v657 = vadd.f32 %v655, %v656
        %v658 = vsel %vm628, %v547, 0.0
        %v659 = vadd.f32 %v657, %v658
        %v660 = vrot.slane %v659, 4
        %v661 = vadd.f32 %v659, %v660
        %v662 = vrot.slane %v661, 2
        %v663 = vadd.f32 %v661, %v662
        %v664 = vrot.slane %v663, 1
        %v665 = vadd.f32 %v663, %v664
        %v666 = vsel %vm628, %v548, 0.0
        %v667 = vsel %vm628, %v549, 0.0
        %v668 = vadd.f32 %v666, %v667
        %v669 = vsel %vm628, %v550, 0.0
        %v670 = vadd.f32 %v668, %v669
        %v671 = vsel %vm628, %v551, 0.0
        %v672 = vadd.f32 %v670, %v671
        %v673 = vsel %vm628, %v552, 0.0
        %v674 = vadd.f32 %v672, %v673
        %v675 = vsel %vm628, %v553, 0.0
        %v676 = vadd.f32 %v674, %v675
        %v677 = vsel %vm628, %v554, 0.0
        %v678 = vadd.f32 %v676, %v677
        %v679 = vsel %vm628, %v555, 0.0
        %v680 = vadd.f32 %v678, %v679
        %v681 = vsel %vm628, %v556, 0.0
        %v682 = vadd.f32 %v680, %v681
        %v683 = vsel %vm628, %v557, 0.0
        %v684 = vadd.f32 %v682, %v683
        %v685 = vsel %vm628, %v558, 0.0
        %v686 = vadd.f32 %v684, %v685
        %v687 = vsel %vm628, %v559, 0.0
        %v688 = vadd.f32 %v686, %v687
        %v689 = vsel %vm628, %v560, 0.0
        %v690 = vadd.f32 %v688, %v689
        %v691 = vsel %vm628, %v561, 0.0
        %v692 = vadd.f32 %v690, %v691
        %v693 = vsel %vm628, %v562, 0.0
        %v694 = vadd.f32 %v692, %v693
        %v695 = vsel %vm628, %v563, 0.0
        %v696 = vadd.f32 %v694, %v695
        %v697 = vrot.slane %v696, 4
        %v698 = vadd.f32 %v696, %v697
        %v699 = vrot.slane %v698, 2
        %v700 = vadd.f32 %v698, %v699
        %v701 = vrot.slane %v700, 1
        %v702 = vadd.f32 %v700, %v701
        %v703 = vrcp.pop 128.0
        %v704 = vmul.f32 %v665, %v703
        %v705 = vmul.f32 %v702, %v703
        %v706 = vsel %vm628, %v532, -inf
        %v707 = vsel %vm628, %v533, -inf
        %v708 = vsel %vm628, %v534, -inf
        %v709 = vmax.f32 %v706, %v708
        %v710 = vsel %vm628, %v535, -inf
        %v711 = vmax.f32 %v707, %v710
        %v712 = vsel %vm628, %v536, -inf
        %v713 = vmax.f32 %v709, %v712
        %v714 = vsel %vm628, %v537, -inf
        %v715 = vmax.f32 %v711, %v714
        %v716 = vsel %vm628, %v538, -inf
        %v717 = vmax.f32 %v713, %v716
        %v718 = vsel %vm628, %v539, -inf
        %v719 = vmax.f32 %v715, %v718
        %v720 = vsel %vm628, %v540, -inf
        %v721 = vmax.f32 %v717, %v720
        %v722 = vsel %vm628, %v541, -inf
        %v723 = vmax.f32 %v719, %v722
        %v724 = vsel %vm628, %v542, -inf
        %v725 = vmax.f32 %v721, %v724
        %v726 = vsel %vm628, %v543, -inf
        %v727 = vmax.f32 %v723, %v726
        %v728 = vsel %vm628, %v544, -inf
        %v729 = vmax.f32 %v725, %v728
        %v730 = vsel %vm628, %v545, -inf
        %v731 = vmax.f32 %v727, %v730
        %v732 = vsel %vm628, %v546, -inf
        %v733 = vmax.f32 %v729, %v732
        %v734 = vsel %vm628, %v547, -inf
        %v735 = vmax.f32 %v731, %v734
        %v736 = vmax.f32 %v733, %v735
        %v737 = vrot.slane %v736, 4
        %v738 = vmax.f32 %v736, %v737
        %v739 = vrot.slane %v738, 2
        %v740 = vmax.f32 %v738, %v739
        %v741 = vrot.slane %v740, 1
        %v742 = vmax.f32 %v740, %v741
        %v743 = vsel %vm628, %v548, -inf
        %v744 = vsel %vm628, %v549, -inf
        %v745 = vsel %vm628, %v550, -inf
        %v746 = vmax.f32 %v743, %v745
        %v747 = vsel %vm628, %v551, -inf
        %v748 = vmax.f32 %v744, %v747
        %v749 = vsel %vm628, %v552, -inf
        %v750 = vmax.f32 %v746, %v749
        %v751 = vsel %vm628, %v553, -inf
        %v752 = vmax.f32 %v748, %v751
        %v753 = vsel %vm628, %v554, -inf
        %v754 = vmax.f32 %v750, %v753
        %v755 = vsel %vm628, %v555, -inf
        %v756 = vmax.f32 %v752, %v755
        %v757 = vsel %vm628, %v556, -inf
        %v758 = vmax.f32 %v754, %v757
        %v759 = vsel %vm628, %v557, -inf
        %v760 = vmax.f32 %v756, %v759
        %v761 = vsel %vm628, %v558, -inf
        %v762 = vmax.f32 %v758, %v761
        %v763 = vsel %vm628, %v559, -inf
        %v764 = vmax.f32 %v760, %v763
        %v765 = vsel %vm628, %v560, -inf
        %v766 = vmax.f32 %v762, %v765
        %v767 = vsel %vm628, %v561, -inf
        %v768 = vmax.f32 %v764, %v767
        %v769 = vsel %vm628, %v562, -inf
        %v770 = vmax.f32 %v766, %v769
        %v771 = vsel %vm628, %v563, -inf
        %v772 = vmax.f32 %v768, %v771
        %v773 = vmax.f32 %v770, %v772
        %v774 = vrot.slane %v773, 4
        %v775 = vmax.f32 %v773, %v774
        %v776 = vrot.slane %v775, 2
        %v777 = vmax.f32 %v775, %v776
        %v778 = vrot.slane %v777, 1
        %v779 = vmax.f32 %v777, %v778
        %v780 = vsel %vm628, %v532, inf
        %v781 = vsel %vm628, %v533, inf
        %v782 = vsel %vm628, %v534, inf
        %v783 = vmin.f32 %v780, %v782
        %v784 = vsel %vm628, %v535, inf
        %v785 = vmin.f32 %v781, %v784
        %v786 = vsel %vm628, %v536, inf
        %v787 = vmin.f32 %v783, %v786
        %v788 = vsel %vm628, %v537, inf
        %v789 = vmin.f32 %v785, %v788
        %v790 = vsel %vm628, %v538, inf
        %v791 = vmin.f32 %v787, %v790
        %v792 = vsel %vm628, %v539, inf
        %v793 = vmin.f32 %v789, %v792
        %v794 = vsel %vm628, %v540, inf
        %v795 = vmin.f32 %v791, %v794
        %v796 = vsel %vm628, %v541, inf
        %v797 = vmin.f32 %v793, %v796
        %v798 = vsel %vm628, %v542, inf
        %v799 = vmin.f32 %v795, %v798
        %v800 = vsel %vm628, %v543, inf
        %v801 = vmin.f32 %v797, %v800
        %v802 = vsel %vm628, %v544, inf
        %v803 = vmin.f32 %v799, %v802
        %v804 = vsel %vm628, %v545, inf
        %v805 = vmin.f32 %v801, %v804
        %v806 = vsel %vm628, %v546, inf
        %v807 = vmin.f32 %v803, %v806
        %v808 = vsel %vm628, %v547, inf
        %v809 = vmin.f32 %v805, %v808
        %v810 = vmin.f32 %v807, %v809
        %v811 = vrot.slane %v810, 4
        %v812 = vmin.f32 %v810, %v811
        %v813 = vrot.slane %v812, 2
        %v814 = vmin.f32 %v812, %v813
        %v815 = vrot.slane %v814, 1
        %v816 = vmin.f32 %v814, %v815
        %v817 = vsel %vm628, %v548, inf
        %v818 = vsel %vm628, %v549, inf
        %v819 = vsel %vm628, %v550, inf
        %v820 = vmin.f32 %v817, %v819
        %v821 = vsel %vm628, %v551, inf
        %v822 = vmin.f32 %v818, %v821
        %v823 = vsel %vm628, %v552, inf
        %v824 = vmin.f32 %v820, %v823
        %v825 = vsel %vm628, %v553, inf
        %v826 = vmin.f32 %v822, %v825
        %v827 = vsel %vm628, %v554, inf
        %v828 = vmin.f32 %v824, %v827
        %v829 = vsel %vm628, %v555, inf
        %v830 = vmin.f32 %v826, %v829
        %v831 = vsel %vm628, %v556, inf
        %v832 = vmin.f32 %v828, %v831
        %v833 = vsel %vm628, %v557, inf
        %v834 = vmin.f32 %v830, %v833
        %v835 = vsel %vm628, %v558, inf
        %v836 = vmin.f32 %v832, %v835
        %v837 = vsel %vm628, %v559, inf
        %v838 = vmin.f32 %v834, %v837
        %v839 = vsel %vm628, %v560, inf
        %v840 = vmin.f32 %v836, %v839
        %v841 = vsel %vm628, %v561, inf
        %v842 = vmin.f32 %v838, %v841
        %v843 = vsel %vm628, %v562, inf
        %v844 = vmin.f32 %v840, %v843
        %v845 = vsel %vm628, %v563, inf
        %v846 = vmin.f32 %v842, %v845
        %v847 = vmin.f32 %v844, %v846
        %v848 = vrot.slane %v847, 4
        %v849 = vmin.f32 %v847, %v848
        %v850 = vrot.slane %v849, 2
        %v851 = vmin.f32 %v849, %v850
        %v852 = vrot.slane %v851, 1
        %v853 = vmin.f32 %v851, %v852
        %v854 = vsub.f32 %v742, %v816
        %v855 = vsub.f32 %v779, %v853
        %v856 = vsel %vm628, %v854, -inf
        %857 = vmax.xlane.f32.xlu0 %v856
        %v858 = vpop.xlane.xlu0 %857
        %v859 = vsel %vm628, %v855, -inf
        %860 = vmax.xlane.f32.xlu0 %v859
        %v861 = vpop.xlane.xlu0 %860
        %v862 = vmax.f32 %v858, 1e-12
        %v863 = vmax.f32 %v861, 1e-12
        %v864 = vrcp.pop %v862
        %v865 = vmul.f32 0.9, %v864
        %v866 = vrcp.pop %v863
        %v867 = vmul.f32 0.9, %v866
        %v868 = vsub.f32 %v564, %v704
        %v869 = vsub.f32 %v565, %v704
        %v870 = vsub.f32 %v566, %v704
        %v871 = vsub.f32 %v567, %v704
        %v872 = vsub.f32 %v568, %v704
        %v873 = vsub.f32 %v569, %v704
        %v874 = vsub.f32 %v570, %v704
        %v875 = vsub.f32 %v571, %v704
        %v876 = vsub.f32 %v572, %v704
        %v877 = vsub.f32 %v573, %v704
        %v878 = vsub.f32 %v574, %v704
        %v879 = vsub.f32 %v575, %v704
        %v880 = vsub.f32 %v576, %v704
        %v881 = vsub.f32 %v577, %v704
        %v882 = vsub.f32 %v578, %v704
        %v883 = vsub.f32 %v579, %v704
        %v884 = vsub.f32 %v580, %v705
        %v885 = vsub.f32 %v581, %v705
        %v886 = vsub.f32 %v582, %v705
        %v887 = vsub.f32 %v583, %v705
        %v888 = vsub.f32 %v584, %v705
        %v889 = vsub.f32 %v585, %v705
        %v890 = vsub.f32 %v586, %v705
        %v891 = vsub.f32 %v587, %v705
        %v892 = vsub.f32 %v588, %v705
        %v893 = vsub.f32 %v589, %v705
        %v894 = vsub.f32 %v590, %v705
        %v895 = vsub.f32 %v591, %v705
        %v896 = vsub.f32 %v592, %v705
        %v897 = vsub.f32 %v593, %v705
        %v898 = vsub.f32 %v594, %v705
        %v899 = vsub.f32 %v595, %v705
        %v900 = vmul.f32 %v868, %v865
        %v901 = vmul.f32 %v869, %v865
        %v902 = vmul.f32 %v870, %v865
        %v903 = vmul.f32 %v871, %v865
        %v904 = vmul.f32 %v872, %v865
        %v905 = vmul.f32 %v873, %v865
        %v906 = vmul.f32 %v874, %v865
        %v907 = vmul.f32 %v875, %v865
        %v908 = vmul.f32 %v876, %v865
        %v909 = vmul.f32 %v877, %v865
        %v910 = vmul.f32 %v878, %v865
        %v911 = vmul.f32 %v879, %v865
        %v912 = vmul.f32 %v880, %v865
        %v913 = vmul.f32 %v881, %v865
        %v914 = vmul.f32 %v882, %v865
        %v915 = vmul.f32 %v883, %v865
        %v916 = vmul.f32 %v884, %v867
        %v917 = vmul.f32 %v885, %v867
        %v918 = vmul.f32 %v886, %v867
        %v919 = vmul.f32 %v887, %v867
        %v920 = vmul.f32 %v888, %v867
        %v921 = vmul.f32 %v889, %v867
        %v922 = vmul.f32 %v890, %v867
        %v923 = vmul.f32 %v891, %v867
        %v924 = vmul.f32 %v892, %v867
        %v925 = vmul.f32 %v893, %v867
        %v926 = vmul.f32 %v894, %v867
        %v927 = vmul.f32 %v895, %v867
        %v928 = vmul.f32 %v896, %v867
        %v929 = vmul.f32 %v897, %v867
        %v930 = vmul.f32 %v898, %v867
        %v931 = vmul.f32 %v899, %v867
        %v932 = vadd.f32 %v900, %v596
        %v933 = vadd.f32 %v901, %v597
        %v934 = vadd.f32 %v902, %v598
        %v935 = vadd.f32 %v903, %v599
        %v936 = vadd.f32 %v904, %v600
        %v937 = vadd.f32 %v905, %v601
        %v938 = vadd.f32 %v906, %v602
        %v939 = vadd.f32 %v907, %v603
        %v940 = vadd.f32 %v908, %v604
        %v941 = vadd.f32 %v909, %v605
        %v942 = vadd.f32 %v910, %v606
        %v943 = vadd.f32 %v911, %v607
        %v944 = vadd.f32 %v912, %v608
        %v945 = vadd.f32 %v913, %v609
        %v946 = vadd.f32 %v914, %v610
        %v947 = vadd.f32 %v915, %v611
        %v948 = vadd.f32 %v916, %v612
        %v949 = vadd.f32 %v917, %v613
        %v950 = vadd.f32 %v918, %v614
        %v951 = vadd.f32 %v919, %v615
        %v952 = vadd.f32 %v920, %v616
        %v953 = vadd.f32 %v921, %v617
        %v954 = vadd.f32 %v922, %v618
        %v955 = vadd.f32 %v923, %v619
        %v956 = vadd.f32 %v924, %v620
        %v957 = vadd.f32 %v925, %v621
        %v958 = vadd.f32 %v926, %v622
        %v959 = vadd.f32 %v927, %v623
        %v960 = vadd.f32 %v928, %v624
        %v961 = vadd.f32 %v929, %v625
        %v962 = vadd.f32 %v930, %v626
        %v963 = vadd.f32 %v931, %v627
        %v964 = vmax.f32 %v932, -0.45
        %v965 = vmax.f32 %v933, -0.45
        %v966 = vmax.f32 %v934, -0.45
        %v967 = vmax.f32 %v935, -0.45
        %v968 = vmax.f32 %v936, -0.45
        %v969 = vmax.f32 %v937, -0.45
        %v970 = vmax.f32 %v938, -0.45
        %v971 = vmax.f32 %v939, -0.45
        %v972 = vmax.f32 %v940, -0.45
        %v973 = vmax.f32 %v941, -0.45
        %v974 = vmax.f32 %v942, -0.45
        %v975 = vmax.f32 %v943, -0.45
        %v976 = vmax.f32 %v944, -0.45
        %v977 = vmax.f32 %v945, -0.45
        %v978 = vmax.f32 %v946, -0.45
        %v979 = vmax.f32 %v947, -0.45
        %v980 = vmax.f32 %v948, -0.45
        %v981 = vmax.f32 %v949, -0.45
        %v982 = vmax.f32 %v950, -0.45
        %v983 = vmax.f32 %v951, -0.45
        %v984 = vmax.f32 %v952, -0.45
        %v985 = vmax.f32 %v953, -0.45
        %v986 = vmax.f32 %v954, -0.45
        %v987 = vmax.f32 %v955, -0.45
        %v988 = vmax.f32 %v956, -0.45
        %v989 = vmax.f32 %v957, -0.45
        %v990 = vmax.f32 %v958, -0.45
        %v991 = vmax.f32 %v959, -0.45
        %v992 = vmax.f32 %v960, -0.45
        %v993 = vmax.f32 %v961, -0.45
        %v994 = vmax.f32 %v962, -0.45
        %v995 = vmax.f32 %v963, -0.45
        %v996 = vmin.f32 %v964, 0.45
        %v997 = vmin.f32 %v965, 0.45
        %v998 = vmin.f32 %v966, 0.45
        %v999 = vmin.f32 %v967, 0.45
        %v1000 = vmin.f32 %v968, 0.45
        %v1001 = vmin.f32 %v969, 0.45
        %v1002 = vmin.f32 %v970, 0.45
        %v1003 = vmin.f32 %v971, 0.45
        %v1004 = vmin.f32 %v972, 0.45
        %v1005 = vmin.f32 %v973, 0.45
        %v1006 = vmin.f32 %v974, 0.45
        %v1007 = vmin.f32 %v975, 0.45
        %v1008 = vmin.f32 %v976, 0.45
        %v1009 = vmin.f32 %v977, 0.45
        %v1010 = vmin.f32 %v978, 0.45
        %v1011 = vmin.f32 %v979, 0.45
        %v1012 = vmin.f32 %v980, 0.45
        %v1013 = vmin.f32 %v981, 0.45
        %v1014 = vmin.f32 %v982, 0.45
        %v1015 = vmin.f32 %v983, 0.45
        %v1016 = vmin.f32 %v984, 0.45
        %v1017 = vmin.f32 %v985, 0.45
        %v1018 = vmin.f32 %v986, 0.45
        %v1019 = vmin.f32 %v987, 0.45
        %v1020 = vmin.f32 %v988, 0.45
        %v1021 = vmin.f32 %v989, 0.45
        %v1022 = vmin.f32 %v990, 0.45
        %v1023 = vmin.f32 %v991, 0.45
        %v1024 = vmin.f32 %v992, 0.45
        %v1025 = vmin.f32 %v993, 0.45
        %v1026 = vmin.f32 %v994, 0.45
        %v1027 = vmin.f32 %v995, 0.45
        %v1028 = vsel %vm628, %v996, 0.0
        %v1029 = vsel %vm628, %v997, 0.0
        %v1030 = vadd.f32 %v1028, %v1029
        %v1031 = vsel %vm628, %v998, 0.0
        %v1032 = vadd.f32 %v1030, %v1031
        %v1033 = vsel %vm628, %v999, 0.0
        %v1034 = vadd.f32 %v1032, %v1033
        %v1035 = vsel %vm628, %v1000, 0.0
        %v1036 = vadd.f32 %v1034, %v1035
        %v1037 = vsel %vm628, %v1001, 0.0
        %v1038 = vadd.f32 %v1036, %v1037
        %v1039 = vsel %vm628, %v1002, 0.0
        %v1040 = vadd.f32 %v1038, %v1039
        %v1041 = vsel %vm628, %v1003, 0.0
        %v1042 = vadd.f32 %v1040, %v1041
        %v1043 = vsel %vm628, %v1004, 0.0
        %v1044 = vadd.f32 %v1042, %v1043
        %v1045 = vsel %vm628, %v1005, 0.0
        %v1046 = vadd.f32 %v1044, %v1045
        %v1047 = vsel %vm628, %v1006, 0.0
        %v1048 = vadd.f32 %v1046, %v1047
        %v1049 = vsel %vm628, %v1007, 0.0
        %v1050 = vadd.f32 %v1048, %v1049
        %v1051 = vsel %vm628, %v1008, 0.0
        %v1052 = vadd.f32 %v1050, %v1051
        %v1053 = vsel %vm628, %v1009, 0.0
        %v1054 = vadd.f32 %v1052, %v1053
        %v1055 = vsel %vm628, %v1010, 0.0
        %v1056 = vadd.f32 %v1054, %v1055
        %v1057 = vsel %vm628, %v1011, 0.0
        %v1058 = vadd.f32 %v1056, %v1057
        %v1059 = vrot.slane %v1058, 4
        %v1060 = vadd.f32 %v1058, %v1059
        %v1061 = vrot.slane %v1060, 2
        %v1062 = vadd.f32 %v1060, %v1061
        %v1063 = vrot.slane %v1062, 1
        %v1064 = vadd.f32 %v1062, %v1063
        %v1065 = vsel %vm628, %v1012, 0.0
        %v1066 = vsel %vm628, %v1013, 0.0
        %v1067 = vadd.f32 %v1065, %v1066
        %v1068 = vsel %vm628, %v1014, 0.0
        %v1069 = vadd.f32 %v1067, %v1068
        %v1070 = vsel %vm628, %v1015, 0.0
        %v1071 = vadd.f32 %v1069, %v1070
        %v1072 = vsel %vm628, %v1016, 0.0
        %v1073 = vadd.f32 %v1071, %v1072
        %v1074 = vsel %vm628, %v1017, 0.0
        %v1075 = vadd.f32 %v1073, %v1074
        %v1076 = vsel %vm628, %v1018, 0.0
        %v1077 = vadd.f32 %v1075, %v1076
        %v1078 = vsel %vm628, %v1019, 0.0
        %v1079 = vadd.f32 %v1077, %v1078
        %v1080 = vsel %vm628, %v1020, 0.0
        %v1081 = vadd.f32 %v1079, %v1080
        %v1082 = vsel %vm628, %v1021, 0.0
        %v1083 = vadd.f32 %v1081, %v1082
        %v1084 = vsel %vm628, %v1022, 0.0
        %v1085 = vadd.f32 %v1083, %v1084
        %v1086 = vsel %vm628, %v1023, 0.0
        %v1087 = vadd.f32 %v1085, %v1086
        %v1088 = vsel %vm628, %v1024, 0.0
        %v1089 = vadd.f32 %v1087, %v1088
        %v1090 = vsel %vm628, %v1025, 0.0
        %v1091 = vadd.f32 %v1089, %v1090
        %v1092 = vsel %vm628, %v1026, 0.0
        %v1093 = vadd.f32 %v1091, %v1092
        %v1094 = vsel %vm628, %v1027, 0.0
        %v1095 = vadd.f32 %v1093, %v1094
        %v1096 = vrot.slane %v1095, 4
        %v1097 = vadd.f32 %v1095, %v1096
        %v1098 = vrot.slane %v1097, 2
        %v1099 = vadd.f32 %v1097, %v1098
        %v1100 = vrot.slane %v1099, 1
        %v1101 = vadd.f32 %v1099, %v1100
        %v1102 = vmul.f32 %v1064, %v703
        %v1103 = vmul.f32 %v1101, %v703
        %v1104 = vsub.f32 %v996, %v1102
        %v1105 = vsub.f32 %v997, %v1102
        %v1106 = vsub.f32 %v998, %v1102
        %v1107 = vsub.f32 %v999, %v1102
        %v1108 = vsub.f32 %v1000, %v1102
        %v1109 = vsub.f32 %v1001, %v1102
        %v1110 = vsub.f32 %v1002, %v1102
        %v1111 = vsub.f32 %v1003, %v1102
        %v1112 = vsub.f32 %v1004, %v1102
        %v1113 = vsub.f32 %v1005, %v1102
        %v1114 = vsub.f32 %v1006, %v1102
        %v1115 = vsub.f32 %v1007, %v1102
        %v1116 = vsub.f32 %v1008, %v1102
        %v1117 = vsub.f32 %v1009, %v1102
        %v1118 = vsub.f32 %v1010, %v1102
        %v1119 = vsub.f32 %v1011, %v1102
        %v1120 = vsub.f32 %v1012, %v1103
        %v1121 = vsub.f32 %v1013, %v1103
        %v1122 = vsub.f32 %v1014, %v1103
        %v1123 = vsub.f32 %v1015, %v1103
        %v1124 = vsub.f32 %v1016, %v1103
        %v1125 = vsub.f32 %v1017, %v1103
        %v1126 = vsub.f32 %v1018, %v1103
        %v1127 = vsub.f32 %v1019, %v1103
        %v1128 = vsub.f32 %v1020, %v1103
        %v1129 = vsub.f32 %v1021, %v1103
        %v1130 = vsub.f32 %v1022, %v1103
        %v1131 = vsub.f32 %v1023, %v1103
        %v1132 = vsub.f32 %v1024, %v1103
        %v1133 = vsub.f32 %v1025, %v1103
        %v1134 = vsub.f32 %v1026, %v1103
        %v1135 = vsub.f32 %v1027, %v1103
        %v1136 = vmul.f32 %v1104, %v1104
        %v1137 = vmul.f32 %v1105, %v1105
        %v1138 = vmul.f32 %v1106, %v1106
        %v1139 = vmul.f32 %v1107, %v1107
        %v1140 = vmul.f32 %v1108, %v1108
        %v1141 = vmul.f32 %v1109, %v1109
        %v1142 = vmul.f32 %v1110, %v1110
        %v1143 = vmul.f32 %v1111, %v1111
        %v1144 = vmul.f32 %v1112, %v1112
        %v1145 = vmul.f32 %v1113, %v1113
        %v1146 = vmul.f32 %v1114, %v1114
        %v1147 = vmul.f32 %v1115, %v1115
        %v1148 = vmul.f32 %v1116, %v1116
        %v1149 = vmul.f32 %v1117, %v1117
        %v1150 = vmul.f32 %v1118, %v1118
        %v1151 = vmul.f32 %v1119, %v1119
        %v1152 = vmul.f32 %v1120, %v1120
        %v1153 = vmul.f32 %v1121, %v1121
        %v1154 = vmul.f32 %v1122, %v1122
        %v1155 = vmul.f32 %v1123, %v1123
        %v1156 = vmul.f32 %v1124, %v1124
        %v1157 = vmul.f32 %v1125, %v1125
        %v1158 = vmul.f32 %v1126, %v1126
        %v1159 = vmul.f32 %v1127, %v1127
        %v1160 = vmul.f32 %v1128, %v1128
        %v1161 = vmul.f32 %v1129, %v1129
        %v1162 = vmul.f32 %v1130, %v1130
        %v1163 = vmul.f32 %v1131, %v1131
        %v1164 = vmul.f32 %v1132, %v1132
        %v1165 = vmul.f32 %v1133, %v1133
        %v1166 = vmul.f32 %v1134, %v1134
        %v1167 = vmul.f32 %v1135, %v1135
        %v1168 = vsel %vm628, %v1136, 0.0
        %1169 = vadd.xlane.f32.xlu0 %v1168
        %v1170 = vpop.xlane.xlu0 %1169
        %v1171 = vsel %vm628, %v1137, 0.0
        %1172 = vadd.xlane.f32.xlu0 %v1171
        %v1173 = vpop.xlane.xlu0 %1172
        %v1174 = vsel %vm628, %v1138, 0.0
        %1175 = vadd.xlane.f32.xlu0 %v1174
        %v1176 = vpop.xlane.xlu0 %1175
        %v1177 = vsel %vm628, %v1139, 0.0
        %1178 = vadd.xlane.f32.xlu0 %v1177
        %v1179 = vpop.xlane.xlu0 %1178
        %v1180 = vsel %vm628, %v1140, 0.0
        %1181 = vadd.xlane.f32.xlu0 %v1180
        %v1182 = vpop.xlane.xlu0 %1181
        %v1183 = vsel %vm628, %v1141, 0.0
        %1184 = vadd.xlane.f32.xlu0 %v1183
        %v1185 = vpop.xlane.xlu0 %1184
        %v1186 = vsel %vm628, %v1142, 0.0
        %1187 = vadd.xlane.f32.xlu0 %v1186
        %v1188 = vpop.xlane.xlu0 %1187
        %v1189 = vsel %vm628, %v1143, 0.0
        %1190 = vadd.xlane.f32.xlu0 %v1189
        %v1191 = vpop.xlane.xlu0 %1190
        %v1192 = vsel %vm628, %v1144, 0.0
        %1193 = vadd.xlane.f32.xlu0 %v1192
        %v1194 = vpop.xlane.xlu0 %1193
        %v1195 = vsel %vm628, %v1145, 0.0
        %1196 = vadd.xlane.f32.xlu0 %v1195
        %v1197 = vpop.xlane.xlu0 %1196
        %v1198 = vsel %vm628, %v1146, 0.0
        %1199 = vadd.xlane.f32.xlu0 %v1198
        %v1200 = vpop.xlane.xlu0 %1199
        %v1201 = vsel %vm628, %v1147, 0.0
        %1202 = vadd.xlane.f32.xlu0 %v1201
        %v1203 = vpop.xlane.xlu0 %1202
        %v1204 = vsel %vm628, %v1148, 0.0
        %1205 = vadd.xlane.f32.xlu0 %v1204
        %v1206 = vpop.xlane.xlu0 %1205
        %v1207 = vsel %vm628, %v1149, 0.0
        %1208 = vadd.xlane.f32.xlu0 %v1207
        %v1209 = vpop.xlane.xlu0 %1208
        %v1210 = vsel %vm628, %v1150, 0.0
        %1211 = vadd.xlane.f32.xlu0 %v1210
        %v1212 = vpop.xlane.xlu0 %1211
        %v1213 = vsel %vm628, %v1151, 0.0
        %1214 = vadd.xlane.f32.xlu0 %v1213
        %v1215 = vpop.xlane.xlu0 %1214
        %v1216 = vsel %vm628, %v1152, 0.0
        %1217 = vadd.xlane.f32.xlu0 %v1216
        %v1218 = vpop.xlane.xlu0 %1217
        %v1219 = vsel %vm628, %v1153, 0.0
        %1220 = vadd.xlane.f32.xlu0 %v1219
        %v1221 = vpop.xlane.xlu0 %1220
        %v1222 = vsel %vm628, %v1154, 0.0
        %1223 = vadd.xlane.f32.xlu0 %v1222
        %v1224 = vpop.xlane.xlu0 %1223
        %v1225 = vsel %vm628, %v1155, 0.0
        %1226 = vadd.xlane.f32.xlu0 %v1225
        %v1227 = vpop.xlane.xlu0 %1226
        %v1228 = vsel %vm628, %v1156, 0.0
        %1229 = vadd.xlane.f32.xlu0 %v1228
        %v1230 = vpop.xlane.xlu0 %1229
        %v1231 = vsel %vm628, %v1157, 0.0
        %1232 = vadd.xlane.f32.xlu0 %v1231
        %v1233 = vpop.xlane.xlu0 %1232
        %v1234 = vsel %vm628, %v1158, 0.0
        %1235 = vadd.xlane.f32.xlu0 %v1234
        %v1236 = vpop.xlane.xlu0 %1235
        %v1237 = vsel %vm628, %v1159, 0.0
        %1238 = vadd.xlane.f32.xlu0 %v1237
        %v1239 = vpop.xlane.xlu0 %1238
        %v1240 = vsel %vm628, %v1160, 0.0
        %1241 = vadd.xlane.f32.xlu0 %v1240
        %v1242 = vpop.xlane.xlu0 %1241
        %v1243 = vsel %vm628, %v1161, 0.0
        %1244 = vadd.xlane.f32.xlu0 %v1243
        %v1245 = vpop.xlane.xlu0 %1244
        %v1246 = vsel %vm628, %v1162, 0.0
        %1247 = vadd.xlane.f32.xlu0 %v1246
        %v1248 = vpop.xlane.xlu0 %1247
        %v1249 = vsel %vm628, %v1163, 0.0
        %1250 = vadd.xlane.f32.xlu0 %v1249
        %v1251 = vpop.xlane.xlu0 %1250
        %v1252 = vsel %vm628, %v1164, 0.0
        %1253 = vadd.xlane.f32.xlu0 %v1252
        %v1254 = vpop.xlane.xlu0 %1253
        %v1255 = vsel %vm628, %v1165, 0.0
        %1256 = vadd.xlane.f32.xlu0 %v1255
        %v1257 = vpop.xlane.xlu0 %1256
        %v1258 = vsel %vm628, %v1166, 0.0
        %1259 = vadd.xlane.f32.xlu0 %v1258
        %v1260 = vpop.xlane.xlu0 %1259
        %v1261 = vsel %vm628, %v1167, 0.0
        %1262 = vadd.xlane.f32.xlu0 %v1261
        %v1263 = vpop.xlane.xlu0 %1262
        %v1264 = vmax.f32 %v1170, %v1176
        %v1265 = vmax.f32 %v1173, %v1179
        %v1266 = vmax.f32 %v1264, %v1182
        %v1267 = vmax.f32 %v1265, %v1185
        %v1268 = vmax.f32 %v1266, %v1188
        %v1269 = vmax.f32 %v1267, %v1191
        %v1270 = vmax.f32 %v1268, %v1194
        %v1271 = vmax.f32 %v1269, %v1197
        %v1272 = vmax.f32 %v1270, %v1200
        %v1273 = vmax.f32 %v1271, %v1203
        %v1274 = vmax.f32 %v1272, %v1206
        %v1275 = vmax.f32 %v1273, %v1209
        %v1276 = vmax.f32 %v1274, %v1212
        %v1277 = vmax.f32 %v1275, %v1215
        %v1278 = vmax.f32 %v1276, %v1277
        %v1279 = vrot.slane %v1278, 4
        %v1280 = vmax.f32 %v1278, %v1279
        %v1281 = vrot.slane %v1280, 2
        %v1282 = vmax.f32 %v1280, %v1281
        %v1283 = vrot.slane %v1282, 1
        %v1284 = vmax.f32 %v1282, %v1283
        %v1285 = vmax.f32 %v1218, %v1224
        %v1286 = vmax.f32 %v1221, %v1227
        %v1287 = vmax.f32 %v1285, %v1230
        %v1288 = vmax.f32 %v1286, %v1233
        %v1289 = vmax.f32 %v1287, %v1236
        %v1290 = vmax.f32 %v1288, %v1239
        %v1291 = vmax.f32 %v1289, %v1242
        %v1292 = vmax.f32 %v1290, %v1245
        %v1293 = vmax.f32 %v1291, %v1248
        %v1294 = vmax.f32 %v1292, %v1251
        %v1295 = vmax.f32 %v1293, %v1254
        %v1296 = vmax.f32 %v1294, %v1257
        %v1297 = vmax.f32 %v1295, %v1260
        %v1298 = vmax.f32 %v1296, %v1263
        %v1299 = vmax.f32 %v1297, %v1298
        %v1300 = vrot.slane %v1299, 4
        %v1301 = vmax.f32 %v1299, %v1300
        %v1302 = vrot.slane %v1301, 2
        %v1303 = vmax.f32 %v1301, %v1302
        %v1304 = vrot.slane %v1303, 1
        %v1305 = vmax.f32 %v1303, %v1304
        %v1306 = vrsqrt.pop %v1284
        %v1307 = vmul.f32 %v1284, %v1306
        %vm1308 = vcmp.eq.f32.partialorder %v1284, inf
        %v1309 = vsel %vm1308, %v1284, %v1307
        %vm1310 = vcmp.eq.f32.partialorder %v1284, 0.0
        %v1311 = vand.u32 %v1284, 2147483648
        %v1312 = vsel %vm1310, %v1311, %v1309
        %v1313 = vrsqrt.pop %v1305
        %v1314 = vmul.f32 %v1305, %v1313
        %vm1315 = vcmp.eq.f32.partialorder %v1305, inf
        %v1316 = vsel %vm1315, %v1305, %v1314
        %vm1317 = vcmp.eq.f32.partialorder %v1305, 0.0
        %v1318 = vand.u32 %v1305, 2147483648
        %v1319 = vsel %vm1317, %v1318, %v1316
        %v1320 = vmax.f32 %v1312, 1e-12
        %v1321 = vmax.f32 %v1319, 1e-12
        %v1322 = vrcp.pop %v1320
        %v1323 = vmul.f32 %v1104, %v1322
        %v1324 = vmul.f32 %v1105, %v1322
        %v1325 = vmul.f32 %v1106, %v1322
        %v1326 = vmul.f32 %v1107, %v1322
        %v1327 = vmul.f32 %v1108, %v1322
        %v1328 = vmul.f32 %v1109, %v1322
        %v1329 = vmul.f32 %v1110, %v1322
        %v1330 = vmul.f32 %v1111, %v1322
        %v1331 = vmul.f32 %v1112, %v1322
        %v1332 = vmul.f32 %v1113, %v1322
        %v1333 = vmul.f32 %v1114, %v1322
        %v1334 = vmul.f32 %v1115, %v1322
        %v1335 = vmul.f32 %v1116, %v1322
        %v1336 = vmul.f32 %v1117, %v1322
        %v1337 = vmul.f32 %v1118, %v1322
        %v1338 = vmul.f32 %v1119, %v1322
        %v1339 = vrcp.pop %v1321
        %v1340 = vmul.f32 %v1120, %v1339
        %v1341 = vmul.f32 %v1121, %v1339
        %v1342 = vmul.f32 %v1122, %v1339
        %v1343 = vmul.f32 %v1123, %v1339
        %v1344 = vmul.f32 %v1124, %v1339
        %v1345 = vmul.f32 %v1125, %v1339
        %v1346 = vmul.f32 %v1126, %v1339
        %v1347 = vmul.f32 %v1127, %v1339
        %v1348 = vmul.f32 %v1128, %v1339
        %v1349 = vmul.f32 %v1129, %v1339
        %v1350 = vmul.f32 %v1130, %v1339
        %v1351 = vmul.f32 %v1131, %v1339
        %v1352 = vmul.f32 %v1132, %v1339
        %v1353 = vmul.f32 %v1133, %v1339
        %v1354 = vmul.f32 %v1134, %v1339
        %v1355 = vmul.f32 %v1135, %v1339
        %v1356 = vld [vmem:[%s3] sm:$0x7]
        %v1357 = vld [vmem:[%s4] sm:$0x1]
        %v1359 = vlaneseq
        %v1360 = vshrl.u32 %v1359, 7
        %v1361 = vsub.s32 0, %v1360
        %v1362 = vrot.slane %v1357, %v1361
        %v1365 = vsel %vm628, %v1323, 0
        %v1368 = vsel %vm628, %v1324, 0
        %v1371 = vsel %vm628, %v1325, 0
        %v1374 = vsel %vm628, %v1326, 0
        %v1377 = vsel %vm628, %v1327, 0
        %v1380 = vsel %vm628, %v1328, 0
        %v1383 = vsel %vm628, %v1329, 0
        %v1386 = vsel %vm628, %v1330, 0
        %v1389 = vsel %vm628, %v1331, 0
        %v1392 = vsel %vm628, %v1332, 0
        %v1395 = vsel %vm628, %v1333, 0
        %v1398 = vsel %vm628, %v1334, 0
        %v1401 = vsel %vm628, %v1335, 0
        %v1404 = vsel %vm628, %v1336, 0
        %v1407 = vsel %vm628, %v1337, 0
        %v1410 = vsel %vm628, %v1338, 0
        %v1413 = vsel %vm628, %v1340, 0
        %v1416 = vsel %vm628, %v1341, 0
        %v1419 = vsel %vm628, %v1342, 0
        %v1422 = vsel %vm628, %v1343, 0
        %v1425 = vsel %vm628, %v1344, 0
        %v1428 = vsel %vm628, %v1345, 0
        %v1431 = vsel %vm628, %v1346, 0
        %v1434 = vsel %vm628, %v1347, 0
        %v1437 = vsel %vm628, %v1348, 0
        %v1440 = vsel %vm628, %v1349, 0
        %v1443 = vsel %vm628, %v1350, 0
        %v1446 = vsel %vm628, %v1351, 0
        %v1449 = vsel %vm628, %v1352, 0
        %v1452 = vsel %vm628, %v1353, 0
        %v1455 = vsel %vm628, %v1354, 0
        %v1458 = vsel %vm628, %v1355, 0
        %vm1460 = vcmask 1042432
        %v1462 = vsel %vm1460, %v1356, 0
        %1464 = vmatprep.subr.mxu0 0.0
        %1465 = vmatpush1.msra.mxu0 %v1462
        %1466 = vmatprep.subr.mxu0 0.0
        %1467 = vmatpush1.msra.mxu0 0.0
        %1468 = vmatprep.subr.mxu0 0.0
        %1469 = vmatpush1.msra.mxu0 0.0
        %1470 = vmatprep.subr.mxu0 0.0
        %1471 = vmatpush1.msra.mxu0 0.0
        %1472 = vmatprep.subr.mxu0 0.0
        %1473 = vmatpush1.msra.mxu0 0.0
        %1474 = vmatprep.subr.mxu0 0.0
        %1475 = vmatpush1.msra.mxu0 0.0
        %1476 = vmatprep.subr.mxu0 0.0
        %1477 = vmatpush1.msra.mxu0 0.0
        %1478 = vmatprep.subr.mxu0 0.0
        %1479 = vmatpush1.msra.mxu0 0.0
        %1480 = vmatprep.subr.mxu0 0.0
        %1481 = vmatpush1.msra.mxu0 0.0
        %1482 = vmatprep.subr.mxu0 0.0
        %1483 = vmatpush1.msra.mxu0 0.0
        %1484 = vmatprep.subr.mxu0 0.0
        %1485 = vmatpush1.msra.mxu0 0.0
        %1486 = vmatprep.subr.mxu0 0.0
        %1487 = vmatpush1.msra.mxu0 0.0
        %1488 = vmatprep.subr.mxu0 0.0
        %1489 = vmatpush1.msra.mxu0 0.0
        %1490 = vmatprep.subr.mxu0 0.0
        %1491 = vmatpush1.msra.mxu0 0.0
        %1492 = vmatprep.subr.mxu0 0.0
        %1493 = vmatpush1.msra.mxu0 0.0
        %1494 = vmatprep.subr.mxu0 0.0
        %1495 = vmatpush1.msra.mxu0 0.0
        %1496 = vmatprep.subr.mxu0 0.0
        %1497 = vmatpush1.msra.mxu0 0.0
        %1498 = vmatprep.subr.mxu0 0.0
        %1499 = vmatpush1.msra.mxu0 0.0
        %1500 = vmatprep.subr.mxu0 0.0
        %1501 = vmatpush1.msra.mxu0 0.0
        %1502 = vmatprep.subr.mxu0 0.0
        %1503 = vmatpush1.msra.mxu0 0.0
        %1504 = vmatprep.subr.mxu0 0.0
        %1505 = vmatpush1.msra.mxu0 0.0
        %1506 = vmatprep.subr.mxu0 0.0
        %1507 = vmatpush1.msra.mxu0 0.0
        %1508 = vmatprep.subr.mxu0 0.0
        %1509 = vmatpush1.msra.mxu0 0.0
        %1510 = vmatprep.subr.mxu0 0.0
        %1511 = vmatpush1.msra.mxu0 0.0
        %1512 = vmatprep.subr.mxu0 0.0
        %1513 = vmatpush1.msra.mxu0 0.0
        %1514 = vmatprep.subr.mxu0 0.0
        %1515 = vmatpush1.msra.mxu0 0.0
        %1516 = vmatprep.subr.mxu0 0.0
        %1517 = vmatpush1.msra.mxu0 0.0
        %1518 = vmatprep.subr.mxu0 0.0
        %1519 = vmatpush1.msra.mxu0 0.0
        %1520 = vmatprep.subr.mxu0 0.0
        %1521 = vmatpush1.msra.mxu0 0.0
        %1522 = vmatprep.subr.mxu0 0.0
        %1523 = vmatpush1.msra.mxu0 0.0
        %1524 = vmatprep.subr.mxu0 0.0
        %1525 = vmatpush1.msra.mxu0 0.0
        %1526 = vmatprep.subr.mxu0 0.0
        %1527 = vmatpush1.msra.mxu0 0.0
        %1528 = vmatprep.mubr.f32.mxu0 0.0
        %1529 = vmatmul.mubr.f32.gmra.mrb[0].mxu0 %v1365
        %v1530 = vpop.f32.mrb[0].mxu0
        %v1531 = vadd.f32 %v1362, %v1530
        %v1532 = vpop.f32.mrb[0].mxu0
        %1533 = vmatprep.mubr.f32.mxu0 0.0
        %1534 = vmatmul.mubr.f32.gmra.mrb[0].mxu0 %v1368
        %v1535 = vpop.f32.mrb[0].mxu0
        %v1536 = vadd.f32 %v1362, %v1535
        %v1537 = vpop.f32.mrb[0].mxu0
        %1538 = vmatprep.mubr.f32.mxu0 0.0
        %1539 = vmatmul.mubr.f32.gmra.mrb[0].mxu0 %v1371
        %v1540 = vpop.f32.mrb[0].mxu0
        %v1541 = vadd.f32 %v1362, %v1540
        %v1542 = vpop.f32.mrb[0].mxu0
        %1543 = vmatprep.mubr.f32.mxu0 0.0
        %1544 = vmatmul.mubr.f32.gmra.mrb[0].mxu0 %v1374
        %v1545 = vpop.f32.mrb[0].mxu0
        %v1546 = vadd.f32 %v1362, %v1545
        %v1547 = vpop.f32.mrb[0].mxu0
        %1548 = vmatprep.mubr.f32.mxu0 0.0
        %1549 = vmatmul.mubr.f32.gmra.mrb[0].mxu0 %v1377
        %v1550 = vpop.f32.mrb[0].mxu0
        %v1551 = vadd.f32 %v1362, %v1550
        %v1552 = vpop.f32.mrb[0].mxu0
        %1553 = vmatprep.mubr.f32.mxu0 0.0
        %1554 = vmatmul.mubr.f32.gmra.mrb[0].mxu0 %v1380
        %v1555 = vpop.f32.mrb[0].mxu0
        %v1556 = vadd.f32 %v1362, %v1555
        %v1557 = vpop.f32.mrb[0].mxu0
        %1558 = vmatprep.mubr.f32.mxu0 0.0
        %1559 = vmatmul.mubr.f32.gmra.mrb[0].mxu0 %v1383
        %v1560 = vpop.f32.mrb[0].mxu0
        %v1561 = vadd.f32 %v1362, %v1560
        %v1562 = vpop.f32.mrb[0].mxu0
        %1563 = vmatprep.mubr.f32.mxu0 0.0
        %1564 = vmatmul.mubr.f32.gmra.mrb[0].mxu0 %v1386
        %v1565 = vpop.f32.mrb[0].mxu0
        %v1566 = vadd.f32 %v1362, %v1565
        %v1567 = vpop.f32.mrb[0].mxu0
        %1568 = vmatprep.mubr.f32.mxu0 0.0
        %1569 = vmatmul.mubr.f32.gmra.mrb[0].mxu0 %v1389
        %v1570 = vpop.f32.mrb[0].mxu0
        %v1571 = vadd.f32 %v1362, %v1570
        %v1572 = vpop.f32.mrb[0].mxu0
        %1573 = vmatprep.mubr.f32.mxu0 0.0
        %1574 = vmatmul.mubr.f32.gmra.mrb[0].mxu0 %v1392
        %v1575 = vpop.f32.mrb[0].mxu0
        %v1576 = vadd.f32 %v1362, %v1575
        %v1577 = vpop.f32.mrb[0].mxu0
        %1578 = vmatprep.mubr.f32.mxu0 0.0
        %1579 = vmatmul.mubr.f32.gmra.mrb[0].mxu0 %v1395
        %v1580 = vpop.f32.mrb[0].mxu0
        %v1581 = vadd.f32 %v1362, %v1580
        %v1582 = vpop.f32.mrb[0].mxu0
        %1583 = vmatprep.mubr.f32.mxu0 0.0
        %1584 = vmatmul.mubr.f32.gmra.mrb[0].mxu0 %v1398
        %v1585 = vpop.f32.mrb[0].mxu0
        %v1586 = vadd.f32 %v1362, %v1585
        %v1587 = vpop.f32.mrb[0].mxu0
        %1588 = vmatprep.mubr.f32.mxu0 0.0
        %1589 = vmatmul.mubr.f32.gmra.mrb[0].mxu0 %v1401
        %v1590 = vpop.f32.mrb[0].mxu0
        %v1591 = vadd.f32 %v1362, %v1590
        %v1592 = vpop.f32.mrb[0].mxu0
        %1593 = vmatprep.mubr.f32.mxu0 0.0
        %1594 = vmatmul.mubr.f32.gmra.mrb[0].mxu0 %v1404
        %v1595 = vpop.f32.mrb[0].mxu0
        %v1596 = vadd.f32 %v1362, %v1595
        %v1597 = vpop.f32.mrb[0].mxu0
        %1598 = vmatprep.mubr.f32.mxu0 0.0
        %1599 = vmatmul.mubr.f32.gmra.mrb[0].mxu0 %v1407
        %v1600 = vpop.f32.mrb[0].mxu0
        %v1601 = vadd.f32 %v1362, %v1600
        %v1602 = vpop.f32.mrb[0].mxu0
        %1603 = vmatprep.mubr.f32.mxu0 0.0
        %1604 = vmatmul.mubr.f32.gmra.mrb[0].mxu0 %v1410
        %v1605 = vpop.f32.mrb[0].mxu0
        %v1606 = vadd.f32 %v1362, %v1605
        %v1607 = vpop.f32.mrb[0].mxu0
        %1608 = vmatprep.mubr.f32.mxu0 0.0
        %1609 = vmatmul.mubr.f32.gmra.mrb[0].mxu0 %v1413
        %v1610 = vpop.f32.mrb[0].mxu0
        %v1611 = vadd.f32 %v1362, %v1610
        %v1612 = vpop.f32.mrb[0].mxu0
        %1613 = vmatprep.mubr.f32.mxu0 0.0
        %1614 = vmatmul.mubr.f32.gmra.mrb[0].mxu0 %v1416
        %v1615 = vpop.f32.mrb[0].mxu0
        %v1616 = vadd.f32 %v1362, %v1615
        %v1617 = vpop.f32.mrb[0].mxu0
        %1618 = vmatprep.mubr.f32.mxu0 0.0
        %1619 = vmatmul.mubr.f32.gmra.mrb[0].mxu0 %v1419
        %v1620 = vpop.f32.mrb[0].mxu0
        %v1621 = vadd.f32 %v1362, %v1620
        %v1622 = vpop.f32.mrb[0].mxu0
        %1623 = vmatprep.mubr.f32.mxu0 0.0
        %1624 = vmatmul.mubr.f32.gmra.mrb[0].mxu0 %v1422
        %v1625 = vpop.f32.mrb[0].mxu0
        %v1626 = vadd.f32 %v1362, %v1625
        %v1627 = vpop.f32.mrb[0].mxu0
        %1628 = vmatprep.mubr.f32.mxu0 0.0
        %1629 = vmatmul.mubr.f32.gmra.mrb[0].mxu0 %v1425
        %v1630 = vpop.f32.mrb[0].mxu0
        %v1631 = vadd.f32 %v1362, %v1630
        %v1632 = vpop.f32.mrb[0].mxu0
        %1633 = vmatprep.mubr.f32.mxu0 0.0
        %1634 = vmatmul.mubr.f32.gmra.mrb[0].mxu0 %v1428
        %v1635 = vpop.f32.mrb[0].mxu0
        %v1636 = vadd.f32 %v1362, %v1635
        %v1637 = vpop.f32.mrb[0].mxu0
        %1638 = vmatprep.mubr.f32.mxu0 0.0
        %1639 = vmatmul.mubr.f32.gmra.mrb[0].mxu0 %v1431
        %v1640 = vpop.f32.mrb[0].mxu0
        %v1641 = vadd.f32 %v1362, %v1640
        %v1642 = vpop.f32.mrb[0].mxu0
        %1643 = vmatprep.mubr.f32.mxu0 0.0
        %1644 = vmatmul.mubr.f32.gmra.mrb[0].mxu0 %v1434
        %v1645 = vpop.f32.mrb[0].mxu0
        %v1646 = vadd.f32 %v1362, %v1645
        %v1647 = vpop.f32.mrb[0].mxu0
        %1648 = vmatprep.mubr.f32.mxu0 0.0
        %1649 = vmatmul.mubr.f32.gmra.mrb[0].mxu0 %v1437
        %v1650 = vpop.f32.mrb[0].mxu0
        %v1651 = vadd.f32 %v1362, %v1650
        %v1652 = vpop.f32.mrb[0].mxu0
        %1653 = vmatprep.mubr.f32.mxu0 0.0
        %1654 = vmatmul.mubr.f32.gmra.mrb[0].mxu0 %v1440
        %v1655 = vpop.f32.mrb[0].mxu0
        %v1656 = vadd.f32 %v1362, %v1655
        %v1657 = vpop.f32.mrb[0].mxu0
        %1658 = vmatprep.mubr.f32.mxu0 0.0
        %1659 = vmatmul.mubr.f32.gmra.mrb[0].mxu0 %v1443
        %v1660 = vpop.f32.mrb[0].mxu0
        %v1661 = vadd.f32 %v1362, %v1660
        %v1662 = vpop.f32.mrb[0].mxu0
        %1663 = vmatprep.mubr.f32.mxu0 0.0
        %1664 = vmatmul.mubr.f32.gmra.mrb[0].mxu0 %v1446
        %v1665 = vpop.f32.mrb[0].mxu0
        %v1666 = vadd.f32 %v1362, %v1665
        %v1667 = vpop.f32.mrb[0].mxu0
        %1668 = vmatprep.mubr.f32.mxu0 0.0
        %1669 = vmatmul.mubr.f32.gmra.mrb[0].mxu0 %v1449
        %v1670 = vpop.f32.mrb[0].mxu0
        %v1671 = vadd.f32 %v1362, %v1670
        %v1672 = vpop.f32.mrb[0].mxu0
        %1673 = vmatprep.mubr.f32.mxu0 0.0
        %1674 = vmatmul.mubr.f32.gmra.mrb[0].mxu0 %v1452
        %v1675 = vpop.f32.mrb[0].mxu0
        %v1676 = vadd.f32 %v1362, %v1675
        %v1677 = vpop.f32.mrb[0].mxu0
        %1678 = vmatprep.mubr.f32.mxu0 0.0
        %1679 = vmatmul.mubr.f32.gmra.mrb[0].mxu0 %v1455
        %v1680 = vpop.f32.mrb[0].mxu0
        %v1681 = vadd.f32 %v1362, %v1680
        %v1682 = vpop.f32.mrb[0].mxu0
        %1683 = vmatprep.mubr.f32.mxu0 0.0
        %1684 = vmatmul.mubr.f32.gmra.mrb[0].mxu0 %v1458
        %v1685 = vpop.f32.mrb[0].mxu0
        %v1686 = vadd.f32 %v1362, %v1685
        %v1687 = vpop.f32.mrb[0].mxu0
        %1688 = vdwg.mxu0
        %v1689 = vmax.f32 %v1531, 0.0
        %v1690 = vmax.f32 %v1536, 0.0
        %v1691 = vmax.f32 %v1541, 0.0
        %v1692 = vmax.f32 %v1546, 0.0
        %v1693 = vmax.f32 %v1551, 0.0
        %v1694 = vmax.f32 %v1556, 0.0
        %v1695 = vmax.f32 %v1561, 0.0
        %v1696 = vmax.f32 %v1566, 0.0
        %v1697 = vmax.f32 %v1571, 0.0
        %v1698 = vmax.f32 %v1576, 0.0
        %v1699 = vmax.f32 %v1581, 0.0
        %v1700 = vmax.f32 %v1586, 0.0
        %v1701 = vmax.f32 %v1591, 0.0
        %v1702 = vmax.f32 %v1596, 0.0
        %v1703 = vmax.f32 %v1601, 0.0
        %v1704 = vmax.f32 %v1606, 0.0
        %v1705 = vmax.f32 %v1611, 0.0
        %v1706 = vmax.f32 %v1616, 0.0
        %v1707 = vmax.f32 %v1621, 0.0
        %v1708 = vmax.f32 %v1626, 0.0
        %v1709 = vmax.f32 %v1631, 0.0
        %v1710 = vmax.f32 %v1636, 0.0
        %v1711 = vmax.f32 %v1641, 0.0
        %v1712 = vmax.f32 %v1646, 0.0
        %v1713 = vmax.f32 %v1651, 0.0
        %v1714 = vmax.f32 %v1656, 0.0
        %v1715 = vmax.f32 %v1661, 0.0
        %v1716 = vmax.f32 %v1666, 0.0
        %v1717 = vmax.f32 %v1671, 0.0
        %v1718 = vmax.f32 %v1676, 0.0
        %v1719 = vmax.f32 %v1681, 0.0
        %v1720 = vmax.f32 %v1686, 0.0
        %v1721 = vld [vmem:[%s5] sm:$0xff]
        %v1722 = vld [vmem:[%s5 + $0x8] sm:$0xff]
        %v1723 = vld [vmem:[%s5 + $0x10] sm:$0xff]
        %v1724 = vld [vmem:[%s5 + $0x18] sm:$0xff]
        %v1725 = vld [vmem:[%s5 + $0x20] sm:$0xff]
        %v1726 = vld [vmem:[%s5 + $0x28] sm:$0xff]
        %v1727 = vld [vmem:[%s5 + $0x30] sm:$0xff]
        %v1728 = vld [vmem:[%s5 + $0x38] sm:$0xff]
        %v1729 = vld [vmem:[%s6] sm:$0x1]
        %v1731 = vlaneseq
        %v1732 = vshrl.u32 %v1731, 7
        %v1733 = vsub.s32 0, %v1732
        %v1734 = vrot.slane %v1729, %v1733
        %vm1736 = vcmask 523264
        %v1738 = vsel %vm1736, %v1689, 0
        %v1741 = vsel %vm1736, %v1690, 0
        %v1744 = vsel %vm1736, %v1691, 0
        %v1747 = vsel %vm1736, %v1692, 0
        %v1750 = vsel %vm1736, %v1693, 0
        %v1753 = vsel %vm1736, %v1694, 0
        %v1756 = vsel %vm1736, %v1695, 0
        %v1759 = vsel %vm1736, %v1696, 0
        %v1762 = vsel %vm1736, %v1697, 0
        %v1765 = vsel %vm1736, %v1698, 0
        %v1768 = vsel %vm1736, %v1699, 0
        %v1771 = vsel %vm1736, %v1700, 0
        %v1774 = vsel %vm1736, %v1701, 0
        %v1777 = vsel %vm1736, %v1702, 0
        %v1780 = vsel %vm1736, %v1703, 0
        %v1783 = vsel %vm1736, %v1704, 0
        %v1786 = vsel %vm1736, %v1705, 0
        %v1789 = vsel %vm1736, %v1706, 0
        %v1792 = vsel %vm1736, %v1707, 0
        %v1795 = vsel %vm1736, %v1708, 0
        %v1798 = vsel %vm1736, %v1709, 0
        %v1801 = vsel %vm1736, %v1710, 0
        %v1804 = vsel %vm1736, %v1711, 0
        %v1807 = vsel %vm1736, %v1712, 0
        %v1810 = vsel %vm1736, %v1713, 0
        %v1813 = vsel %vm1736, %v1714, 0
        %v1816 = vsel %vm1736, %v1715, 0
        %v1819 = vsel %vm1736, %v1716, 0
        %v1822 = vsel %vm1736, %v1717, 0
        %v1825 = vsel %vm1736, %v1718, 0
        %v1828 = vsel %vm1736, %v1719, 0
        %v1831 = vsel %vm1736, %v1720, 0
        %1833 = vmatprep.subr.mxu0 0.0
        %1834 = vmatpush1.msra.mxu0 %v1721
        %1835 = vmatprep.subr.mxu0 0.0
        %1836 = vmatpush1.msra.mxu0 %v1722
        %1837 = vmatprep.subr.mxu0 0.0
        %1838 = vmatpush1.msra.mxu0 %v1723
        %1839 = vmatprep.subr.mxu0 0.0
        %1840 = vmatpush1.msra.mxu0 %v1724
        %1841 = vmatprep.subr.mxu0 0.0
        %1842 = vmatpush1.msra.mxu0 %v1725
        %1843 = vmatprep.subr.mxu0 0.0
        %1844 = vmatpush1.msra.mxu0 %v1726
        %1845 = vmatprep.subr.mxu0 0.0
        %1846 = vmatpush1.msra.mxu0 %v1727
        %1847 = vmatprep.subr.mxu0 0.0
        %1848 = vmatpush1.msra.mxu0 %v1728
        %1849 = vmatprep.subr.mxu0 0.0
        %1850 = vmatpush1.msra.mxu0 0.0
        %1851 = vmatprep.subr.mxu0 0.0
        %1852 = vmatpush1.msra.mxu0 0.0
        %1853 = vmatprep.subr.mxu0 0.0
        %1854 = vmatpush1.msra.mxu0 0.0
        %1855 = vmatprep.subr.mxu0 0.0
        %1856 = vmatpush1.msra.mxu0 0.0
        %1857 = vmatprep.subr.mxu0 0.0
        %1858 = vmatpush1.msra.mxu0 0.0
        %1859 = vmatprep.subr.mxu0 0.0
        %1860 = vmatpush1.msra.mxu0 0.0
        %1861 = vmatprep.subr.mxu0 0.0
        %1862 = vmatpush1.msra.mxu0 0.0
        %1863 = vmatprep.subr.mxu0 0.0
        %1864 = vmatpush1.msra.mxu0 0.0
        %1865 = vmatprep.subr.mxu0 0.0
        %1866 = vmatpush1.msra.mxu0 0.0
        %1867 = vmatprep.subr.mxu0 0.0
        %1868 = vmatpush1.msra.mxu0 0.0
        %1869 = vmatprep.subr.mxu0 0.0
        %1870 = vmatpush1.msra.mxu0 0.0
        %1871 = vmatprep.subr.mxu0 0.0
        %1872 = vmatpush1.msra.mxu0 0.0
        %1873 = vmatprep.subr.mxu0 0.0
        %1874 = vmatpush1.msra.mxu0 0.0
        %1875 = vmatprep.subr.mxu0 0.0
        %1876 = vmatpush1.msra.mxu0 0.0
        %1877 = vmatprep.subr.mxu0 0.0
        %1878 = vmatpush1.msra.mxu0 0.0
        %1879 = vmatprep.subr.mxu0 0.0
        %1880 = vmatpush1.msra.mxu0 0.0
        %1881 = vmatprep.subr.mxu0 0.0
        %1882 = vmatpush1.msra.mxu0 0.0
        %1883 = vmatprep.subr.mxu0 0.0
        %1884 = vmatpush1.msra.mxu0 0.0
        %1885 = vmatprep.subr.mxu0 0.0
        %1886 = vmatpush1.msra.mxu0 0.0
        %1887 = vmatprep.subr.mxu0 0.0
        %1888 = vmatpush1.msra.mxu0 0.0
        %1889 = vmatprep.subr.mxu0 0.0
        %1890 = vmatpush1.msra.mxu0 0.0
        %1891 = vmatprep.subr.mxu0 0.0
        %1892 = vmatpush1.msra.mxu0 0.0
        %1893 = vmatprep.subr.mxu0 0.0
        %1894 = vmatpush1.msra.mxu0 0.0
        %1895 = vmatprep.subr.mxu0 0.0
        %1896 = vmatpush1.msra.mxu0 0.0
        %1897 = vmatprep.mubr.f32.mxu0 0.0
        %1898 = vmatmul.mubr.f32.gmra.mrb[0].mxu0 %v1738
        %v1899 = vpop.f32.mrb[0].mxu0
        %v1900 = vadd.f32 %v1734, %v1899
        %v1901 = vpop.f32.mrb[0].mxu0
        %1902 = vmatprep.mubr.f32.mxu0 0.0
        %1903 = vmatmul.mubr.f32.gmra.mrb[0].mxu0 %v1741
        %v1904 = vpop.f32.mrb[0].mxu0
        %v1905 = vadd.f32 %v1734, %v1904
        %v1906 = vpop.f32.mrb[0].mxu0
        %1907 = vmatprep.mubr.f32.mxu0 0.0
        %1908 = vmatmul.mubr.f32.gmra.mrb[0].mxu0 %v1744
        %v1909 = vpop.f32.mrb[0].mxu0
        %v1910 = vadd.f32 %v1734, %v1909
        %v1911 = vpop.f32.mrb[0].mxu0
        %1912 = vmatprep.mubr.f32.mxu0 0.0
        %1913 = vmatmul.mubr.f32.gmra.mrb[0].mxu0 %v1747
        %v1914 = vpop.f32.mrb[0].mxu0
        %v1915 = vadd.f32 %v1734, %v1914
        %v1916 = vpop.f32.mrb[0].mxu0
        %1917 = vmatprep.mubr.f32.mxu0 0.0
        %1918 = vmatmul.mubr.f32.gmra.mrb[0].mxu0 %v1750
        %v1919 = vpop.f32.mrb[0].mxu0
        %v1920 = vadd.f32 %v1734, %v1919
        %v1921 = vpop.f32.mrb[0].mxu0
        %1922 = vmatprep.mubr.f32.mxu0 0.0
        %1923 = vmatmul.mubr.f32.gmra.mrb[0].mxu0 %v1753
        %v1924 = vpop.f32.mrb[0].mxu0
        %v1925 = vadd.f32 %v1734, %v1924
        %v1926 = vpop.f32.mrb[0].mxu0
        %1927 = vmatprep.mubr.f32.mxu0 0.0
        %1928 = vmatmul.mubr.f32.gmra.mrb[0].mxu0 %v1756
        %v1929 = vpop.f32.mrb[0].mxu0
        %v1930 = vadd.f32 %v1734, %v1929
        %v1931 = vpop.f32.mrb[0].mxu0
        %1932 = vmatprep.mubr.f32.mxu0 0.0
        %1933 = vmatmul.mubr.f32.gmra.mrb[0].mxu0 %v1759
        %v1934 = vpop.f32.mrb[0].mxu0
        %v1935 = vadd.f32 %v1734, %v1934
        %v1936 = vpop.f32.mrb[0].mxu0
        %1937 = vmatprep.mubr.f32.mxu0 0.0
        %1938 = vmatmul.mubr.f32.gmra.mrb[0].mxu0 %v1762
        %v1939 = vpop.f32.mrb[0].mxu0
        %v1940 = vadd.f32 %v1734, %v1939
        %v1941 = vpop.f32.mrb[0].mxu0
        %1942 = vmatprep.mubr.f32.mxu0 0.0
        %1943 = vmatmul.mubr.f32.gmra.mrb[0].mxu0 %v1765
        %v1944 = vpop.f32.mrb[0].mxu0
        %v1945 = vadd.f32 %v1734, %v1944
        %v1946 = vpop.f32.mrb[0].mxu0
        %1947 = vmatprep.mubr.f32.mxu0 0.0
        %1948 = vmatmul.mubr.f32.gmra.mrb[0].mxu0 %v1768
        %v1949 = vpop.f32.mrb[0].mxu0
        %v1950 = vadd.f32 %v1734, %v1949
        %v1951 = vpop.f32.mrb[0].mxu0
        %1952 = vmatprep.mubr.f32.mxu0 0.0
        %1953 = vmatmul.mubr.f32.gmra.mrb[0].mxu0 %v1771
        %v1954 = vpop.f32.mrb[0].mxu0
        %v1955 = vadd.f32 %v1734, %v1954
        %v1956 = vpop.f32.mrb[0].mxu0
        %1957 = vmatprep.mubr.f32.mxu0 0.0
        %1958 = vmatmul.mubr.f32.gmra.mrb[0].mxu0 %v1774
        %v1959 = vpop.f32.mrb[0].mxu0
        %v1960 = vadd.f32 %v1734, %v1959
        %v1961 = vpop.f32.mrb[0].mxu0
        %1962 = vmatprep.mubr.f32.mxu0 0.0
        %1963 = vmatmul.mubr.f32.gmra.mrb[0].mxu0 %v1777
        %v1964 = vpop.f32.mrb[0].mxu0
        %v1965 = vadd.f32 %v1734, %v1964
        %v1966 = vpop.f32.mrb[0].mxu0
        %1967 = vmatprep.mubr.f32.mxu0 0.0
        %1968 = vmatmul.mubr.f32.gmra.mrb[0].mxu0 %v1780
        %v1969 = vpop.f32.mrb[0].mxu0
        %v1970 = vadd.f32 %v1734, %v1969
        %v1971 = vpop.f32.mrb[0].mxu0
        %1972 = vmatprep.mubr.f32.mxu0 0.0
        %1973 = vmatmul.mubr.f32.gmra.mrb[0].mxu0 %v1783
        %v1974 = vpop.f32.mrb[0].mxu0
        %v1975 = vadd.f32 %v1734, %v1974
        %v1976 = vpop.f32.mrb[0].mxu0
        %1977 = vmatprep.mubr.f32.mxu0 0.0
        %1978 = vmatmul.mubr.f32.gmra.mrb[0].mxu0 %v1786
        %v1979 = vpop.f32.mrb[0].mxu0
        %v1980 = vadd.f32 %v1734, %v1979
        %v1981 = vpop.f32.mrb[0].mxu0
        %1982 = vmatprep.mubr.f32.mxu0 0.0
        %1983 = vmatmul.mubr.f32.gmra.mrb[0].mxu0 %v1789
        %v1984 = vpop.f32.mrb[0].mxu0
        %v1985 = vadd.f32 %v1734, %v1984
        %v1986 = vpop.f32.mrb[0].mxu0
        %1987 = vmatprep.mubr.f32.mxu0 0.0
        %1988 = vmatmul.mubr.f32.gmra.mrb[0].mxu0 %v1792
        %v1989 = vpop.f32.mrb[0].mxu0
        %v1990 = vadd.f32 %v1734, %v1989
        %v1991 = vpop.f32.mrb[0].mxu0
        %1992 = vmatprep.mubr.f32.mxu0 0.0
        %1993 = vmatmul.mubr.f32.gmra.mrb[0].mxu0 %v1795
        %v1994 = vpop.f32.mrb[0].mxu0
        %v1995 = vadd.f32 %v1734, %v1994
        %v1996 = vpop.f32.mrb[0].mxu0
        %1997 = vmatprep.mubr.f32.mxu0 0.0
        %1998 = vmatmul.mubr.f32.gmra.mrb[0].mxu0 %v1798
        %v1999 = vpop.f32.mrb[0].mxu0
        %v2000 = vadd.f32 %v1734, %v1999
        %v2001 = vpop.f32.mrb[0].mxu0
        %2002 = vmatprep.mubr.f32.mxu0 0.0
        %2003 = vmatmul.mubr.f32.gmra.mrb[0].mxu0 %v1801
        %v2004 = vpop.f32.mrb[0].mxu0
        %v2005 = vadd.f32 %v1734, %v2004
        %v2006 = vpop.f32.mrb[0].mxu0
        %2007 = vmatprep.mubr.f32.mxu0 0.0
        %2008 = vmatmul.mubr.f32.gmra.mrb[0].mxu0 %v1804
        %v2009 = vpop.f32.mrb[0].mxu0
        %v2010 = vadd.f32 %v1734, %v2009
        %v2011 = vpop.f32.mrb[0].mxu0
        %2012 = vmatprep.mubr.f32.mxu0 0.0
        %2013 = vmatmul.mubr.f32.gmra.mrb[0].mxu0 %v1807
        %v2014 = vpop.f32.mrb[0].mxu0
        %v2015 = vadd.f32 %v1734, %v2014
        %v2016 = vpop.f32.mrb[0].mxu0
        %2017 = vmatprep.mubr.f32.mxu0 0.0
        %2018 = vmatmul.mubr.f32.gmra.mrb[0].mxu0 %v1810
        %v2019 = vpop.f32.mrb[0].mxu0
        %v2020 = vadd.f32 %v1734, %v2019
        %v2021 = vpop.f32.mrb[0].mxu0
        %2022 = vmatprep.mubr.f32.mxu0 0.0
        %2023 = vmatmul.mubr.f32.gmra.mrb[0].mxu0 %v1813
        %v2024 = vpop.f32.mrb[0].mxu0
        %v2025 = vadd.f32 %v1734, %v2024
        %v2026 = vpop.f32.mrb[0].mxu0
        %2027 = vmatprep.mubr.f32.mxu0 0.0
        %2028 = vmatmul.mubr.f32.gmra.mrb[0].mxu0 %v1816
        %v2029 = vpop.f32.mrb[0].mxu0
        %v2030 = vadd.f32 %v1734, %v2029
        %v2031 = vpop.f32.mrb[0].mxu0
        %2032 = vmatprep.mubr.f32.mxu0 0.0
        %2033 = vmatmul.mubr.f32.gmra.mrb[0].mxu0 %v1819
        %v2034 = vpop.f32.mrb[0].mxu0
        %v2035 = vadd.f32 %v1734, %v2034
        %v2036 = vpop.f32.mrb[0].mxu0
        %2037 = vmatprep.mubr.f32.mxu0 0.0
        %2038 = vmatmul.mubr.f32.gmra.mrb[0].mxu0 %v1822
        %v2039 = vpop.f32.mrb[0].mxu0
        %v2040 = vadd.f32 %v1734, %v2039
        %v2041 = vpop.f32.mrb[0].mxu0
        %2042 = vmatprep.mubr.f32.mxu0 0.0
        %2043 = vmatmul.mubr.f32.gmra.mrb[0].mxu0 %v1825
        %v2044 = vpop.f32.mrb[0].mxu0
        %v2045 = vadd.f32 %v1734, %v2044
        %v2046 = vpop.f32.mrb[0].mxu0
        %2047 = vmatprep.mubr.f32.mxu0 0.0
        %2048 = vmatmul.mubr.f32.gmra.mrb[0].mxu0 %v1828
        %v2049 = vpop.f32.mrb[0].mxu0
        %v2050 = vadd.f32 %v1734, %v2049
        %v2051 = vpop.f32.mrb[0].mxu0
        %2052 = vmatprep.mubr.f32.mxu0 0.0
        %2053 = vmatmul.mubr.f32.gmra.mrb[0].mxu0 %v1831
        %v2054 = vpop.f32.mrb[0].mxu0
        %v2055 = vadd.f32 %v1734, %v2054
        %v2056 = vpop.f32.mrb[0].mxu0
        %2057 = vdwg.mxu0
        %v2058 = vmax.f32 %v1900, 0.0
        %v2059 = vmax.f32 %v1905, 0.0
        %v2060 = vmax.f32 %v1910, 0.0
        %v2061 = vmax.f32 %v1915, 0.0
        %v2062 = vmax.f32 %v1920, 0.0
        %v2063 = vmax.f32 %v1925, 0.0
        %v2064 = vmax.f32 %v1930, 0.0
        %v2065 = vmax.f32 %v1935, 0.0
        %v2066 = vmax.f32 %v1940, 0.0
        %v2067 = vmax.f32 %v1945, 0.0
        %v2068 = vmax.f32 %v1950, 0.0
        %v2069 = vmax.f32 %v1955, 0.0
        %v2070 = vmax.f32 %v1960, 0.0
        %v2071 = vmax.f32 %v1965, 0.0
        %v2072 = vmax.f32 %v1970, 0.0
        %v2073 = vmax.f32 %v1975, 0.0
        %v2074 = vmax.f32 %v1980, 0.0
        %v2075 = vmax.f32 %v1985, 0.0
        %v2076 = vmax.f32 %v1990, 0.0
        %v2077 = vmax.f32 %v1995, 0.0
        %v2078 = vmax.f32 %v2000, 0.0
        %v2079 = vmax.f32 %v2005, 0.0
        %v2080 = vmax.f32 %v2010, 0.0
        %v2081 = vmax.f32 %v2015, 0.0
        %v2082 = vmax.f32 %v2020, 0.0
        %v2083 = vmax.f32 %v2025, 0.0
        %v2084 = vmax.f32 %v2030, 0.0
        %v2085 = vmax.f32 %v2035, 0.0
        %v2086 = vmax.f32 %v2040, 0.0
        %v2087 = vmax.f32 %v2045, 0.0
        %v2088 = vmax.f32 %v2050, 0.0
        %v2089 = vmax.f32 %v2055, 0.0
        %v2090 = vld [vmem:[%s7] sm:$0xff]
        %v2091 = vld [vmem:[%s7 + $0x8] sm:$0xff]
        %v2092 = vld [vmem:[%s7 + $0x10] sm:$0xff]
        %v2093 = vld [vmem:[%s7 + $0x18] sm:$0xff]
        %v2094 = vld [vmem:[%s7 + $0x20] sm:$0xff]
        %v2095 = vld [vmem:[%s7 + $0x28] sm:$0xff]
        %v2096 = vld [vmem:[%s7 + $0x30] sm:$0xff]
        %v2097 = vld [vmem:[%s7 + $0x38] sm:$0xff]
        %v2098 = vld [vmem:[%s8] sm:$0x1]
        %v2100 = vlaneseq
        %v2101 = vshrl.u32 %v2100, 7
        %v2102 = vsub.s32 0, %v2101
        %v2103 = vrot.slane %v2098, %v2102
        %v2106 = vsel %vm1736, %v2058, 0
        %v2109 = vsel %vm1736, %v2059, 0
        %v2112 = vsel %vm1736, %v2060, 0
        %v2115 = vsel %vm1736, %v2061, 0
        %v2118 = vsel %vm1736, %v2062, 0
        %v2121 = vsel %vm1736, %v2063, 0
        %v2124 = vsel %vm1736, %v2064, 0
        %v2127 = vsel %vm1736, %v2065, 0
        %v2130 = vsel %vm1736, %v2066, 0
        %v2133 = vsel %vm1736, %v2067, 0
        %v2136 = vsel %vm1736, %v2068, 0
        %v2139 = vsel %vm1736, %v2069, 0
        %v2142 = vsel %vm1736, %v2070, 0
        %v2145 = vsel %vm1736, %v2071, 0
        %v2148 = vsel %vm1736, %v2072, 0
        %v2151 = vsel %vm1736, %v2073, 0
        %v2154 = vsel %vm1736, %v2074, 0
        %v2157 = vsel %vm1736, %v2075, 0
        %v2160 = vsel %vm1736, %v2076, 0
        %v2163 = vsel %vm1736, %v2077, 0
        %v2166 = vsel %vm1736, %v2078, 0
        %v2169 = vsel %vm1736, %v2079, 0
        %v2172 = vsel %vm1736, %v2080, 0
        %v2175 = vsel %vm1736, %v2081, 0
        %v2178 = vsel %vm1736, %v2082, 0
        %v2181 = vsel %vm1736, %v2083, 0
        %v2184 = vsel %vm1736, %v2084, 0
        %v2187 = vsel %vm1736, %v2085, 0
        %v2190 = vsel %vm1736, %v2086, 0
        %v2193 = vsel %vm1736, %v2087, 0
        %v2196 = vsel %vm1736, %v2088, 0
        %v2199 = vsel %vm1736, %v2089, 0
        %2201 = vmatprep.subr.mxu0 0.0
        %2202 = vmatpush1.msra.mxu0 %v2090
        %2203 = vmatprep.subr.mxu0 0.0
        %2204 = vmatpush1.msra.mxu0 %v2091
        %2205 = vmatprep.subr.mxu0 0.0
        %2206 = vmatpush1.msra.mxu0 %v2092
        %2207 = vmatprep.subr.mxu0 0.0
        %2208 = vmatpush1.msra.mxu0 %v2093
        %2209 = vmatprep.subr.mxu0 0.0
        %2210 = vmatpush1.msra.mxu0 %v2094
        %2211 = vmatprep.subr.mxu0 0.0
        %2212 = vmatpush1.msra.mxu0 %v2095
        %2213 = vmatprep.subr.mxu0 0.0
        %2214 = vmatpush1.msra.mxu0 %v2096
        %2215 = vmatprep.subr.mxu0 0.0
        %2216 = vmatpush1.msra.mxu0 %v2097
        %2217 = vmatprep.subr.mxu0 0.0
        %2218 = vmatpush1.msra.mxu0 0.0
        %2219 = vmatprep.subr.mxu0 0.0
        %2220 = vmatpush1.msra.mxu0 0.0
        %2221 = vmatprep.subr.mxu0 0.0
        %2222 = vmatpush1.msra.mxu0 0.0
        %2223 = vmatprep.subr.mxu0 0.0
        %2224 = vmatpush1.msra.mxu0 0.0
        %2225 = vmatprep.subr.mxu0 0.0
        %2226 = vmatpush1.msra.mxu0 0.0
        %2227 = vmatprep.subr.mxu0 0.0
        %2228 = vmatpush1.msra.mxu0 0.0
        %2229 = vmatprep.subr.mxu0 0.0
        %2230 = vmatpush1.msra.mxu0 0.0
        %2231 = vmatprep.subr.mxu0 0.0
        %2232 = vmatpush1.msra.mxu0 0.0
        %2233 = vmatprep.subr.mxu0 0.0
        %2234 = vmatpush1.msra.mxu0 0.0
        %2235 = vmatprep.subr.mxu0 0.0
        %2236 = vmatpush1.msra.mxu0 0.0
        %2237 = vmatprep.subr.mxu0 0.0
        %2238 = vmatpush1.msra.mxu0 0.0
        %2239 = vmatprep.subr.mxu0 0.0
        %2240 = vmatpush1.msra.mxu0 0.0
        %2241 = vmatprep.subr.mxu0 0.0
        %2242 = vmatpush1.msra.mxu0 0.0
        %2243 = vmatprep.subr.mxu0 0.0
        %2244 = vmatpush1.msra.mxu0 0.0
        %2245 = vmatprep.subr.mxu0 0.0
        %2246 = vmatpush1.msra.mxu0 0.0
        %2247 = vmatprep.subr.mxu0 0.0
        %2248 = vmatpush1.msra.mxu0 0.0
        %2249 = vmatprep.subr.mxu0 0.0
        %2250 = vmatpush1.msra.mxu0 0.0
        %2251 = vmatprep.subr.mxu0 0.0
        %2252 = vmatpush1.msra.mxu0 0.0
        %2253 = vmatprep.subr.mxu0 0.0
        %2254 = vmatpush1.msra.mxu0 0.0
        %2255 = vmatprep.subr.mxu0 0.0
        %2256 = vmatpush1.msra.mxu0 0.0
        %2257 = vmatprep.subr.mxu0 0.0
        %2258 = vmatpush1.msra.mxu0 0.0
        %2259 = vmatprep.subr.mxu0 0.0
        %2260 = vmatpush1.msra.mxu0 0.0
        %2261 = vmatprep.subr.mxu0 0.0
        %2262 = vmatpush1.msra.mxu0 0.0
        %2263 = vmatprep.subr.mxu0 0.0
        %2264 = vmatpush1.msra.mxu0 0.0
        %2265 = vmatprep.mubr.f32.mxu0 0.0
        %2266 = vmatmul.mubr.f32.gmra.mrb[0].mxu0 %v2106
        %v2267 = vpop.f32.mrb[0].mxu0
        %v2268 = vadd.f32 %v2103, %v2267
        %v2269 = vpop.f32.mrb[0].mxu0
        %2270 = vmatprep.mubr.f32.mxu0 0.0
        %2271 = vmatmul.mubr.f32.gmra.mrb[0].mxu0 %v2109
        %v2272 = vpop.f32.mrb[0].mxu0
        %v2273 = vadd.f32 %v2103, %v2272
        %v2274 = vpop.f32.mrb[0].mxu0
        %2275 = vmatprep.mubr.f32.mxu0 0.0
        %2276 = vmatmul.mubr.f32.gmra.mrb[0].mxu0 %v2112
        %v2277 = vpop.f32.mrb[0].mxu0
        %v2278 = vadd.f32 %v2103, %v2277
        %v2279 = vpop.f32.mrb[0].mxu0
        %2280 = vmatprep.mubr.f32.mxu0 0.0
        %2281 = vmatmul.mubr.f32.gmra.mrb[0].mxu0 %v2115
        %v2282 = vpop.f32.mrb[0].mxu0
        %v2283 = vadd.f32 %v2103, %v2282
        %v2284 = vpop.f32.mrb[0].mxu0
        %2285 = vmatprep.mubr.f32.mxu0 0.0
        %2286 = vmatmul.mubr.f32.gmra.mrb[0].mxu0 %v2118
        %v2287 = vpop.f32.mrb[0].mxu0
        %v2288 = vadd.f32 %v2103, %v2287
        %v2289 = vpop.f32.mrb[0].mxu0
        %2290 = vmatprep.mubr.f32.mxu0 0.0
        %2291 = vmatmul.mubr.f32.gmra.mrb[0].mxu0 %v2121
        %v2292 = vpop.f32.mrb[0].mxu0
        %v2293 = vadd.f32 %v2103, %v2292
        %v2294 = vpop.f32.mrb[0].mxu0
        %2295 = vmatprep.mubr.f32.mxu0 0.0
        %2296 = vmatmul.mubr.f32.gmra.mrb[0].mxu0 %v2124
        %v2297 = vpop.f32.mrb[0].mxu0
        %v2298 = vadd.f32 %v2103, %v2297
        %v2299 = vpop.f32.mrb[0].mxu0
        %2300 = vmatprep.mubr.f32.mxu0 0.0
        %2301 = vmatmul.mubr.f32.gmra.mrb[0].mxu0 %v2127
        %v2302 = vpop.f32.mrb[0].mxu0
        %v2303 = vadd.f32 %v2103, %v2302
        %v2304 = vpop.f32.mrb[0].mxu0
        %2305 = vmatprep.mubr.f32.mxu0 0.0
        %2306 = vmatmul.mubr.f32.gmra.mrb[0].mxu0 %v2130
        %v2307 = vpop.f32.mrb[0].mxu0
        %v2308 = vadd.f32 %v2103, %v2307
        %v2309 = vpop.f32.mrb[0].mxu0
        %2310 = vmatprep.mubr.f32.mxu0 0.0
        %2311 = vmatmul.mubr.f32.gmra.mrb[0].mxu0 %v2133
        %v2312 = vpop.f32.mrb[0].mxu0
        %v2313 = vadd.f32 %v2103, %v2312
        %v2314 = vpop.f32.mrb[0].mxu0
        %2315 = vmatprep.mubr.f32.mxu0 0.0
        %2316 = vmatmul.mubr.f32.gmra.mrb[0].mxu0 %v2136
        %v2317 = vpop.f32.mrb[0].mxu0
        %v2318 = vadd.f32 %v2103, %v2317
        %v2319 = vpop.f32.mrb[0].mxu0
        %2320 = vmatprep.mubr.f32.mxu0 0.0
        %2321 = vmatmul.mubr.f32.gmra.mrb[0].mxu0 %v2139
        %v2322 = vpop.f32.mrb[0].mxu0
        %v2323 = vadd.f32 %v2103, %v2322
        %v2324 = vpop.f32.mrb[0].mxu0
        %2325 = vmatprep.mubr.f32.mxu0 0.0
        %2326 = vmatmul.mubr.f32.gmra.mrb[0].mxu0 %v2142
        %v2327 = vpop.f32.mrb[0].mxu0
        %v2328 = vadd.f32 %v2103, %v2327
        %v2329 = vpop.f32.mrb[0].mxu0
        %2330 = vmatprep.mubr.f32.mxu0 0.0
        %2331 = vmatmul.mubr.f32.gmra.mrb[0].mxu0 %v2145
        %v2332 = vpop.f32.mrb[0].mxu0
        %v2333 = vadd.f32 %v2103, %v2332
        %v2334 = vpop.f32.mrb[0].mxu0
        %2335 = vmatprep.mubr.f32.mxu0 0.0
        %2336 = vmatmul.mubr.f32.gmra.mrb[0].mxu0 %v2148
        %v2337 = vpop.f32.mrb[0].mxu0
        %v2338 = vadd.f32 %v2103, %v2337
        %v2339 = vpop.f32.mrb[0].mxu0
        %2340 = vmatprep.mubr.f32.mxu0 0.0
        %2341 = vmatmul.mubr.f32.gmra.mrb[0].mxu0 %v2151
        %v2342 = vpop.f32.mrb[0].mxu0
        %v2343 = vadd.f32 %v2103, %v2342
        %v2344 = vpop.f32.mrb[0].mxu0
        %2345 = vmatprep.mubr.f32.mxu0 0.0
        %2346 = vmatmul.mubr.f32.gmra.mrb[0].mxu0 %v2154
        %v2347 = vpop.f32.mrb[0].mxu0
        %v2348 = vadd.f32 %v2103, %v2347
        %v2349 = vpop.f32.mrb[0].mxu0
        %2350 = vmatprep.mubr.f32.mxu0 0.0
        %2351 = vmatmul.mubr.f32.gmra.mrb[0].mxu0 %v2157
        %v2352 = vpop.f32.mrb[0].mxu0
        %v2353 = vadd.f32 %v2103, %v2352
        %v2354 = vpop.f32.mrb[0].mxu0
        %2355 = vmatprep.mubr.f32.mxu0 0.0
        %2356 = vmatmul.mubr.f32.gmra.mrb[0].mxu0 %v2160
        %v2357 = vpop.f32.mrb[0].mxu0
        %v2358 = vadd.f32 %v2103, %v2357
        %v2359 = vpop.f32.mrb[0].mxu0
        %2360 = vmatprep.mubr.f32.mxu0 0.0
        %2361 = vmatmul.mubr.f32.gmra.mrb[0].mxu0 %v2163
        %v2362 = vpop.f32.mrb[0].mxu0
        %v2363 = vadd.f32 %v2103, %v2362
        %v2364 = vpop.f32.mrb[0].mxu0
        %2365 = vmatprep.mubr.f32.mxu0 0.0
        %2366 = vmatmul.mubr.f32.gmra.mrb[0].mxu0 %v2166
        %v2367 = vpop.f32.mrb[0].mxu0
        %v2368 = vadd.f32 %v2103, %v2367
        %v2369 = vpop.f32.mrb[0].mxu0
        %2370 = vmatprep.mubr.f32.mxu0 0.0
        %2371 = vmatmul.mubr.f32.gmra.mrb[0].mxu0 %v2169
        %v2372 = vpop.f32.mrb[0].mxu0
        %v2373 = vadd.f32 %v2103, %v2372
        %v2374 = vpop.f32.mrb[0].mxu0
        %2375 = vmatprep.mubr.f32.mxu0 0.0
        %2376 = vmatmul.mubr.f32.gmra.mrb[0].mxu0 %v2172
        %v2377 = vpop.f32.mrb[0].mxu0
        %v2378 = vadd.f32 %v2103, %v2377
        %v2379 = vpop.f32.mrb[0].mxu0
        %2380 = vmatprep.mubr.f32.mxu0 0.0
        %2381 = vmatmul.mubr.f32.gmra.mrb[0].mxu0 %v2175
        %v2382 = vpop.f32.mrb[0].mxu0
        %v2383 = vadd.f32 %v2103, %v2382
        %v2384 = vpop.f32.mrb[0].mxu0
        %2385 = vmatprep.mubr.f32.mxu0 0.0
        %2386 = vmatmul.mubr.f32.gmra.mrb[0].mxu0 %v2178
        %v2387 = vpop.f32.mrb[0].mxu0
        %v2388 = vadd.f32 %v2103, %v2387
        %v2389 = vpop.f32.mrb[0].mxu0
        %2390 = vmatprep.mubr.f32.mxu0 0.0
        %2391 = vmatmul.mubr.f32.gmra.mrb[0].mxu0 %v2181
        %v2392 = vpop.f32.mrb[0].mxu0
        %v2393 = vadd.f32 %v2103, %v2392
        %v2394 = vpop.f32.mrb[0].mxu0
        %2395 = vmatprep.mubr.f32.mxu0 0.0
        %2396 = vmatmul.mubr.f32.gmra.mrb[0].mxu0 %v2184
        %v2397 = vpop.f32.mrb[0].mxu0
        %v2398 = vadd.f32 %v2103, %v2397
        %v2399 = vpop.f32.mrb[0].mxu0
        %2400 = vmatprep.mubr.f32.mxu0 0.0
        %2401 = vmatmul.mubr.f32.gmra.mrb[0].mxu0 %v2187
        %v2402 = vpop.f32.mrb[0].mxu0
        %v2403 = vadd.f32 %v2103, %v2402
        %v2404 = vpop.f32.mrb[0].mxu0
        %2405 = vmatprep.mubr.f32.mxu0 0.0
        %2406 = vmatmul.mubr.f32.gmra.mrb[0].mxu0 %v2190
        %v2407 = vpop.f32.mrb[0].mxu0
        %v2408 = vadd.f32 %v2103, %v2407
        %v2409 = vpop.f32.mrb[0].mxu0
        %2410 = vmatprep.mubr.f32.mxu0 0.0
        %2411 = vmatmul.mubr.f32.gmra.mrb[0].mxu0 %v2193
        %v2412 = vpop.f32.mrb[0].mxu0
        %v2413 = vadd.f32 %v2103, %v2412
        %v2414 = vpop.f32.mrb[0].mxu0
        %2415 = vmatprep.mubr.f32.mxu0 0.0
        %2416 = vmatmul.mubr.f32.gmra.mrb[0].mxu0 %v2196
        %v2417 = vpop.f32.mrb[0].mxu0
        %v2418 = vadd.f32 %v2103, %v2417
        %v2419 = vpop.f32.mrb[0].mxu0
        %2420 = vmatprep.mubr.f32.mxu0 0.0
        %2421 = vmatmul.mubr.f32.gmra.mrb[0].mxu0 %v2199
        %v2422 = vpop.f32.mrb[0].mxu0
        %v2423 = vadd.f32 %v2103, %v2422
        %v2424 = vpop.f32.mrb[0].mxu0
        %2425 = vdwg.mxu0
        %v2426 = vmax.f32 %v2268, 0.0
        %v2427 = vmax.f32 %v2273, 0.0
        %v2428 = vmax.f32 %v2278, 0.0
        %v2429 = vmax.f32 %v2283, 0.0
        %v2430 = vmax.f32 %v2288, 0.0
        %v2431 = vmax.f32 %v2293, 0.0
        %v2432 = vmax.f32 %v2298, 0.0
        %v2433 = vmax.f32 %v2303, 0.0
        %v2434 = vmax.f32 %v2308, 0.0
        %v2435 = vmax.f32 %v2313, 0.0
        %v2436 = vmax.f32 %v2318, 0.0
        %v2437 = vmax.f32 %v2323, 0.0
        %v2438 = vmax.f32 %v2328, 0.0
        %v2439 = vmax.f32 %v2333, 0.0
        %v2440 = vmax.f32 %v2338, 0.0
        %v2441 = vmax.f32 %v2343, 0.0
        %v2442 = vmax.f32 %v2348, 0.0
        %v2443 = vmax.f32 %v2353, 0.0
        %v2444 = vmax.f32 %v2358, 0.0
        %v2445 = vmax.f32 %v2363, 0.0
        %v2446 = vmax.f32 %v2368, 0.0
        %v2447 = vmax.f32 %v2373, 0.0
        %v2448 = vmax.f32 %v2378, 0.0
        %v2449 = vmax.f32 %v2383, 0.0
        %v2450 = vmax.f32 %v2388, 0.0
        %v2451 = vmax.f32 %v2393, 0.0
        %v2452 = vmax.f32 %v2398, 0.0
        %v2453 = vmax.f32 %v2403, 0.0
        %v2454 = vmax.f32 %v2408, 0.0
        %v2455 = vmax.f32 %v2413, 0.0
        %v2456 = vmax.f32 %v2418, 0.0
        %v2457 = vmax.f32 %v2423, 0.0
        %v2458 = vmax.f32 %v2426, %v2428
        %v2459 = vmax.f32 %v2427, %v2429
        %v2460 = vmax.f32 %v2458, %v2430
        %v2461 = vmax.f32 %v2459, %v2431
        %v2462 = vmax.f32 %v2460, %v2432
        %v2463 = vmax.f32 %v2461, %v2433
        %v2464 = vmax.f32 %v2462, %v2434
        %v2465 = vmax.f32 %v2463, %v2435
        %v2466 = vmax.f32 %v2464, %v2436
        %v2467 = vmax.f32 %v2465, %v2437
        %v2468 = vmax.f32 %v2466, %v2438
        %v2469 = vmax.f32 %v2467, %v2439
        %v2470 = vmax.f32 %v2468, %v2440
        %v2471 = vmax.f32 %v2469, %v2441
        %v2472 = vmax.f32 %v2470, %v2471
        %v2473 = vrot.slane %v2472, 4
        %v2474 = vmax.f32 %v2472, %v2473
        %v2475 = vrot.slane %v2474, 2
        %v2476 = vmax.f32 %v2474, %v2475
        %v2477 = vrot.slane %v2476, 1
        %v2478 = vmax.f32 %v2476, %v2477
        %v2479 = vmax.f32 %v2442, %v2444
        %v2480 = vmax.f32 %v2443, %v2445
        %v2481 = vmax.f32 %v2479, %v2446
        %v2482 = vmax.f32 %v2480, %v2447
        %v2483 = vmax.f32 %v2481, %v2448
        %v2484 = vmax.f32 %v2482, %v2449
        %v2485 = vmax.f32 %v2483, %v2450
        %v2486 = vmax.f32 %v2484, %v2451
        %v2487 = vmax.f32 %v2485, %v2452
        %v2488 = vmax.f32 %v2486, %v2453
        %v2489 = vmax.f32 %v2487, %v2454
        %v2490 = vmax.f32 %v2488, %v2455
        %v2491 = vmax.f32 %v2489, %v2456
        %v2492 = vmax.f32 %v2490, %v2457
        %v2493 = vmax.f32 %v2491, %v2492
        %v2494 = vrot.slane %v2493, 4
        %v2495 = vmax.f32 %v2493, %v2494
        %v2496 = vrot.slane %v2495, 2
        %v2497 = vmax.f32 %v2495, %v2496
        %v2498 = vrot.slane %v2497, 1
        %v2499 = vmax.f32 %v2497, %v2498
        %v2500 = vld [vmem:[%s9] sm:$0xff]
        %v2501 = vld [vmem:[%s9 + $0x8] sm:$0xff]
        %v2502 = vld [vmem:[%s9 + $0x10] sm:$0xff]
        %v2503 = vld [vmem:[%s9 + $0x18] sm:$0xff]
        %v2504 = vld [vmem:[%s9 + $0x20] sm:$0xff]
        %v2505 = vld [vmem:[%s9 + $0x28] sm:$0xff]
        %v2506 = vld [vmem:[%s9 + $0x30] sm:$0xff]
        %v2507 = vld [vmem:[%s9 + $0x38] sm:$0xff]
        %v2508 = vld [vmem:[%s9 + $0x40] sm:$0xff]
        %v2509 = vld [vmem:[%s9 + $0x48] sm:$0xff]
        %v2510 = vld [vmem:[%s9 + $0x50] sm:$0xff]
        %v2511 = vld [vmem:[%s9 + $0x58] sm:$0xff]
        %v2512 = vld [vmem:[%s9 + $0x60] sm:$0xff]
        %v2513 = vld [vmem:[%s9 + $0x68] sm:$0xff]
        %v2514 = vld [vmem:[%s9 + $0x70] sm:$0xff]
        %v2515 = vld [vmem:[%s9 + $0x78] sm:$0xff]
        %v2516 = vld [vmem:[%s10] sm:$0x1]
        %v2518 = vlaneseq
        %v2519 = vshrl.u32 %v2518, 7
        %v2520 = vsub.s32 0, %v2519
        %v2521 = vrot.slane %v2516, %v2520
        %vm2525 = vcmask 1041409
        %v2526 = vsel %vm2525, %v2499, %v2478
        %2528 = vmatprep.subr.mxu0 0.0
        %2529 = vmatpush1.msra.mxu0 %v2500
        %2530 = vmatprep.subr.mxu0 0.0
        %2531 = vmatpush1.msra.mxu0 %v2501
        %2532 = vmatprep.subr.mxu0 0.0
        %2533 = vmatpush1.msra.mxu0 %v2502
        %2534 = vmatprep.subr.mxu0 0.0
        %2535 = vmatpush1.msra.mxu0 %v2503
        %2536 = vmatprep.subr.mxu0 0.0
        %2537 = vmatpush1.msra.mxu0 %v2504
        %2538 = vmatprep.subr.mxu0 0.0
        %2539 = vmatpush1.msra.mxu0 %v2505
        %2540 = vmatprep.subr.mxu0 0.0
        %2541 = vmatpush1.msra.mxu0 %v2506
        %2542 = vmatprep.subr.mxu0 0.0
        %2543 = vmatpush1.msra.mxu0 %v2507
        %2544 = vmatprep.subr.mxu0 0.0
        %2545 = vmatpush1.msra.mxu0 %v2508
        %2546 = vmatprep.subr.mxu0 0.0
        %2547 = vmatpush1.msra.mxu0 %v2509
        %2548 = vmatprep.subr.mxu0 0.0
        %2549 = vmatpush1.msra.mxu0 %v2510
        %2550 = vmatprep.subr.mxu0 0.0
        %2551 = vmatpush1.msra.mxu0 %v2511
        %2552 = vmatprep.subr.mxu0 0.0
        %2553 = vmatpush1.msra.mxu0 %v2512
        %2554 = vmatprep.subr.mxu0 0.0
        %2555 = vmatpush1.msra.mxu0 %v2513
        %2556 = vmatprep.subr.mxu0 0.0
        %2557 = vmatpush1.msra.mxu0 %v2514
        %2558 = vmatprep.subr.mxu0 0.0
        %2559 = vmatpush1.msra.mxu0 %v2515
        %2560 = vmatprep.subr.mxu0 0.0
        %2561 = vmatpush1.msra.mxu0 0.0
        %2562 = vmatprep.subr.mxu0 0.0
        %2563 = vmatpush1.msra.mxu0 0.0
        %2564 = vmatprep.subr.mxu0 0.0
        %2565 = vmatpush1.msra.mxu0 0.0
        %2566 = vmatprep.subr.mxu0 0.0
        %2567 = vmatpush1.msra.mxu0 0.0
        %2568 = vmatprep.subr.mxu0 0.0
        %2569 = vmatpush1.msra.mxu0 0.0
        %2570 = vmatprep.subr.mxu0 0.0
        %2571 = vmatpush1.msra.mxu0 0.0
        %2572 = vmatprep.subr.mxu0 0.0
        %2573 = vmatpush1.msra.mxu0 0.0
        %2574 = vmatprep.subr.mxu0 0.0
        %2575 = vmatpush1.msra.mxu0 0.0
        %2576 = vmatprep.subr.mxu0 0.0
        %2577 = vmatpush1.msra.mxu0 0.0
        %2578 = vmatprep.subr.mxu0 0.0
        %2579 = vmatpush1.msra.mxu0 0.0
        %2580 = vmatprep.subr.mxu0 0.0
        %2581 = vmatpush1.msra.mxu0 0.0
        %2582 = vmatprep.subr.mxu0 0.0
        %2583 = vmatpush1.msra.mxu0 0.0
        %2584 = vmatprep.subr.mxu0 0.0
        %2585 = vmatpush1.msra.mxu0 0.0
        %2586 = vmatprep.subr.mxu0 0.0
        %2587 = vmatpush1.msra.mxu0 0.0
        %2588 = vmatprep.subr.mxu0 0.0
        %2589 = vmatpush1.msra.mxu0 0.0
        %2590 = vmatprep.subr.mxu0 0.0
        %2591 = vmatpush1.msra.mxu0 0.0
        %2592 = vmatprep.mubr.f32.mxu0 0.0
        %2593 = vmatmul.mubr.f32.gmra.mrb[0].mxu0 %v2526
        %v2594 = vpop.f32.mrb[0].mxu0
        %v2595 = vadd.f32 %v2521, %v2594
        %v2596 = vpop.f32.mrb[0].mxu0
        %2597 = vdwg.mxu0
        %v2598 = vmax.f32 %v2595, 0.0
        %v2599 = vld [vmem:[%s11] sm:$0xff]
        %v2600 = vld [vmem:[%s11 + $0x8] sm:$0xff]
        %v2601 = vld [vmem:[%s11 + $0x10] sm:$0xff]
        %v2602 = vld [vmem:[%s11 + $0x18] sm:$0xff]
        %v2603 = vld [vmem:[%s11 + $0x20] sm:$0xff]
        %v2604 = vld [vmem:[%s11 + $0x28] sm:$0xff]
        %v2605 = vld [vmem:[%s11 + $0x30] sm:$0xff]
        %v2606 = vld [vmem:[%s11 + $0x38] sm:$0xff]
        %v2607 = vld [vmem:[%s12] sm:$0x1]
        %v2609 = vlaneseq
        %v2610 = vshrl.u32 %v2609, 7
        %v2611 = vsub.s32 0, %v2610
        %v2612 = vrot.slane %v2607, %v2611
        %v2615 = vsel %vm1736, %v2598, 0
        %2617 = vmatprep.subr.mxu0 0.0
        %2618 = vmatpush1.msra.mxu0 %v2599
        %2619 = vmatprep.subr.mxu0 0.0
        %2620 = vmatpush1.msra.mxu0 %v2600
        %2621 = vmatprep.subr.mxu0 0.0
        %2622 = vmatpush1.msra.mxu0 %v2601
        %2623 = vmatprep.subr.mxu0 0.0
        %2624 = vmatpush1.msra.mxu0 %v2602
        %2625 = vmatprep.subr.mxu0 0.0
        %2626 = vmatpush1.msra.mxu0 %v2603
        %2627 = vmatprep.subr.mxu0 0.0
        %2628 = vmatpush1.msra.mxu0 %v2604
        %2629 = vmatprep.subr.mxu0 0.0
        %2630 = vmatpush1.msra.mxu0 %v2605
        %2631 = vmatprep.subr.mxu0 0.0
        %2632 = vmatpush1.msra.mxu0 %v2606
        %2633 = vmatprep.subr.mxu0 0.0
        %2634 = vmatpush1.msra.mxu0 0.0
        %2635 = vmatprep.subr.mxu0 0.0
        %2636 = vmatpush1.msra.mxu0 0.0
        %2637 = vmatprep.subr.mxu0 0.0
        %2638 = vmatpush1.msra.mxu0 0.0
        %2639 = vmatprep.subr.mxu0 0.0
        %2640 = vmatpush1.msra.mxu0 0.0
        %2641 = vmatprep.subr.mxu0 0.0
        %2642 = vmatpush1.msra.mxu0 0.0
        %2643 = vmatprep.subr.mxu0 0.0
        %2644 = vmatpush1.msra.mxu0 0.0
        %2645 = vmatprep.subr.mxu0 0.0
        %2646 = vmatpush1.msra.mxu0 0.0
        %2647 = vmatprep.subr.mxu0 0.0
        %2648 = vmatpush1.msra.mxu0 0.0
        %2649 = vmatprep.subr.mxu0 0.0
        %2650 = vmatpush1.msra.mxu0 0.0
        %2651 = vmatprep.subr.mxu0 0.0
        %2652 = vmatpush1.msra.mxu0 0.0
        %2653 = vmatprep.subr.mxu0 0.0
        %2654 = vmatpush1.msra.mxu0 0.0
        %2655 = vmatprep.subr.mxu0 0.0
        %2656 = vmatpush1.msra.mxu0 0.0
        %2657 = vmatprep.subr.mxu0 0.0
        %2658 = vmatpush1.msra.mxu0 0.0
        %2659 = vmatprep.subr.mxu0 0.0
        %2660 = vmatpush1.msra.mxu0 0.0
        %2661 = vmatprep.subr.mxu0 0.0
        %2662 = vmatpush1.msra.mxu0 0.0
        %2663 = vmatprep.subr.mxu0 0.0
        %2664 = vmatpush1.msra.mxu0 0.0
        %2665 = vmatprep.subr.mxu0 0.0
        %2666 = vmatpush1.msra.mxu0 0.0
        %2667 = vmatprep.subr.mxu0 0.0
        %2668 = vmatpush1.msra.mxu0 0.0
        %2669 = vmatprep.subr.mxu0 0.0
        %2670 = vmatpush1.msra.mxu0 0.0
        %2671 = vmatprep.subr.mxu0 0.0
        %2672 = vmatpush1.msra.mxu0 0.0
        %2673 = vmatprep.subr.mxu0 0.0
        %2674 = vmatpush1.msra.mxu0 0.0
        %2675 = vmatprep.subr.mxu0 0.0
        %2676 = vmatpush1.msra.mxu0 0.0
        %2677 = vmatprep.subr.mxu0 0.0
        %2678 = vmatpush1.msra.mxu0 0.0
        %2679 = vmatprep.subr.mxu0 0.0
        %2680 = vmatpush1.msra.mxu0 0.0
        %2681 = vmatprep.mubr.f32.mxu0 0.0
        %2682 = vmatmul.mubr.f32.gmra.mrb[0].mxu0 %v2615
        %v2683 = vpop.f32.mrb[0].mxu0
        %v2684 = vadd.f32 %v2612, %v2683
        %v2685 = vpop.f32.mrb[0].mxu0
        %2686 = vdwg.mxu0
        %vm2687 = vcmask 320512
        %2688 = vst.msk [vmem:[%s503] sm:$0x3] %vm2687, %v2684
        %2689 = vst [vmem:[%s510] sm:$0x3] %v2526
        %s2690 = sand.u32 %s328, 1
        %s2691 = scalar_lea.sflag [#allocation3], %s2690
        %s2692 = sand.u32 %s328, 1
        %s2693 = smul.addr %s2692, 2
        %s2694 = scalar_lea.vmem [#allocation2], %s2693
        %s2695 = sand.u32 %s354, 1
        %s2696 = scalar_lea.sflag [#allocation5], %s2695
        %s2697 = sand.u32 %s354, 1
        %s2698 = smul.addr %s2697, 2
        %s2699 = scalar_lea.vmem [#allocation4], %s2698
        // Predicated region
        $region73: #{if_defense_forward.3} parent=71 // pred_check
          %p2700 = pneg %p338
        $region74: #{if_defense_forward.3} parent=71 // pred_check_branch
          %2702 = sbr.rel (%p2700) target = $region76
        $region75: #{if_defense_forward.3} parent=71 // pred_region
          %s2704 = ssub.s32 32, 32
          %2705 = vsyncadd %s2691, %s2704
          %s2706 = smul.addr %s32, 32
          %s2707 = scalar_lea.hbm %s13, %s2706
          %s2709 = sshll.u32 %s2694, 4
          %s2710 = int_to_ptr.vmem [resolvable:$true] %s2709
          %2712 = dma.vmem_to_hbm [thread:$0]  %s2710, 32, %s2707, %s2691
        $region76: #{if_defense_forward.3} parent=71 // pred_fallthru
          _
        // Predicated region
        $region77: #{if_defense_forward.3} parent=71 // pred_check
          %p2713 = pneg %p364
        $region78: #{if_defense_forward.3} parent=71 // pred_check_branch
          %2715 = sbr.rel (%p2713) target = $region80
        $region79: #{if_defense_forward.3} parent=71 // pred_region
          %s2717 = ssub.s32 32, 32
          %2718 = vsyncadd %s2696, %s2717
          %s2719 = smul.addr %s32, 32
          %s2720 = scalar_lea.hbm %s14, %s2719
          %s2722 = sshll.u32 %s2699, 4
          %s2723 = int_to_ptr.vmem [resolvable:$true] %s2722
          %2725 = dma.vmem_to_hbm [thread:$0]  %s2723, 32, %s2720, %s2696
        $region80: #{if_defense_forward.3} parent=71 // pred_fallthru
          _
      $region72: #{if_defense_forward.3} parent=5 // pred_fallthru
        _
      %p2726 = scmp.le.s32.totalorder 2, %s27
      // Predicated region
      $region81: #{if_defense_forward.3} parent=5 // pred_check
        %p2727 = pneg %p2726
      $region82: #{if_defense_forward.3} parent=5 // pred_check_branch
        %2729 = sbr.rel (%p2727) target = $region84
      $region83: #{if_defense_forward.3} parent=5 // pred_region
        %s2730 = ssub.s32 %s27, 2
        // Predicated region
        $region85: #{if_defense_forward.3} parent=83 // pred_check
          %p2731 = pneg %p344
        $region86: #{if_defense_forward.3} parent=83 // pred_check_branch
          %2733 = sbr.rel (%p2731) target = $region88
        $region87: #{if_defense_forward.3} parent=83 // pred_region
          %s2734 = sand.u32 %s329, 1
          %s2735 = scalar_lea.sflag [#allocation3], %s2734
          %s2736 = sand.u32 %s329, 1
          %s2737 = smul.addr %s2736, 2
          %s2738 = scalar_lea.vmem [#allocation2], %s2737
          %2739 = dma.done %s2735, 32
        $region88: #{if_defense_forward.3} parent=83 // pred_fallthru
          _
        // Predicated region
        $region89: #{if_defense_forward.3} parent=83 // pred_check
          %p2740 = pneg %p370
        $region90: #{if_defense_forward.3} parent=83 // pred_check_branch
          %2742 = sbr.rel (%p2740) target = $region92
        $region91: #{if_defense_forward.3} parent=83 // pred_region
          %s2743 = sand.u32 %s355, 1
          %s2744 = scalar_lea.sflag [#allocation5], %s2743
          %s2745 = sand.u32 %s355, 1
          %s2746 = smul.addr %s2745, 2
          %s2747 = scalar_lea.vmem [#allocation4], %s2746
          %2748 = dma.done %s2744, 32
        $region92: #{if_defense_forward.3} parent=83 // pred_fallthru
          _
      $region84: #{if_defense_forward.3} parent=5 // pred_fallthru
        _
    $region6: #{if_defense_forward.3} parent=1 // loop_footer
      %s31 = sadd.s32 1, %s27
    $region7: #{if_defense_forward.3} parent=1 // loop_footer_branch
      %26 = sbr.rel target = $region3
    $region8: #{if_defense_forward.3} parent=1 // loop_exit
      _
    %2749 = vsyncpa [#allocation3], 1
    %s2750 = scalar_lea.sflag [#allocation3], 1
    %2751 = vsyncpa %s2750, 1
    %2752 = vsyncpa [#allocation5], 1
    %s2753 = scalar_lea.sflag [#allocation5], 1
    %2754 = vsyncpa %s2753, 1

</llo_original>
